<compile_context>
chip_gen: v7x
topology: tpu7x:2x2x1
jax: 0.10.0
libtpu: 0.0.40
codegen_flags: <defaults>
</compile_context>

<pallas_src>
import jax
import jax.numpy as jnp
from jax.experimental import pallas as pl
from jax.experimental.pallas import tpu as pltpu

EPS = 1e-5
IN_RAW = 784        # 28*28
IN_PAD = 896        # 7 * 128, lane-aligned contraction dim for fc1
OUT_PAD = 128       # lane-dense padded logits width (real logits are [:, :10])


def _sign_pm1(t, dtype):
    # deterministic sign binarization, sign(0) -> +1
    return jnp.where(t >= 0.0, 1.0, -1.0).astype(dtype)


def _bn_fused(h, gamma, beta):
    # training-mode BatchNorm1d folded into one scale/shift
    mean = jnp.mean(h, axis=0, keepdims=True)
    var = jnp.mean(jnp.square(h - mean), axis=0, keepdims=True)
    scale = gamma * jax.lax.rsqrt(var + EPS)     # rsqrt -> EUP slot
    shift = beta - mean * scale
    return h * scale + shift


def net_kernel(x_ref, w1_ref, w2_ref, w3_ref, w4_ref, b4_ref,
               g1_ref, be1_ref, g2_ref, be2_ref, g3_ref, be3_ref,
               out_ref):
    x = x_ref[...]                                               # (B, 896) f32

    # fc1: BinarizeLinear(784 -> 1024). Input width == 784 -> input NOT
    # binarized; weight pre-binarized (+/-1, bf16) -> widen to f32 so the
    # raw-pixel matmul stays exact. Padded rows are zero on both sides.
    h = jnp.dot(x, w1_ref[...].astype(jnp.float32),
                preferred_element_type=jnp.float32)              # (B, 1024)
    h = _bn_fused(h, g1_ref[...], be1_ref[...])                  # bn1
    # htanh1 dropped: next layer binarizes, sign(clip(h)) == sign(h)

    # fc2: BinarizeLinear(1024 -> 1024). Binarize input to bf16 (+/-1 exact),
    # weight pre-binarized bf16 -> native bf16 MXU path, f32 accumulation.
    hb = _sign_pm1(h, jnp.bfloat16)
    h = jnp.dot(hb, w2_ref[...], preferred_element_type=jnp.float32)
    h = _bn_fused(h, g2_ref[...], be2_ref[...])                  # bn2
    # htanh2 dropped (same reasoning)

    # fc3: BinarizeLinear(1024 -> 1024).
    hb = _sign_pm1(h, jnp.bfloat16)
    h = jnp.dot(hb, w3_ref[...], preferred_element_type=jnp.float32)
    h = _bn_fused(h, g3_ref[...], be3_ref[...])                  # bn3
    h = jnp.clip(h, -1.0, 1.0)                                   # htanh3 (feeds fc4)

    # fc4: plain Linear(1024 -> 10) with bias, padded to 128 lanes (lane-dense
    # unmasked stores); padding columns of w4/b4 are zero so logits[:, :10]
    # are exact.
    out_ref[...] = (jnp.dot(h, w4_ref[...],
                            preferred_element_type=jnp.float32)
                    + b4_ref[...])                               # (B, 128)


def prepare_params(raw_params):
    """Host-side prep: binarize fc1-3 weights to bf16, pad fc1 contraction dim
    to 896 and fc4 output to 128 lanes."""
    w1, w2, w3, w4, b4, g1, be1, g2, be2, g3, be3 = raw_params
    w1b = jnp.zeros((IN_PAD, w1.shape[1]), jnp.bfloat16)
    w1b = w1b.at[:IN_RAW, :].set(_sign_pm1(w1, jnp.bfloat16))
    w2b = _sign_pm1(w2, jnp.bfloat16)
    w3b = _sign_pm1(w3, jnp.bfloat16)
    w4p = jnp.zeros((w4.shape[0], OUT_PAD), jnp.float32).at[:, :w4.shape[1]].set(w4)
    b4p = jnp.zeros((1, OUT_PAD), jnp.float32).at[:, :b4.shape[1]].set(b4)
    return (w1b, w2b, w3b, w4p, b4p, g1, be1, g2, be2, g3, be3)


def net_forward(x_nchw, prepared_params):
    """x_nchw: (B, 1, 28, 28) float32 -> logits (B, 10) float32."""
    B = x_nchw.shape[0]
    x = x_nchw.reshape(B, IN_RAW).astype(jnp.float32)            # x.view(-1, 784)
    x = jnp.pad(x, ((0, 0), (0, IN_PAD - IN_RAW)))               # lane-align to 896

    vmem_spec = pl.BlockSpec(memory_space=pltpu.MemorySpace.VMEM)
    out_padded = pl.pallas_call(
        net_kernel,
        out_shape=jax.ShapeDtypeStruct((B, OUT_PAD), jnp.float32),
        in_specs=[vmem_spec] * 12,
        out_specs=vmem_spec,
        compiler_params=pltpu.CompilerParams(vmem_limit_bytes=32 << 20),
    )(x, *prepared_params)
    return out_padded[:, :10]


def init_params(key):
    ks = jax.random.split(key, 10)
    w1 = jax.random.normal(ks[0], (IN_RAW, 1024), jnp.float32) * 0.05   # (in, out)
    w2 = jax.random.normal(ks[1], (1024, 1024), jnp.float32) * 0.05
    w3 = jax.random.normal(ks[2], (1024, 1024), jnp.float32) * 0.05
    w4 = jax.random.normal(ks[3], (1024, 10), jnp.float32) * 0.05
    b4 = jax.random.normal(ks[4], (1, 10), jnp.float32) * 0.05
    g1 = 1.0 + 0.1 * jax.random.normal(ks[5], (1, 1024), jnp.float32)
    be1 = 0.1 * jax.random.normal(ks[6], (1, 1024), jnp.float32)
    g2 = 1.0 + 0.1 * jax.random.normal(ks[7], (1, 1024), jnp.float32)
    be2 = 0.1 * jax.random.normal(ks[8], (1, 1024), jnp.float32)
    g3 = 1.0 + 0.1 * jax.random.normal(ks[9], (1, 1024), jnp.float32)
    be3 = jnp.zeros((1, 1024), jnp.float32)
    return (w1, w2, w3, w4, b4, g1, be1, g2, be2, g3, be3)


def net_reference(x_nchw, raw_params):
    """Pure-JAX reference of the original PyTorch forward (for validation)."""
    w1, w2, w3, w4, b4, g1, be1, g2, be2, g3, be3 = raw_params
    x = x_nchw.reshape(x_nchw.shape[0], IN_RAW).astype(jnp.float32)

    def bn(h, g, b):
        m = jnp.mean(h, axis=0, keepdims=True)
        v = jnp.mean(jnp.square(h - m), axis=0, keepdims=True)
        return (h - m) * jax.lax.rsqrt(v + EPS) * g + b

    sign = lambda t: jnp.where(t >= 0.0, 1.0, -1.0).astype(jnp.float32)
    h = x @ sign(w1)
    h = jnp.clip(bn(h, g1, be1), -1.0, 1.0)
    h = sign(h) @ sign(w2)
    h = jnp.clip(bn(h, g2, be2), -1.0, 1.0)
    h = sign(h) @ sign(w3)
    h = jnp.clip(bn(h, g3, be3), -1.0, 1.0)
    return h @ w4 + b4


if __name__ == "__main__":
    key = jax.random.PRNGKey(0)
    k_x, k_p = jax.random.split(key)

    B = 8
    x = jax.random.normal(k_x, (B, 1, 28, 28), jnp.float32)   # MNIST-like NCHW
    raw_params = init_params(k_p)
    params = prepare_params(raw_params)

    logits = net_forward(x, params)
    jax.block_until_ready(logits)
    assert logits.shape == (B, 10) and logits.dtype == jnp.float32
    assert bool(jnp.all(jnp.isfinite(logits)))

    ref = net_reference(x, raw_params)
    assert bool(jnp.allclose(logits, ref, rtol=1e-2, atol=1e-2))
    print("KERNEL_OK")
</pallas_src>

<mosaic_0001>
module attributes {stable_mosaic.version = 11 : i64} {
  func.func @net_kernel(%arg0: memref<8x896xf32, #tpu.memory_space<vmem>>, %arg1: memref<896x1024xbf16, #tpu.memory_space<vmem>>, %arg2: memref<1024x1024xbf16, #tpu.memory_space<vmem>>, %arg3: memref<1024x1024xbf16, #tpu.memory_space<vmem>>, %arg4: memref<1024x128xf32, #tpu.memory_space<vmem>>, %arg5: memref<1x128xf32, #tpu.memory_space<vmem>>, %arg6: memref<1x1024xf32, #tpu.memory_space<vmem>>, %arg7: memref<1x1024xf32, #tpu.memory_space<vmem>>, %arg8: memref<1x1024xf32, #tpu.memory_space<vmem>>, %arg9: memref<1x1024xf32, #tpu.memory_space<vmem>>, %arg10: memref<1x1024xf32, #tpu.memory_space<vmem>>, %arg11: memref<1x1024xf32, #tpu.memory_space<vmem>>, %arg12: memref<8x128xf32, #tpu.memory_space<vmem>>) attributes {dimension_semantics = [], scalar_prefetch = 0 : i64, scratch_operands = 0 : i64, tpu.core_type = #tpu.core_type<tc>} {
    %c0 = arith.constant 0 : index
    %c0_0 = arith.constant 0 : index
    %0 = vector.load %arg0[%c0, %c0_0] : memref<8x896xf32, #tpu.memory_space<vmem>>, vector<8x896xf32>
    %c0_1 = arith.constant 0 : index
    %c0_2 = arith.constant 0 : index
    %1 = vector.load %arg1[%c0_1, %c0_2] : memref<896x1024xbf16, #tpu.memory_space<vmem>>, vector<896x1024xbf16>
    %2 = arith.extf %1 : vector<896x1024xbf16> to vector<896x1024xf32>
    %cst = arith.constant dense<0.000000e+00> : vector<8x1024xf32>
    %3 = tpu.matmul %0, %2, %cst {dimension_numbers = #tpu.dot_dimension_numbers<[1], [0], [0], [1], [0, 0, 1, 1], [], []>} : vector<8x896xf32>, vector<896x1024xf32>, vector<8x1024xf32> -> vector<8x1024xf32>
    %c0_3 = arith.constant 0 : index
    %c0_4 = arith.constant 0 : index
    %4 = vector.load %arg6[%c0_3, %c0_4] : memref<1x1024xf32, #tpu.memory_space<vmem>>, vector<1x1024xf32>
    %c0_5 = arith.constant 0 : index
    %c0_6 = arith.constant 0 : index
    %5 = vector.load %arg7[%c0_5, %c0_6] : memref<1x1024xf32, #tpu.memory_space<vmem>>, vector<1x1024xf32>
    %cst_7 = arith.constant dense<0.000000e+00> : vector<1024xf32>
    %6 = vector.multi_reduction <add>, %3, %cst_7 [0] : vector<8x1024xf32> to vector<1024xf32>
    %7 = vector.shape_cast %6 : vector<1024xf32> to vector<1x1024xf32>
    %cst_8 = arith.constant 8.000000e+00 : f32
    %8 = vector.broadcast %cst_8 : f32 to vector<1x1024xf32>
    %9 = arith.divf %7, %8 : vector<1x1024xf32>
    %10 = vector.broadcast %9 : vector<1x1024xf32> to vector<8x1024xf32>
    %11 = arith.subf %3, %10 : vector<8x1024xf32>
    %12 = arith.mulf %11, %11 : vector<8x1024xf32>
    %cst_9 = arith.constant dense<0.000000e+00> : vector<1024xf32>
    %13 = vector.multi_reduction <add>, %12, %cst_9 [0] : vector<8x1024xf32> to vector<1024xf32>
    %14 = vector.shape_cast %13 : vector<1024xf32> to vector<1x1024xf32>
    %cst_10 = arith.constant 8.000000e+00 : f32
    %15 = vector.broadcast %cst_10 : f32 to vector<1x1024xf32>
    %16 = arith.divf %14, %15 : vector<1x1024xf32>
    %cst_11 = arith.constant 9.99999974E-6 : f32
    %17 = vector.broadcast %cst_11 : f32 to vector<1x1024xf32>
    %18 = arith.addf %16, %17 : vector<1x1024xf32>
    %19 = math.rsqrt %18 : vector<1x1024xf32>
    %20 = arith.mulf %4, %19 : vector<1x1024xf32>
    %21 = arith.mulf %9, %20 : vector<1x1024xf32>
    %22 = arith.subf %5, %21 : vector<1x1024xf32>
    %23 = vector.broadcast %20 : vector<1x1024xf32> to vector<8x1024xf32>
    %24 = arith.mulf %3, %23 : vector<8x1024xf32>
    %25 = vector.broadcast %22 : vector<1x1024xf32> to vector<8x1024xf32>
    %26 = arith.addf %24, %25 : vector<8x1024xf32>
    %cst_12 = arith.constant 0.000000e+00 : f32
    %27 = vector.broadcast %cst_12 : f32 to vector<8x1024xf32>
    %28 = arith.cmpf oge, %26, %27 : vector<8x1024xf32>
    %cst_13 = arith.constant 1.000000e+00 : f32
    %cst_14 = arith.constant -1.000000e+00 : f32
    %29 = vector.broadcast %cst_13 : f32 to vector<8x1024xf32>
    %30 = vector.broadcast %cst_14 : f32 to vector<8x1024xf32>
    %31 = arith.select %28, %29, %30 : vector<8x1024xi1>, vector<8x1024xf32>
    %32 = arith.truncf %31 : vector<8x1024xf32> to vector<8x1024xbf16>
    %c0_15 = arith.constant 0 : index
    %c0_16 = arith.constant 0 : index
    %33 = vector.load %arg2[%c0_15, %c0_16] : memref<1024x1024xbf16, #tpu.memory_space<vmem>>, vector<1024x1024xbf16>
    %cst_17 = arith.constant dense<0.000000e+00> : vector<8x1024xf32>
    %34 = tpu.matmul %32, %33, %cst_17 {dimension_numbers = #tpu.dot_dimension_numbers<[1], [0], [0], [1], [0, 0, 1, 1], [], []>} : vector<8x1024xbf16>, vector<1024x1024xbf16>, vector<8x1024xf32> -> vector<8x1024xf32>
    %c0_18 = arith.constant 0 : index
    %c0_19 = arith.constant 0 : index
    %35 = vector.load %arg8[%c0_18, %c0_19] : memref<1x1024xf32, #tpu.memory_space<vmem>>, vector<1x1024xf32>
    %c0_20 = arith.constant 0 : index
    %c0_21 = arith.constant 0 : index
    %36 = vector.load %arg9[%c0_20, %c0_21] : memref<1x1024xf32, #tpu.memory_space<vmem>>, vector<1x1024xf32>
    %cst_22 = arith.constant dense<0.000000e+00> : vector<1024xf32>
    %37 = vector.multi_reduction <add>, %34, %cst_22 [0] : vector<8x1024xf32> to vector<1024xf32>
    %38 = vector.shape_cast %37 : vector<1024xf32> to vector<1x1024xf32>
    %cst_23 = arith.constant 8.000000e+00 : f32
    %39 = vector.broadcast %cst_23 : f32 to vector<1x1024xf32>
    %40 = arith.divf %38, %39 : vector<1x1024xf32>
    %41 = vector.broadcast %40 : vector<1x1024xf32> to vector<8x1024xf32>
    %42 = arith.subf %34, %41 : vector<8x1024xf32>
    %43 = arith.mulf %42, %42 : vector<8x1024xf32>
    %cst_24 = arith.constant dense<0.000000e+00> : vector<1024xf32>
    %44 = vector.multi_reduction <add>, %43, %cst_24 [0] : vector<8x1024xf32> to vector<1024xf32>
    %45 = vector.shape_cast %44 : vector<1024xf32> to vector<1x1024xf32>
    %cst_25 = arith.constant 8.000000e+00 : f32
    %46 = vector.broadcast %cst_25 : f32 to vector<1x1024xf32>
    %47 = arith.divf %45, %46 : vector<1x1024xf32>
    %cst_26 = arith.constant 9.99999974E-6 : f32
    %48 = vector.broadcast %cst_26 : f32 to vector<1x1024xf32>
    %49 = arith.addf %47, %48 : vector<1x1024xf32>
    %50 = math.rsqrt %49 : vector<1x1024xf32>
    %51 = arith.mulf %35, %50 : vector<1x1024xf32>
    %52 = arith.mulf %40, %51 : vector<1x1024xf32>
    %53 = arith.subf %36, %52 : vector<1x1024xf32>
    %54 = vector.broadcast %51 : vector<1x1024xf32> to vector<8x1024xf32>
    %55 = arith.mulf %34, %54 : vector<8x1024xf32>
    %56 = vector.broadcast %53 : vector<1x1024xf32> to vector<8x1024xf32>
    %57 = arith.addf %55, %56 : vector<8x1024xf32>
    %cst_27 = arith.constant 0.000000e+00 : f32
    %58 = vector.broadcast %cst_27 : f32 to vector<8x1024xf32>
    %59 = arith.cmpf oge, %57, %58 : vector<8x1024xf32>
    %cst_28 = arith.constant 1.000000e+00 : f32
    %cst_29 = arith.constant -1.000000e+00 : f32
    %60 = vector.broadcast %cst_28 : f32 to vector<8x1024xf32>
    %61 = vector.broadcast %cst_29 : f32 to vector<8x1024xf32>
    %62 = arith.select %59, %60, %61 : vector<8x1024xi1>, vector<8x1024xf32>
    %63 = arith.truncf %62 : vector<8x1024xf32> to vector<8x1024xbf16>
    %c0_30 = arith.constant 0 : index
    %c0_31 = arith.constant 0 : index
    %64 = vector.load %arg3[%c0_30, %c0_31] : memref<1024x1024xbf16, #tpu.memory_space<vmem>>, vector<1024x1024xbf16>
    %cst_32 = arith.constant dense<0.000000e+00> : vector<8x1024xf32>
    %65 = tpu.matmul %63, %64, %cst_32 {dimension_numbers = #tpu.dot_dimension_numbers<[1], [0], [0], [1], [0, 0, 1, 1], [], []>} : vector<8x1024xbf16>, vector<1024x1024xbf16>, vector<8x1024xf32> -> vector<8x1024xf32>
    %c0_33 = arith.constant 0 : index
    %c0_34 = arith.constant 0 : index
    %66 = vector.load %arg10[%c0_33, %c0_34] : memref<1x1024xf32, #tpu.memory_space<vmem>>, vector<1x1024xf32>
    %c0_35 = arith.constant 0 : index
    %c0_36 = arith.constant 0 : index
    %67 = vector.load %arg11[%c0_35, %c0_36] : memref<1x1024xf32, #tpu.memory_space<vmem>>, vector<1x1024xf32>
    %cst_37 = arith.constant dense<0.000000e+00> : vector<1024xf32>
    %68 = vector.multi_reduction <add>, %65, %cst_37 [0] : vector<8x1024xf32> to vector<1024xf32>
    %69 = vector.shape_cast %68 : vector<1024xf32> to vector<1x1024xf32>
    %cst_38 = arith.constant 8.000000e+00 : f32
    %70 = vector.broadcast %cst_38 : f32 to vector<1x1024xf32>
    %71 = arith.divf %69, %70 : vector<1x1024xf32>
    %72 = vector.broadcast %71 : vector<1x1024xf32> to vector<8x1024xf32>
    %73 = arith.subf %65, %72 : vector<8x1024xf32>
    %74 = arith.mulf %73, %73 : vector<8x1024xf32>
    %cst_39 = arith.constant dense<0.000000e+00> : vector<1024xf32>
    %75 = vector.multi_reduction <add>, %74, %cst_39 [0] : vector<8x1024xf32> to vector<1024xf32>
    %76 = vector.shape_cast %75 : vector<1024xf32> to vector<1x1024xf32>
    %cst_40 = arith.constant 8.000000e+00 : f32
    %77 = vector.broadcast %cst_40 : f32 to vector<1x1024xf32>
    %78 = arith.divf %76, %77 : vector<1x1024xf32>
    %cst_41 = arith.constant 9.99999974E-6 : f32
    %79 = vector.broadcast %cst_41 : f32 to vector<1x1024xf32>
    %80 = arith.addf %78, %79 : vector<1x1024xf32>
    %81 = math.rsqrt %80 : vector<1x1024xf32>
    %82 = arith.mulf %66, %81 : vector<1x1024xf32>
    %83 = arith.mulf %71, %82 : vector<1x1024xf32>
    %84 = arith.subf %67, %83 : vector<1x1024xf32>
    %85 = vector.broadcast %82 : vector<1x1024xf32> to vector<8x1024xf32>
    %86 = arith.mulf %65, %85 : vector<8x1024xf32>
    %87 = vector.broadcast %84 : vector<1x1024xf32> to vector<8x1024xf32>
    %88 = arith.addf %86, %87 : vector<8x1024xf32>
    %cst_42 = arith.constant -1.000000e+00 : f32
    %cst_43 = arith.constant 1.000000e+00 : f32
    %89 = vector.broadcast %cst_42 : f32 to vector<8x1024xf32>
    %90 = arith.maximumf %89, %88 : vector<8x1024xf32>
    %91 = vector.broadcast %cst_43 : f32 to vector<8x1024xf32>
    %92 = arith.minimumf %91, %90 : vector<8x1024xf32>
    %c0_44 = arith.constant 0 : index
    %c0_45 = arith.constant 0 : index
    %93 = vector.load %arg4[%c0_44, %c0_45] : memref<1024x128xf32, #tpu.memory_space<vmem>>, vector<1024x128xf32>
    %cst_46 = arith.constant dense<0.000000e+00> : vector<8x128xf32>
    %94 = tpu.matmul %92, %93, %cst_46 {dimension_numbers = #tpu.dot_dimension_numbers<[1], [0], [0], [1], [0, 0, 1, 1], [], []>} : vector<8x1024xf32>, vector<1024x128xf32>, vector<8x128xf32> -> vector<8x128xf32>
    %c0_47 = arith.constant 0 : index
    %c0_48 = arith.constant 0 : index
    %95 = vector.load %arg5[%c0_47, %c0_48] : memref<1x128xf32, #tpu.memory_space<vmem>>, vector<1x128xf32>
    %96 = vector.broadcast %95 : vector<1x128xf32> to vector<8x128xf32>
    %97 = arith.addf %94, %96 : vector<8x128xf32>
    %c0_49 = arith.constant 0 : index
    %c0_50 = arith.constant 0 : index
    %98 = vector.load %arg12[%c0_49, %c0_50] : memref<8x128xf32, #tpu.memory_space<vmem>>, vector<8x128xf32>
    tpu.vector_store %arg12[%c0_49, %c0_50], %97 {strides = array<i32>} : memref<8x128xf32, #tpu.memory_space<vmem>>, vector<8x128xf32>,
    return
  }
}

</mosaic_0001>

<llo_original>
// kernel: tpu_custom_call.1
$region0: #{tpu_custom_call.1}
  #allocation0 [shape = 'u32[]', space=smem, size = 0x4, offset = 0x4, fixed_abs, tag = 'smem constant byte address 0x4 - core index']
  #allocation1 [shape = 'u32[144,128]{1,0:T(1,128)}', space=vmem, size = 0x12000, scoped, tag = 'internal scratch']
  %s0 = inlined_call_operand.hbm [shape: f32[8,896], index: 0, kind: input, shape index: {}]
  %s1 = inlined_call_operand.hbm [shape: bf16[896,1024], index: 1, kind: input, shape index: {}]
  %s2 = inlined_call_operand.hbm [shape: bf16[1024,1024], index: 2, kind: input, shape index: {}]
  %s3 = inlined_call_operand.hbm [shape: bf16[1024,1024], index: 3, kind: input, shape index: {}]
  %s4 = inlined_call_operand.hbm [shape: f32[1024,128], index: 4, kind: input, shape index: {}]
  %s5 = inlined_call_operand.hbm [shape: f32[1,128], index: 5, kind: input, shape index: {}]
  %s6 = inlined_call_operand.hbm [shape: f32[1,1024], index: 6, kind: input, shape index: {}]
  %s7 = inlined_call_operand.hbm [shape: f32[1,1024], index: 7, kind: input, shape index: {}]
  %s8 = inlined_call_operand.hbm [shape: f32[1,1024], index: 8, kind: input, shape index: {}]
  %s9 = inlined_call_operand.hbm [shape: f32[1,1024], index: 9, kind: input, shape index: {}]
  %s10 = inlined_call_operand.hbm [shape: f32[1,1024], index: 10, kind: input, shape index: {}]
  %s11 = inlined_call_operand.hbm [shape: f32[1,1024], index: 11, kind: input, shape index: {}]
  %s12 = inlined_call_operand.hbm [shape: f32[8,128], index: 12, kind: output, shape index: {}]
  %s13 = sld [smem:[#allocation0]]
  $region106: #{tpu_custom_call.1} parent=0
    _
  %s15 = ssub.s32 1, %s13
  %s16 = scalar_select 0, %s15, %s13
  $region1: #{tpu_custom_call.1} parent=0
    #allocation2 [shape = 'u8[28672]{0}', space=vmem, size = 0x7000, scoped, tag = 'input window, operand 0, single buffered']
    #allocation3 [shape = 's32[1]{0}', space=sflag, size = 0x4, scoped, tag = 'scoped memory for tpu_custom_call.1']
    #allocation4 [shape = 's32[1]{0}', space=sflag, size = 0x4, scoped, tag = 'scoped memory for tpu_custom_call.1']
    #allocation5 [shape = 'u8[1835008]{0}', space=vmem, size = 0x1c0000, scoped, tag = 'input window, operand 1, single buffered']
    #allocation6 [shape = 's32[1]{0}', space=sflag, size = 0x4, scoped, tag = 'scoped memory for tpu_custom_call.1']
    #allocation7 [shape = 'u8[2097152]{0}', space=vmem, size = 0x200000, scoped, tag = 'input window, operand 2, single buffered']
    #allocation8 [shape = 'u8[2097152]{0}', space=vmem, size = 0x200000, scoped, tag = 'input window, operand 3, single buffered']
    #allocation9 [shape = 's32[1]{0}', space=sflag, size = 0x4, scoped, tag = 'scoped memory for tpu_custom_call.1']
    #allocation10 [shape = 'u8[524288]{0}', space=vmem, size = 0x80000, scoped, tag = 'input window, operand 4, single buffered']
    #allocation11 [shape = 'u8[512]{0}', space=vmem, size = 0x400, scoped, tag = 'input window, operand 5, single buffered']
    #allocation12 [shape = 's32[1]{0}', space=sflag, size = 0x4, scoped, tag = 'scoped memory for tpu_custom_call.1']
    #allocation13 [shape = 'u8[4096]{0}', space=vmem, size = 0x1000, scoped, tag = 'input window, operand 6, single buffered']
    #allocation14 [shape = 'u8[4096]{0}', space=vmem, size = 0x1000, scoped, tag = 'input window, operand 7, single buffered']
    #allocation15 [shape = 's32[1]{0}', space=sflag, size = 0x4, scoped, tag = 'scoped memory for tpu_custom_call.1']
    #allocation16 [shape = 'u8[4096]{0}', space=vmem, size = 0x1000, scoped, tag = 'input window, operand 8, single buffered']
    #allocation17 [shape = 'u8[4096]{0}', space=vmem, size = 0x1000, scoped, tag = 'input window, operand 9, single buffered']
    #allocation18 [shape = 's32[1]{0}', space=sflag, size = 0x4, scoped, tag = 'scoped memory for tpu_custom_call.1']
    #allocation19 [shape = 'u8[4096]{0}', space=vmem, size = 0x1000, scoped, tag = 'input window, operand 10, single buffered']
    #allocation20 [shape = 'u8[4096]{0}', space=vmem, size = 0x1000, scoped, tag = 'input window, operand 11, single buffered']
    #allocation21 [shape = 's32[1]{0}', space=sflag, size = 0x4, scoped, tag = 'scoped memory for tpu_custom_call.1']
    #allocation22 [shape = 'u8[4096]{0}', space=vmem, size = 0x1000, scoped, tag = 'output window, operand 0, single buffered']
    %17 = vsyncpa [#allocation3], 0
    %18 = vsyncpa [#allocation6], 0
    %19 = vsyncpa [#allocation9], 0
    %20 = vsyncpa [#allocation12], 0
    %21 = vsyncpa [#allocation15], 0
    %22 = vsyncpa [#allocation18], 0
    %23 = vsyncpa [#allocation21], 0
    %24 = vsyncpa [#allocation4], 0
    // Predicated region
    $region2: #{tpu_custom_call.1} parent=1 // pred_check
      _
    $region3: #{tpu_custom_call.1} parent=1 // pred_check_branch
      %26 = sbr.rel (0) target = $region5
    $region4: #{tpu_custom_call.1} parent=1 // pred_region
      %s28 = ssub.s32 896, 896
      %29 = vsyncadd [#allocation3], %s28
      %s31 = sshll.u32 [#allocation2], 4
      %s32 = int_to_ptr.vmem [resolvable:$true] %s31
      %34 = dma.hbm_to_vmem [thread:$0]  %s0, 896, %s32, [#allocation3]
    $region5: #{tpu_custom_call.1} parent=1 // pred_fallthru
      _
    // Predicated region
    $region6: #{tpu_custom_call.1} parent=1 // pred_check
      _
    $region7: #{tpu_custom_call.1} parent=1 // pred_check_branch
      %36 = sbr.rel (0) target = $region9
    $region8: #{tpu_custom_call.1} parent=1 // pred_region
      %s38 = ssub.s32 57344, 57344
      %39 = vsyncadd [#allocation6], %s38
      %s40 = sshll.u32 [#allocation5], 4
      %s41 = int_to_ptr.vmem [resolvable:$true] %s40
      %46 = dma.hbm_to_vmem [thread:$0]  %s1, 57344, %s41, [#allocation6], 512, 512, 32
    $region9: #{tpu_custom_call.1} parent=1 // pred_fallthru
      _
    // Predicated region
    $region10: #{tpu_custom_call.1} parent=1 // pred_check
      _
    $region11: #{tpu_custom_call.1} parent=1 // pred_check_branch
      %48 = sbr.rel (0) target = $region13
    $region12: #{tpu_custom_call.1} parent=1 // pred_region
      %s50 = ssub.s32 65536, 65536
      %51 = vsyncadd [#allocation6], %s50
      %s52 = sshll.u32 [#allocation7], 4
      %s53 = int_to_ptr.vmem [resolvable:$true] %s52
      %58 = dma.hbm_to_vmem [thread:$0]  %s2, 65536, %s53, [#allocation6], 512, 512, 32
    $region13: #{tpu_custom_call.1} parent=1 // pred_fallthru
      _
    // Predicated region
    $region14: #{tpu_custom_call.1} parent=1 // pred_check
      _
    $region15: #{tpu_custom_call.1} parent=1 // pred_check_branch
      %60 = sbr.rel (0) target = $region17
    $region16: #{tpu_custom_call.1} parent=1 // pred_region
      %s62 = ssub.s32 65536, 65536
      %63 = vsyncadd [#allocation9], %s62
      %s64 = sshll.u32 [#allocation8], 4
      %s65 = int_to_ptr.vmem [resolvable:$true] %s64
      %70 = dma.hbm_to_vmem [thread:$0]  %s3, 65536, %s65, [#allocation9], 512, 512, 32
    $region17: #{tpu_custom_call.1} parent=1 // pred_fallthru
      _
    // Predicated region
    $region18: #{tpu_custom_call.1} parent=1 // pred_check
      _
    $region19: #{tpu_custom_call.1} parent=1 // pred_check_branch
      %72 = sbr.rel (0) target = $region21
    $region20: #{tpu_custom_call.1} parent=1 // pred_region
      %s74 = ssub.s32 16384, 16384
      %75 = vsyncadd [#allocation9], %s74
      %s76 = sshll.u32 [#allocation10], 4
      %s77 = int_to_ptr.vmem [resolvable:$true] %s76
      %82 = dma.hbm_to_vmem [thread:$0]  %s4, 16384, %s77, [#allocation9], 128, 128, 8
    $region21: #{tpu_custom_call.1} parent=1 // pred_fallthru
      _
    // Predicated region
    $region22: #{tpu_custom_call.1} parent=1 // pred_check
      _
    $region23: #{tpu_custom_call.1} parent=1 // pred_check_branch
      %84 = sbr.rel (0) target = $region25
    $region24: #{tpu_custom_call.1} parent=1 // pred_region
      %s86 = ssub.s32 16, 16
      %87 = vsyncadd [#allocation12], %s86
      %s89 = sshll.u32 [#allocation11], 4
      %s90 = int_to_ptr.vmem [resolvable:$true] %s89
      %92 = dma.hbm_to_vmem [thread:$0]  %s5, 16, %s90, [#allocation12]
    $region25: #{tpu_custom_call.1} parent=1 // pred_fallthru
      _
    // Predicated region
    $region26: #{tpu_custom_call.1} parent=1 // pred_check
      _
    $region27: #{tpu_custom_call.1} parent=1 // pred_check_branch
      %94 = sbr.rel (0) target = $region29
    $region28: #{tpu_custom_call.1} parent=1 // pred_region
      %s96 = ssub.s32 128, 128
      %97 = vsyncadd [#allocation12], %s96
      %s99 = sshll.u32 [#allocation13], 4
      %s100 = int_to_ptr.vmem [resolvable:$true] %s99
      %102 = dma.hbm_to_vmem [thread:$0]  %s6, 128, %s100, [#allocation12]
    $region29: #{tpu_custom_call.1} parent=1 // pred_fallthru
      _
    // Predicated region
    $region30: #{tpu_custom_call.1} parent=1 // pred_check
      _
    $region31: #{tpu_custom_call.1} parent=1 // pred_check_branch
      %104 = sbr.rel (0) target = $region33
    $region32: #{tpu_custom_call.1} parent=1 // pred_region
      %s106 = ssub.s32 128, 128
      %107 = vsyncadd [#allocation15], %s106
      %s109 = sshll.u32 [#allocation14], 4
      %s110 = int_to_ptr.vmem [resolvable:$true] %s109
      %112 = dma.hbm_to_vmem [thread:$0]  %s7, 128, %s110, [#allocation15]
    $region33: #{tpu_custom_call.1} parent=1 // pred_fallthru
      _
    // Predicated region
    $region34: #{tpu_custom_call.1} parent=1 // pred_check
      _
    $region35: #{tpu_custom_call.1} parent=1 // pred_check_branch
      %114 = sbr.rel (0) target = $region37
    $region36: #{tpu_custom_call.1} parent=1 // pred_region
      %s116 = ssub.s32 128, 128
      %117 = vsyncadd [#allocation15], %s116
      %s119 = sshll.u32 [#allocation16], 4
      %s120 = int_to_ptr.vmem [resolvable:$true] %s119
      %122 = dma.hbm_to_vmem [thread:$0]  %s8, 128, %s120, [#allocation15]
    $region37: #{tpu_custom_call.1} parent=1 // pred_fallthru
      _
    // Predicated region
    $region38: #{tpu_custom_call.1} parent=1 // pred_check
      _
    $region39: #{tpu_custom_call.1} parent=1 // pred_check_branch
      %124 = sbr.rel (0) target = $region41
    $region40: #{tpu_custom_call.1} parent=1 // pred_region
      %s126 = ssub.s32 128, 128
      %127 = vsyncadd [#allocation18], %s126
      %s129 = sshll.u32 [#allocation17], 4
      %s130 = int_to_ptr.vmem [resolvable:$true] %s129
      %132 = dma.hbm_to_vmem [thread:$0]  %s9, 128, %s130, [#allocation18]
    $region41: #{tpu_custom_call.1} parent=1 // pred_fallthru
      _
    // Predicated region
    $region42: #{tpu_custom_call.1} parent=1 // pred_check
      _
    $region43: #{tpu_custom_call.1} parent=1 // pred_check_branch
      %134 = sbr.rel (0) target = $region45
    $region44: #{tpu_custom_call.1} parent=1 // pred_region
      %s136 = ssub.s32 128, 128
      %137 = vsyncadd [#allocation18], %s136
      %s139 = sshll.u32 [#allocation19], 4
      %s140 = int_to_ptr.vmem [resolvable:$true] %s139
      %142 = dma.hbm_to_vmem [thread:$0]  %s10, 128, %s140, [#allocation18]
    $region45: #{tpu_custom_call.1} parent=1 // pred_fallthru
      _
    // Predicated region
    $region46: #{tpu_custom_call.1} parent=1 // pred_check
      _
    $region47: #{tpu_custom_call.1} parent=1 // pred_check_branch
      %144 = sbr.rel (0) target = $region49
    $region48: #{tpu_custom_call.1} parent=1 // pred_region
      %s146 = ssub.s32 128, 128
      %147 = vsyncadd [#allocation21], %s146
      %s149 = sshll.u32 [#allocation20], 4
      %s150 = int_to_ptr.vmem [resolvable:$true] %s149
      %152 = dma.hbm_to_vmem [thread:$0]  %s11, 128, %s150, [#allocation21]
    $region49: #{tpu_custom_call.1} parent=1 // pred_fallthru
      _
    // Predicated region
    $region50: #{tpu_custom_call.1} parent=1 // pred_check
      _
    $region51: #{tpu_custom_call.1} parent=1 // pred_check_branch
      %154 = sbr.rel (0) target = $region53
    $region52: #{tpu_custom_call.1} parent=1 // pred_region
      %155 = dma.done [#allocation3], 896
    $region53: #{tpu_custom_call.1} parent=1 // pred_fallthru
      _
    // Predicated region
    $region54: #{tpu_custom_call.1} parent=1 // pred_check
      _
    $region55: #{tpu_custom_call.1} parent=1 // pred_check_branch
      %157 = sbr.rel (0) target = $region57
    $region56: #{tpu_custom_call.1} parent=1 // pred_region
      %158 = dma.done [#allocation6], 57344
    $region57: #{tpu_custom_call.1} parent=1 // pred_fallthru
      _
    // Predicated region
    $region58: #{tpu_custom_call.1} parent=1 // pred_check
      _
    $region59: #{tpu_custom_call.1} parent=1 // pred_check_branch
      %160 = sbr.rel (0) target = $region61
    $region60: #{tpu_custom_call.1} parent=1 // pred_region
      %161 = dma.done [#allocation6], 65536
    $region61: #{tpu_custom_call.1} parent=1 // pred_fallthru
      _
    // Predicated region
    $region62: #{tpu_custom_call.1} parent=1 // pred_check
      _
    $region63: #{tpu_custom_call.1} parent=1 // pred_check_branch
      %163 = sbr.rel (0) target = $region65
    $region64: #{tpu_custom_call.1} parent=1 // pred_region
      %164 = dma.done [#allocation9], 65536
    $region65: #{tpu_custom_call.1} parent=1 // pred_fallthru
      _
    // Predicated region
    $region66: #{tpu_custom_call.1} parent=1 // pred_check
      _
    $region67: #{tpu_custom_call.1} parent=1 // pred_check_branch
      %166 = sbr.rel (0) target = $region69
    $region68: #{tpu_custom_call.1} parent=1 // pred_region
      %167 = dma.done [#allocation9], 16384
    $region69: #{tpu_custom_call.1} parent=1 // pred_fallthru
      _
    // Predicated region
    $region70: #{tpu_custom_call.1} parent=1 // pred_check
      _
    $region71: #{tpu_custom_call.1} parent=1 // pred_check_branch
      %169 = sbr.rel (0) target = $region73
    $region72: #{tpu_custom_call.1} parent=1 // pred_region
      %170 = dma.done [#allocation12], 16
    $region73: #{tpu_custom_call.1} parent=1 // pred_fallthru
      _
    // Predicated region
    $region74: #{tpu_custom_call.1} parent=1 // pred_check
      _
    $region75: #{tpu_custom_call.1} parent=1 // pred_check_branch
      %172 = sbr.rel (0) target = $region77
    $region76: #{tpu_custom_call.1} parent=1 // pred_region
      %173 = dma.done [#allocation12], 128
    $region77: #{tpu_custom_call.1} parent=1 // pred_fallthru
      _
    // Predicated region
    $region78: #{tpu_custom_call.1} parent=1 // pred_check
      _
    $region79: #{tpu_custom_call.1} parent=1 // pred_check_branch
      %175 = sbr.rel (0) target = $region81
    $region80: #{tpu_custom_call.1} parent=1 // pred_region
      %176 = dma.done [#allocation15], 128
    $region81: #{tpu_custom_call.1} parent=1 // pred_fallthru
      _
    // Predicated region
    $region82: #{tpu_custom_call.1} parent=1 // pred_check
      _
    $region83: #{tpu_custom_call.1} parent=1 // pred_check_branch
      %178 = sbr.rel (0) target = $region85
    $region84: #{tpu_custom_call.1} parent=1 // pred_region
      %179 = dma.done [#allocation15], 128
    $region85: #{tpu_custom_call.1} parent=1 // pred_fallthru
      _
    // Predicated region
    $region86: #{tpu_custom_call.1} parent=1 // pred_check
      _
    $region87: #{tpu_custom_call.1} parent=1 // pred_check_branch
      %181 = sbr.rel (0) target = $region89
    $region88: #{tpu_custom_call.1} parent=1 // pred_region
      %182 = dma.done [#allocation18], 128
    $region89: #{tpu_custom_call.1} parent=1 // pred_fallthru
      _
    // Predicated region
    $region90: #{tpu_custom_call.1} parent=1 // pred_check
      _
    $region91: #{tpu_custom_call.1} parent=1 // pred_check_branch
      %184 = sbr.rel (0) target = $region93
    $region92: #{tpu_custom_call.1} parent=1 // pred_region
      %185 = dma.done [#allocation18], 128
    $region93: #{tpu_custom_call.1} parent=1 // pred_fallthru
      _
    // Predicated region
    $region94: #{tpu_custom_call.1} parent=1 // pred_check
      _
    $region95: #{tpu_custom_call.1} parent=1 // pred_check_branch
      %187 = sbr.rel (0) target = $region97
    $region96: #{tpu_custom_call.1} parent=1 // pred_region
      %188 = dma.done [#allocation21], 128
    $region97: #{tpu_custom_call.1} parent=1 // pred_fallthru
      _
    %v189 = vld [vmem:[#allocation2] sm:$0xff]
    %v190 = vld [vmem:[#allocation2 + $0x8] sm:$0xff]
    %v191 = vld [vmem:[#allocation2 + $0x10] sm:$0xff]
    %v192 = vld [vmem:[#allocation2 + $0x18] sm:$0xff]
    %v193 = vld [vmem:[#allocation2 + $0x20] sm:$0xff]
    %v194 = vld [vmem:[#allocation2 + $0x28] sm:$0xff]
    %v195 = vld [vmem:[#allocation2 + $0x30] sm:$0xff]
    %v196 = vld [vmem:[#allocation5] sm:$0xff]
    %v197 = vld [vmem:[#allocation5 + $0x8] sm:$0xff]
    %v198 = vld [vmem:[#allocation5 + $0x10] sm:$0xff]
    %v199 = vld [vmem:[#allocation5 + $0x18] sm:$0xff]
    %v200 = vld [vmem:[#allocation5 + $0x20] sm:$0xff]
    %v201 = vld [vmem:[#allocation5 + $0x28] sm:$0xff]
    %v202 = vld [vmem:[#allocation5 + $0x30] sm:$0xff]
    %v203 = vld [vmem:[#allocation5 + $0x38] sm:$0xff]
    %v204 = vld [vmem:[#allocation5 + $0x40] sm:$0xff]
    %v205 = vld [vmem:[#allocation5 + $0x48] sm:$0xff]
    %v206 = vld [vmem:[#allocation5 + $0x50] sm:$0xff]
    %v207 = vld [vmem:[#allocation5 + $0x58] sm:$0xff]
    %v208 = vld [vmem:[#allocation5 + $0x60] sm:$0xff]
    %v209 = vld [vmem:[#allocation5 + $0x68] sm:$0xff]
    %v210 = vld [vmem:[#allocation5 + $0x70] sm:$0xff]
    %v211 = vld [vmem:[#allocation5 + $0x78] sm:$0xff]
    %v212 = vld [vmem:[#allocation5 + $0x80] sm:$0xff]
    %v213 = vld [vmem:[#allocation5 + $0x88] sm:$0xff]
    %v214 = vld [vmem:[#allocation5 + $0x90] sm:$0xff]
    %v215 = vld [vmem:[#allocation5 + $0x98] sm:$0xff]
    %v216 = vld [vmem:[#allocation5 + $0xa0] sm:$0xff]
    %v217 = vld [vmem:[#allocation5 + $0xa8] sm:$0xff]
    %v218 = vld [vmem:[#allocation5 + $0xb0] sm:$0xff]
    %v219 = vld [vmem:[#allocation5 + $0xb8] sm:$0xff]
    %v220 = vld [vmem:[#allocation5 + $0xc0] sm:$0xff]
    %v221 = vld [vmem:[#allocation5 + $0xc8] sm:$0xff]
    %v222 = vld [vmem:[#allocation5 + $0xd0] sm:$0xff]
    %v223 = vld [vmem:[#allocation5 + $0xd8] sm:$0xff]
    %v224 = vld [vmem:[#allocation5 + $0xe0] sm:$0xff]
    %v225 = vld [vmem:[#allocation5 + $0xe8] sm:$0xff]
    %v226 = vld [vmem:[#allocation5 + $0xf0] sm:$0xff]
    %v227 = vld [vmem:[#allocation5 + $0xf8] sm:$0xff]
    %v228 = vld [vmem:[#allocation5 + $0x100] sm:$0xff]
    %v229 = vld [vmem:[#allocation5 + $0x108] sm:$0xff]
    %v230 = vld [vmem:[#allocation5 + $0x110] sm:$0xff]
    %v231 = vld [vmem:[#allocation5 + $0x118] sm:$0xff]
    %v232 = vld [vmem:[#allocation5 + $0x120] sm:$0xff]
    %v233 = vld [vmem:[#allocation5 + $0x128] sm:$0xff]
    %v234 = vld [vmem:[#allocation5 + $0x130] sm:$0xff]
    %v235 = vld [vmem:[#allocation5 + $0x138] sm:$0xff]
    %v236 = vld [vmem:[#allocation5 + $0x140] sm:$0xff]
    %v237 = vld [vmem:[#allocation5 + $0x148] sm:$0xff]
    %v238 = vld [vmem:[#allocation5 + $0x150] sm:$0xff]
    %v239 = vld [vmem:[#allocation5 + $0x158] sm:$0xff]
    %v240 = vld [vmem:[#allocation5 + $0x160] sm:$0xff]
    %v241 = vld [vmem:[#allocation5 + $0x168] sm:$0xff]
    %v242 = vld [vmem:[#allocation5 + $0x170] sm:$0xff]
    %v243 = vld [vmem:[#allocation5 + $0x178] sm:$0xff]
    %v244 = vld [vmem:[#allocation5 + $0x180] sm:$0xff]
    %v245 = vld [vmem:[#allocation5 + $0x188] sm:$0xff]
    %v246 = vld [vmem:[#allocation5 + $0x190] sm:$0xff]
    %v247 = vld [vmem:[#allocation5 + $0x198] sm:$0xff]
    %v248 = vld [vmem:[#allocation5 + $0x1a0] sm:$0xff]
    %v249 = vld [vmem:[#allocation5 + $0x1a8] sm:$0xff]
    %v250 = vld [vmem:[#allocation5 + $0x1b0] sm:$0xff]
    %v251 = vld [vmem:[#allocation5 + $0x1b8] sm:$0xff]
    %v252 = vld [vmem:[#allocation5 + $0x1c0] sm:$0xff]
    %v253 = vld [vmem:[#allocation5 + $0x1c8] sm:$0xff]
    %v254 = vld [vmem:[#allocation5 + $0x1d0] sm:$0xff]
    %v255 = vld [vmem:[#allocation5 + $0x1d8] sm:$0xff]
    %v256 = vld [vmem:[#allocation5 + $0x1e0] sm:$0xff]
    %v257 = vld [vmem:[#allocation5 + $0x1e8] sm:$0xff]
    %v258 = vld [vmem:[#allocation5 + $0x1f0] sm:$0xff]
    %v259 = vld [vmem:[#allocation5 + $0x1f8] sm:$0xff]
    %v260 = vld [vmem:[#allocation5 + $0x200] sm:$0xff]
    %v261 = vld [vmem:[#allocation5 + $0x208] sm:$0xff]
    %v262 = vld [vmem:[#allocation5 + $0x210] sm:$0xff]
    %v263 = vld [vmem:[#allocation5 + $0x218] sm:$0xff]
    %v264 = vld [vmem:[#allocation5 + $0x220] sm:$0xff]
    %v265 = vld [vmem:[#allocation5 + $0x228] sm:$0xff]
    %v266 = vld [vmem:[#allocation5 + $0x230] sm:$0xff]
    %v267 = vld [vmem:[#allocation5 + $0x238] sm:$0xff]
    %v268 = vld [vmem:[#allocation5 + $0x240] sm:$0xff]
    %v269 = vld [vmem:[#allocation5 + $0x248] sm:$0xff]
    %v270 = vld [vmem:[#allocation5 + $0x250] sm:$0xff]
    %v271 = vld [vmem:[#allocation5 + $0x258] sm:$0xff]
    %v272 = vld [vmem:[#allocation5 + $0x260] sm:$0xff]
    %v273 = vld [vmem:[#allocation5 + $0x268] sm:$0xff]
    %v274 = vld [vmem:[#allocation5 + $0x270] sm:$0xff]
    %v275 = vld [vmem:[#allocation5 + $0x278] sm:$0xff]
    %v276 = vld [vmem:[#allocation5 + $0x280] sm:$0xff]
    %v277 = vld [vmem:[#allocation5 + $0x288] sm:$0xff]
    %v278 = vld [vmem:[#allocation5 + $0x290] sm:$0xff]
    %v279 = vld [vmem:[#allocation5 + $0x298] sm:$0xff]
    %v280 = vld [vmem:[#allocation5 + $0x2a0] sm:$0xff]
    %v281 = vld [vmem:[#allocation5 + $0x2a8] sm:$0xff]
    %v282 = vld [vmem:[#allocation5 + $0x2b0] sm:$0xff]
    %v283 = vld [vmem:[#allocation5 + $0x2b8] sm:$0xff]
    %v284 = vld [vmem:[#allocation5 + $0x2c0] sm:$0xff]
    %v285 = vld [vmem:[#allocation5 + $0x2c8] sm:$0xff]
    %v286 = vld [vmem:[#allocation5 + $0x2d0] sm:$0xff]
    %v287 = vld [vmem:[#allocation5 + $0x2d8] sm:$0xff]
    %v288 = vld [vmem:[#allocation5 + $0x2e0] sm:$0xff]
    %v289 = vld [vmem:[#allocation5 + $0x2e8] sm:$0xff]
    %v290 = vld [vmem:[#allocation5 + $0x2f0] sm:$0xff]
    %v291 = vld [vmem:[#allocation5 + $0x2f8] sm:$0xff]
    %v292 = vld [vmem:[#allocation5 + $0x300] sm:$0xff]
    %v293 = vld [vmem:[#allocation5 + $0x308] sm:$0xff]
    %v294 = vld [vmem:[#allocation5 + $0x310] sm:$0xff]
    %v295 = vld [vmem:[#allocation5 + $0x318] sm:$0xff]
    %v296 = vld [vmem:[#allocation5 + $0x320] sm:$0xff]
    %v297 = vld [vmem:[#allocation5 + $0x328] sm:$0xff]
    %v298 = vld [vmem:[#allocation5 + $0x330] sm:$0xff]
    %v299 = vld [vmem:[#allocation5 + $0x338] sm:$0xff]
    %v300 = vld [vmem:[#allocation5 + $0x340] sm:$0xff]
    %v301 = vld [vmem:[#allocation5 + $0x348] sm:$0xff]
    %v302 = vld [vmem:[#allocation5 + $0x350] sm:$0xff]
    %v303 = vld [vmem:[#allocation5 + $0x358] sm:$0xff]
    %v304 = vld [vmem:[#allocation5 + $0x360] sm:$0xff]
    %v305 = vld [vmem:[#allocation5 + $0x368] sm:$0xff]
    %v306 = vld [vmem:[#allocation5 + $0x370] sm:$0xff]
    %v307 = vld [vmem:[#allocation5 + $0x378] sm:$0xff]
    %v308 = vld [vmem:[#allocation5 + $0x380] sm:$0xff]
    %v309 = vld [vmem:[#allocation5 + $0x388] sm:$0xff]
    %v310 = vld [vmem:[#allocation5 + $0x390] sm:$0xff]
    %v311 = vld [vmem:[#allocation5 + $0x398] sm:$0xff]
    %v312 = vld [vmem:[#allocation5 + $0x3a0] sm:$0xff]
    %v313 = vld [vmem:[#allocation5 + $0x3a8] sm:$0xff]
    %v314 = vld [vmem:[#allocation5 + $0x3b0] sm:$0xff]
    %v315 = vld [vmem:[#allocation5 + $0x3b8] sm:$0xff]
    %v316 = vld [vmem:[#allocation5 + $0x3c0] sm:$0xff]
    %v317 = vld [vmem:[#allocation5 + $0x3c8] sm:$0xff]
    %v318 = vld [vmem:[#allocation5 + $0x3d0] sm:$0xff]
    %v319 = vld [vmem:[#allocation5 + $0x3d8] sm:$0xff]
    %v320 = vld [vmem:[#allocation5 + $0x3e0] sm:$0xff]
    %v321 = vld [vmem:[#allocation5 + $0x3e8] sm:$0xff]
    %v322 = vld [vmem:[#allocation5 + $0x3f0] sm:$0xff]
    %v323 = vld [vmem:[#allocation5 + $0x3f8] sm:$0xff]
    %v324 = vld [vmem:[#allocation5 + $0x400] sm:$0xff]
    %v325 = vld [vmem:[#allocation5 + $0x408] sm:$0xff]
    %v326 = vld [vmem:[#allocation5 + $0x410] sm:$0xff]
    %v327 = vld [vmem:[#allocation5 + $0x418] sm:$0xff]
    %v328 = vld [vmem:[#allocation5 + $0x420] sm:$0xff]
    %v329 = vld [vmem:[#allocation5 + $0x428] sm:$0xff]
    %v330 = vld [vmem:[#allocation5 + $0x430] sm:$0xff]
    %v331 = vld [vmem:[#allocation5 + $0x438] sm:$0xff]
    %v332 = vld [vmem:[#allocation5 + $0x440] sm:$0xff]
    %v333 = vld [vmem:[#allocation5 + $0x448] sm:$0xff]
    %v334 = vld [vmem:[#allocation5 + $0x450] sm:$0xff]
    %v335 = vld [vmem:[#allocation5 + $0x458] sm:$0xff]
    %v336 = vld [vmem:[#allocation5 + $0x460] sm:$0xff]
    %v337 = vld [vmem:[#allocation5 + $0x468] sm:$0xff]
    %v338 = vld [vmem:[#allocation5 + $0x470] sm:$0xff]
    %v339 = vld [vmem:[#allocation5 + $0x478] sm:$0xff]
    %v340 = vld [vmem:[#allocation5 + $0x480] sm:$0xff]
    %v341 = vld [vmem:[#allocation5 + $0x488] sm:$0xff]
    %v342 = vld [vmem:[#allocation5 + $0x490] sm:$0xff]
    %v343 = vld [vmem:[#allocation5 + $0x498] sm:$0xff]
    %v344 = vld [vmem:[#allocation5 + $0x4a0] sm:$0xff]
    %v345 = vld [vmem:[#allocation5 + $0x4a8] sm:$0xff]
    %v346 = vld [vmem:[#allocation5 + $0x4b0] sm:$0xff]
    %v347 = vld [vmem:[#allocation5 + $0x4b8] sm:$0xff]
    %v348 = vld [vmem:[#allocation5 + $0x4c0] sm:$0xff]
    %v349 = vld [vmem:[#allocation5 + $0x4c8] sm:$0xff]
    %v350 = vld [vmem:[#allocation5 + $0x4d0] sm:$0xff]
    %v351 = vld [vmem:[#allocation5 + $0x4d8] sm:$0xff]
    %v352 = vld [vmem:[#allocation5 + $0x4e0] sm:$0xff]
    %v353 = vld [vmem:[#allocation5 + $0x4e8] sm:$0xff]
    %v354 = vld [vmem:[#allocation5 + $0x4f0] sm:$0xff]
    %v355 = vld [vmem:[#allocation5 + $0x4f8] sm:$0xff]
    %v356 = vld [vmem:[#allocation5 + $0x500] sm:$0xff]
    %v357 = vld [vmem:[#allocation5 + $0x508] sm:$0xff]
    %v358 = vld [vmem:[#allocation5 + $0x510] sm:$0xff]
    %v359 = vld [vmem:[#allocation5 + $0x518] sm:$0xff]
    %v360 = vld [vmem:[#allocation5 + $0x520] sm:$0xff]
    %v361 = vld [vmem:[#allocation5 + $0x528] sm:$0xff]
    %v362 = vld [vmem:[#allocation5 + $0x530] sm:$0xff]
    %v363 = vld [vmem:[#allocation5 + $0x538] sm:$0xff]
    %v364 = vld [vmem:[#allocation5 + $0x540] sm:$0xff]
    %v365 = vld [vmem:[#allocation5 + $0x548] sm:$0xff]
    %v366 = vld [vmem:[#allocation5 + $0x550] sm:$0xff]
    %v367 = vld [vmem:[#allocation5 + $0x558] sm:$0xff]
    %v368 = vld [vmem:[#allocation5 + $0x560] sm:$0xff]
    %v369 = vld [vmem:[#allocation5 + $0x568] sm:$0xff]
    %v370 = vld [vmem:[#allocation5 + $0x570] sm:$0xff]
    %v371 = vld [vmem:[#allocation5 + $0x578] sm:$0xff]
    %v372 = vld [vmem:[#allocation5 + $0x580] sm:$0xff]
    %v373 = vld [vmem:[#allocation5 + $0x588] sm:$0xff]
    %v374 = vld [vmem:[#allocation5 + $0x590] sm:$0xff]
    %v375 = vld [vmem:[#allocation5 + $0x598] sm:$0xff]
    %v376 = vld [vmem:[#allocation5 + $0x5a0] sm:$0xff]
    %v377 = vld [vmem:[#allocation5 + $0x5a8] sm:$0xff]
    %v378 = vld [vmem:[#allocation5 + $0x5b0] sm:$0xff]
    %v379 = vld [vmem:[#allocation5 + $0x5b8] sm:$0xff]
    %v380 = vld [vmem:[#allocation5 + $0x5c0] sm:$0xff]
    %v381 = vld [vmem:[#allocation5 + $0x5c8] sm:$0xff]
    %v382 = vld [vmem:[#allocation5 + $0x5d0] sm:$0xff]
    %v383 = vld [vmem:[#allocation5 + $0x5d8] sm:$0xff]
    %v384 = vld [vmem:[#allocation5 + $0x5e0] sm:$0xff]
    %v385 = vld [vmem:[#allocation5 + $0x5e8] sm:$0xff]
    %v386 = vld [vmem:[#allocation5 + $0x5f0] sm:$0xff]
    %v387 = vld [vmem:[#allocation5 + $0x5f8] sm:$0xff]
    %v388 = vld [vmem:[#allocation5 + $0x600] sm:$0xff]
    %v389 = vld [vmem:[#allocation5 + $0x608] sm:$0xff]
    %v390 = vld [vmem:[#allocation5 + $0x610] sm:$0xff]
    %v391 = vld [vmem:[#allocation5 + $0x618] sm:$0xff]
    %v392 = vld [vmem:[#allocation5 + $0x620] sm:$0xff]
    %v393 = vld [vmem:[#allocation5 + $0x628] sm:$0xff]
    %v394 = vld [vmem:[#allocation5 + $0x630] sm:$0xff]
    %v395 = vld [vmem:[#allocation5 + $0x638] sm:$0xff]
    %v396 = vld [vmem:[#allocation5 + $0x640] sm:$0xff]
    %v397 = vld [vmem:[#allocation5 + $0x648] sm:$0xff]
    %v398 = vld [vmem:[#allocation5 + $0x650] sm:$0xff]
    %v399 = vld [vmem:[#allocation5 + $0x658] sm:$0xff]
    %v400 = vld [vmem:[#allocation5 + $0x660] sm:$0xff]
    %v401 = vld [vmem:[#allocation5 + $0x668] sm:$0xff]
    %v402 = vld [vmem:[#allocation5 + $0x670] sm:$0xff]
    %v403 = vld [vmem:[#allocation5 + $0x678] sm:$0xff]
    %v404 = vld [vmem:[#allocation5 + $0x680] sm:$0xff]
    %v405 = vld [vmem:[#allocation5 + $0x688] sm:$0xff]
    %v406 = vld [vmem:[#allocation5 + $0x690] sm:$0xff]
    %v407 = vld [vmem:[#allocation5 + $0x698] sm:$0xff]
    %v408 = vld [vmem:[#allocation5 + $0x6a0] sm:$0xff]
    %v409 = vld [vmem:[#allocation5 + $0x6a8] sm:$0xff]
    %v410 = vld [vmem:[#allocation5 + $0x6b0] sm:$0xff]
    %v411 = vld [vmem:[#allocation5 + $0x6b8] sm:$0xff]
    %v412 = vld [vmem:[#allocation5 + $0x6c0] sm:$0xff]
    %v413 = vld [vmem:[#allocation5 + $0x6c8] sm:$0xff]
    %v414 = vld [vmem:[#allocation5 + $0x6d0] sm:$0xff]
    %v415 = vld [vmem:[#allocation5 + $0x6d8] sm:$0xff]
    %v416 = vld [vmem:[#allocation5 + $0x6e0] sm:$0xff]
    %v417 = vld [vmem:[#allocation5 + $0x6e8] sm:$0xff]
    %v418 = vld [vmem:[#allocation5 + $0x6f0] sm:$0xff]
    %v419 = vld [vmem:[#allocation5 + $0x6f8] sm:$0xff]
    %v420 = vld [vmem:[#allocation5 + $0x700] sm:$0xff]
    %v421 = vld [vmem:[#allocation5 + $0x708] sm:$0xff]
    %v422 = vld [vmem:[#allocation5 + $0x710] sm:$0xff]
    %v423 = vld [vmem:[#allocation5 + $0x718] sm:$0xff]
    %v424 = vld [vmem:[#allocation5 + $0x720] sm:$0xff]
    %v425 = vld [vmem:[#allocation5 + $0x728] sm:$0xff]
    %v426 = vld [vmem:[#allocation5 + $0x730] sm:$0xff]
    %v427 = vld [vmem:[#allocation5 + $0x738] sm:$0xff]
    %v428 = vld [vmem:[#allocation5 + $0x740] sm:$0xff]
    %v429 = vld [vmem:[#allocation5 + $0x748] sm:$0xff]
    %v430 = vld [vmem:[#allocation5 + $0x750] sm:$0xff]
    %v431 = vld [vmem:[#allocation5 + $0x758] sm:$0xff]
    %v432 = vld [vmem:[#allocation5 + $0x760] sm:$0xff]
    %v433 = vld [vmem:[#allocation5 + $0x768] sm:$0xff]
    %v434 = vld [vmem:[#allocation5 + $0x770] sm:$0xff]
    %v435 = vld [vmem:[#allocation5 + $0x778] sm:$0xff]
    %v436 = vld [vmem:[#allocation5 + $0x780] sm:$0xff]
    %v437 = vld [vmem:[#allocation5 + $0x788] sm:$0xff]
    %v438 = vld [vmem:[#allocation5 + $0x790] sm:$0xff]
    %v439 = vld [vmem:[#allocation5 + $0x798] sm:$0xff]
    %v440 = vld [vmem:[#allocation5 + $0x7a0] sm:$0xff]
    %v441 = vld [vmem:[#allocation5 + $0x7a8] sm:$0xff]
    %v442 = vld [vmem:[#allocation5 + $0x7b0] sm:$0xff]
    %v443 = vld [vmem:[#allocation5 + $0x7b8] sm:$0xff]
    %v444 = vld [vmem:[#allocation5 + $0x7c0] sm:$0xff]
    %v445 = vld [vmem:[#allocation5 + $0x7c8] sm:$0xff]
    %v446 = vld [vmem:[#allocation5 + $0x7d0] sm:$0xff]
    %v447 = vld [vmem:[#allocation5 + $0x7d8] sm:$0xff]
    %v448 = vld [vmem:[#allocation5 + $0x7e0] sm:$0xff]
    %v449 = vld [vmem:[#allocation5 + $0x7e8] sm:$0xff]
    %v450 = vld [vmem:[#allocation5 + $0x7f0] sm:$0xff]
    %v451 = vld [vmem:[#allocation5 + $0x7f8] sm:$0xff]
    %v452 = vld [vmem:[#allocation5 + $0x800] sm:$0xff]
    %v453 = vld [vmem:[#allocation5 + $0x808] sm:$0xff]
    %v454 = vld [vmem:[#allocation5 + $0x810] sm:$0xff]
    %v455 = vld [vmem:[#allocation5 + $0x818] sm:$0xff]
    %v456 = vld [vmem:[#allocation5 + $0x820] sm:$0xff]
    %v457 = vld [vmem:[#allocation5 + $0x828] sm:$0xff]
    %v458 = vld [vmem:[#allocation5 + $0x830] sm:$0xff]
    %v459 = vld [vmem:[#allocation5 + $0x838] sm:$0xff]
    %v460 = vld [vmem:[#allocation5 + $0x840] sm:$0xff]
    %v461 = vld [vmem:[#allocation5 + $0x848] sm:$0xff]
    %v462 = vld [vmem:[#allocation5 + $0x850] sm:$0xff]
    %v463 = vld [vmem:[#allocation5 + $0x858] sm:$0xff]
    %v464 = vld [vmem:[#allocation5 + $0x860] sm:$0xff]
    %v465 = vld [vmem:[#allocation5 + $0x868] sm:$0xff]
    %v466 = vld [vmem:[#allocation5 + $0x870] sm:$0xff]
    %v467 = vld [vmem:[#allocation5 + $0x878] sm:$0xff]
    %v468 = vld [vmem:[#allocation5 + $0x880] sm:$0xff]
    %v469 = vld [vmem:[#allocation5 + $0x888] sm:$0xff]
    %v470 = vld [vmem:[#allocation5 + $0x890] sm:$0xff]
    %v471 = vld [vmem:[#allocation5 + $0x898] sm:$0xff]
    %v472 = vld [vmem:[#allocation5 + $0x8a0] sm:$0xff]
    %v473 = vld [vmem:[#allocation5 + $0x8a8] sm:$0xff]
    %v474 = vld [vmem:[#allocation5 + $0x8b0] sm:$0xff]
    %v475 = vld [vmem:[#allocation5 + $0x8b8] sm:$0xff]
    %v476 = vld [vmem:[#allocation5 + $0x8c0] sm:$0xff]
    %v477 = vld [vmem:[#allocation5 + $0x8c8] sm:$0xff]
    %v478 = vld [vmem:[#allocation5 + $0x8d0] sm:$0xff]
    %v479 = vld [vmem:[#allocation5 + $0x8d8] sm:$0xff]
    %v480 = vld [vmem:[#allocation5 + $0x8e0] sm:$0xff]
    %v481 = vld [vmem:[#allocation5 + $0x8e8] sm:$0xff]
    %v482 = vld [vmem:[#allocation5 + $0x8f0] sm:$0xff]
    %v483 = vld [vmem:[#allocation5 + $0x8f8] sm:$0xff]
    %v484 = vld [vmem:[#allocation5 + $0x900] sm:$0xff]
    %v485 = vld [vmem:[#allocation5 + $0x908] sm:$0xff]
    %v486 = vld [vmem:[#allocation5 + $0x910] sm:$0xff]
    %v487 = vld [vmem:[#allocation5 + $0x918] sm:$0xff]
    %v488 = vld [vmem:[#allocation5 + $0x920] sm:$0xff]
    %v489 = vld [vmem:[#allocation5 + $0x928] sm:$0xff]
    %v490 = vld [vmem:[#allocation5 + $0x930] sm:$0xff]
    %v491 = vld [vmem:[#allocation5 + $0x938] sm:$0xff]
    %v492 = vld [vmem:[#allocation5 + $0x940] sm:$0xff]
    %v493 = vld [vmem:[#allocation5 + $0x948] sm:$0xff]
    %v494 = vld [vmem:[#allocation5 + $0x950] sm:$0xff]
    %v495 = vld [vmem:[#allocation5 + $0x958] sm:$0xff]
    %v496 = vld [vmem:[#allocation5 + $0x960] sm:$0xff]
    %v497 = vld [vmem:[#allocation5 + $0x968] sm:$0xff]
    %v498 = vld [vmem:[#allocation5 + $0x970] sm:$0xff]
    %v499 = vld [vmem:[#allocation5 + $0x978] sm:$0xff]
    %v500 = vld [vmem:[#allocation5 + $0x980] sm:$0xff]
    %v501 = vld [vmem:[#allocation5 + $0x988] sm:$0xff]
    %v502 = vld [vmem:[#allocation5 + $0x990] sm:$0xff]
    %v503 = vld [vmem:[#allocation5 + $0x998] sm:$0xff]
    %v504 = vld [vmem:[#allocation5 + $0x9a0] sm:$0xff]
    %v505 = vld [vmem:[#allocation5 + $0x9a8] sm:$0xff]
    %v506 = vld [vmem:[#allocation5 + $0x9b0] sm:$0xff]
    %v507 = vld [vmem:[#allocation5 + $0x9b8] sm:$0xff]
    %v508 = vld [vmem:[#allocation5 + $0x9c0] sm:$0xff]
    %v509 = vld [vmem:[#allocation5 + $0x9c8] sm:$0xff]
    %v510 = vld [vmem:[#allocation5 + $0x9d0] sm:$0xff]
    %v511 = vld [vmem:[#allocation5 + $0x9d8] sm:$0xff]
    %v512 = vld [vmem:[#allocation5 + $0x9e0] sm:$0xff]
    %v513 = vld [vmem:[#allocation5 + $0x9e8] sm:$0xff]
    %v514 = vld [vmem:[#allocation5 + $0x9f0] sm:$0xff]
    %v515 = vld [vmem:[#allocation5 + $0x9f8] sm:$0xff]
    %v516 = vld [vmem:[#allocation5 + $0xa00] sm:$0xff]
    %v517 = vld [vmem:[#allocation5 + $0xa08] sm:$0xff]
    %v518 = vld [vmem:[#allocation5 + $0xa10] sm:$0xff]
    %v519 = vld [vmem:[#allocation5 + $0xa18] sm:$0xff]
    %v520 = vld [vmem:[#allocation5 + $0xa20] sm:$0xff]
    %v521 = vld [vmem:[#allocation5 + $0xa28] sm:$0xff]
    %v522 = vld [vmem:[#allocation5 + $0xa30] sm:$0xff]
    %v523 = vld [vmem:[#allocation5 + $0xa38] sm:$0xff]
    %v524 = vld [vmem:[#allocation5 + $0xa40] sm:$0xff]
    %v525 = vld [vmem:[#allocation5 + $0xa48] sm:$0xff]
    %v526 = vld [vmem:[#allocation5 + $0xa50] sm:$0xff]
    %v527 = vld [vmem:[#allocation5 + $0xa58] sm:$0xff]
    %v528 = vld [vmem:[#allocation5 + $0xa60] sm:$0xff]
    %v529 = vld [vmem:[#allocation5 + $0xa68] sm:$0xff]
    %v530 = vld [vmem:[#allocation5 + $0xa70] sm:$0xff]
    %v531 = vld [vmem:[#allocation5 + $0xa78] sm:$0xff]
    %v532 = vld [vmem:[#allocation5 + $0xa80] sm:$0xff]
    %v533 = vld [vmem:[#allocation5 + $0xa88] sm:$0xff]
    %v534 = vld [vmem:[#allocation5 + $0xa90] sm:$0xff]
    %v535 = vld [vmem:[#allocation5 + $0xa98] sm:$0xff]
    %v536 = vld [vmem:[#allocation5 + $0xaa0] sm:$0xff]
    %v537 = vld [vmem:[#allocation5 + $0xaa8] sm:$0xff]
    %v538 = vld [vmem:[#allocation5 + $0xab0] sm:$0xff]
    %v539 = vld [vmem:[#allocation5 + $0xab8] sm:$0xff]
    %v540 = vld [vmem:[#allocation5 + $0xac0] sm:$0xff]
    %v541 = vld [vmem:[#allocation5 + $0xac8] sm:$0xff]
    %v542 = vld [vmem:[#allocation5 + $0xad0] sm:$0xff]
    %v543 = vld [vmem:[#allocation5 + $0xad8] sm:$0xff]
    %v544 = vld [vmem:[#allocation5 + $0xae0] sm:$0xff]
    %v545 = vld [vmem:[#allocation5 + $0xae8] sm:$0xff]
    %v546 = vld [vmem:[#allocation5 + $0xaf0] sm:$0xff]
    %v547 = vld [vmem:[#allocation5 + $0xaf8] sm:$0xff]
    %v548 = vld [vmem:[#allocation5 + $0xb00] sm:$0xff]
    %v549 = vld [vmem:[#allocation5 + $0xb08] sm:$0xff]
    %v550 = vld [vmem:[#allocation5 + $0xb10] sm:$0xff]
    %v551 = vld [vmem:[#allocation5 + $0xb18] sm:$0xff]
    %v552 = vld [vmem:[#allocation5 + $0xb20] sm:$0xff]
    %v553 = vld [vmem:[#allocation5 + $0xb28] sm:$0xff]
    %v554 = vld [vmem:[#allocation5 + $0xb30] sm:$0xff]
    %v555 = vld [vmem:[#allocation5 + $0xb38] sm:$0xff]
    %v556 = vld [vmem:[#allocation5 + $0xb40] sm:$0xff]
    %v557 = vld [vmem:[#allocation5 + $0xb48] sm:$0xff]
    %v558 = vld [vmem:[#allocation5 + $0xb50] sm:$0xff]
    %v559 = vld [vmem:[#allocation5 + $0xb58] sm:$0xff]
    %v560 = vld [vmem:[#allocation5 + $0xb60] sm:$0xff]
    %v561 = vld [vmem:[#allocation5 + $0xb68] sm:$0xff]
    %v562 = vld [vmem:[#allocation5 + $0xb70] sm:$0xff]
    %v563 = vld [vmem:[#allocation5 + $0xb78] sm:$0xff]
    %v564 = vld [vmem:[#allocation5 + $0xb80] sm:$0xff]
    %v565 = vld [vmem:[#allocation5 + $0xb88] sm:$0xff]
    %v566 = vld [vmem:[#allocation5 + $0xb90] sm:$0xff]
    %v567 = vld [vmem:[#allocation5 + $0xb98] sm:$0xff]
    %v568 = vld [vmem:[#allocation5 + $0xba0] sm:$0xff]
    %v569 = vld [vmem:[#allocation5 + $0xba8] sm:$0xff]
    %v570 = vld [vmem:[#allocation5 + $0xbb0] sm:$0xff]
    %v571 = vld [vmem:[#allocation5 + $0xbb8] sm:$0xff]
    %v572 = vld [vmem:[#allocation5 + $0xbc0] sm:$0xff]
    %v573 = vld [vmem:[#allocation5 + $0xbc8] sm:$0xff]
    %v574 = vld [vmem:[#allocation5 + $0xbd0] sm:$0xff]
    %v575 = vld [vmem:[#allocation5 + $0xbd8] sm:$0xff]
    %v576 = vld [vmem:[#allocation5 + $0xbe0] sm:$0xff]
    %v577 = vld [vmem:[#allocation5 + $0xbe8] sm:$0xff]
    %v578 = vld [vmem:[#allocation5 + $0xbf0] sm:$0xff]
    %v579 = vld [vmem:[#allocation5 + $0xbf8] sm:$0xff]
    %v580 = vld [vmem:[#allocation5 + $0xc00] sm:$0xff]
    %v581 = vld [vmem:[#allocation5 + $0xc08] sm:$0xff]
    %v582 = vld [vmem:[#allocation5 + $0xc10] sm:$0xff]
    %v583 = vld [vmem:[#allocation5 + $0xc18] sm:$0xff]
    %v584 = vld [vmem:[#allocation5 + $0xc20] sm:$0xff]
    %v585 = vld [vmem:[#allocation5 + $0xc28] sm:$0xff]
    %v586 = vld [vmem:[#allocation5 + $0xc30] sm:$0xff]
    %v587 = vld [vmem:[#allocation5 + $0xc38] sm:$0xff]
    %v588 = vld [vmem:[#allocation5 + $0xc40] sm:$0xff]
    %v589 = vld [vmem:[#allocation5 + $0xc48] sm:$0xff]
    %v590 = vld [vmem:[#allocation5 + $0xc50] sm:$0xff]
    %v591 = vld [vmem:[#allocation5 + $0xc58] sm:$0xff]
    %v592 = vld [vmem:[#allocation5 + $0xc60] sm:$0xff]
    %v593 = vld [vmem:[#allocation5 + $0xc68] sm:$0xff]
    %v594 = vld [vmem:[#allocation5 + $0xc70] sm:$0xff]
    %v595 = vld [vmem:[#allocation5 + $0xc78] sm:$0xff]
    %v596 = vld [vmem:[#allocation5 + $0xc80] sm:$0xff]
    %v597 = vld [vmem:[#allocation5 + $0xc88] sm:$0xff]
    %v598 = vld [vmem:[#allocation5 + $0xc90] sm:$0xff]
    %v599 = vld [vmem:[#allocation5 + $0xc98] sm:$0xff]
    %v600 = vld [vmem:[#allocation5 + $0xca0] sm:$0xff]
    %v601 = vld [vmem:[#allocation5 + $0xca8] sm:$0xff]
    %v602 = vld [vmem:[#allocation5 + $0xcb0] sm:$0xff]
    %v603 = vld [vmem:[#allocation5 + $0xcb8] sm:$0xff]
    %v604 = vld [vmem:[#allocation5 + $0xcc0] sm:$0xff]
    %v605 = vld [vmem:[#allocation5 + $0xcc8] sm:$0xff]
    %v606 = vld [vmem:[#allocation5 + $0xcd0] sm:$0xff]
    %v607 = vld [vmem:[#allocation5 + $0xcd8] sm:$0xff]
    %v608 = vld [vmem:[#allocation5 + $0xce0] sm:$0xff]
    %v609 = vld [vmem:[#allocation5 + $0xce8] sm:$0xff]
    %v610 = vld [vmem:[#allocation5 + $0xcf0] sm:$0xff]
    %v611 = vld [vmem:[#allocation5 + $0xcf8] sm:$0xff]
    %v612 = vld [vmem:[#allocation5 + $0xd00] sm:$0xff]
    %v613 = vld [vmem:[#allocation5 + $0xd08] sm:$0xff]
    %v614 = vld [vmem:[#allocation5 + $0xd10] sm:$0xff]
    %v615 = vld [vmem:[#allocation5 + $0xd18] sm:$0xff]
    %v616 = vld [vmem:[#allocation5 + $0xd20] sm:$0xff]
    %v617 = vld [vmem:[#allocation5 + $0xd28] sm:$0xff]
    %v618 = vld [vmem:[#allocation5 + $0xd30] sm:$0xff]
    %v619 = vld [vmem:[#allocation5 + $0xd38] sm:$0xff]
    %v620 = vld [vmem:[#allocation5 + $0xd40] sm:$0xff]
    %v621 = vld [vmem:[#allocation5 + $0xd48] sm:$0xff]
    %v622 = vld [vmem:[#allocation5 + $0xd50] sm:$0xff]
    %v623 = vld [vmem:[#allocation5 + $0xd58] sm:$0xff]
    %v624 = vld [vmem:[#allocation5 + $0xd60] sm:$0xff]
    %v625 = vld [vmem:[#allocation5 + $0xd68] sm:$0xff]
    %v626 = vld [vmem:[#allocation5 + $0xd70] sm:$0xff]
    %v627 = vld [vmem:[#allocation5 + $0xd78] sm:$0xff]
    %v628 = vld [vmem:[#allocation5 + $0xd80] sm:$0xff]
    %v629 = vld [vmem:[#allocation5 + $0xd88] sm:$0xff]
    %v630 = vld [vmem:[#allocation5 + $0xd90] sm:$0xff]
    %v631 = vld [vmem:[#allocation5 + $0xd98] sm:$0xff]
    %v632 = vld [vmem:[#allocation5 + $0xda0] sm:$0xff]
    %v633 = vld [vmem:[#allocation5 + $0xda8] sm:$0xff]
    %v634 = vld [vmem:[#allocation5 + $0xdb0] sm:$0xff]
    %v635 = vld [vmem:[#allocation5 + $0xdb8] sm:$0xff]
    %v636 = vld [vmem:[#allocation5 + $0xdc0] sm:$0xff]
    %v637 = vld [vmem:[#allocation5 + $0xdc8] sm:$0xff]
    %v638 = vld [vmem:[#allocation5 + $0xdd0] sm:$0xff]
    %v639 = vld [vmem:[#allocation5 + $0xdd8] sm:$0xff]
    %v640 = vld [vmem:[#allocation5 + $0xde0] sm:$0xff]
    %v641 = vld [vmem:[#allocation5 + $0xde8] sm:$0xff]
    %v642 = vld [vmem:[#allocation5 + $0xdf0] sm:$0xff]
    %v643 = vld [vmem:[#allocation5 + $0xdf8] sm:$0xff]
    %v644 = vunpack.c.l.bf16 %v196
    %v645 = vunpack.c.h.bf16 %v196
    %v646 = vunpack.c.l.bf16 %v197
    %v647 = vunpack.c.h.bf16 %v197
    %v648 = vunpack.c.l.bf16 %v198
    %v649 = vunpack.c.h.bf16 %v198
    %v650 = vunpack.c.l.bf16 %v199
    %v651 = vunpack.c.h.bf16 %v199
    %v652 = vunpack.c.l.bf16 %v200
    %v653 = vunpack.c.h.bf16 %v200
    %v654 = vunpack.c.l.bf16 %v201
    %v655 = vunpack.c.h.bf16 %v201
    %v656 = vunpack.c.l.bf16 %v202
    %v657 = vunpack.c.h.bf16 %v202
    %v658 = vunpack.c.l.bf16 %v203
    %v659 = vunpack.c.h.bf16 %v203
    %v660 = vunpack.c.l.bf16 %v204
    %v661 = vunpack.c.h.bf16 %v204
    %v662 = vunpack.c.l.bf16 %v205
    %v663 = vunpack.c.h.bf16 %v205
    %v664 = vunpack.c.l.bf16 %v206
    %v665 = vunpack.c.h.bf16 %v206
    %v666 = vunpack.c.l.bf16 %v207
    %v667 = vunpack.c.h.bf16 %v207
    %v668 = vunpack.c.l.bf16 %v208
    %v669 = vunpack.c.h.bf16 %v208
    %v670 = vunpack.c.l.bf16 %v209
    %v671 = vunpack.c.h.bf16 %v209
    %v672 = vunpack.c.l.bf16 %v210
    %v673 = vunpack.c.h.bf16 %v210
    %v674 = vunpack.c.l.bf16 %v211
    %v675 = vunpack.c.h.bf16 %v211
    %v676 = vunpack.c.l.bf16 %v212
    %v677 = vunpack.c.h.bf16 %v212
    %v678 = vunpack.c.l.bf16 %v213
    %v679 = vunpack.c.h.bf16 %v213
    %v680 = vunpack.c.l.bf16 %v214
    %v681 = vunpack.c.h.bf16 %v214
    %v682 = vunpack.c.l.bf16 %v215
    %v683 = vunpack.c.h.bf16 %v215
    %v684 = vunpack.c.l.bf16 %v216
    %v685 = vunpack.c.h.bf16 %v216
    %v686 = vunpack.c.l.bf16 %v217
    %v687 = vunpack.c.h.bf16 %v217
    %v688 = vunpack.c.l.bf16 %v218
    %v689 = vunpack.c.h.bf16 %v218
    %v690 = vunpack.c.l.bf16 %v219
    %v691 = vunpack.c.h.bf16 %v219
    %v692 = vunpack.c.l.bf16 %v220
    %v693 = vunpack.c.h.bf16 %v220
    %v694 = vunpack.c.l.bf16 %v221
    %v695 = vunpack.c.h.bf16 %v221
    %v696 = vunpack.c.l.bf16 %v222
    %v697 = vunpack.c.h.bf16 %v222
    %v698 = vunpack.c.l.bf16 %v223
    %v699 = vunpack.c.h.bf16 %v223
    %v700 = vunpack.c.l.bf16 %v224
    %v701 = vunpack.c.h.bf16 %v224
    %v702 = vunpack.c.l.bf16 %v225
    %v703 = vunpack.c.h.bf16 %v225
    %v704 = vunpack.c.l.bf16 %v226
    %v705 = vunpack.c.h.bf16 %v226
    %v706 = vunpack.c.l.bf16 %v227
    %v707 = vunpack.c.h.bf16 %v227
    %v708 = vunpack.c.l.bf16 %v228
    %v709 = vunpack.c.h.bf16 %v228
    %v710 = vunpack.c.l.bf16 %v229
    %v711 = vunpack.c.h.bf16 %v229
    %v712 = vunpack.c.l.bf16 %v230
    %v713 = vunpack.c.h.bf16 %v230
    %v714 = vunpack.c.l.bf16 %v231
    %v715 = vunpack.c.h.bf16 %v231
    %v716 = vunpack.c.l.bf16 %v232
    %v717 = vunpack.c.h.bf16 %v232
    %v718 = vunpack.c.l.bf16 %v233
    %v719 = vunpack.c.h.bf16 %v233
    %v720 = vunpack.c.l.bf16 %v234
    %v721 = vunpack.c.h.bf16 %v234
    %v722 = vunpack.c.l.bf16 %v235
    %v723 = vunpack.c.h.bf16 %v235
    %v724 = vunpack.c.l.bf16 %v236
    %v725 = vunpack.c.h.bf16 %v236
    %v726 = vunpack.c.l.bf16 %v237
    %v727 = vunpack.c.h.bf16 %v237
    %v728 = vunpack.c.l.bf16 %v238
    %v729 = vunpack.c.h.bf16 %v238
    %v730 = vunpack.c.l.bf16 %v239
    %v731 = vunpack.c.h.bf16 %v239
    %v732 = vunpack.c.l.bf16 %v240
    %v733 = vunpack.c.h.bf16 %v240
    %v734 = vunpack.c.l.bf16 %v241
    %v735 = vunpack.c.h.bf16 %v241
    %v736 = vunpack.c.l.bf16 %v242
    %v737 = vunpack.c.h.bf16 %v242
    %v738 = vunpack.c.l.bf16 %v243
    %v739 = vunpack.c.h.bf16 %v243
    %v740 = vunpack.c.l.bf16 %v244
    %v741 = vunpack.c.h.bf16 %v244
    %v742 = vunpack.c.l.bf16 %v245
    %v743 = vunpack.c.h.bf16 %v245
    %v744 = vunpack.c.l.bf16 %v246
    %v745 = vunpack.c.h.bf16 %v246
    %v746 = vunpack.c.l.bf16 %v247
    %v747 = vunpack.c.h.bf16 %v247
    %v748 = vunpack.c.l.bf16 %v248
    %v749 = vunpack.c.h.bf16 %v248
    %v750 = vunpack.c.l.bf16 %v249
    %v751 = vunpack.c.h.bf16 %v249
    %v752 = vunpack.c.l.bf16 %v250
    %v753 = vunpack.c.h.bf16 %v250
    %v754 = vunpack.c.l.bf16 %v251
    %v755 = vunpack.c.h.bf16 %v251
    %v756 = vunpack.c.l.bf16 %v252
    %v757 = vunpack.c.h.bf16 %v252
    %v758 = vunpack.c.l.bf16 %v253
    %v759 = vunpack.c.h.bf16 %v253
    %v760 = vunpack.c.l.bf16 %v254
    %v761 = vunpack.c.h.bf16 %v254
    %v762 = vunpack.c.l.bf16 %v255
    %v763 = vunpack.c.h.bf16 %v255
    %v764 = vunpack.c.l.bf16 %v256
    %v765 = vunpack.c.h.bf16 %v256
    %v766 = vunpack.c.l.bf16 %v257
    %v767 = vunpack.c.h.bf16 %v257
    %v768 = vunpack.c.l.bf16 %v258
    %v769 = vunpack.c.h.bf16 %v258
    %v770 = vunpack.c.l.bf16 %v259
    %v771 = vunpack.c.h.bf16 %v259
    %v772 = vunpack.c.l.bf16 %v260
    %v773 = vunpack.c.h.bf16 %v260
    %v774 = vunpack.c.l.bf16 %v261
    %v775 = vunpack.c.h.bf16 %v261
    %v776 = vunpack.c.l.bf16 %v262
    %v777 = vunpack.c.h.bf16 %v262
    %v778 = vunpack.c.l.bf16 %v263
    %v779 = vunpack.c.h.bf16 %v263
    %v780 = vunpack.c.l.bf16 %v264
    %v781 = vunpack.c.h.bf16 %v264
    %v782 = vunpack.c.l.bf16 %v265
    %v783 = vunpack.c.h.bf16 %v265
    %v784 = vunpack.c.l.bf16 %v266
    %v785 = vunpack.c.h.bf16 %v266
    %v786 = vunpack.c.l.bf16 %v267
    %v787 = vunpack.c.h.bf16 %v267
    %v788 = vunpack.c.l.bf16 %v268
    %v789 = vunpack.c.h.bf16 %v268
    %v790 = vunpack.c.l.bf16 %v269
    %v791 = vunpack.c.h.bf16 %v269
    %v792 = vunpack.c.l.bf16 %v270
    %v793 = vunpack.c.h.bf16 %v270
    %v794 = vunpack.c.l.bf16 %v271
    %v795 = vunpack.c.h.bf16 %v271
    %v796 = vunpack.c.l.bf16 %v272
    %v797 = vunpack.c.h.bf16 %v272
    %v798 = vunpack.c.l.bf16 %v273
    %v799 = vunpack.c.h.bf16 %v273
    %v800 = vunpack.c.l.bf16 %v274
    %v801 = vunpack.c.h.bf16 %v274
    %v802 = vunpack.c.l.bf16 %v275
    %v803 = vunpack.c.h.bf16 %v275
    %v804 = vunpack.c.l.bf16 %v276
    %v805 = vunpack.c.h.bf16 %v276
    %v806 = vunpack.c.l.bf16 %v277
    %v807 = vunpack.c.h.bf16 %v277
    %v808 = vunpack.c.l.bf16 %v278
    %v809 = vunpack.c.h.bf16 %v278
    %v810 = vunpack.c.l.bf16 %v279
    %v811 = vunpack.c.h.bf16 %v279
    %v812 = vunpack.c.l.bf16 %v280
    %v813 = vunpack.c.h.bf16 %v280
    %v814 = vunpack.c.l.bf16 %v281
    %v815 = vunpack.c.h.bf16 %v281
    %v816 = vunpack.c.l.bf16 %v282
    %v817 = vunpack.c.h.bf16 %v282
    %v818 = vunpack.c.l.bf16 %v283
    %v819 = vunpack.c.h.bf16 %v283
    %v820 = vunpack.c.l.bf16 %v284
    %v821 = vunpack.c.h.bf16 %v284
    %v822 = vunpack.c.l.bf16 %v285
    %v823 = vunpack.c.h.bf16 %v285
    %v824 = vunpack.c.l.bf16 %v286
    %v825 = vunpack.c.h.bf16 %v286
    %v826 = vunpack.c.l.bf16 %v287
    %v827 = vunpack.c.h.bf16 %v287
    %v828 = vunpack.c.l.bf16 %v288
    %v829 = vunpack.c.h.bf16 %v288
    %v830 = vunpack.c.l.bf16 %v289
    %v831 = vunpack.c.h.bf16 %v289
    %v832 = vunpack.c.l.bf16 %v290
    %v833 = vunpack.c.h.bf16 %v290
    %v834 = vunpack.c.l.bf16 %v291
    %v835 = vunpack.c.h.bf16 %v291
    %v836 = vunpack.c.l.bf16 %v292
    %v837 = vunpack.c.h.bf16 %v292
    %v838 = vunpack.c.l.bf16 %v293
    %v839 = vunpack.c.h.bf16 %v293
    %v840 = vunpack.c.l.bf16 %v294
    %v841 = vunpack.c.h.bf16 %v294
    %v842 = vunpack.c.l.bf16 %v295
    %v843 = vunpack.c.h.bf16 %v295
    %v844 = vunpack.c.l.bf16 %v296
    %v845 = vunpack.c.h.bf16 %v296
    %v846 = vunpack.c.l.bf16 %v297
    %v847 = vunpack.c.h.bf16 %v297
    %v848 = vunpack.c.l.bf16 %v298
    %v849 = vunpack.c.h.bf16 %v298
    %v850 = vunpack.c.l.bf16 %v299
    %v851 = vunpack.c.h.bf16 %v299
    %v852 = vunpack.c.l.bf16 %v300
    %v853 = vunpack.c.h.bf16 %v300
    %v854 = vunpack.c.l.bf16 %v301
    %v855 = vunpack.c.h.bf16 %v301
    %v856 = vunpack.c.l.bf16 %v302
    %v857 = vunpack.c.h.bf16 %v302
    %v858 = vunpack.c.l.bf16 %v303
    %v859 = vunpack.c.h.bf16 %v303
    %v860 = vunpack.c.l.bf16 %v304
    %v861 = vunpack.c.h.bf16 %v304
    %v862 = vunpack.c.l.bf16 %v305
    %v863 = vunpack.c.h.bf16 %v305
    %v864 = vunpack.c.l.bf16 %v306
    %v865 = vunpack.c.h.bf16 %v306
    %v866 = vunpack.c.l.bf16 %v307
    %v867 = vunpack.c.h.bf16 %v307
    %v868 = vunpack.c.l.bf16 %v308
    %v869 = vunpack.c.h.bf16 %v308
    %v870 = vunpack.c.l.bf16 %v309
    %v871 = vunpack.c.h.bf16 %v309
    %v872 = vunpack.c.l.bf16 %v310
    %v873 = vunpack.c.h.bf16 %v310
    %v874 = vunpack.c.l.bf16 %v311
    %v875 = vunpack.c.h.bf16 %v311
    %v876 = vunpack.c.l.bf16 %v312
    %v877 = vunpack.c.h.bf16 %v312
    %v878 = vunpack.c.l.bf16 %v313
    %v879 = vunpack.c.h.bf16 %v313
    %v880 = vunpack.c.l.bf16 %v314
    %v881 = vunpack.c.h.bf16 %v314
    %v882 = vunpack.c.l.bf16 %v315
    %v883 = vunpack.c.h.bf16 %v315
    %v884 = vunpack.c.l.bf16 %v316
    %v885 = vunpack.c.h.bf16 %v316
    %v886 = vunpack.c.l.bf16 %v317
    %v887 = vunpack.c.h.bf16 %v317
    %v888 = vunpack.c.l.bf16 %v318
    %v889 = vunpack.c.h.bf16 %v318
    %v890 = vunpack.c.l.bf16 %v319
    %v891 = vunpack.c.h.bf16 %v319
    %v892 = vunpack.c.l.bf16 %v320
    %v893 = vunpack.c.h.bf16 %v320
    %v894 = vunpack.c.l.bf16 %v321
    %v895 = vunpack.c.h.bf16 %v321
    %v896 = vunpack.c.l.bf16 %v322
    %v897 = vunpack.c.h.bf16 %v322
    %v898 = vunpack.c.l.bf16 %v323
    %v899 = vunpack.c.h.bf16 %v323
    %v900 = vunpack.c.l.bf16 %v324
    %v901 = vunpack.c.h.bf16 %v324
    %v902 = vunpack.c.l.bf16 %v325
    %v903 = vunpack.c.h.bf16 %v325
    %v904 = vunpack.c.l.bf16 %v326
    %v905 = vunpack.c.h.bf16 %v326
    %v906 = vunpack.c.l.bf16 %v327
    %v907 = vunpack.c.h.bf16 %v327
    %v908 = vunpack.c.l.bf16 %v328
    %v909 = vunpack.c.h.bf16 %v328
    %v910 = vunpack.c.l.bf16 %v329
    %v911 = vunpack.c.h.bf16 %v329
    %v912 = vunpack.c.l.bf16 %v330
    %v913 = vunpack.c.h.bf16 %v330
    %v914 = vunpack.c.l.bf16 %v331
    %v915 = vunpack.c.h.bf16 %v331
    %v916 = vunpack.c.l.bf16 %v332
    %v917 = vunpack.c.h.bf16 %v332
    %v918 = vunpack.c.l.bf16 %v333
    %v919 = vunpack.c.h.bf16 %v333
    %v920 = vunpack.c.l.bf16 %v334
    %v921 = vunpack.c.h.bf16 %v334
    %v922 = vunpack.c.l.bf16 %v335
    %v923 = vunpack.c.h.bf16 %v335
    %v924 = vunpack.c.l.bf16 %v336
    %v925 = vunpack.c.h.bf16 %v336
    %v926 = vunpack.c.l.bf16 %v337
    %v927 = vunpack.c.h.bf16 %v337
    %v928 = vunpack.c.l.bf16 %v338
    %v929 = vunpack.c.h.bf16 %v338
    %v930 = vunpack.c.l.bf16 %v339
    %v931 = vunpack.c.h.bf16 %v339
    %v932 = vunpack.c.l.bf16 %v340
    %v933 = vunpack.c.h.bf16 %v340
    %v934 = vunpack.c.l.bf16 %v341
    %v935 = vunpack.c.h.bf16 %v341
    %v936 = vunpack.c.l.bf16 %v342
    %v937 = vunpack.c.h.bf16 %v342
    %v938 = vunpack.c.l.bf16 %v343
    %v939 = vunpack.c.h.bf16 %v343
    %v940 = vunpack.c.l.bf16 %v344
    %v941 = vunpack.c.h.bf16 %v344
    %v942 = vunpack.c.l.bf16 %v345
    %v943 = vunpack.c.h.bf16 %v345
    %v944 = vunpack.c.l.bf16 %v346
    %v945 = vunpack.c.h.bf16 %v346
    %v946 = vunpack.c.l.bf16 %v347
    %v947 = vunpack.c.h.bf16 %v347
    %v948 = vunpack.c.l.bf16 %v348
    %v949 = vunpack.c.h.bf16 %v348
    %v950 = vunpack.c.l.bf16 %v349
    %v951 = vunpack.c.h.bf16 %v349
    %v952 = vunpack.c.l.bf16 %v350
    %v953 = vunpack.c.h.bf16 %v350
    %v954 = vunpack.c.l.bf16 %v351
    %v955 = vunpack.c.h.bf16 %v351
    %v956 = vunpack.c.l.bf16 %v352
    %v957 = vunpack.c.h.bf16 %v352
    %v958 = vunpack.c.l.bf16 %v353
    %v959 = vunpack.c.h.bf16 %v353
    %v960 = vunpack.c.l.bf16 %v354
    %v961 = vunpack.c.h.bf16 %v354
    %v962 = vunpack.c.l.bf16 %v355
    %v963 = vunpack.c.h.bf16 %v355
    %v964 = vunpack.c.l.bf16 %v356
    %v965 = vunpack.c.h.bf16 %v356
    %v966 = vunpack.c.l.bf16 %v357
    %v967 = vunpack.c.h.bf16 %v357
    %v968 = vunpack.c.l.bf16 %v358
    %v969 = vunpack.c.h.bf16 %v358
    %v970 = vunpack.c.l.bf16 %v359
    %v971 = vunpack.c.h.bf16 %v359
    %v972 = vunpack.c.l.bf16 %v360
    %v973 = vunpack.c.h.bf16 %v360
    %v974 = vunpack.c.l.bf16 %v361
    %v975 = vunpack.c.h.bf16 %v361
    %v976 = vunpack.c.l.bf16 %v362
    %v977 = vunpack.c.h.bf16 %v362
    %v978 = vunpack.c.l.bf16 %v363
    %v979 = vunpack.c.h.bf16 %v363
    %v980 = vunpack.c.l.bf16 %v364
    %v981 = vunpack.c.h.bf16 %v364
    %v982 = vunpack.c.l.bf16 %v365
    %v983 = vunpack.c.h.bf16 %v365
    %v984 = vunpack.c.l.bf16 %v366
    %v985 = vunpack.c.h.bf16 %v366
    %v986 = vunpack.c.l.bf16 %v367
    %v987 = vunpack.c.h.bf16 %v367
    %v988 = vunpack.c.l.bf16 %v368
    %v989 = vunpack.c.h.bf16 %v368
    %v990 = vunpack.c.l.bf16 %v369
    %v991 = vunpack.c.h.bf16 %v369
    %v992 = vunpack.c.l.bf16 %v370
    %v993 = vunpack.c.h.bf16 %v370
    %v994 = vunpack.c.l.bf16 %v371
    %v995 = vunpack.c.h.bf16 %v371
    %v996 = vunpack.c.l.bf16 %v372
    %v997 = vunpack.c.h.bf16 %v372
    %v998 = vunpack.c.l.bf16 %v373
    %v999 = vunpack.c.h.bf16 %v373
    %v1000 = vunpack.c.l.bf16 %v374
    %v1001 = vunpack.c.h.bf16 %v374
    %v1002 = vunpack.c.l.bf16 %v375
    %v1003 = vunpack.c.h.bf16 %v375
    %v1004 = vunpack.c.l.bf16 %v376
    %v1005 = vunpack.c.h.bf16 %v376
    %v1006 = vunpack.c.l.bf16 %v377
    %v1007 = vunpack.c.h.bf16 %v377
    %v1008 = vunpack.c.l.bf16 %v378
    %v1009 = vunpack.c.h.bf16 %v378
    %v1010 = vunpack.c.l.bf16 %v379
    %v1011 = vunpack.c.h.bf16 %v379
    %v1012 = vunpack.c.l.bf16 %v380
    %v1013 = vunpack.c.h.bf16 %v380
    %v1014 = vunpack.c.l.bf16 %v381
    %v1015 = vunpack.c.h.bf16 %v381
    %v1016 = vunpack.c.l.bf16 %v382
    %v1017 = vunpack.c.h.bf16 %v382
    %v1018 = vunpack.c.l.bf16 %v383
    %v1019 = vunpack.c.h.bf16 %v383
    %v1020 = vunpack.c.l.bf16 %v384
    %v1021 = vunpack.c.h.bf16 %v384
    %v1022 = vunpack.c.l.bf16 %v385
    %v1023 = vunpack.c.h.bf16 %v385
    %v1024 = vunpack.c.l.bf16 %v386
    %v1025 = vunpack.c.h.bf16 %v386
    %v1026 = vunpack.c.l.bf16 %v387
    %v1027 = vunpack.c.h.bf16 %v387
    %v1028 = vunpack.c.l.bf16 %v388
    %v1029 = vunpack.c.h.bf16 %v388
    %v1030 = vunpack.c.l.bf16 %v389
    %v1031 = vunpack.c.h.bf16 %v389
    %v1032 = vunpack.c.l.bf16 %v390
    %v1033 = vunpack.c.h.bf16 %v390
    %v1034 = vunpack.c.l.bf16 %v391
    %v1035 = vunpack.c.h.bf16 %v391
    %v1036 = vunpack.c.l.bf16 %v392
    %v1037 = vunpack.c.h.bf16 %v392
    %v1038 = vunpack.c.l.bf16 %v393
    %v1039 = vunpack.c.h.bf16 %v393
    %v1040 = vunpack.c.l.bf16 %v394
    %v1041 = vunpack.c.h.bf16 %v394
    %v1042 = vunpack.c.l.bf16 %v395
    %v1043 = vunpack.c.h.bf16 %v395
    %v1044 = vunpack.c.l.bf16 %v396
    %v1045 = vunpack.c.h.bf16 %v396
    %v1046 = vunpack.c.l.bf16 %v397
    %v1047 = vunpack.c.h.bf16 %v397
    %v1048 = vunpack.c.l.bf16 %v398
    %v1049 = vunpack.c.h.bf16 %v398
    %v1050 = vunpack.c.l.bf16 %v399
    %v1051 = vunpack.c.h.bf16 %v399
    %v1052 = vunpack.c.l.bf16 %v400
    %v1053 = vunpack.c.h.bf16 %v400
    %v1054 = vunpack.c.l.bf16 %v401
    %v1055 = vunpack.c.h.bf16 %v401
    %v1056 = vunpack.c.l.bf16 %v402
    %v1057 = vunpack.c.h.bf16 %v402
    %v1058 = vunpack.c.l.bf16 %v403
    %v1059 = vunpack.c.h.bf16 %v403
    %v1060 = vunpack.c.l.bf16 %v404
    %v1061 = vunpack.c.h.bf16 %v404
    %v1062 = vunpack.c.l.bf16 %v405
    %v1063 = vunpack.c.h.bf16 %v405
    %v1064 = vunpack.c.l.bf16 %v406
    %v1065 = vunpack.c.h.bf16 %v406
    %v1066 = vunpack.c.l.bf16 %v407
    %v1067 = vunpack.c.h.bf16 %v407
    %v1068 = vunpack.c.l.bf16 %v408
    %v1069 = vunpack.c.h.bf16 %v408
    %v1070 = vunpack.c.l.bf16 %v409
    %v1071 = vunpack.c.h.bf16 %v409
    %v1072 = vunpack.c.l.bf16 %v410
    %v1073 = vunpack.c.h.bf16 %v410
    %v1074 = vunpack.c.l.bf16 %v411
    %v1075 = vunpack.c.h.bf16 %v411
    %v1076 = vunpack.c.l.bf16 %v412
    %v1077 = vunpack.c.h.bf16 %v412
    %v1078 = vunpack.c.l.bf16 %v413
    %v1079 = vunpack.c.h.bf16 %v413
    %v1080 = vunpack.c.l.bf16 %v414
    %v1081 = vunpack.c.h.bf16 %v414
    %v1082 = vunpack.c.l.bf16 %v415
    %v1083 = vunpack.c.h.bf16 %v415
    %v1084 = vunpack.c.l.bf16 %v416
    %v1085 = vunpack.c.h.bf16 %v416
    %v1086 = vunpack.c.l.bf16 %v417
    %v1087 = vunpack.c.h.bf16 %v417
    %v1088 = vunpack.c.l.bf16 %v418
    %v1089 = vunpack.c.h.bf16 %v418
    %v1090 = vunpack.c.l.bf16 %v419
    %v1091 = vunpack.c.h.bf16 %v419
    %v1092 = vunpack.c.l.bf16 %v420
    %v1093 = vunpack.c.h.bf16 %v420
    %v1094 = vunpack.c.l.bf16 %v421
    %v1095 = vunpack.c.h.bf16 %v421
    %v1096 = vunpack.c.l.bf16 %v422
    %v1097 = vunpack.c.h.bf16 %v422
    %v1098 = vunpack.c.l.bf16 %v423
    %v1099 = vunpack.c.h.bf16 %v423
    %v1100 = vunpack.c.l.bf16 %v424
    %v1101 = vunpack.c.h.bf16 %v424
    %v1102 = vunpack.c.l.bf16 %v425
    %v1103 = vunpack.c.h.bf16 %v425
    %v1104 = vunpack.c.l.bf16 %v426
    %v1105 = vunpack.c.h.bf16 %v426
    %v1106 = vunpack.c.l.bf16 %v427
    %v1107 = vunpack.c.h.bf16 %v427
    %v1108 = vunpack.c.l.bf16 %v428
    %v1109 = vunpack.c.h.bf16 %v428
    %v1110 = vunpack.c.l.bf16 %v429
    %v1111 = vunpack.c.h.bf16 %v429
    %v1112 = vunpack.c.l.bf16 %v430
    %v1113 = vunpack.c.h.bf16 %v430
    %v1114 = vunpack.c.l.bf16 %v431
    %v1115 = vunpack.c.h.bf16 %v431
    %v1116 = vunpack.c.l.bf16 %v432
    %v1117 = vunpack.c.h.bf16 %v432
    %v1118 = vunpack.c.l.bf16 %v433
    %v1119 = vunpack.c.h.bf16 %v433
    %v1120 = vunpack.c.l.bf16 %v434
    %v1121 = vunpack.c.h.bf16 %v434
    %v1122 = vunpack.c.l.bf16 %v435
    %v1123 = vunpack.c.h.bf16 %v435
    %v1124 = vunpack.c.l.bf16 %v436
    %v1125 = vunpack.c.h.bf16 %v436
    %v1126 = vunpack.c.l.bf16 %v437
    %v1127 = vunpack.c.h.bf16 %v437
    %v1128 = vunpack.c.l.bf16 %v438
    %v1129 = vunpack.c.h.bf16 %v438
    %v1130 = vunpack.c.l.bf16 %v439
    %v1131 = vunpack.c.h.bf16 %v439
    %v1132 = vunpack.c.l.bf16 %v440
    %v1133 = vunpack.c.h.bf16 %v440
    %v1134 = vunpack.c.l.bf16 %v441
    %v1135 = vunpack.c.h.bf16 %v441
    %v1136 = vunpack.c.l.bf16 %v442
    %v1137 = vunpack.c.h.bf16 %v442
    %v1138 = vunpack.c.l.bf16 %v443
    %v1139 = vunpack.c.h.bf16 %v443
    %v1140 = vunpack.c.l.bf16 %v444
    %v1141 = vunpack.c.h.bf16 %v444
    %v1142 = vunpack.c.l.bf16 %v445
    %v1143 = vunpack.c.h.bf16 %v445
    %v1144 = vunpack.c.l.bf16 %v446
    %v1145 = vunpack.c.h.bf16 %v446
    %v1146 = vunpack.c.l.bf16 %v447
    %v1147 = vunpack.c.h.bf16 %v447
    %v1148 = vunpack.c.l.bf16 %v448
    %v1149 = vunpack.c.h.bf16 %v448
    %v1150 = vunpack.c.l.bf16 %v449
    %v1151 = vunpack.c.h.bf16 %v449
    %v1152 = vunpack.c.l.bf16 %v450
    %v1153 = vunpack.c.h.bf16 %v450
    %v1154 = vunpack.c.l.bf16 %v451
    %v1155 = vunpack.c.h.bf16 %v451
    %v1156 = vunpack.c.l.bf16 %v452
    %v1157 = vunpack.c.h.bf16 %v452
    %v1158 = vunpack.c.l.bf16 %v453
    %v1159 = vunpack.c.h.bf16 %v453
    %v1160 = vunpack.c.l.bf16 %v454
    %v1161 = vunpack.c.h.bf16 %v454
    %v1162 = vunpack.c.l.bf16 %v455
    %v1163 = vunpack.c.h.bf16 %v455
    %v1164 = vunpack.c.l.bf16 %v456
    %v1165 = vunpack.c.h.bf16 %v456
    %v1166 = vunpack.c.l.bf16 %v457
    %v1167 = vunpack.c.h.bf16 %v457
    %v1168 = vunpack.c.l.bf16 %v458
    %v1169 = vunpack.c.h.bf16 %v458
    %v1170 = vunpack.c.l.bf16 %v459
    %v1171 = vunpack.c.h.bf16 %v459
    %v1172 = vunpack.c.l.bf16 %v460
    %v1173 = vunpack.c.h.bf16 %v460
    %v1174 = vunpack.c.l.bf16 %v461
    %v1175 = vunpack.c.h.bf16 %v461
    %v1176 = vunpack.c.l.bf16 %v462
    %v1177 = vunpack.c.h.bf16 %v462
    %v1178 = vunpack.c.l.bf16 %v463
    %v1179 = vunpack.c.h.bf16 %v463
    %v1180 = vunpack.c.l.bf16 %v464
    %v1181 = vunpack.c.h.bf16 %v464
    %v1182 = vunpack.c.l.bf16 %v465
    %v1183 = vunpack.c.h.bf16 %v465
    %v1184 = vunpack.c.l.bf16 %v466
    %v1185 = vunpack.c.h.bf16 %v466
    %v1186 = vunpack.c.l.bf16 %v467
    %v1187 = vunpack.c.h.bf16 %v467
    %v1188 = vunpack.c.l.bf16 %v468
    %v1189 = vunpack.c.h.bf16 %v468
    %v1190 = vunpack.c.l.bf16 %v469
    %v1191 = vunpack.c.h.bf16 %v469
    %v1192 = vunpack.c.l.bf16 %v470
    %v1193 = vunpack.c.h.bf16 %v470
    %v1194 = vunpack.c.l.bf16 %v471
    %v1195 = vunpack.c.h.bf16 %v471
    %v1196 = vunpack.c.l.bf16 %v472
    %v1197 = vunpack.c.h.bf16 %v472
    %v1198 = vunpack.c.l.bf16 %v473
    %v1199 = vunpack.c.h.bf16 %v473
    %v1200 = vunpack.c.l.bf16 %v474
    %v1201 = vunpack.c.h.bf16 %v474
    %v1202 = vunpack.c.l.bf16 %v475
    %v1203 = vunpack.c.h.bf16 %v475
    %v1204 = vunpack.c.l.bf16 %v476
    %v1205 = vunpack.c.h.bf16 %v476
    %v1206 = vunpack.c.l.bf16 %v477
    %v1207 = vunpack.c.h.bf16 %v477
    %v1208 = vunpack.c.l.bf16 %v478
    %v1209 = vunpack.c.h.bf16 %v478
    %v1210 = vunpack.c.l.bf16 %v479
    %v1211 = vunpack.c.h.bf16 %v479
    %v1212 = vunpack.c.l.bf16 %v480
    %v1213 = vunpack.c.h.bf16 %v480
    %v1214 = vunpack.c.l.bf16 %v481
    %v1215 = vunpack.c.h.bf16 %v481
    %v1216 = vunpack.c.l.bf16 %v482
    %v1217 = vunpack.c.h.bf16 %v482
    %v1218 = vunpack.c.l.bf16 %v483
    %v1219 = vunpack.c.h.bf16 %v483
    %v1220 = vunpack.c.l.bf16 %v484
    %v1221 = vunpack.c.h.bf16 %v484
    %v1222 = vunpack.c.l.bf16 %v485
    %v1223 = vunpack.c.h.bf16 %v485
    %v1224 = vunpack.c.l.bf16 %v486
    %v1225 = vunpack.c.h.bf16 %v486
    %v1226 = vunpack.c.l.bf16 %v487
    %v1227 = vunpack.c.h.bf16 %v487
    %v1228 = vunpack.c.l.bf16 %v488
    %v1229 = vunpack.c.h.bf16 %v488
    %v1230 = vunpack.c.l.bf16 %v489
    %v1231 = vunpack.c.h.bf16 %v489
    %v1232 = vunpack.c.l.bf16 %v490
    %v1233 = vunpack.c.h.bf16 %v490
    %v1234 = vunpack.c.l.bf16 %v491
    %v1235 = vunpack.c.h.bf16 %v491
    %v1236 = vunpack.c.l.bf16 %v492
    %v1237 = vunpack.c.h.bf16 %v492
    %v1238 = vunpack.c.l.bf16 %v493
    %v1239 = vunpack.c.h.bf16 %v493
    %v1240 = vunpack.c.l.bf16 %v494
    %v1241 = vunpack.c.h.bf16 %v494
    %v1242 = vunpack.c.l.bf16 %v495
    %v1243 = vunpack.c.h.bf16 %v495
    %v1244 = vunpack.c.l.bf16 %v496
    %v1245 = vunpack.c.h.bf16 %v496
    %v1246 = vunpack.c.l.bf16 %v497
    %v1247 = vunpack.c.h.bf16 %v497
    %v1248 = vunpack.c.l.bf16 %v498
    %v1249 = vunpack.c.h.bf16 %v498
    %v1250 = vunpack.c.l.bf16 %v499
    %v1251 = vunpack.c.h.bf16 %v499
    %v1252 = vunpack.c.l.bf16 %v500
    %v1253 = vunpack.c.h.bf16 %v500
    %v1254 = vunpack.c.l.bf16 %v501
    %v1255 = vunpack.c.h.bf16 %v501
    %v1256 = vunpack.c.l.bf16 %v502
    %v1257 = vunpack.c.h.bf16 %v502
    %v1258 = vunpack.c.l.bf16 %v503
    %v1259 = vunpack.c.h.bf16 %v503
    %v1260 = vunpack.c.l.bf16 %v504
    %v1261 = vunpack.c.h.bf16 %v504
    %v1262 = vunpack.c.l.bf16 %v505
    %v1263 = vunpack.c.h.bf16 %v505
    %v1264 = vunpack.c.l.bf16 %v506
    %v1265 = vunpack.c.h.bf16 %v506
    %v1266 = vunpack.c.l.bf16 %v507
    %v1267 = vunpack.c.h.bf16 %v507
    %v1268 = vunpack.c.l.bf16 %v508
    %v1269 = vunpack.c.h.bf16 %v508
    %v1270 = vunpack.c.l.bf16 %v509
    %v1271 = vunpack.c.h.bf16 %v509
    %v1272 = vunpack.c.l.bf16 %v510
    %v1273 = vunpack.c.h.bf16 %v510
    %v1274 = vunpack.c.l.bf16 %v511
    %v1275 = vunpack.c.h.bf16 %v511
    %v1276 = vunpack.c.l.bf16 %v512
    %v1277 = vunpack.c.h.bf16 %v512
    %v1278 = vunpack.c.l.bf16 %v513
    %v1279 = vunpack.c.h.bf16 %v513
    %v1280 = vunpack.c.l.bf16 %v514
    %v1281 = vunpack.c.h.bf16 %v514
    %v1282 = vunpack.c.l.bf16 %v515
    %v1283 = vunpack.c.h.bf16 %v515
    %v1284 = vunpack.c.l.bf16 %v516
    %v1285 = vunpack.c.h.bf16 %v516
    %v1286 = vunpack.c.l.bf16 %v517
    %v1287 = vunpack.c.h.bf16 %v517
    %v1288 = vunpack.c.l.bf16 %v518
    %v1289 = vunpack.c.h.bf16 %v518
    %v1290 = vunpack.c.l.bf16 %v519
    %v1291 = vunpack.c.h.bf16 %v519
    %v1292 = vunpack.c.l.bf16 %v520
    %v1293 = vunpack.c.h.bf16 %v520
    %v1294 = vunpack.c.l.bf16 %v521
    %v1295 = vunpack.c.h.bf16 %v521
    %v1296 = vunpack.c.l.bf16 %v522
    %v1297 = vunpack.c.h.bf16 %v522
    %v1298 = vunpack.c.l.bf16 %v523
    %v1299 = vunpack.c.h.bf16 %v523
    %v1300 = vunpack.c.l.bf16 %v524
    %v1301 = vunpack.c.h.bf16 %v524
    %v1302 = vunpack.c.l.bf16 %v525
    %v1303 = vunpack.c.h.bf16 %v525
    %v1304 = vunpack.c.l.bf16 %v526
    %v1305 = vunpack.c.h.bf16 %v526
    %v1306 = vunpack.c.l.bf16 %v527
    %v1307 = vunpack.c.h.bf16 %v527
    %v1308 = vunpack.c.l.bf16 %v528
    %v1309 = vunpack.c.h.bf16 %v528
    %v1310 = vunpack.c.l.bf16 %v529
    %v1311 = vunpack.c.h.bf16 %v529
    %v1312 = vunpack.c.l.bf16 %v530
    %v1313 = vunpack.c.h.bf16 %v530
    %v1314 = vunpack.c.l.bf16 %v531
    %v1315 = vunpack.c.h.bf16 %v531
    %v1316 = vunpack.c.l.bf16 %v532
    %v1317 = vunpack.c.h.bf16 %v532
    %v1318 = vunpack.c.l.bf16 %v533
    %v1319 = vunpack.c.h.bf16 %v533
    %v1320 = vunpack.c.l.bf16 %v534
    %v1321 = vunpack.c.h.bf16 %v534
    %v1322 = vunpack.c.l.bf16 %v535
    %v1323 = vunpack.c.h.bf16 %v535
    %v1324 = vunpack.c.l.bf16 %v536
    %v1325 = vunpack.c.h.bf16 %v536
    %v1326 = vunpack.c.l.bf16 %v537
    %v1327 = vunpack.c.h.bf16 %v537
    %v1328 = vunpack.c.l.bf16 %v538
    %v1329 = vunpack.c.h.bf16 %v538
    %v1330 = vunpack.c.l.bf16 %v539
    %v1331 = vunpack.c.h.bf16 %v539
    %v1332 = vunpack.c.l.bf16 %v540
    %v1333 = vunpack.c.h.bf16 %v540
    %v1334 = vunpack.c.l.bf16 %v541
    %v1335 = vunpack.c.h.bf16 %v541
    %v1336 = vunpack.c.l.bf16 %v542
    %v1337 = vunpack.c.h.bf16 %v542
    %v1338 = vunpack.c.l.bf16 %v543
    %v1339 = vunpack.c.h.bf16 %v543
    %v1340 = vunpack.c.l.bf16 %v544
    %v1341 = vunpack.c.h.bf16 %v544
    %v1342 = vunpack.c.l.bf16 %v545
    %v1343 = vunpack.c.h.bf16 %v545
    %v1344 = vunpack.c.l.bf16 %v546
    %v1345 = vunpack.c.h.bf16 %v546
    %v1346 = vunpack.c.l.bf16 %v547
    %v1347 = vunpack.c.h.bf16 %v547
    %v1348 = vunpack.c.l.bf16 %v548
    %v1349 = vunpack.c.h.bf16 %v548
    %v1350 = vunpack.c.l.bf16 %v549
    %v1351 = vunpack.c.h.bf16 %v549
    %v1352 = vunpack.c.l.bf16 %v550
    %v1353 = vunpack.c.h.bf16 %v550
    %v1354 = vunpack.c.l.bf16 %v551
    %v1355 = vunpack.c.h.bf16 %v551
    %v1356 = vunpack.c.l.bf16 %v552
    %v1357 = vunpack.c.h.bf16 %v552
    %v1358 = vunpack.c.l.bf16 %v553
    %v1359 = vunpack.c.h.bf16 %v553
    %v1360 = vunpack.c.l.bf16 %v554
    %v1361 = vunpack.c.h.bf16 %v554
    %v1362 = vunpack.c.l.bf16 %v555
    %v1363 = vunpack.c.h.bf16 %v555
    %v1364 = vunpack.c.l.bf16 %v556
    %v1365 = vunpack.c.h.bf16 %v556
    %v1366 = vunpack.c.l.bf16 %v557
    %v1367 = vunpack.c.h.bf16 %v557
    %v1368 = vunpack.c.l.bf16 %v558
    %v1369 = vunpack.c.h.bf16 %v558
    %v1370 = vunpack.c.l.bf16 %v559
    %v1371 = vunpack.c.h.bf16 %v559
    %v1372 = vunpack.c.l.bf16 %v560
    %v1373 = vunpack.c.h.bf16 %v560
    %v1374 = vunpack.c.l.bf16 %v561
    %v1375 = vunpack.c.h.bf16 %v561
    %v1376 = vunpack.c.l.bf16 %v562
    %v1377 = vunpack.c.h.bf16 %v562
    %v1378 = vunpack.c.l.bf16 %v563
    %v1379 = vunpack.c.h.bf16 %v563
    %v1380 = vunpack.c.l.bf16 %v564
    %v1381 = vunpack.c.h.bf16 %v564
    %v1382 = vunpack.c.l.bf16 %v565
    %v1383 = vunpack.c.h.bf16 %v565
    %v1384 = vunpack.c.l.bf16 %v566
    %v1385 = vunpack.c.h.bf16 %v566
    %v1386 = vunpack.c.l.bf16 %v567
    %v1387 = vunpack.c.h.bf16 %v567
    %v1388 = vunpack.c.l.bf16 %v568
    %v1389 = vunpack.c.h.bf16 %v568
    %v1390 = vunpack.c.l.bf16 %v569
    %v1391 = vunpack.c.h.bf16 %v569
    %v1392 = vunpack.c.l.bf16 %v570
    %v1393 = vunpack.c.h.bf16 %v570
    %v1394 = vunpack.c.l.bf16 %v571
    %v1395 = vunpack.c.h.bf16 %v571
    %v1396 = vunpack.c.l.bf16 %v572
    %v1397 = vunpack.c.h.bf16 %v572
    %v1398 = vunpack.c.l.bf16 %v573
    %v1399 = vunpack.c.h.bf16 %v573
    %v1400 = vunpack.c.l.bf16 %v574
    %v1401 = vunpack.c.h.bf16 %v574
    %v1402 = vunpack.c.l.bf16 %v575
    %v1403 = vunpack.c.h.bf16 %v575
    %v1404 = vunpack.c.l.bf16 %v576
    %v1405 = vunpack.c.h.bf16 %v576
    %v1406 = vunpack.c.l.bf16 %v577
    %v1407 = vunpack.c.h.bf16 %v577
    %v1408 = vunpack.c.l.bf16 %v578
    %v1409 = vunpack.c.h.bf16 %v578
    %v1410 = vunpack.c.l.bf16 %v579
    %v1411 = vunpack.c.h.bf16 %v579
    %v1412 = vunpack.c.l.bf16 %v580
    %v1413 = vunpack.c.h.bf16 %v580
    %v1414 = vunpack.c.l.bf16 %v581
    %v1415 = vunpack.c.h.bf16 %v581
    %v1416 = vunpack.c.l.bf16 %v582
    %v1417 = vunpack.c.h.bf16 %v582
    %v1418 = vunpack.c.l.bf16 %v583
    %v1419 = vunpack.c.h.bf16 %v583
    %v1420 = vunpack.c.l.bf16 %v584
    %v1421 = vunpack.c.h.bf16 %v584
    %v1422 = vunpack.c.l.bf16 %v585
    %v1423 = vunpack.c.h.bf16 %v585
    %v1424 = vunpack.c.l.bf16 %v586
    %v1425 = vunpack.c.h.bf16 %v586
    %v1426 = vunpack.c.l.bf16 %v587
    %v1427 = vunpack.c.h.bf16 %v587
    %v1428 = vunpack.c.l.bf16 %v588
    %v1429 = vunpack.c.h.bf16 %v588
    %v1430 = vunpack.c.l.bf16 %v589
    %v1431 = vunpack.c.h.bf16 %v589
    %v1432 = vunpack.c.l.bf16 %v590
    %v1433 = vunpack.c.h.bf16 %v590
    %v1434 = vunpack.c.l.bf16 %v591
    %v1435 = vunpack.c.h.bf16 %v591
    %v1436 = vunpack.c.l.bf16 %v592
    %v1437 = vunpack.c.h.bf16 %v592
    %v1438 = vunpack.c.l.bf16 %v593
    %v1439 = vunpack.c.h.bf16 %v593
    %v1440 = vunpack.c.l.bf16 %v594
    %v1441 = vunpack.c.h.bf16 %v594
    %v1442 = vunpack.c.l.bf16 %v595
    %v1443 = vunpack.c.h.bf16 %v595
    %v1444 = vunpack.c.l.bf16 %v596
    %v1445 = vunpack.c.h.bf16 %v596
    %v1446 = vunpack.c.l.bf16 %v597
    %v1447 = vunpack.c.h.bf16 %v597
    %v1448 = vunpack.c.l.bf16 %v598
    %v1449 = vunpack.c.h.bf16 %v598
    %v1450 = vunpack.c.l.bf16 %v599
    %v1451 = vunpack.c.h.bf16 %v599
    %v1452 = vunpack.c.l.bf16 %v600
    %v1453 = vunpack.c.h.bf16 %v600
    %v1454 = vunpack.c.l.bf16 %v601
    %v1455 = vunpack.c.h.bf16 %v601
    %v1456 = vunpack.c.l.bf16 %v602
    %v1457 = vunpack.c.h.bf16 %v602
    %v1458 = vunpack.c.l.bf16 %v603
    %v1459 = vunpack.c.h.bf16 %v603
    %v1460 = vunpack.c.l.bf16 %v604
    %v1461 = vunpack.c.h.bf16 %v604
    %v1462 = vunpack.c.l.bf16 %v605
    %v1463 = vunpack.c.h.bf16 %v605
    %v1464 = vunpack.c.l.bf16 %v606
    %v1465 = vunpack.c.h.bf16 %v606
    %v1466 = vunpack.c.l.bf16 %v607
    %v1467 = vunpack.c.h.bf16 %v607
    %v1468 = vunpack.c.l.bf16 %v608
    %v1469 = vunpack.c.h.bf16 %v608
    %v1470 = vunpack.c.l.bf16 %v609
    %v1471 = vunpack.c.h.bf16 %v609
    %v1472 = vunpack.c.l.bf16 %v610
    %v1473 = vunpack.c.h.bf16 %v610
    %v1474 = vunpack.c.l.bf16 %v611
    %v1475 = vunpack.c.h.bf16 %v611
    %v1476 = vunpack.c.l.bf16 %v612
    %v1477 = vunpack.c.h.bf16 %v612
    %v1478 = vunpack.c.l.bf16 %v613
    %v1479 = vunpack.c.h.bf16 %v613
    %v1480 = vunpack.c.l.bf16 %v614
    %v1481 = vunpack.c.h.bf16 %v614
    %v1482 = vunpack.c.l.bf16 %v615
    %v1483 = vunpack.c.h.bf16 %v615
    %v1484 = vunpack.c.l.bf16 %v616
    %v1485 = vunpack.c.h.bf16 %v616
    %v1486 = vunpack.c.l.bf16 %v617
    %v1487 = vunpack.c.h.bf16 %v617
    %v1488 = vunpack.c.l.bf16 %v618
    %v1489 = vunpack.c.h.bf16 %v618
    %v1490 = vunpack.c.l.bf16 %v619
    %v1491 = vunpack.c.h.bf16 %v619
    %v1492 = vunpack.c.l.bf16 %v620
    %v1493 = vunpack.c.h.bf16 %v620
    %v1494 = vunpack.c.l.bf16 %v621
    %v1495 = vunpack.c.h.bf16 %v621
    %v1496 = vunpack.c.l.bf16 %v622
    %v1497 = vunpack.c.h.bf16 %v622
    %v1498 = vunpack.c.l.bf16 %v623
    %v1499 = vunpack.c.h.bf16 %v623
    %v1500 = vunpack.c.l.bf16 %v624
    %v1501 = vunpack.c.h.bf16 %v624
    %v1502 = vunpack.c.l.bf16 %v625
    %v1503 = vunpack.c.h.bf16 %v625
    %v1504 = vunpack.c.l.bf16 %v626
    %v1505 = vunpack.c.h.bf16 %v626
    %v1506 = vunpack.c.l.bf16 %v627
    %v1507 = vunpack.c.h.bf16 %v627
    %v1508 = vunpack.c.l.bf16 %v628
    %v1509 = vunpack.c.h.bf16 %v628
    %v1510 = vunpack.c.l.bf16 %v629
    %v1511 = vunpack.c.h.bf16 %v629
    %v1512 = vunpack.c.l.bf16 %v630
    %v1513 = vunpack.c.h.bf16 %v630
    %v1514 = vunpack.c.l.bf16 %v631
    %v1515 = vunpack.c.h.bf16 %v631
    %v1516 = vunpack.c.l.bf16 %v632
    %v1517 = vunpack.c.h.bf16 %v632
    %v1518 = vunpack.c.l.bf16 %v633
    %v1519 = vunpack.c.h.bf16 %v633
    %v1520 = vunpack.c.l.bf16 %v634
    %v1521 = vunpack.c.h.bf16 %v634
    %v1522 = vunpack.c.l.bf16 %v635
    %v1523 = vunpack.c.h.bf16 %v635
    %v1524 = vunpack.c.l.bf16 %v636
    %v1525 = vunpack.c.h.bf16 %v636
    %v1526 = vunpack.c.l.bf16 %v637
    %v1527 = vunpack.c.h.bf16 %v637
    %v1528 = vunpack.c.l.bf16 %v638
    %v1529 = vunpack.c.h.bf16 %v638
    %v1530 = vunpack.c.l.bf16 %v639
    %v1531 = vunpack.c.h.bf16 %v639
    %v1532 = vunpack.c.l.bf16 %v640
    %v1533 = vunpack.c.h.bf16 %v640
    %v1534 = vunpack.c.l.bf16 %v641
    %v1535 = vunpack.c.h.bf16 %v641
    %v1536 = vunpack.c.l.bf16 %v642
    %v1537 = vunpack.c.h.bf16 %v642
    %v1538 = vunpack.c.l.bf16 %v643
    %v1539 = vunpack.c.h.bf16 %v643
    %1540 = vmatprep.subr.mxu0 %v645
    %1541 = vmatpush1.msra.mxu0 %v644
    %1542 = vmatprep.subr.mxu0 %v653
    %1543 = vmatpush1.msra.mxu0 %v652
    %1544 = vmatprep.subr.mxu0 %v661
    %1545 = vmatpush1.msra.mxu0 %v660
    %1546 = vmatprep.subr.mxu0 %v669
    %1547 = vmatpush1.msra.mxu0 %v668
    %1548 = vmatprep.subr.mxu0 %v677
    %1549 = vmatpush1.msra.mxu0 %v676
    %1550 = vmatprep.subr.mxu0 %v685
    %1551 = vmatpush1.msra.mxu0 %v684
    %1552 = vmatprep.subr.mxu0 %v693
    %1553 = vmatpush1.msra.mxu0 %v692
    %1554 = vmatprep.subr.mxu0 %v701
    %1555 = vmatpush1.msra.mxu0 %v700
    %1556 = vmatprep.subr.mxu0 %v709
    %1557 = vmatpush1.msra.mxu0 %v708
    %1558 = vmatprep.subr.mxu0 %v717
    %1559 = vmatpush1.msra.mxu0 %v716
    %1560 = vmatprep.subr.mxu0 %v725
    %1561 = vmatpush1.msra.mxu0 %v724
    %1562 = vmatprep.subr.mxu0 %v733
    %1563 = vmatpush1.msra.mxu0 %v732
    %1564 = vmatprep.subr.mxu0 %v741
    %1565 = vmatpush1.msra.mxu0 %v740
    %1566 = vmatprep.subr.mxu0 %v749
    %1567 = vmatpush1.msra.mxu0 %v748
    %1568 = vmatprep.subr.mxu0 %v757
    %1569 = vmatpush1.msra.mxu0 %v756
    %1570 = vmatprep.subr.mxu0 %v765
    %1571 = vmatpush1.msra.mxu0 %v764
    %1572 = vmatprep.subr.mxu0 %v773
    %1573 = vmatpush1.msra.mxu0 %v772
    %1574 = vmatprep.subr.mxu0 %v781
    %1575 = vmatpush1.msra.mxu0 %v780
    %1576 = vmatprep.subr.mxu0 %v789
    %1577 = vmatpush1.msra.mxu0 %v788
    %1578 = vmatprep.subr.mxu0 %v797
    %1579 = vmatpush1.msra.mxu0 %v796
    %1580 = vmatprep.subr.mxu0 %v805
    %1581 = vmatpush1.msra.mxu0 %v804
    %1582 = vmatprep.subr.mxu0 %v813
    %1583 = vmatpush1.msra.mxu0 %v812
    %1584 = vmatprep.subr.mxu0 %v821
    %1585 = vmatpush1.msra.mxu0 %v820
    %1586 = vmatprep.subr.mxu0 %v829
    %1587 = vmatpush1.msra.mxu0 %v828
    %1588 = vmatprep.subr.mxu0 %v837
    %1589 = vmatpush1.msra.mxu0 %v836
    %1590 = vmatprep.subr.mxu0 %v845
    %1591 = vmatpush1.msra.mxu0 %v844
    %1592 = vmatprep.subr.mxu0 %v853
    %1593 = vmatpush1.msra.mxu0 %v852
    %1594 = vmatprep.subr.mxu0 %v861
    %1595 = vmatpush1.msra.mxu0 %v860
    %1596 = vmatprep.subr.mxu0 %v869
    %1597 = vmatpush1.msra.mxu0 %v868
    %1598 = vmatprep.subr.mxu0 %v877
    %1599 = vmatpush1.msra.mxu0 %v876
    %1600 = vmatprep.subr.mxu0 %v885
    %1601 = vmatpush1.msra.mxu0 %v884
    %1602 = vmatprep.subr.mxu0 %v893
    %1603 = vmatpush1.msra.mxu0 %v892
    %1604 = vmatprep.mubr.f32.mxu0 %v190
    %1605 = vmatmul.mubr.f32.gmra.mrb[0].mxu0 %v189
    %v1606 = vpop.f32.mrb[0].mxu0
    %v1607 = vadd.f32 0.0, %v1606
    %v1608 = vpop.f32.mrb[0].mxu0
    %v1609 = vadd.f32 0.0, %v1608
    %1610 = vdwg.mxu0
    %1611 = vmatprep.subr.mxu0 %v901
    %1612 = vmatpush1.msra.mxu0 %v900
    %1613 = vmatprep.subr.mxu0 %v909
    %1614 = vmatpush1.msra.mxu0 %v908
    %1615 = vmatprep.subr.mxu0 %v917
    %1616 = vmatpush1.msra.mxu0 %v916
    %1617 = vmatprep.subr.mxu0 %v925
    %1618 = vmatpush1.msra.mxu0 %v924
    %1619 = vmatprep.subr.mxu0 %v933
    %1620 = vmatpush1.msra.mxu0 %v932
    %1621 = vmatprep.subr.mxu0 %v941
    %1622 = vmatpush1.msra.mxu0 %v940
    %1623 = vmatprep.subr.mxu0 %v949
    %1624 = vmatpush1.msra.mxu0 %v948
    %1625 = vmatprep.subr.mxu0 %v957
    %1626 = vmatpush1.msra.mxu0 %v956
    %1627 = vmatprep.subr.mxu0 %v965
    %1628 = vmatpush1.msra.mxu0 %v964
    %1629 = vmatprep.subr.mxu0 %v973
    %1630 = vmatpush1.msra.mxu0 %v972
    %1631 = vmatprep.subr.mxu0 %v981
    %1632 = vmatpush1.msra.mxu0 %v980
    %1633 = vmatprep.subr.mxu0 %v989
    %1634 = vmatpush1.msra.mxu0 %v988
    %1635 = vmatprep.subr.mxu0 %v997
    %1636 = vmatpush1.msra.mxu0 %v996
    %1637 = vmatprep.subr.mxu0 %v1005
    %1638 = vmatpush1.msra.mxu0 %v1004
    %1639 = vmatprep.subr.mxu0 %v1013
    %1640 = vmatpush1.msra.mxu0 %v1012
    %1641 = vmatprep.subr.mxu0 %v1021
    %1642 = vmatpush1.msra.mxu0 %v1020
    %1643 = vmatprep.subr.mxu0 %v1029
    %1644 = vmatpush1.msra.mxu0 %v1028
    %1645 = vmatprep.subr.mxu0 %v1037
    %1646 = vmatpush1.msra.mxu0 %v1036
    %1647 = vmatprep.subr.mxu0 %v1045
    %1648 = vmatpush1.msra.mxu0 %v1044
    %1649 = vmatprep.subr.mxu0 %v1053
    %1650 = vmatpush1.msra.mxu0 %v1052
    %1651 = vmatprep.subr.mxu0 %v1061
    %1652 = vmatpush1.msra.mxu0 %v1060
    %1653 = vmatprep.subr.mxu0 %v1069
    %1654 = vmatpush1.msra.mxu0 %v1068
    %1655 = vmatprep.subr.mxu0 %v1077
    %1656 = vmatpush1.msra.mxu0 %v1076
    %1657 = vmatprep.subr.mxu0 %v1085
    %1658 = vmatpush1.msra.mxu0 %v1084
    %1659 = vmatprep.subr.mxu0 %v1093
    %1660 = vmatpush1.msra.mxu0 %v1092
    %1661 = vmatprep.subr.mxu0 %v1101
    %1662 = vmatpush1.msra.mxu0 %v1100
    %1663 = vmatprep.subr.mxu0 %v1109
    %1664 = vmatpush1.msra.mxu0 %v1108
    %1665 = vmatprep.subr.mxu0 %v1117
    %1666 = vmatpush1.msra.mxu0 %v1116
    %1667 = vmatprep.subr.mxu0 %v1125
    %1668 = vmatpush1.msra.mxu0 %v1124
    %1669 = vmatprep.subr.mxu0 %v1133
    %1670 = vmatpush1.msra.mxu0 %v1132
    %1671 = vmatprep.subr.mxu0 %v1141
    %1672 = vmatpush1.msra.mxu0 %v1140
    %1673 = vmatprep.subr.mxu0 %v1149
    %1674 = vmatpush1.msra.mxu0 %v1148
    %1675 = vmatprep.mubr.f32.mxu0 %v192
    %1676 = vmatmul.mubr.f32.gmra.mrb[0].mxu0 %v191
    %v1677 = vpop.f32.mrb[0].mxu0
    %v1678 = vadd.f32 %v1607, %v1677
    %v1679 = vpop.f32.mrb[0].mxu0
    %v1680 = vadd.f32 %v1609, %v1679
    %1681 = vdwg.mxu0
    %1682 = vmatprep.subr.mxu0 %v1157
    %1683 = vmatpush1.msra.mxu0 %v1156
    %1684 = vmatprep.subr.mxu0 %v1165
    %1685 = vmatpush1.msra.mxu0 %v1164
    %1686 = vmatprep.subr.mxu0 %v1173
    %1687 = vmatpush1.msra.mxu0 %v1172
    %1688 = vmatprep.subr.mxu0 %v1181
    %1689 = vmatpush1.msra.mxu0 %v1180
    %1690 = vmatprep.subr.mxu0 %v1189
    %1691 = vmatpush1.msra.mxu0 %v1188
    %1692 = vmatprep.subr.mxu0 %v1197
    %1693 = vmatpush1.msra.mxu0 %v1196
    %1694 = vmatprep.subr.mxu0 %v1205
    %1695 = vmatpush1.msra.mxu0 %v1204
    %1696 = vmatprep.subr.mxu0 %v1213
    %1697 = vmatpush1.msra.mxu0 %v1212
    %1698 = vmatprep.subr.mxu0 %v1221
    %1699 = vmatpush1.msra.mxu0 %v1220
    %1700 = vmatprep.subr.mxu0 %v1229
    %1701 = vmatpush1.msra.mxu0 %v1228
    %1702 = vmatprep.subr.mxu0 %v1237
    %1703 = vmatpush1.msra.mxu0 %v1236
    %1704 = vmatprep.subr.mxu0 %v1245
    %1705 = vmatpush1.msra.mxu0 %v1244
    %1706 = vmatprep.subr.mxu0 %v1253
    %1707 = vmatpush1.msra.mxu0 %v1252
    %1708 = vmatprep.subr.mxu0 %v1261
    %1709 = vmatpush1.msra.mxu0 %v1260
    %1710 = vmatprep.subr.mxu0 %v1269
    %1711 = vmatpush1.msra.mxu0 %v1268
    %1712 = vmatprep.subr.mxu0 %v1277
    %1713 = vmatpush1.msra.mxu0 %v1276
    %1714 = vmatprep.subr.mxu0 %v1285
    %1715 = vmatpush1.msra.mxu0 %v1284
    %1716 = vmatprep.subr.mxu0 %v1293
    %1717 = vmatpush1.msra.mxu0 %v1292
    %1718 = vmatprep.subr.mxu0 %v1301
    %1719 = vmatpush1.msra.mxu0 %v1300
    %1720 = vmatprep.subr.mxu0 %v1309
    %1721 = vmatpush1.msra.mxu0 %v1308
    %1722 = vmatprep.subr.mxu0 %v1317
    %1723 = vmatpush1.msra.mxu0 %v1316
    %1724 = vmatprep.subr.mxu0 %v1325
    %1725 = vmatpush1.msra.mxu0 %v1324
    %1726 = vmatprep.subr.mxu0 %v1333
    %1727 = vmatpush1.msra.mxu0 %v1332
    %1728 = vmatprep.subr.mxu0 %v1341
    %1729 = vmatpush1.msra.mxu0 %v1340
    %1730 = vmatprep.subr.mxu0 %v1349
    %1731 = vmatpush1.msra.mxu0 %v1348
    %1732 = vmatprep.subr.mxu0 %v1357
    %1733 = vmatpush1.msra.mxu0 %v1356
    %1734 = vmatprep.subr.mxu0 %v1365
    %1735 = vmatpush1.msra.mxu0 %v1364
    %1736 = vmatprep.subr.mxu0 %v1373
    %1737 = vmatpush1.msra.mxu0 %v1372
    %1738 = vmatprep.subr.mxu0 %v1381
    %1739 = vmatpush1.msra.mxu0 %v1380
    %1740 = vmatprep.subr.mxu0 %v1389
    %1741 = vmatpush1.msra.mxu0 %v1388
    %1742 = vmatprep.subr.mxu0 %v1397
    %1743 = vmatpush1.msra.mxu0 %v1396
    %1744 = vmatprep.subr.mxu0 %v1405
    %1745 = vmatpush1.msra.mxu0 %v1404
    %1746 = vmatprep.mubr.f32.mxu0 %v194
    %1747 = vmatmul.mubr.f32.gmra.mrb[0].mxu0 %v193
    %v1748 = vpop.f32.mrb[0].mxu0
    %v1749 = vadd.f32 %v1678, %v1748
    %v1750 = vpop.f32.mrb[0].mxu0
    %v1751 = vadd.f32 %v1680, %v1750
    %1752 = vdwg.mxu0
    %1753 = vmatprep.subr.mxu0 %v1413
    %1754 = vmatpush1.msra.mxu0 %v1412
    %1755 = vmatprep.subr.mxu0 %v1421
    %1756 = vmatpush1.msra.mxu0 %v1420
    %1757 = vmatprep.subr.mxu0 %v1429
    %1758 = vmatpush1.msra.mxu0 %v1428
    %1759 = vmatprep.subr.mxu0 %v1437
    %1760 = vmatpush1.msra.mxu0 %v1436
    %1761 = vmatprep.subr.mxu0 %v1445
    %1762 = vmatpush1.msra.mxu0 %v1444
    %1763 = vmatprep.subr.mxu0 %v1453
    %1764 = vmatpush1.msra.mxu0 %v1452
    %1765 = vmatprep.subr.mxu0 %v1461
    %1766 = vmatpush1.msra.mxu0 %v1460
    %1767 = vmatprep.subr.mxu0 %v1469
    %1768 = vmatpush1.msra.mxu0 %v1468
    %1769 = vmatprep.subr.mxu0 %v1477
    %1770 = vmatpush1.msra.mxu0 %v1476
    %1771 = vmatprep.subr.mxu0 %v1485
    %1772 = vmatpush1.msra.mxu0 %v1484
    %1773 = vmatprep.subr.mxu0 %v1493
    %1774 = vmatpush1.msra.mxu0 %v1492
    %1775 = vmatprep.subr.mxu0 %v1501
    %1776 = vmatpush1.msra.mxu0 %v1500
    %1777 = vmatprep.subr.mxu0 %v1509
    %1778 = vmatpush1.msra.mxu0 %v1508
    %1779 = vmatprep.subr.mxu0 %v1517
    %1780 = vmatpush1.msra.mxu0 %v1516
    %1781 = vmatprep.subr.mxu0 %v1525
    %1782 = vmatpush1.msra.mxu0 %v1524
    %1783 = vmatprep.subr.mxu0 %v1533
    %1784 = vmatpush1.msra.mxu0 %v1532
    %1785 = vmatprep.subr.mxu0 0.0
    %1786 = vmatpush1.msra.mxu0 0.0
    %1787 = vmatprep.subr.mxu0 0.0
    %1788 = vmatpush1.msra.mxu0 0.0
    %1789 = vmatprep.subr.mxu0 0.0
    %1790 = vmatpush1.msra.mxu0 0.0
    %1791 = vmatprep.subr.mxu0 0.0
    %1792 = vmatpush1.msra.mxu0 0.0
    %1793 = vmatprep.subr.mxu0 0.0
    %1794 = vmatpush1.msra.mxu0 0.0
    %1795 = vmatprep.subr.mxu0 0.0
    %1796 = vmatpush1.msra.mxu0 0.0
    %1797 = vmatprep.subr.mxu0 0.0
    %1798 = vmatpush1.msra.mxu0 0.0
    %1799 = vmatprep.subr.mxu0 0.0
    %1800 = vmatpush1.msra.mxu0 0.0
    %1801 = vmatprep.subr.mxu0 0.0
    %1802 = vmatpush1.msra.mxu0 0.0
    %1803 = vmatprep.subr.mxu0 0.0
    %1804 = vmatpush1.msra.mxu0 0.0
    %1805 = vmatprep.subr.mxu0 0.0
    %1806 = vmatpush1.msra.mxu0 0.0
    %1807 = vmatprep.subr.mxu0 0.0
    %1808 = vmatpush1.msra.mxu0 0.0
    %1809 = vmatprep.subr.mxu0 0.0
    %1810 = vmatpush1.msra.mxu0 0.0
    %1811 = vmatprep.subr.mxu0 0.0
    %1812 = vmatpush1.msra.mxu0 0.0
    %1813 = vmatprep.subr.mxu0 0.0
    %1814 = vmatpush1.msra.mxu0 0.0
    %1815 = vmatprep.subr.mxu0 0.0
    %1816 = vmatpush1.msra.mxu0 0.0
    %1817 = vmatprep.mubr.f32.mxu0 0.0
    %1818 = vmatmul.mubr.f32.gmra.mrb[0].mxu0 %v195
    %v1819 = vpop.f32.mrb[0].mxu0
    %v1820 = vadd.f32 %v1749, %v1819
    %v1821 = vpop.f32.mrb[0].mxu0
    %v1822 = vadd.f32 %v1751, %v1821
    %1823 = vdwg.mxu0
    %1824 = vmatprep.subr.mxu0 %v647
    %1825 = vmatpush1.msra.mxu0 %v646
    %1826 = vmatprep.subr.mxu0 %v655
    %1827 = vmatpush1.msra.mxu0 %v654
    %1828 = vmatprep.subr.mxu0 %v663
    %1829 = vmatpush1.msra.mxu0 %v662
    %1830 = vmatprep.subr.mxu0 %v671
    %1831 = vmatpush1.msra.mxu0 %v670
    %1832 = vmatprep.subr.mxu0 %v679
    %1833 = vmatpush1.msra.mxu0 %v678
    %1834 = vmatprep.subr.mxu0 %v687
    %1835 = vmatpush1.msra.mxu0 %v686
    %1836 = vmatprep.subr.mxu0 %v695
    %1837 = vmatpush1.msra.mxu0 %v694
    %1838 = vmatprep.subr.mxu0 %v703
    %1839 = vmatpush1.msra.mxu0 %v702
    %1840 = vmatprep.subr.mxu0 %v711
    %1841 = vmatpush1.msra.mxu0 %v710
    %1842 = vmatprep.subr.mxu0 %v719
    %1843 = vmatpush1.msra.mxu0 %v718
    %1844 = vmatprep.subr.mxu0 %v727
    %1845 = vmatpush1.msra.mxu0 %v726
    %1846 = vmatprep.subr.mxu0 %v735
    %1847 = vmatpush1.msra.mxu0 %v734
    %1848 = vmatprep.subr.mxu0 %v743
    %1849 = vmatpush1.msra.mxu0 %v742
    %1850 = vmatprep.subr.mxu0 %v751
    %1851 = vmatpush1.msra.mxu0 %v750
    %1852 = vmatprep.subr.mxu0 %v759
    %1853 = vmatpush1.msra.mxu0 %v758
    %1854 = vmatprep.subr.mxu0 %v767
    %1855 = vmatpush1.msra.mxu0 %v766
    %1856 = vmatprep.subr.mxu0 %v775
    %1857 = vmatpush1.msra.mxu0 %v774
    %1858 = vmatprep.subr.mxu0 %v783
    %1859 = vmatpush1.msra.mxu0 %v782
    %1860 = vmatprep.subr.mxu0 %v791
    %1861 = vmatpush1.msra.mxu0 %v790
    %1862 = vmatprep.subr.mxu0 %v799
    %1863 = vmatpush1.msra.mxu0 %v798
    %1864 = vmatprep.subr.mxu0 %v807
    %1865 = vmatpush1.msra.mxu0 %v806
    %1866 = vmatprep.subr.mxu0 %v815
    %1867 = vmatpush1.msra.mxu0 %v814
    %1868 = vmatprep.subr.mxu0 %v823
    %1869 = vmatpush1.msra.mxu0 %v822
    %1870 = vmatprep.subr.mxu0 %v831
    %1871 = vmatpush1.msra.mxu0 %v830
    %1872 = vmatprep.subr.mxu0 %v839
    %1873 = vmatpush1.msra.mxu0 %v838
    %1874 = vmatprep.subr.mxu0 %v847
    %1875 = vmatpush1.msra.mxu0 %v846
    %1876 = vmatprep.subr.mxu0 %v855
    %1877 = vmatpush1.msra.mxu0 %v854
    %1878 = vmatprep.subr.mxu0 %v863
    %1879 = vmatpush1.msra.mxu0 %v862
    %1880 = vmatprep.subr.mxu0 %v871
    %1881 = vmatpush1.msra.mxu0 %v870
    %1882 = vmatprep.subr.mxu0 %v879
    %1883 = vmatpush1.msra.mxu0 %v878
    %1884 = vmatprep.subr.mxu0 %v887
    %1885 = vmatpush1.msra.mxu0 %v886
    %1886 = vmatprep.subr.mxu0 %v895
    %1887 = vmatpush1.msra.mxu0 %v894
    %1888 = vmatprep.mubr.f32.mxu0 %v190
    %1889 = vmatmul.mubr.f32.gmra.mrb[0].mxu0 %v189
    %v1890 = vpop.f32.mrb[0].mxu0
    %v1891 = vadd.f32 0.0, %v1890
    %v1892 = vpop.f32.mrb[0].mxu0
    %v1893 = vadd.f32 0.0, %v1892
    %1894 = vdwg.mxu0
    %1895 = vmatprep.subr.mxu0 %v903
    %1896 = vmatpush1.msra.mxu0 %v902
    %1897 = vmatprep.subr.mxu0 %v911
    %1898 = vmatpush1.msra.mxu0 %v910
    %1899 = vmatprep.subr.mxu0 %v919
    %1900 = vmatpush1.msra.mxu0 %v918
    %1901 = vmatprep.subr.mxu0 %v927
    %1902 = vmatpush1.msra.mxu0 %v926
    %1903 = vmatprep.subr.mxu0 %v935
    %1904 = vmatpush1.msra.mxu0 %v934
    %1905 = vmatprep.subr.mxu0 %v943
    %1906 = vmatpush1.msra.mxu0 %v942
    %1907 = vmatprep.subr.mxu0 %v951
    %1908 = vmatpush1.msra.mxu0 %v950
    %1909 = vmatprep.subr.mxu0 %v959
    %1910 = vmatpush1.msra.mxu0 %v958
    %1911 = vmatprep.subr.mxu0 %v967
    %1912 = vmatpush1.msra.mxu0 %v966
    %1913 = vmatprep.subr.mxu0 %v975
    %1914 = vmatpush1.msra.mxu0 %v974
    %1915 = vmatprep.subr.mxu0 %v983
    %1916 = vmatpush1.msra.mxu0 %v982
    %1917 = vmatprep.subr.mxu0 %v991
    %1918 = vmatpush1.msra.mxu0 %v990
    %1919 = vmatprep.subr.mxu0 %v999
    %1920 = vmatpush1.msra.mxu0 %v998
    %1921 = vmatprep.subr.mxu0 %v1007
    %1922 = vmatpush1.msra.mxu0 %v1006
    %1923 = vmatprep.subr.mxu0 %v1015
    %1924 = vmatpush1.msra.mxu0 %v1014
    %1925 = vmatprep.subr.mxu0 %v1023
    %1926 = vmatpush1.msra.mxu0 %v1022
    %1927 = vmatprep.subr.mxu0 %v1031
    %1928 = vmatpush1.msra.mxu0 %v1030
    %1929 = vmatprep.subr.mxu0 %v1039
    %1930 = vmatpush1.msra.mxu0 %v1038
    %1931 = vmatprep.subr.mxu0 %v1047
    %1932 = vmatpush1.msra.mxu0 %v1046
    %1933 = vmatprep.subr.mxu0 %v1055
    %1934 = vmatpush1.msra.mxu0 %v1054
    %1935 = vmatprep.subr.mxu0 %v1063
    %1936 = vmatpush1.msra.mxu0 %v1062
    %1937 = vmatprep.subr.mxu0 %v1071
    %1938 = vmatpush1.msra.mxu0 %v1070
    %1939 = vmatprep.subr.mxu0 %v1079
    %1940 = vmatpush1.msra.mxu0 %v1078
    %1941 = vmatprep.subr.mxu0 %v1087
    %1942 = vmatpush1.msra.mxu0 %v1086
    %1943 = vmatprep.subr.mxu0 %v1095
    %1944 = vmatpush1.msra.mxu0 %v1094
    %1945 = vmatprep.subr.mxu0 %v1103
    %1946 = vmatpush1.msra.mxu0 %v1102
    %1947 = vmatprep.subr.mxu0 %v1111
    %1948 = vmatpush1.msra.mxu0 %v1110
    %1949 = vmatprep.subr.mxu0 %v1119
    %1950 = vmatpush1.msra.mxu0 %v1118
    %1951 = vmatprep.subr.mxu0 %v1127
    %1952 = vmatpush1.msra.mxu0 %v1126
    %1953 = vmatprep.subr.mxu0 %v1135
    %1954 = vmatpush1.msra.mxu0 %v1134
    %1955 = vmatprep.subr.mxu0 %v1143
    %1956 = vmatpush1.msra.mxu0 %v1142
    %1957 = vmatprep.subr.mxu0 %v1151
    %1958 = vmatpush1.msra.mxu0 %v1150
    %1959 = vmatprep.mubr.f32.mxu0 %v192
    %1960 = vmatmul.mubr.f32.gmra.mrb[0].mxu0 %v191
    %v1961 = vpop.f32.mrb[0].mxu0
    %v1962 = vadd.f32 %v1891, %v1961
    %v1963 = vpop.f32.mrb[0].mxu0
    %v1964 = vadd.f32 %v1893, %v1963
    %1965 = vdwg.mxu0
    %1966 = vmatprep.subr.mxu0 %v1159
    %1967 = vmatpush1.msra.mxu0 %v1158
    %1968 = vmatprep.subr.mxu0 %v1167
    %1969 = vmatpush1.msra.mxu0 %v1166
    %1970 = vmatprep.subr.mxu0 %v1175
    %1971 = vmatpush1.msra.mxu0 %v1174
    %1972 = vmatprep.subr.mxu0 %v1183
    %1973 = vmatpush1.msra.mxu0 %v1182
    %1974 = vmatprep.subr.mxu0 %v1191
    %1975 = vmatpush1.msra.mxu0 %v1190
    %1976 = vmatprep.subr.mxu0 %v1199
    %1977 = vmatpush1.msra.mxu0 %v1198
    %1978 = vmatprep.subr.mxu0 %v1207
    %1979 = vmatpush1.msra.mxu0 %v1206
    %1980 = vmatprep.subr.mxu0 %v1215
    %1981 = vmatpush1.msra.mxu0 %v1214
    %1982 = vmatprep.subr.mxu0 %v1223
    %1983 = vmatpush1.msra.mxu0 %v1222
    %1984 = vmatprep.subr.mxu0 %v1231
    %1985 = vmatpush1.msra.mxu0 %v1230
    %1986 = vmatprep.subr.mxu0 %v1239
    %1987 = vmatpush1.msra.mxu0 %v1238
    %1988 = vmatprep.subr.mxu0 %v1247
    %1989 = vmatpush1.msra.mxu0 %v1246
    %1990 = vmatprep.subr.mxu0 %v1255
    %1991 = vmatpush1.msra.mxu0 %v1254
    %1992 = vmatprep.subr.mxu0 %v1263
    %1993 = vmatpush1.msra.mxu0 %v1262
    %1994 = vmatprep.subr.mxu0 %v1271
    %1995 = vmatpush1.msra.mxu0 %v1270
    %1996 = vmatprep.subr.mxu0 %v1279
    %1997 = vmatpush1.msra.mxu0 %v1278
    %1998 = vmatprep.subr.mxu0 %v1287
    %1999 = vmatpush1.msra.mxu0 %v1286
    %2000 = vmatprep.subr.mxu0 %v1295
    %2001 = vmatpush1.msra.mxu0 %v1294
    %2002 = vmatprep.subr.mxu0 %v1303
    %2003 = vmatpush1.msra.mxu0 %v1302
    %2004 = vmatprep.subr.mxu0 %v1311
    %2005 = vmatpush1.msra.mxu0 %v1310
    %2006 = vmatprep.subr.mxu0 %v1319
    %2007 = vmatpush1.msra.mxu0 %v1318
    %2008 = vmatprep.subr.mxu0 %v1327
    %2009 = vmatpush1.msra.mxu0 %v1326
    %2010 = vmatprep.subr.mxu0 %v1335
    %2011 = vmatpush1.msra.mxu0 %v1334
    %2012 = vmatprep.subr.mxu0 %v1343
    %2013 = vmatpush1.msra.mxu0 %v1342
    %2014 = vmatprep.subr.mxu0 %v1351
    %2015 = vmatpush1.msra.mxu0 %v1350
    %2016 = vmatprep.subr.mxu0 %v1359
    %2017 = vmatpush1.msra.mxu0 %v1358
    %2018 = vmatprep.subr.mxu0 %v1367
    %2019 = vmatpush1.msra.mxu0 %v1366
    %2020 = vmatprep.subr.mxu0 %v1375
    %2021 = vmatpush1.msra.mxu0 %v1374
    %2022 = vmatprep.subr.mxu0 %v1383
    %2023 = vmatpush1.msra.mxu0 %v1382
    %2024 = vmatprep.subr.mxu0 %v1391
    %2025 = vmatpush1.msra.mxu0 %v1390
    %2026 = vmatprep.subr.mxu0 %v1399
    %2027 = vmatpush1.msra.mxu0 %v1398
    %2028 = vmatprep.subr.mxu0 %v1407
    %2029 = vmatpush1.msra.mxu0 %v1406
    %2030 = vmatprep.mubr.f32.mxu0 %v194
    %2031 = vmatmul.mubr.f32.gmra.mrb[0].mxu0 %v193
    %v2032 = vpop.f32.mrb[0].mxu0
    %v2033 = vadd.f32 %v1962, %v2032
    %v2034 = vpop.f32.mrb[0].mxu0
    %v2035 = vadd.f32 %v1964, %v2034
    %2036 = vdwg.mxu0
    %2037 = vmatprep.subr.mxu0 %v1415
    %2038 = vmatpush1.msra.mxu0 %v1414
    %2039 = vmatprep.subr.mxu0 %v1423
    %2040 = vmatpush1.msra.mxu0 %v1422
    %2041 = vmatprep.subr.mxu0 %v1431
    %2042 = vmatpush1.msra.mxu0 %v1430
    %2043 = vmatprep.subr.mxu0 %v1439
    %2044 = vmatpush1.msra.mxu0 %v1438
    %2045 = vmatprep.subr.mxu0 %v1447
    %2046 = vmatpush1.msra.mxu0 %v1446
    %2047 = vmatprep.subr.mxu0 %v1455
    %2048 = vmatpush1.msra.mxu0 %v1454
    %2049 = vmatprep.subr.mxu0 %v1463
    %2050 = vmatpush1.msra.mxu0 %v1462
    %2051 = vmatprep.subr.mxu0 %v1471
    %2052 = vmatpush1.msra.mxu0 %v1470
    %2053 = vmatprep.subr.mxu0 %v1479
    %2054 = vmatpush1.msra.mxu0 %v1478
    %2055 = vmatprep.subr.mxu0 %v1487
    %2056 = vmatpush1.msra.mxu0 %v1486
    %2057 = vmatprep.subr.mxu0 %v1495
    %2058 = vmatpush1.msra.mxu0 %v1494
    %2059 = vmatprep.subr.mxu0 %v1503
    %2060 = vmatpush1.msra.mxu0 %v1502
    %2061 = vmatprep.subr.mxu0 %v1511
    %2062 = vmatpush1.msra.mxu0 %v1510
    %2063 = vmatprep.subr.mxu0 %v1519
    %2064 = vmatpush1.msra.mxu0 %v1518
    %2065 = vmatprep.subr.mxu0 %v1527
    %2066 = vmatpush1.msra.mxu0 %v1526
    %2067 = vmatprep.subr.mxu0 %v1535
    %2068 = vmatpush1.msra.mxu0 %v1534
    %2069 = vmatprep.subr.mxu0 0.0
    %2070 = vmatpush1.msra.mxu0 0.0
    %2071 = vmatprep.subr.mxu0 0.0
    %2072 = vmatpush1.msra.mxu0 0.0
    %2073 = vmatprep.subr.mxu0 0.0
    %2074 = vmatpush1.msra.mxu0 0.0
    %2075 = vmatprep.subr.mxu0 0.0
    %2076 = vmatpush1.msra.mxu0 0.0
    %2077 = vmatprep.subr.mxu0 0.0
    %2078 = vmatpush1.msra.mxu0 0.0
    %2079 = vmatprep.subr.mxu0 0.0
    %2080 = vmatpush1.msra.mxu0 0.0
    %2081 = vmatprep.subr.mxu0 0.0
    %2082 = vmatpush1.msra.mxu0 0.0
    %2083 = vmatprep.subr.mxu0 0.0
    %2084 = vmatpush1.msra.mxu0 0.0
    %2085 = vmatprep.subr.mxu0 0.0
    %2086 = vmatpush1.msra.mxu0 0.0
    %2087 = vmatprep.subr.mxu0 0.0
    %2088 = vmatpush1.msra.mxu0 0.0
    %2089 = vmatprep.subr.mxu0 0.0
    %2090 = vmatpush1.msra.mxu0 0.0
    %2091 = vmatprep.subr.mxu0 0.0
    %2092 = vmatpush1.msra.mxu0 0.0
    %2093 = vmatprep.subr.mxu0 0.0
    %2094 = vmatpush1.msra.mxu0 0.0
    %2095 = vmatprep.subr.mxu0 0.0
    %2096 = vmatpush1.msra.mxu0 0.0
    %2097 = vmatprep.subr.mxu0 0.0
    %2098 = vmatpush1.msra.mxu0 0.0
    %2099 = vmatprep.subr.mxu0 0.0
    %2100 = vmatpush1.msra.mxu0 0.0
    %2101 = vmatprep.mubr.f32.mxu0 0.0
    %2102 = vmatmul.mubr.f32.gmra.mrb[0].mxu0 %v195
    %v2103 = vpop.f32.mrb[0].mxu0
    %v2104 = vadd.f32 %v2033, %v2103
    %v2105 = vpop.f32.mrb[0].mxu0
    %v2106 = vadd.f32 %v2035, %v2105
    %2107 = vdwg.mxu0
    %2108 = vmatprep.subr.mxu0 %v649
    %2109 = vmatpush1.msra.mxu0 %v648
    %2110 = vmatprep.subr.mxu0 %v657
    %2111 = vmatpush1.msra.mxu0 %v656
    %2112 = vmatprep.subr.mxu0 %v665
    %2113 = vmatpush1.msra.mxu0 %v664
    %2114 = vmatprep.subr.mxu0 %v673
    %2115 = vmatpush1.msra.mxu0 %v672
    %2116 = vmatprep.subr.mxu0 %v681
    %2117 = vmatpush1.msra.mxu0 %v680
    %2118 = vmatprep.subr.mxu0 %v689
    %2119 = vmatpush1.msra.mxu0 %v688
    %2120 = vmatprep.subr.mxu0 %v697
    %2121 = vmatpush1.msra.mxu0 %v696
    %2122 = vmatprep.subr.mxu0 %v705
    %2123 = vmatpush1.msra.mxu0 %v704
    %2124 = vmatprep.subr.mxu0 %v713
    %2125 = vmatpush1.msra.mxu0 %v712
    %2126 = vmatprep.subr.mxu0 %v721
    %2127 = vmatpush1.msra.mxu0 %v720
    %2128 = vmatprep.subr.mxu0 %v729
    %2129 = vmatpush1.msra.mxu0 %v728
    %2130 = vmatprep.subr.mxu0 %v737
    %2131 = vmatpush1.msra.mxu0 %v736
    %2132 = vmatprep.subr.mxu0 %v745
    %2133 = vmatpush1.msra.mxu0 %v744
    %2134 = vmatprep.subr.mxu0 %v753
    %2135 = vmatpush1.msra.mxu0 %v752
    %2136 = vmatprep.subr.mxu0 %v761
    %2137 = vmatpush1.msra.mxu0 %v760
    %2138 = vmatprep.subr.mxu0 %v769
    %2139 = vmatpush1.msra.mxu0 %v768
    %2140 = vmatprep.subr.mxu0 %v777
    %2141 = vmatpush1.msra.mxu0 %v776
    %2142 = vmatprep.subr.mxu0 %v785
    %2143 = vmatpush1.msra.mxu0 %v784
    %2144 = vmatprep.subr.mxu0 %v793
    %2145 = vmatpush1.msra.mxu0 %v792
    %2146 = vmatprep.subr.mxu0 %v801
    %2147 = vmatpush1.msra.mxu0 %v800
    %2148 = vmatprep.subr.mxu0 %v809
    %2149 = vmatpush1.msra.mxu0 %v808
    %2150 = vmatprep.subr.mxu0 %v817
    %2151 = vmatpush1.msra.mxu0 %v816
    %2152 = vmatprep.subr.mxu0 %v825
    %2153 = vmatpush1.msra.mxu0 %v824
    %2154 = vmatprep.subr.mxu0 %v833
    %2155 = vmatpush1.msra.mxu0 %v832
    %2156 = vmatprep.subr.mxu0 %v841
    %2157 = vmatpush1.msra.mxu0 %v840
    %2158 = vmatprep.subr.mxu0 %v849
    %2159 = vmatpush1.msra.mxu0 %v848
    %2160 = vmatprep.subr.mxu0 %v857
    %2161 = vmatpush1.msra.mxu0 %v856
    %2162 = vmatprep.subr.mxu0 %v865
    %2163 = vmatpush1.msra.mxu0 %v864
    %2164 = vmatprep.subr.mxu0 %v873
    %2165 = vmatpush1.msra.mxu0 %v872
    %2166 = vmatprep.subr.mxu0 %v881
    %2167 = vmatpush1.msra.mxu0 %v880
    %2168 = vmatprep.subr.mxu0 %v889
    %2169 = vmatpush1.msra.mxu0 %v888
    %2170 = vmatprep.subr.mxu0 %v897
    %2171 = vmatpush1.msra.mxu0 %v896
    %2172 = vmatprep.mubr.f32.mxu0 %v190
    %2173 = vmatmul.mubr.f32.gmra.mrb[0].mxu0 %v189
    %v2174 = vpop.f32.mrb[0].mxu0
    %v2175 = vadd.f32 0.0, %v2174
    %v2176 = vpop.f32.mrb[0].mxu0
    %v2177 = vadd.f32 0.0, %v2176
    %2178 = vdwg.mxu0
    %2179 = vmatprep.subr.mxu0 %v905
    %2180 = vmatpush1.msra.mxu0 %v904
    %2181 = vmatprep.subr.mxu0 %v913
    %2182 = vmatpush1.msra.mxu0 %v912
    %2183 = vmatprep.subr.mxu0 %v921
    %2184 = vmatpush1.msra.mxu0 %v920
    %2185 = vmatprep.subr.mxu0 %v929
    %2186 = vmatpush1.msra.mxu0 %v928
    %2187 = vmatprep.subr.mxu0 %v937
    %2188 = vmatpush1.msra.mxu0 %v936
    %2189 = vmatprep.subr.mxu0 %v945
    %2190 = vmatpush1.msra.mxu0 %v944
    %2191 = vmatprep.subr.mxu0 %v953
    %2192 = vmatpush1.msra.mxu0 %v952
    %2193 = vmatprep.subr.mxu0 %v961
    %2194 = vmatpush1.msra.mxu0 %v960
    %2195 = vmatprep.subr.mxu0 %v969
    %2196 = vmatpush1.msra.mxu0 %v968
    %2197 = vmatprep.subr.mxu0 %v977
    %2198 = vmatpush1.msra.mxu0 %v976
    %2199 = vmatprep.subr.mxu0 %v985
    %2200 = vmatpush1.msra.mxu0 %v984
    %2201 = vmatprep.subr.mxu0 %v993
    %2202 = vmatpush1.msra.mxu0 %v992
    %2203 = vmatprep.subr.mxu0 %v1001
    %2204 = vmatpush1.msra.mxu0 %v1000
    %2205 = vmatprep.subr.mxu0 %v1009
    %2206 = vmatpush1.msra.mxu0 %v1008
    %2207 = vmatprep.subr.mxu0 %v1017
    %2208 = vmatpush1.msra.mxu0 %v1016
    %2209 = vmatprep.subr.mxu0 %v1025
    %2210 = vmatpush1.msra.mxu0 %v1024
    %2211 = vmatprep.subr.mxu0 %v1033
    %2212 = vmatpush1.msra.mxu0 %v1032
    %2213 = vmatprep.subr.mxu0 %v1041
    %2214 = vmatpush1.msra.mxu0 %v1040
    %2215 = vmatprep.subr.mxu0 %v1049
    %2216 = vmatpush1.msra.mxu0 %v1048
    %2217 = vmatprep.subr.mxu0 %v1057
    %2218 = vmatpush1.msra.mxu0 %v1056
    %2219 = vmatprep.subr.mxu0 %v1065
    %2220 = vmatpush1.msra.mxu0 %v1064
    %2221 = vmatprep.subr.mxu0 %v1073
    %2222 = vmatpush1.msra.mxu0 %v1072
    %2223 = vmatprep.subr.mxu0 %v1081
    %2224 = vmatpush1.msra.mxu0 %v1080
    %2225 = vmatprep.subr.mxu0 %v1089
    %2226 = vmatpush1.msra.mxu0 %v1088
    %2227 = vmatprep.subr.mxu0 %v1097
    %2228 = vmatpush1.msra.mxu0 %v1096
    %2229 = vmatprep.subr.mxu0 %v1105
    %2230 = vmatpush1.msra.mxu0 %v1104
    %2231 = vmatprep.subr.mxu0 %v1113
    %2232 = vmatpush1.msra.mxu0 %v1112
    %2233 = vmatprep.subr.mxu0 %v1121
    %2234 = vmatpush1.msra.mxu0 %v1120
    %2235 = vmatprep.subr.mxu0 %v1129
    %2236 = vmatpush1.msra.mxu0 %v1128
    %2237 = vmatprep.subr.mxu0 %v1137
    %2238 = vmatpush1.msra.mxu0 %v1136
    %2239 = vmatprep.subr.mxu0 %v1145
    %2240 = vmatpush1.msra.mxu0 %v1144
    %2241 = vmatprep.subr.mxu0 %v1153
    %2242 = vmatpush1.msra.mxu0 %v1152
    %2243 = vmatprep.mubr.f32.mxu0 %v192
    %2244 = vmatmul.mubr.f32.gmra.mrb[0].mxu0 %v191
    %v2245 = vpop.f32.mrb[0].mxu0
    %v2246 = vadd.f32 %v2175, %v2245
    %v2247 = vpop.f32.mrb[0].mxu0
    %v2248 = vadd.f32 %v2177, %v2247
    %2249 = vdwg.mxu0
    %2250 = vmatprep.subr.mxu0 %v1161
    %2251 = vmatpush1.msra.mxu0 %v1160
    %2252 = vmatprep.subr.mxu0 %v1169
    %2253 = vmatpush1.msra.mxu0 %v1168
    %2254 = vmatprep.subr.mxu0 %v1177
    %2255 = vmatpush1.msra.mxu0 %v1176
    %2256 = vmatprep.subr.mxu0 %v1185
    %2257 = vmatpush1.msra.mxu0 %v1184
    %2258 = vmatprep.subr.mxu0 %v1193
    %2259 = vmatpush1.msra.mxu0 %v1192
    %2260 = vmatprep.subr.mxu0 %v1201
    %2261 = vmatpush1.msra.mxu0 %v1200
    %2262 = vmatprep.subr.mxu0 %v1209
    %2263 = vmatpush1.msra.mxu0 %v1208
    %2264 = vmatprep.subr.mxu0 %v1217
    %2265 = vmatpush1.msra.mxu0 %v1216
    %2266 = vmatprep.subr.mxu0 %v1225
    %2267 = vmatpush1.msra.mxu0 %v1224
    %2268 = vmatprep.subr.mxu0 %v1233
    %2269 = vmatpush1.msra.mxu0 %v1232
    %2270 = vmatprep.subr.mxu0 %v1241
    %2271 = vmatpush1.msra.mxu0 %v1240
    %2272 = vmatprep.subr.mxu0 %v1249
    %2273 = vmatpush1.msra.mxu0 %v1248
    %2274 = vmatprep.subr.mxu0 %v1257
    %2275 = vmatpush1.msra.mxu0 %v1256
    %2276 = vmatprep.subr.mxu0 %v1265
    %2277 = vmatpush1.msra.mxu0 %v1264
    %2278 = vmatprep.subr.mxu0 %v1273
    %2279 = vmatpush1.msra.mxu0 %v1272
    %2280 = vmatprep.subr.mxu0 %v1281
    %2281 = vmatpush1.msra.mxu0 %v1280
    %2282 = vmatprep.subr.mxu0 %v1289
    %2283 = vmatpush1.msra.mxu0 %v1288
    %2284 = vmatprep.subr.mxu0 %v1297
    %2285 = vmatpush1.msra.mxu0 %v1296
    %2286 = vmatprep.subr.mxu0 %v1305
    %2287 = vmatpush1.msra.mxu0 %v1304
    %2288 = vmatprep.subr.mxu0 %v1313
    %2289 = vmatpush1.msra.mxu0 %v1312
    %2290 = vmatprep.subr.mxu0 %v1321
    %2291 = vmatpush1.msra.mxu0 %v1320
    %2292 = vmatprep.subr.mxu0 %v1329
    %2293 = vmatpush1.msra.mxu0 %v1328
    %2294 = vmatprep.subr.mxu0 %v1337
    %2295 = vmatpush1.msra.mxu0 %v1336
    %2296 = vmatprep.subr.mxu0 %v1345
    %2297 = vmatpush1.msra.mxu0 %v1344
    %2298 = vmatprep.subr.mxu0 %v1353
    %2299 = vmatpush1.msra.mxu0 %v1352
    %2300 = vmatprep.subr.mxu0 %v1361
    %2301 = vmatpush1.msra.mxu0 %v1360
    %2302 = vmatprep.subr.mxu0 %v1369
    %2303 = vmatpush1.msra.mxu0 %v1368
    %2304 = vmatprep.subr.mxu0 %v1377
    %2305 = vmatpush1.msra.mxu0 %v1376
    %2306 = vmatprep.subr.mxu0 %v1385
    %2307 = vmatpush1.msra.mxu0 %v1384
    %2308 = vmatprep.subr.mxu0 %v1393
    %2309 = vmatpush1.msra.mxu0 %v1392
    %2310 = vmatprep.subr.mxu0 %v1401
    %2311 = vmatpush1.msra.mxu0 %v1400
    %2312 = vmatprep.subr.mxu0 %v1409
    %2313 = vmatpush1.msra.mxu0 %v1408
    %2314 = vmatprep.mubr.f32.mxu0 %v194
    %2315 = vmatmul.mubr.f32.gmra.mrb[0].mxu0 %v193
    %v2316 = vpop.f32.mrb[0].mxu0
    %v2317 = vadd.f32 %v2246, %v2316
    %v2318 = vpop.f32.mrb[0].mxu0
    %v2319 = vadd.f32 %v2248, %v2318
    %2320 = vdwg.mxu0
    %2321 = vmatprep.subr.mxu0 %v1417
    %2322 = vmatpush1.msra.mxu0 %v1416
    %2323 = vmatprep.subr.mxu0 %v1425
    %2324 = vmatpush1.msra.mxu0 %v1424
    %2325 = vmatprep.subr.mxu0 %v1433
    %2326 = vmatpush1.msra.mxu0 %v1432
    %2327 = vmatprep.subr.mxu0 %v1441
    %2328 = vmatpush1.msra.mxu0 %v1440
    %2329 = vmatprep.subr.mxu0 %v1449
    %2330 = vmatpush1.msra.mxu0 %v1448
    %2331 = vmatprep.subr.mxu0 %v1457
    %2332 = vmatpush1.msra.mxu0 %v1456
    %2333 = vmatprep.subr.mxu0 %v1465
    %2334 = vmatpush1.msra.mxu0 %v1464
    %2335 = vmatprep.subr.mxu0 %v1473
    %2336 = vmatpush1.msra.mxu0 %v1472
    %2337 = vmatprep.subr.mxu0 %v1481
    %2338 = vmatpush1.msra.mxu0 %v1480
    %2339 = vmatprep.subr.mxu0 %v1489
    %2340 = vmatpush1.msra.mxu0 %v1488
    %2341 = vmatprep.subr.mxu0 %v1497
    %2342 = vmatpush1.msra.mxu0 %v1496
    %2343 = vmatprep.subr.mxu0 %v1505
    %2344 = vmatpush1.msra.mxu0 %v1504
    %2345 = vmatprep.subr.mxu0 %v1513
    %2346 = vmatpush1.msra.mxu0 %v1512
    %2347 = vmatprep.subr.mxu0 %v1521
    %2348 = vmatpush1.msra.mxu0 %v1520
    %2349 = vmatprep.subr.mxu0 %v1529
    %2350 = vmatpush1.msra.mxu0 %v1528
    %2351 = vmatprep.subr.mxu0 %v1537
    %2352 = vmatpush1.msra.mxu0 %v1536
    %2353 = vmatprep.subr.mxu0 0.0
    %2354 = vmatpush1.msra.mxu0 0.0
    %2355 = vmatprep.subr.mxu0 0.0
    %2356 = vmatpush1.msra.mxu0 0.0
    %2357 = vmatprep.subr.mxu0 0.0
    %2358 = vmatpush1.msra.mxu0 0.0
    %2359 = vmatprep.subr.mxu0 0.0
    %2360 = vmatpush1.msra.mxu0 0.0
    %2361 = vmatprep.subr.mxu0 0.0
    %2362 = vmatpush1.msra.mxu0 0.0
    %2363 = vmatprep.subr.mxu0 0.0
    %2364 = vmatpush1.msra.mxu0 0.0
    %2365 = vmatprep.subr.mxu0 0.0
    %2366 = vmatpush1.msra.mxu0 0.0
    %2367 = vmatprep.subr.mxu0 0.0
    %2368 = vmatpush1.msra.mxu0 0.0
    %2369 = vmatprep.subr.mxu0 0.0
    %2370 = vmatpush1.msra.mxu0 0.0
    %2371 = vmatprep.subr.mxu0 0.0
    %2372 = vmatpush1.msra.mxu0 0.0
    %2373 = vmatprep.subr.mxu0 0.0
    %2374 = vmatpush1.msra.mxu0 0.0
    %2375 = vmatprep.subr.mxu0 0.0
    %2376 = vmatpush1.msra.mxu0 0.0
    %2377 = vmatprep.subr.mxu0 0.0
    %2378 = vmatpush1.msra.mxu0 0.0
    %2379 = vmatprep.subr.mxu0 0.0
    %2380 = vmatpush1.msra.mxu0 0.0
    %2381 = vmatprep.subr.mxu0 0.0
    %2382 = vmatpush1.msra.mxu0 0.0
    %2383 = vmatprep.subr.mxu0 0.0
    %2384 = vmatpush1.msra.mxu0 0.0
    %2385 = vmatprep.mubr.f32.mxu0 0.0
    %2386 = vmatmul.mubr.f32.gmra.mrb[0].mxu0 %v195
    %v2387 = vpop.f32.mrb[0].mxu0
    %v2388 = vadd.f32 %v2317, %v2387
    %v2389 = vpop.f32.mrb[0].mxu0
    %v2390 = vadd.f32 %v2319, %v2389
    %2391 = vdwg.mxu0
    %2392 = vmatprep.subr.mxu0 %v651
    %2393 = vmatpush1.msra.mxu0 %v650
    %2394 = vmatprep.subr.mxu0 %v659
    %2395 = vmatpush1.msra.mxu0 %v658
    %2396 = vmatprep.subr.mxu0 %v667
    %2397 = vmatpush1.msra.mxu0 %v666
    %2398 = vmatprep.subr.mxu0 %v675
    %2399 = vmatpush1.msra.mxu0 %v674
    %2400 = vmatprep.subr.mxu0 %v683
    %2401 = vmatpush1.msra.mxu0 %v682
    %2402 = vmatprep.subr.mxu0 %v691
    %2403 = vmatpush1.msra.mxu0 %v690
    %2404 = vmatprep.subr.mxu0 %v699
    %2405 = vmatpush1.msra.mxu0 %v698
    %2406 = vmatprep.subr.mxu0 %v707
    %2407 = vmatpush1.msra.mxu0 %v706
    %2408 = vmatprep.subr.mxu0 %v715
    %2409 = vmatpush1.msra.mxu0 %v714
    %2410 = vmatprep.subr.mxu0 %v723
    %2411 = vmatpush1.msra.mxu0 %v722
    %2412 = vmatprep.subr.mxu0 %v731
    %2413 = vmatpush1.msra.mxu0 %v730
    %2414 = vmatprep.subr.mxu0 %v739
    %2415 = vmatpush1.msra.mxu0 %v738
    %2416 = vmatprep.subr.mxu0 %v747
    %2417 = vmatpush1.msra.mxu0 %v746
    %2418 = vmatprep.subr.mxu0 %v755
    %2419 = vmatpush1.msra.mxu0 %v754
    %2420 = vmatprep.subr.mxu0 %v763
    %2421 = vmatpush1.msra.mxu0 %v762
    %2422 = vmatprep.subr.mxu0 %v771
    %2423 = vmatpush1.msra.mxu0 %v770
    %2424 = vmatprep.subr.mxu0 %v779
    %2425 = vmatpush1.msra.mxu0 %v778
    %2426 = vmatprep.subr.mxu0 %v787
    %2427 = vmatpush1.msra.mxu0 %v786
    %2428 = vmatprep.subr.mxu0 %v795
    %2429 = vmatpush1.msra.mxu0 %v794
    %2430 = vmatprep.subr.mxu0 %v803
    %2431 = vmatpush1.msra.mxu0 %v802
    %2432 = vmatprep.subr.mxu0 %v811
    %2433 = vmatpush1.msra.mxu0 %v810
    %2434 = vmatprep.subr.mxu0 %v819
    %2435 = vmatpush1.msra.mxu0 %v818
    %2436 = vmatprep.subr.mxu0 %v827
    %2437 = vmatpush1.msra.mxu0 %v826
    %2438 = vmatprep.subr.mxu0 %v835
    %2439 = vmatpush1.msra.mxu0 %v834
    %2440 = vmatprep.subr.mxu0 %v843
    %2441 = vmatpush1.msra.mxu0 %v842
    %2442 = vmatprep.subr.mxu0 %v851
    %2443 = vmatpush1.msra.mxu0 %v850
    %2444 = vmatprep.subr.mxu0 %v859
    %2445 = vmatpush1.msra.mxu0 %v858
    %2446 = vmatprep.subr.mxu0 %v867
    %2447 = vmatpush1.msra.mxu0 %v866
    %2448 = vmatprep.subr.mxu0 %v875
    %2449 = vmatpush1.msra.mxu0 %v874
    %2450 = vmatprep.subr.mxu0 %v883
    %2451 = vmatpush1.msra.mxu0 %v882
    %2452 = vmatprep.subr.mxu0 %v891
    %2453 = vmatpush1.msra.mxu0 %v890
    %2454 = vmatprep.subr.mxu0 %v899
    %2455 = vmatpush1.msra.mxu0 %v898
    %2456 = vmatprep.mubr.f32.mxu0 %v190
    %2457 = vmatmul.mubr.f32.gmra.mrb[0].mxu0 %v189
    %v2458 = vpop.f32.mrb[0].mxu0
    %v2459 = vadd.f32 0.0, %v2458
    %v2460 = vpop.f32.mrb[0].mxu0
    %v2461 = vadd.f32 0.0, %v2460
    %2462 = vdwg.mxu0
    %2463 = vmatprep.subr.mxu0 %v907
    %2464 = vmatpush1.msra.mxu0 %v906
    %2465 = vmatprep.subr.mxu0 %v915
    %2466 = vmatpush1.msra.mxu0 %v914
    %2467 = vmatprep.subr.mxu0 %v923
    %2468 = vmatpush1.msra.mxu0 %v922
    %2469 = vmatprep.subr.mxu0 %v931
    %2470 = vmatpush1.msra.mxu0 %v930
    %2471 = vmatprep.subr.mxu0 %v939
    %2472 = vmatpush1.msra.mxu0 %v938
    %2473 = vmatprep.subr.mxu0 %v947
    %2474 = vmatpush1.msra.mxu0 %v946
    %2475 = vmatprep.subr.mxu0 %v955
    %2476 = vmatpush1.msra.mxu0 %v954
    %2477 = vmatprep.subr.mxu0 %v963
    %2478 = vmatpush1.msra.mxu0 %v962
    %2479 = vmatprep.subr.mxu0 %v971
    %2480 = vmatpush1.msra.mxu0 %v970
    %2481 = vmatprep.subr.mxu0 %v979
    %2482 = vmatpush1.msra.mxu0 %v978
    %2483 = vmatprep.subr.mxu0 %v987
    %2484 = vmatpush1.msra.mxu0 %v986
    %2485 = vmatprep.subr.mxu0 %v995
    %2486 = vmatpush1.msra.mxu0 %v994
    %2487 = vmatprep.subr.mxu0 %v1003
    %2488 = vmatpush1.msra.mxu0 %v1002
    %2489 = vmatprep.subr.mxu0 %v1011
    %2490 = vmatpush1.msra.mxu0 %v1010
    %2491 = vmatprep.subr.mxu0 %v1019
    %2492 = vmatpush1.msra.mxu0 %v1018
    %2493 = vmatprep.subr.mxu0 %v1027
    %2494 = vmatpush1.msra.mxu0 %v1026
    %2495 = vmatprep.subr.mxu0 %v1035
    %2496 = vmatpush1.msra.mxu0 %v1034
    %2497 = vmatprep.subr.mxu0 %v1043
    %2498 = vmatpush1.msra.mxu0 %v1042
    %2499 = vmatprep.subr.mxu0 %v1051
    %2500 = vmatpush1.msra.mxu0 %v1050
    %2501 = vmatprep.subr.mxu0 %v1059
    %2502 = vmatpush1.msra.mxu0 %v1058
    %2503 = vmatprep.subr.mxu0 %v1067
    %2504 = vmatpush1.msra.mxu0 %v1066
    %2505 = vmatprep.subr.mxu0 %v1075
    %2506 = vmatpush1.msra.mxu0 %v1074
    %2507 = vmatprep.subr.mxu0 %v1083
    %2508 = vmatpush1.msra.mxu0 %v1082
    %2509 = vmatprep.subr.mxu0 %v1091
    %2510 = vmatpush1.msra.mxu0 %v1090
    %2511 = vmatprep.subr.mxu0 %v1099
    %2512 = vmatpush1.msra.mxu0 %v1098
    %2513 = vmatprep.subr.mxu0 %v1107
    %2514 = vmatpush1.msra.mxu0 %v1106
    %2515 = vmatprep.subr.mxu0 %v1115
    %2516 = vmatpush1.msra.mxu0 %v1114
    %2517 = vmatprep.subr.mxu0 %v1123
    %2518 = vmatpush1.msra.mxu0 %v1122
    %2519 = vmatprep.subr.mxu0 %v1131
    %2520 = vmatpush1.msra.mxu0 %v1130
    %2521 = vmatprep.subr.mxu0 %v1139
    %2522 = vmatpush1.msra.mxu0 %v1138
    %2523 = vmatprep.subr.mxu0 %v1147
    %2524 = vmatpush1.msra.mxu0 %v1146
    %2525 = vmatprep.subr.mxu0 %v1155
    %2526 = vmatpush1.msra.mxu0 %v1154
    %2527 = vmatprep.mubr.f32.mxu0 %v192
    %2528 = vmatmul.mubr.f32.gmra.mrb[0].mxu0 %v191
    %v2529 = vpop.f32.mrb[0].mxu0
    %v2530 = vadd.f32 %v2459, %v2529
    %v2531 = vpop.f32.mrb[0].mxu0
    %v2532 = vadd.f32 %v2461, %v2531
    %2533 = vdwg.mxu0
    %2534 = vmatprep.subr.mxu0 %v1163
    %2535 = vmatpush1.msra.mxu0 %v1162
    %2536 = vmatprep.subr.mxu0 %v1171
    %2537 = vmatpush1.msra.mxu0 %v1170
    %2538 = vmatprep.subr.mxu0 %v1179
    %2539 = vmatpush1.msra.mxu0 %v1178
    %2540 = vmatprep.subr.mxu0 %v1187
    %2541 = vmatpush1.msra.mxu0 %v1186
    %2542 = vmatprep.subr.mxu0 %v1195
    %2543 = vmatpush1.msra.mxu0 %v1194
    %2544 = vmatprep.subr.mxu0 %v1203
    %2545 = vmatpush1.msra.mxu0 %v1202
    %2546 = vmatprep.subr.mxu0 %v1211
    %2547 = vmatpush1.msra.mxu0 %v1210
    %2548 = vmatprep.subr.mxu0 %v1219
    %2549 = vmatpush1.msra.mxu0 %v1218
    %2550 = vmatprep.subr.mxu0 %v1227
    %2551 = vmatpush1.msra.mxu0 %v1226
    %2552 = vmatprep.subr.mxu0 %v1235
    %2553 = vmatpush1.msra.mxu0 %v1234
    %2554 = vmatprep.subr.mxu0 %v1243
    %2555 = vmatpush1.msra.mxu0 %v1242
    %2556 = vmatprep.subr.mxu0 %v1251
    %2557 = vmatpush1.msra.mxu0 %v1250
    %2558 = vmatprep.subr.mxu0 %v1259
    %2559 = vmatpush1.msra.mxu0 %v1258
    %2560 = vmatprep.subr.mxu0 %v1267
    %2561 = vmatpush1.msra.mxu0 %v1266
    %2562 = vmatprep.subr.mxu0 %v1275
    %2563 = vmatpush1.msra.mxu0 %v1274
    %2564 = vmatprep.subr.mxu0 %v1283
    %2565 = vmatpush1.msra.mxu0 %v1282
    %2566 = vmatprep.subr.mxu0 %v1291
    %2567 = vmatpush1.msra.mxu0 %v1290
    %2568 = vmatprep.subr.mxu0 %v1299
    %2569 = vmatpush1.msra.mxu0 %v1298
    %2570 = vmatprep.subr.mxu0 %v1307
    %2571 = vmatpush1.msra.mxu0 %v1306
    %2572 = vmatprep.subr.mxu0 %v1315
    %2573 = vmatpush1.msra.mxu0 %v1314
    %2574 = vmatprep.subr.mxu0 %v1323
    %2575 = vmatpush1.msra.mxu0 %v1322
    %2576 = vmatprep.subr.mxu0 %v1331
    %2577 = vmatpush1.msra.mxu0 %v1330
    %2578 = vmatprep.subr.mxu0 %v1339
    %2579 = vmatpush1.msra.mxu0 %v1338
    %2580 = vmatprep.subr.mxu0 %v1347
    %2581 = vmatpush1.msra.mxu0 %v1346
    %2582 = vmatprep.subr.mxu0 %v1355
    %2583 = vmatpush1.msra.mxu0 %v1354
    %2584 = vmatprep.subr.mxu0 %v1363
    %2585 = vmatpush1.msra.mxu0 %v1362
    %2586 = vmatprep.subr.mxu0 %v1371
    %2587 = vmatpush1.msra.mxu0 %v1370
    %2588 = vmatprep.subr.mxu0 %v1379
    %2589 = vmatpush1.msra.mxu0 %v1378
    %2590 = vmatprep.subr.mxu0 %v1387
    %2591 = vmatpush1.msra.mxu0 %v1386
    %2592 = vmatprep.subr.mxu0 %v1395
    %2593 = vmatpush1.msra.mxu0 %v1394
    %2594 = vmatprep.subr.mxu0 %v1403
    %2595 = vmatpush1.msra.mxu0 %v1402
    %2596 = vmatprep.subr.mxu0 %v1411
    %2597 = vmatpush1.msra.mxu0 %v1410
    %2598 = vmatprep.mubr.f32.mxu0 %v194
    %2599 = vmatmul.mubr.f32.gmra.mrb[0].mxu0 %v193
    %v2600 = vpop.f32.mrb[0].mxu0
    %v2601 = vadd.f32 %v2530, %v2600
    %v2602 = vpop.f32.mrb[0].mxu0
    %v2603 = vadd.f32 %v2532, %v2602
    %2604 = vdwg.mxu0
    %2605 = vmatprep.subr.mxu0 %v1419
    %2606 = vmatpush1.msra.mxu0 %v1418
    %2607 = vmatprep.subr.mxu0 %v1427
    %2608 = vmatpush1.msra.mxu0 %v1426
    %2609 = vmatprep.subr.mxu0 %v1435
    %2610 = vmatpush1.msra.mxu0 %v1434
    %2611 = vmatprep.subr.mxu0 %v1443
    %2612 = vmatpush1.msra.mxu0 %v1442
    %2613 = vmatprep.subr.mxu0 %v1451
    %2614 = vmatpush1.msra.mxu0 %v1450
    %2615 = vmatprep.subr.mxu0 %v1459
    %2616 = vmatpush1.msra.mxu0 %v1458
    %2617 = vmatprep.subr.mxu0 %v1467
    %2618 = vmatpush1.msra.mxu0 %v1466
    %2619 = vmatprep.subr.mxu0 %v1475
    %2620 = vmatpush1.msra.mxu0 %v1474
    %2621 = vmatprep.subr.mxu0 %v1483
    %2622 = vmatpush1.msra.mxu0 %v1482
    %2623 = vmatprep.subr.mxu0 %v1491
    %2624 = vmatpush1.msra.mxu0 %v1490
    %2625 = vmatprep.subr.mxu0 %v1499
    %2626 = vmatpush1.msra.mxu0 %v1498
    %2627 = vmatprep.subr.mxu0 %v1507
    %2628 = vmatpush1.msra.mxu0 %v1506
    %2629 = vmatprep.subr.mxu0 %v1515
    %2630 = vmatpush1.msra.mxu0 %v1514
    %2631 = vmatprep.subr.mxu0 %v1523
    %2632 = vmatpush1.msra.mxu0 %v1522
    %2633 = vmatprep.subr.mxu0 %v1531
    %2634 = vmatpush1.msra.mxu0 %v1530
    %2635 = vmatprep.subr.mxu0 %v1539
    %2636 = vmatpush1.msra.mxu0 %v1538
    %2637 = vmatprep.subr.mxu0 0.0
    %2638 = vmatpush1.msra.mxu0 0.0
    %2639 = vmatprep.subr.mxu0 0.0
    %2640 = vmatpush1.msra.mxu0 0.0
    %2641 = vmatprep.subr.mxu0 0.0
    %2642 = vmatpush1.msra.mxu0 0.0
    %2643 = vmatprep.subr.mxu0 0.0
    %2644 = vmatpush1.msra.mxu0 0.0
    %2645 = vmatprep.subr.mxu0 0.0
    %2646 = vmatpush1.msra.mxu0 0.0
    %2647 = vmatprep.subr.mxu0 0.0
    %2648 = vmatpush1.msra.mxu0 0.0
    %2649 = vmatprep.subr.mxu0 0.0
    %2650 = vmatpush1.msra.mxu0 0.0
    %2651 = vmatprep.subr.mxu0 0.0
    %2652 = vmatpush1.msra.mxu0 0.0
    %2653 = vmatprep.subr.mxu0 0.0
    %2654 = vmatpush1.msra.mxu0 0.0
    %2655 = vmatprep.subr.mxu0 0.0
    %2656 = vmatpush1.msra.mxu0 0.0
    %2657 = vmatprep.subr.mxu0 0.0
    %2658 = vmatpush1.msra.mxu0 0.0
    %2659 = vmatprep.subr.mxu0 0.0
    %2660 = vmatpush1.msra.mxu0 0.0
    %2661 = vmatprep.subr.mxu0 0.0
    %2662 = vmatpush1.msra.mxu0 0.0
    %2663 = vmatprep.subr.mxu0 0.0
    %2664 = vmatpush1.msra.mxu0 0.0
    %2665 = vmatprep.subr.mxu0 0.0
    %2666 = vmatpush1.msra.mxu0 0.0
    %2667 = vmatprep.subr.mxu0 0.0
    %2668 = vmatpush1.msra.mxu0 0.0
    %2669 = vmatprep.mubr.f32.mxu0 0.0
    %2670 = vmatmul.mubr.f32.gmra.mrb[0].mxu0 %v195
    %v2671 = vpop.f32.mrb[0].mxu0
    %v2672 = vadd.f32 %v2601, %v2671
    %v2673 = vpop.f32.mrb[0].mxu0
    %v2674 = vadd.f32 %v2603, %v2673
    %2675 = vdwg.mxu0
    %v2676 = vld [vmem:[#allocation13] sm:$0xff]
    %v2677 = vld [vmem:[#allocation14] sm:$0xff]
    %v2678 = vrot.slane %v1820, 4
    %v2679 = vadd.f32 %v1820, %v2678
    %v2680 = vrot.slane %v2679, 2
    %v2681 = vadd.f32 %v2679, %v2680
    %v2682 = vrot.slane %v2681, 1
    %v2683 = vadd.f32 %v2681, %v2682
    %v2684 = vrot.slane %v1822, 4
    %v2685 = vadd.f32 %v1822, %v2684
    %v2686 = vrot.slane %v2685, 2
    %v2687 = vadd.f32 %v2685, %v2686
    %v2688 = vrot.slane %v2687, 1
    %v2689 = vadd.f32 %v2687, %v2688
    %v2690 = vrot.slane %v2104, 4
    %v2691 = vadd.f32 %v2104, %v2690
    %v2692 = vrot.slane %v2691, 2
    %v2693 = vadd.f32 %v2691, %v2692
    %v2694 = vrot.slane %v2693, 1
    %v2695 = vadd.f32 %v2693, %v2694
    %v2696 = vrot.slane %v2106, 4
    %v2697 = vadd.f32 %v2106, %v2696
    %v2698 = vrot.slane %v2697, 2
    %v2699 = vadd.f32 %v2697, %v2698
    %v2700 = vrot.slane %v2699, 1
    %v2701 = vadd.f32 %v2699, %v2700
    %v2702 = vrot.slane %v2388, 4
    %v2703 = vadd.f32 %v2388, %v2702
    %v2704 = vrot.slane %v2703, 2
    %v2705 = vadd.f32 %v2703, %v2704
    %v2706 = vrot.slane %v2705, 1
    %v2707 = vadd.f32 %v2705, %v2706
    %v2708 = vrot.slane %v2390, 4
    %v2709 = vadd.f32 %v2390, %v2708
    %v2710 = vrot.slane %v2709, 2
    %v2711 = vadd.f32 %v2709, %v2710
    %v2712 = vrot.slane %v2711, 1
    %v2713 = vadd.f32 %v2711, %v2712
    %v2714 = vrot.slane %v2672, 4
    %v2715 = vadd.f32 %v2672, %v2714
    %v2716 = vrot.slane %v2715, 2
    %v2717 = vadd.f32 %v2715, %v2716
    %v2718 = vrot.slane %v2717, 1
    %v2719 = vadd.f32 %v2717, %v2718
    %v2720 = vrot.slane %v2674, 4
    %v2721 = vadd.f32 %v2674, %v2720
    %v2722 = vrot.slane %v2721, 2
    %v2723 = vadd.f32 %v2721, %v2722
    %v2724 = vrot.slane %v2723, 1
    %v2725 = vadd.f32 %v2723, %v2724
    %v2726 = vrcp.pop 8.0
    %v2727 = vmul.f32 %v2683, %v2726
    %v2728 = vmul.f32 %v2689, %v2726
    %v2729 = vmul.f32 %v2695, %v2726
    %v2730 = vmul.f32 %v2701, %v2726
    %v2731 = vmul.f32 %v2707, %v2726
    %v2732 = vmul.f32 %v2713, %v2726
    %v2733 = vmul.f32 %v2719, %v2726
    %v2734 = vmul.f32 %v2725, %v2726
    %v2735 = vsub.f32 %v1820, %v2727
    %v2736 = vsub.f32 %v1822, %v2728
    %v2737 = vsub.f32 %v2104, %v2729
    %v2738 = vsub.f32 %v2106, %v2730
    %v2739 = vsub.f32 %v2388, %v2731
    %v2740 = vsub.f32 %v2390, %v2732
    %v2741 = vsub.f32 %v2672, %v2733
    %v2742 = vsub.f32 %v2674, %v2734
    %v2743 = vmul.f32 %v2735, %v2735
    %v2744 = vmul.f32 %v2736, %v2736
    %v2745 = vmul.f32 %v2737, %v2737
    %v2746 = vmul.f32 %v2738, %v2738
    %v2747 = vmul.f32 %v2739, %v2739
    %v2748 = vmul.f32 %v2740, %v2740
    %v2749 = vmul.f32 %v2741, %v2741
    %v2750 = vmul.f32 %v2742, %v2742
    %v2751 = vrot.slane %v2743, 4
    %v2752 = vadd.f32 %v2743, %v2751
    %v2753 = vrot.slane %v2752, 2
    %v2754 = vadd.f32 %v2752, %v2753
    %v2755 = vrot.slane %v2754, 1
    %v2756 = vadd.f32 %v2754, %v2755
    %v2757 = vrot.slane %v2744, 4
    %v2758 = vadd.f32 %v2744, %v2757
    %v2759 = vrot.slane %v2758, 2
    %v2760 = vadd.f32 %v2758, %v2759
    %v2761 = vrot.slane %v2760, 1
    %v2762 = vadd.f32 %v2760, %v2761
    %v2763 = vrot.slane %v2745, 4
    %v2764 = vadd.f32 %v2745, %v2763
    %v2765 = vrot.slane %v2764, 2
    %v2766 = vadd.f32 %v2764, %v2765
    %v2767 = vrot.slane %v2766, 1
    %v2768 = vadd.f32 %v2766, %v2767
    %v2769 = vrot.slane %v2746, 4
    %v2770 = vadd.f32 %v2746, %v2769
    %v2771 = vrot.slane %v2770, 2
    %v2772 = vadd.f32 %v2770, %v2771
    %v2773 = vrot.slane %v2772, 1
    %v2774 = vadd.f32 %v2772, %v2773
    %v2775 = vrot.slane %v2747, 4
    %v2776 = vadd.f32 %v2747, %v2775
    %v2777 = vrot.slane %v2776, 2
    %v2778 = vadd.f32 %v2776, %v2777
    %v2779 = vrot.slane %v2778, 1
    %v2780 = vadd.f32 %v2778, %v2779
    %v2781 = vrot.slane %v2748, 4
    %v2782 = vadd.f32 %v2748, %v2781
    %v2783 = vrot.slane %v2782, 2
    %v2784 = vadd.f32 %v2782, %v2783
    %v2785 = vrot.slane %v2784, 1
    %v2786 = vadd.f32 %v2784, %v2785
    %v2787 = vrot.slane %v2749, 4
    %v2788 = vadd.f32 %v2749, %v2787
    %v2789 = vrot.slane %v2788, 2
    %v2790 = vadd.f32 %v2788, %v2789
    %v2791 = vrot.slane %v2790, 1
    %v2792 = vadd.f32 %v2790, %v2791
    %v2793 = vrot.slane %v2750, 4
    %v2794 = vadd.f32 %v2750, %v2793
    %v2795 = vrot.slane %v2794, 2
    %v2796 = vadd.f32 %v2794, %v2795
    %v2797 = vrot.slane %v2796, 1
    %v2798 = vadd.f32 %v2796, %v2797
    %v2799 = vmul.f32 %v2756, %v2726
    %v2800 = vmul.f32 %v2762, %v2726
    %v2801 = vmul.f32 %v2768, %v2726
    %v2802 = vmul.f32 %v2774, %v2726
    %v2803 = vmul.f32 %v2780, %v2726
    %v2804 = vmul.f32 %v2786, %v2726
    %v2805 = vmul.f32 %v2792, %v2726
    %v2806 = vmul.f32 %v2798, %v2726
    %v2807 = vadd.f32 %v2799, 1e-05
    %v2808 = vadd.f32 %v2800, 1e-05
    %v2809 = vadd.f32 %v2801, 1e-05
    %v2810 = vadd.f32 %v2802, 1e-05
    %v2811 = vadd.f32 %v2803, 1e-05
    %v2812 = vadd.f32 %v2804, 1e-05
    %v2813 = vadd.f32 %v2805, 1e-05
    %v2814 = vadd.f32 %v2806, 1e-05
    %v2815 = vrsqrt.pop %v2807
    %v2816 = vrsqrt.pop %v2808
    %v2817 = vrsqrt.pop %v2809
    %v2818 = vrsqrt.pop %v2810
    %v2819 = vrsqrt.pop %v2811
    %v2820 = vrsqrt.pop %v2812
    %v2821 = vrsqrt.pop %v2813
    %v2822 = vrsqrt.pop %v2814
    %v2831 = vcombine.low %v2815, %v2816
    %v2832 = vcombine.low %v2817, %v2818
    %v2833 = vcombine.low %v2819, %v2820
    %v2834 = vcombine.low %v2821, %v2822
    %v2836 = vunpack.c.l.s4 1966171168
    %v2837 = vunpack.c.0.s8 %v2836
    %v2838 = vlaneseq
    %v2839 = vshrl.u32 %v2838, 7
    %v2840 = vsub.s32 %v2837, %v2839
    %v2841 = vrot.slane %v2831, %v2840
    %v2843 = vunpack.c.l.s4 1966171168
    %v2844 = vunpack.c.0.s8 %v2843
    %v2845 = vlaneseq
    %v2846 = vshrl.u32 %v2845, 7
    %v2847 = vsub.s32 %v2844, %v2846
    %v2848 = vrot.slane %v2832, %v2847
    %v2850 = vunpack.c.l.s4 1966171168
    %v2851 = vunpack.c.0.s8 %v2850
    %v2852 = vlaneseq
    %v2853 = vshrl.u32 %v2852, 7
    %v2854 = vsub.s32 %v2851, %v2853
    %v2855 = vrot.slane %v2833, %v2854
    %v2857 = vunpack.c.l.s4 1966171168
    %v2858 = vunpack.c.0.s8 %v2857
    %v2859 = vlaneseq
    %v2860 = vshrl.u32 %v2859, 7
    %v2861 = vsub.s32 %v2858, %v2860
    %v2862 = vrot.slane %v2834, %v2861
    %v2863 = vcombine.low %v2841, %v2848
    %v2864 = vcombine.low %v2855, %v2862
    %v2866 = vunpack.c.l.s4 1966171168
    %v2867 = vunpack.c.0.s8 %v2866
    %v2868 = vlaneseq
    %v2869 = vshrl.u32 %v2868, 7
    %v2870 = vsub.s32 %v2867, %v2869
    %v2871 = vrot.slane %v2863, %v2870
    %v2873 = vunpack.c.l.s4 1966171168
    %v2874 = vunpack.c.0.s8 %v2873
    %v2875 = vlaneseq
    %v2876 = vshrl.u32 %v2875, 7
    %v2877 = vsub.s32 %v2874, %v2876
    %v2878 = vrot.slane %v2864, %v2877
    %v2879 = vcombine.low %v2871, %v2878
    %v2881 = vmul.f32 %v2676, %v2879
    %v2883 = vlaneseq
    %v2884 = vshrl.u32 %v2883, 7
    %v2885 = vsub.s32 0, %v2884
    %v2886 = vrot.slane %v2881, %v2885
    %v2887 = vlaneseq
    %v2888 = vshrl.u32 %v2887, 7
    %v2889 = vsub.s32 1, %v2888
    %v2890 = vrot.slane %v2881, %v2889
    %v2891 = vlaneseq
    %v2892 = vshrl.u32 %v2891, 7
    %v2893 = vsub.s32 2, %v2892
    %v2894 = vrot.slane %v2881, %v2893
    %v2895 = vlaneseq
    %v2896 = vshrl.u32 %v2895, 7
    %v2897 = vsub.s32 3, %v2896
    %v2898 = vrot.slane %v2881, %v2897
    %v2899 = vlaneseq
    %v2900 = vshrl.u32 %v2899, 7
    %v2901 = vsub.s32 4, %v2900
    %v2902 = vrot.slane %v2881, %v2901
    %v2903 = vlaneseq
    %v2904 = vshrl.u32 %v2903, 7
    %v2905 = vsub.s32 5, %v2904
    %v2906 = vrot.slane %v2881, %v2905
    %v2907 = vlaneseq
    %v2908 = vshrl.u32 %v2907, 7
    %v2909 = vsub.s32 6, %v2908
    %v2910 = vrot.slane %v2881, %v2909
    %v2911 = vlaneseq
    %v2912 = vshrl.u32 %v2911, 7
    %v2913 = vsub.s32 7, %v2912
    %v2914 = vrot.slane %v2881, %v2913
    %v2923 = vmul.f32 %v2727, %v2886
    %v2924 = vmul.f32 %v2728, %v2890
    %v2925 = vmul.f32 %v2729, %v2894
    %v2926 = vmul.f32 %v2730, %v2898
    %v2927 = vmul.f32 %v2731, %v2902
    %v2928 = vmul.f32 %v2732, %v2906
    %v2929 = vmul.f32 %v2733, %v2910
    %v2930 = vmul.f32 %v2734, %v2914
    %v2939 = vcombine.low %v2923, %v2924
    %v2940 = vcombine.low %v2925, %v2926
    %v2941 = vcombine.low %v2927, %v2928
    %v2942 = vcombine.low %v2929, %v2930
    %v2944 = vunpack.c.l.s4 1966171168
    %v2945 = vunpack.c.0.s8 %v2944
    %v2946 = vlaneseq
    %v2947 = vshrl.u32 %v2946, 7
    %v2948 = vsub.s32 %v2945, %v2947
    %v2949 = vrot.slane %v2939, %v2948
    %v2951 = vunpack.c.l.s4 1966171168
    %v2952 = vunpack.c.0.s8 %v2951
    %v2953 = vlaneseq
    %v2954 = vshrl.u32 %v2953, 7
    %v2955 = vsub.s32 %v2952, %v2954
    %v2956 = vrot.slane %v2940, %v2955
    %v2958 = vunpack.c.l.s4 1966171168
    %v2959 = vunpack.c.0.s8 %v2958
    %v2960 = vlaneseq
    %v2961 = vshrl.u32 %v2960, 7
    %v2962 = vsub.s32 %v2959, %v2961
    %v2963 = vrot.slane %v2941, %v2962
    %v2965 = vunpack.c.l.s4 1966171168
    %v2966 = vunpack.c.0.s8 %v2965
    %v2967 = vlaneseq
    %v2968 = vshrl.u32 %v2967, 7
    %v2969 = vsub.s32 %v2966, %v2968
    %v2970 = vrot.slane %v2942, %v2969
    %v2971 = vcombine.low %v2949, %v2956
    %v2972 = vcombine.low %v2963, %v2970
    %v2974 = vunpack.c.l.s4 1966171168
    %v2975 = vunpack.c.0.s8 %v2974
    %v2976 = vlaneseq
    %v2977 = vshrl.u32 %v2976, 7
    %v2978 = vsub.s32 %v2975, %v2977
    %v2979 = vrot.slane %v2971, %v2978
    %v2981 = vunpack.c.l.s4 1966171168
    %v2982 = vunpack.c.0.s8 %v2981
    %v2983 = vlaneseq
    %v2984 = vshrl.u32 %v2983, 7
    %v2985 = vsub.s32 %v2982, %v2984
    %v2986 = vrot.slane %v2972, %v2985
    %v2987 = vcombine.low %v2979, %v2986
    %v2989 = vsub.f32 %v2677, %v2987
    %v2990 = vmul.f32 %v1820, %v2886
    %v2991 = vmul.f32 %v1822, %v2890
    %v2992 = vmul.f32 %v2104, %v2894
    %v2993 = vmul.f32 %v2106, %v2898
    %v2994 = vmul.f32 %v2388, %v2902
    %v2995 = vmul.f32 %v2390, %v2906
    %v2996 = vmul.f32 %v2672, %v2910
    %v2997 = vmul.f32 %v2674, %v2914
    %v2999 = vlaneseq
    %v3000 = vshrl.u32 %v2999, 7
    %v3001 = vsub.s32 0, %v3000
    %v3002 = vrot.slane %v2989, %v3001
    %v3003 = vlaneseq
    %v3004 = vshrl.u32 %v3003, 7
    %v3005 = vsub.s32 1, %v3004
    %v3006 = vrot.slane %v2989, %v3005
    %v3007 = vlaneseq
    %v3008 = vshrl.u32 %v3007, 7
    %v3009 = vsub.s32 2, %v3008
    %v3010 = vrot.slane %v2989, %v3009
    %v3011 = vlaneseq
    %v3012 = vshrl.u32 %v3011, 7
    %v3013 = vsub.s32 3, %v3012
    %v3014 = vrot.slane %v2989, %v3013
    %v3015 = vlaneseq
    %v3016 = vshrl.u32 %v3015, 7
    %v3017 = vsub.s32 4, %v3016
    %v3018 = vrot.slane %v2989, %v3017
    %v3019 = vlaneseq
    %v3020 = vshrl.u32 %v3019, 7
    %v3021 = vsub.s32 5, %v3020
    %v3022 = vrot.slane %v2989, %v3021
    %v3023 = vlaneseq
    %v3024 = vshrl.u32 %v3023, 7
    %v3025 = vsub.s32 6, %v3024
    %v3026 = vrot.slane %v2989, %v3025
    %v3027 = vlaneseq
    %v3028 = vshrl.u32 %v3027, 7
    %v3029 = vsub.s32 7, %v3028
    %v3030 = vrot.slane %v2989, %v3029
    %v3039 = vadd.f32 %v2990, %v3002
    %v3040 = vadd.f32 %v2991, %v3006
    %v3041 = vadd.f32 %v2992, %v3010
    %v3042 = vadd.f32 %v2993, %v3014
    %v3043 = vadd.f32 %v2994, %v3018
    %v3044 = vadd.f32 %v2995, %v3022
    %v3045 = vadd.f32 %v2996, %v3026
    %v3046 = vadd.f32 %v2997, %v3030
    %vm3047 = vcmp.ge.f32.partialorder %v3039, 0.0
    %vm3048 = vcmp.ge.f32.partialorder %v3040, 0.0
    %vm3049 = vcmp.ge.f32.partialorder %v3041, 0.0
    %vm3050 = vcmp.ge.f32.partialorder %v3042, 0.0
    %vm3051 = vcmp.ge.f32.partialorder %v3043, 0.0
    %vm3052 = vcmp.ge.f32.partialorder %v3044, 0.0
    %vm3053 = vcmp.ge.f32.partialorder %v3045, 0.0
    %vm3054 = vcmp.ge.f32.partialorder %v3046, 0.0
    %v3055 = vsel %vm3047, 1.0, -1.0
    %v3056 = vsel %vm3048, 1.0, -1.0
    %v3057 = vsel %vm3049, 1.0, -1.0
    %v3058 = vsel %vm3050, 1.0, -1.0
    %v3059 = vsel %vm3051, 1.0, -1.0
    %v3060 = vsel %vm3052, 1.0, -1.0
    %v3061 = vsel %vm3053, 1.0, -1.0
    %v3062 = vsel %vm3054, 1.0, -1.0
    %v3063 = vpack.c.bf16 %v3055, %v3055
    %v3064 = vpack.c.bf16 %v3056, %v3056
    %v3065 = vpack.c.bf16 %v3057, %v3057
    %v3066 = vpack.c.bf16 %v3058, %v3058
    %v3067 = vpack.c.bf16 %v3059, %v3059
    %v3068 = vpack.c.bf16 %v3060, %v3060
    %v3069 = vpack.c.bf16 %v3061, %v3061
    %v3070 = vpack.c.bf16 %v3062, %v3062
    %v3071 = vld [vmem:[#allocation7] sm:$0xff]
    %v3072 = vld [vmem:[#allocation7 + $0x8] sm:$0xff]
    %v3073 = vld [vmem:[#allocation7 + $0x10] sm:$0xff]
    %v3074 = vld [vmem:[#allocation7 + $0x18] sm:$0xff]
    %v3075 = vld [vmem:[#allocation7 + $0x20] sm:$0xff]
    %v3076 = vld [vmem:[#allocation7 + $0x28] sm:$0xff]
    %v3077 = vld [vmem:[#allocation7 + $0x30] sm:$0xff]
    %v3078 = vld [vmem:[#allocation7 + $0x38] sm:$0xff]
    %v3079 = vld [vmem:[#allocation7 + $0x40] sm:$0xff]
    %v3080 = vld [vmem:[#allocation7 + $0x48] sm:$0xff]
    %v3081 = vld [vmem:[#allocation7 + $0x50] sm:$0xff]
    %v3082 = vld [vmem:[#allocation7 + $0x58] sm:$0xff]
    %v3083 = vld [vmem:[#allocation7 + $0x60] sm:$0xff]
    %v3084 = vld [vmem:[#allocation7 + $0x68] sm:$0xff]
    %v3085 = vld [vmem:[#allocation7 + $0x70] sm:$0xff]
    %v3086 = vld [vmem:[#allocation7 + $0x78] sm:$0xff]
    %v3087 = vld [vmem:[#allocation7 + $0x80] sm:$0xff]
    %v3088 = vld [vmem:[#allocation7 + $0x88] sm:$0xff]
    %v3089 = vld [vmem:[#allocation7 + $0x90] sm:$0xff]
    %v3090 = vld [vmem:[#allocation7 + $0x98] sm:$0xff]
    %v3091 = vld [vmem:[#allocation7 + $0xa0] sm:$0xff]
    %v3092 = vld [vmem:[#allocation7 + $0xa8] sm:$0xff]
    %v3093 = vld [vmem:[#allocation7 + $0xb0] sm:$0xff]
    %v3094 = vld [vmem:[#allocation7 + $0xb8] sm:$0xff]
    %v3095 = vld [vmem:[#allocation7 + $0xc0] sm:$0xff]
    %v3096 = vld [vmem:[#allocation7 + $0xc8] sm:$0xff]
    %v3097 = vld [vmem:[#allocation7 + $0xd0] sm:$0xff]
    %v3098 = vld [vmem:[#allocation7 + $0xd8] sm:$0xff]
    %v3099 = vld [vmem:[#allocation7 + $0xe0] sm:$0xff]
    %v3100 = vld [vmem:[#allocation7 + $0xe8] sm:$0xff]
    %v3101 = vld [vmem:[#allocation7 + $0xf0] sm:$0xff]
    %v3102 = vld [vmem:[#allocation7 + $0xf8] sm:$0xff]
    %v3103 = vld [vmem:[#allocation7 + $0x100] sm:$0xff]
    %v3104 = vld [vmem:[#allocation7 + $0x108] sm:$0xff]
    %v3105 = vld [vmem:[#allocation7 + $0x110] sm:$0xff]
    %v3106 = vld [vmem:[#allocation7 + $0x118] sm:$0xff]
    %v3107 = vld [vmem:[#allocation7 + $0x120] sm:$0xff]
    %v3108 = vld [vmem:[#allocation7 + $0x128] sm:$0xff]
    %v3109 = vld [vmem:[#allocation7 + $0x130] sm:$0xff]
    %v3110 = vld [vmem:[#allocation7 + $0x138] sm:$0xff]
    %v3111 = vld [vmem:[#allocation7 + $0x140] sm:$0xff]
    %v3112 = vld [vmem:[#allocation7 + $0x148] sm:$0xff]
    %v3113 = vld [vmem:[#allocation7 + $0x150] sm:$0xff]
    %v3114 = vld [vmem:[#allocation7 + $0x158] sm:$0xff]
    %v3115 = vld [vmem:[#allocation7 + $0x160] sm:$0xff]
    %v3116 = vld [vmem:[#allocation7 + $0x168] sm:$0xff]
    %v3117 = vld [vmem:[#allocation7 + $0x170] sm:$0xff]
    %v3118 = vld [vmem:[#allocation7 + $0x178] sm:$0xff]
    %v3119 = vld [vmem:[#allocation7 + $0x180] sm:$0xff]
    %v3120 = vld [vmem:[#allocation7 + $0x188] sm:$0xff]
    %v3121 = vld [vmem:[#allocation7 + $0x190] sm:$0xff]
    %v3122 = vld [vmem:[#allocation7 + $0x198] sm:$0xff]
    %v3123 = vld [vmem:[#allocation7 + $0x1a0] sm:$0xff]
    %v3124 = vld [vmem:[#allocation7 + $0x1a8] sm:$0xff]
    %v3125 = vld [vmem:[#allocation7 + $0x1b0] sm:$0xff]
    %v3126 = vld [vmem:[#allocation7 + $0x1b8] sm:$0xff]
    %v3127 = vld [vmem:[#allocation7 + $0x1c0] sm:$0xff]
    %v3128 = vld [vmem:[#allocation7 + $0x1c8] sm:$0xff]
    %v3129 = vld [vmem:[#allocation7 + $0x1d0] sm:$0xff]
    %v3130 = vld [vmem:[#allocation7 + $0x1d8] sm:$0xff]
    %v3131 = vld [vmem:[#allocation7 + $0x1e0] sm:$0xff]
    %v3132 = vld [vmem:[#allocation7 + $0x1e8] sm:$0xff]
    %v3133 = vld [vmem:[#allocation7 + $0x1f0] sm:$0xff]
    %v3134 = vld [vmem:[#allocation7 + $0x1f8] sm:$0xff]
    %v3135 = vld [vmem:[#allocation7 + $0x200] sm:$0xff]
    %v3136 = vld [vmem:[#allocation7 + $0x208] sm:$0xff]
    %v3137 = vld [vmem:[#allocation7 + $0x210] sm:$0xff]
    %v3138 = vld [vmem:[#allocation7 + $0x218] sm:$0xff]
    %v3139 = vld [vmem:[#allocation7 + $0x220] sm:$0xff]
    %v3140 = vld [vmem:[#allocation7 + $0x228] sm:$0xff]
    %v3141 = vld [vmem:[#allocation7 + $0x230] sm:$0xff]
    %v3142 = vld [vmem:[#allocation7 + $0x238] sm:$0xff]
    %v3143 = vld [vmem:[#allocation7 + $0x240] sm:$0xff]
    %v3144 = vld [vmem:[#allocation7 + $0x248] sm:$0xff]
    %v3145 = vld [vmem:[#allocation7 + $0x250] sm:$0xff]
    %v3146 = vld [vmem:[#allocation7 + $0x258] sm:$0xff]
    %v3147 = vld [vmem:[#allocation7 + $0x260] sm:$0xff]
    %v3148 = vld [vmem:[#allocation7 + $0x268] sm:$0xff]
    %v3149 = vld [vmem:[#allocation7 + $0x270] sm:$0xff]
    %v3150 = vld [vmem:[#allocation7 + $0x278] sm:$0xff]
    %v3151 = vld [vmem:[#allocation7 + $0x280] sm:$0xff]
    %v3152 = vld [vmem:[#allocation7 + $0x288] sm:$0xff]
    %v3153 = vld [vmem:[#allocation7 + $0x290] sm:$0xff]
    %v3154 = vld [vmem:[#allocation7 + $0x298] sm:$0xff]
    %v3155 = vld [vmem:[#allocation7 + $0x2a0] sm:$0xff]
    %v3156 = vld [vmem:[#allocation7 + $0x2a8] sm:$0xff]
    %v3157 = vld [vmem:[#allocation7 + $0x2b0] sm:$0xff]
    %v3158 = vld [vmem:[#allocation7 + $0x2b8] sm:$0xff]
    %v3159 = vld [vmem:[#allocation7 + $0x2c0] sm:$0xff]
    %v3160 = vld [vmem:[#allocation7 + $0x2c8] sm:$0xff]
    %v3161 = vld [vmem:[#allocation7 + $0x2d0] sm:$0xff]
    %v3162 = vld [vmem:[#allocation7 + $0x2d8] sm:$0xff]
    %v3163 = vld [vmem:[#allocation7 + $0x2e0] sm:$0xff]
    %v3164 = vld [vmem:[#allocation7 + $0x2e8] sm:$0xff]
    %v3165 = vld [vmem:[#allocation7 + $0x2f0] sm:$0xff]
    %v3166 = vld [vmem:[#allocation7 + $0x2f8] sm:$0xff]
    %v3167 = vld [vmem:[#allocation7 + $0x300] sm:$0xff]
    %v3168 = vld [vmem:[#allocation7 + $0x308] sm:$0xff]
    %v3169 = vld [vmem:[#allocation7 + $0x310] sm:$0xff]
    %v3170 = vld [vmem:[#allocation7 + $0x318] sm:$0xff]
    %v3171 = vld [vmem:[#allocation7 + $0x320] sm:$0xff]
    %v3172 = vld [vmem:[#allocation7 + $0x328] sm:$0xff]
    %v3173 = vld [vmem:[#allocation7 + $0x330] sm:$0xff]
    %v3174 = vld [vmem:[#allocation7 + $0x338] sm:$0xff]
    %v3175 = vld [vmem:[#allocation7 + $0x340] sm:$0xff]
    %v3176 = vld [vmem:[#allocation7 + $0x348] sm:$0xff]
    %v3177 = vld [vmem:[#allocation7 + $0x350] sm:$0xff]
    %v3178 = vld [vmem:[#allocation7 + $0x358] sm:$0xff]
    %v3179 = vld [vmem:[#allocation7 + $0x360] sm:$0xff]
    %v3180 = vld [vmem:[#allocation7 + $0x368] sm:$0xff]
    %v3181 = vld [vmem:[#allocation7 + $0x370] sm:$0xff]
    %v3182 = vld [vmem:[#allocation7 + $0x378] sm:$0xff]
    %v3183 = vld [vmem:[#allocation7 + $0x380] sm:$0xff]
    %v3184 = vld [vmem:[#allocation7 + $0x388] sm:$0xff]
    %v3185 = vld [vmem:[#allocation7 + $0x390] sm:$0xff]
    %v3186 = vld [vmem:[#allocation7 + $0x398] sm:$0xff]
    %v3187 = vld [vmem:[#allocation7 + $0x3a0] sm:$0xff]
    %v3188 = vld [vmem:[#allocation7 + $0x3a8] sm:$0xff]
    %v3189 = vld [vmem:[#allocation7 + $0x3b0] sm:$0xff]
    %v3190 = vld [vmem:[#allocation7 + $0x3b8] sm:$0xff]
    %v3191 = vld [vmem:[#allocation7 + $0x3c0] sm:$0xff]
    %v3192 = vld [vmem:[#allocation7 + $0x3c8] sm:$0xff]
    %v3193 = vld [vmem:[#allocation7 + $0x3d0] sm:$0xff]
    %v3194 = vld [vmem:[#allocation7 + $0x3d8] sm:$0xff]
    %v3195 = vld [vmem:[#allocation7 + $0x3e0] sm:$0xff]
    %v3196 = vld [vmem:[#allocation7 + $0x3e8] sm:$0xff]
    %v3197 = vld [vmem:[#allocation7 + $0x3f0] sm:$0xff]
    %v3198 = vld [vmem:[#allocation7 + $0x3f8] sm:$0xff]
    %v3199 = vld [vmem:[#allocation7 + $0x400] sm:$0xff]
    %v3200 = vld [vmem:[#allocation7 + $0x408] sm:$0xff]
    %v3201 = vld [vmem:[#allocation7 + $0x410] sm:$0xff]
    %v3202 = vld [vmem:[#allocation7 + $0x418] sm:$0xff]
    %v3203 = vld [vmem:[#allocation7 + $0x420] sm:$0xff]
    %v3204 = vld [vmem:[#allocation7 + $0x428] sm:$0xff]
    %v3205 = vld [vmem:[#allocation7 + $0x430] sm:$0xff]
    %v3206 = vld [vmem:[#allocation7 + $0x438] sm:$0xff]
    %v3207 = vld [vmem:[#allocation7 + $0x440] sm:$0xff]
    %v3208 = vld [vmem:[#allocation7 + $0x448] sm:$0xff]
    %v3209 = vld [vmem:[#allocation7 + $0x450] sm:$0xff]
    %v3210 = vld [vmem:[#allocation7 + $0x458] sm:$0xff]
    %v3211 = vld [vmem:[#allocation7 + $0x460] sm:$0xff]
    %v3212 = vld [vmem:[#allocation7 + $0x468] sm:$0xff]
    %v3213 = vld [vmem:[#allocation7 + $0x470] sm:$0xff]
    %v3214 = vld [vmem:[#allocation7 + $0x478] sm:$0xff]
    %v3215 = vld [vmem:[#allocation7 + $0x480] sm:$0xff]
    %v3216 = vld [vmem:[#allocation7 + $0x488] sm:$0xff]
    %v3217 = vld [vmem:[#allocation7 + $0x490] sm:$0xff]
    %v3218 = vld [vmem:[#allocation7 + $0x498] sm:$0xff]
    %v3219 = vld [vmem:[#allocation7 + $0x4a0] sm:$0xff]
    %v3220 = vld [vmem:[#allocation7 + $0x4a8] sm:$0xff]
    %v3221 = vld [vmem:[#allocation7 + $0x4b0] sm:$0xff]
    %v3222 = vld [vmem:[#allocation7 + $0x4b8] sm:$0xff]
    %v3223 = vld [vmem:[#allocation7 + $0x4c0] sm:$0xff]
    %v3224 = vld [vmem:[#allocation7 + $0x4c8] sm:$0xff]
    %v3225 = vld [vmem:[#allocation7 + $0x4d0] sm:$0xff]
    %v3226 = vld [vmem:[#allocation7 + $0x4d8] sm:$0xff]
    %v3227 = vld [vmem:[#allocation7 + $0x4e0] sm:$0xff]
    %v3228 = vld [vmem:[#allocation7 + $0x4e8] sm:$0xff]
    %v3229 = vld [vmem:[#allocation7 + $0x4f0] sm:$0xff]
    %v3230 = vld [vmem:[#allocation7 + $0x4f8] sm:$0xff]
    %v3231 = vld [vmem:[#allocation7 + $0x500] sm:$0xff]
    %v3232 = vld [vmem:[#allocation7 + $0x508] sm:$0xff]
    %v3233 = vld [vmem:[#allocation7 + $0x510] sm:$0xff]
    %v3234 = vld [vmem:[#allocation7 + $0x518] sm:$0xff]
    %v3235 = vld [vmem:[#allocation7 + $0x520] sm:$0xff]
    %v3236 = vld [vmem:[#allocation7 + $0x528] sm:$0xff]
    %v3237 = vld [vmem:[#allocation7 + $0x530] sm:$0xff]
    %v3238 = vld [vmem:[#allocation7 + $0x538] sm:$0xff]
    %v3239 = vld [vmem:[#allocation7 + $0x540] sm:$0xff]
    %v3240 = vld [vmem:[#allocation7 + $0x548] sm:$0xff]
    %v3241 = vld [vmem:[#allocation7 + $0x550] sm:$0xff]
    %v3242 = vld [vmem:[#allocation7 + $0x558] sm:$0xff]
    %v3243 = vld [vmem:[#allocation7 + $0x560] sm:$0xff]
    %v3244 = vld [vmem:[#allocation7 + $0x568] sm:$0xff]
    %v3245 = vld [vmem:[#allocation7 + $0x570] sm:$0xff]
    %v3246 = vld [vmem:[#allocation7 + $0x578] sm:$0xff]
    %v3247 = vld [vmem:[#allocation7 + $0x580] sm:$0xff]
    %v3248 = vld [vmem:[#allocation7 + $0x588] sm:$0xff]
    %v3249 = vld [vmem:[#allocation7 + $0x590] sm:$0xff]
    %v3250 = vld [vmem:[#allocation7 + $0x598] sm:$0xff]
    %v3251 = vld [vmem:[#allocation7 + $0x5a0] sm:$0xff]
    %v3252 = vld [vmem:[#allocation7 + $0x5a8] sm:$0xff]
    %v3253 = vld [vmem:[#allocation7 + $0x5b0] sm:$0xff]
    %v3254 = vld [vmem:[#allocation7 + $0x5b8] sm:$0xff]
    %v3255 = vld [vmem:[#allocation7 + $0x5c0] sm:$0xff]
    %v3256 = vld [vmem:[#allocation7 + $0x5c8] sm:$0xff]
    %v3257 = vld [vmem:[#allocation7 + $0x5d0] sm:$0xff]
    %v3258 = vld [vmem:[#allocation7 + $0x5d8] sm:$0xff]
    %v3259 = vld [vmem:[#allocation7 + $0x5e0] sm:$0xff]
    %v3260 = vld [vmem:[#allocation7 + $0x5e8] sm:$0xff]
    %v3261 = vld [vmem:[#allocation7 + $0x5f0] sm:$0xff]
    %v3262 = vld [vmem:[#allocation7 + $0x5f8] sm:$0xff]
    %v3263 = vld [vmem:[#allocation7 + $0x600] sm:$0xff]
    %v3264 = vld [vmem:[#allocation7 + $0x608] sm:$0xff]
    %v3265 = vld [vmem:[#allocation7 + $0x610] sm:$0xff]
    %v3266 = vld [vmem:[#allocation7 + $0x618] sm:$0xff]
    %v3267 = vld [vmem:[#allocation7 + $0x620] sm:$0xff]
    %v3268 = vld [vmem:[#allocation7 + $0x628] sm:$0xff]
    %v3269 = vld [vmem:[#allocation7 + $0x630] sm:$0xff]
    %v3270 = vld [vmem:[#allocation7 + $0x638] sm:$0xff]
    %v3271 = vld [vmem:[#allocation7 + $0x640] sm:$0xff]
    %v3272 = vld [vmem:[#allocation7 + $0x648] sm:$0xff]
    %v3273 = vld [vmem:[#allocation7 + $0x650] sm:$0xff]
    %v3274 = vld [vmem:[#allocation7 + $0x658] sm:$0xff]
    %v3275 = vld [vmem:[#allocation7 + $0x660] sm:$0xff]
    %v3276 = vld [vmem:[#allocation7 + $0x668] sm:$0xff]
    %v3277 = vld [vmem:[#allocation7 + $0x670] sm:$0xff]
    %v3278 = vld [vmem:[#allocation7 + $0x678] sm:$0xff]
    %v3279 = vld [vmem:[#allocation7 + $0x680] sm:$0xff]
    %v3280 = vld [vmem:[#allocation7 + $0x688] sm:$0xff]
    %v3281 = vld [vmem:[#allocation7 + $0x690] sm:$0xff]
    %v3282 = vld [vmem:[#allocation7 + $0x698] sm:$0xff]
    %v3283 = vld [vmem:[#allocation7 + $0x6a0] sm:$0xff]
    %v3284 = vld [vmem:[#allocation7 + $0x6a8] sm:$0xff]
    %v3285 = vld [vmem:[#allocation7 + $0x6b0] sm:$0xff]
    %v3286 = vld [vmem:[#allocation7 + $0x6b8] sm:$0xff]
    %v3287 = vld [vmem:[#allocation7 + $0x6c0] sm:$0xff]
    %v3288 = vld [vmem:[#allocation7 + $0x6c8] sm:$0xff]
    %v3289 = vld [vmem:[#allocation7 + $0x6d0] sm:$0xff]
    %v3290 = vld [vmem:[#allocation7 + $0x6d8] sm:$0xff]
    %v3291 = vld [vmem:[#allocation7 + $0x6e0] sm:$0xff]
    %v3292 = vld [vmem:[#allocation7 + $0x6e8] sm:$0xff]
    %v3293 = vld [vmem:[#allocation7 + $0x6f0] sm:$0xff]
    %v3294 = vld [vmem:[#allocation7 + $0x6f8] sm:$0xff]
    %v3295 = vld [vmem:[#allocation7 + $0x700] sm:$0xff]
    %v3296 = vld [vmem:[#allocation7 + $0x708] sm:$0xff]
    %v3297 = vld [vmem:[#allocation7 + $0x710] sm:$0xff]
    %v3298 = vld [vmem:[#allocation7 + $0x718] sm:$0xff]
    %v3299 = vld [vmem:[#allocation7 + $0x720] sm:$0xff]
    %v3300 = vld [vmem:[#allocation7 + $0x728] sm:$0xff]
    %v3301 = vld [vmem:[#allocation7 + $0x730] sm:$0xff]
    %v3302 = vld [vmem:[#allocation7 + $0x738] sm:$0xff]
    %v3303 = vld [vmem:[#allocation7 + $0x740] sm:$0xff]
    %v3304 = vld [vmem:[#allocation7 + $0x748] sm:$0xff]
    %v3305 = vld [vmem:[#allocation7 + $0x750] sm:$0xff]
    %v3306 = vld [vmem:[#allocation7 + $0x758] sm:$0xff]
    %v3307 = vld [vmem:[#allocation7 + $0x760] sm:$0xff]
    %v3308 = vld [vmem:[#allocation7 + $0x768] sm:$0xff]
    %v3309 = vld [vmem:[#allocation7 + $0x770] sm:$0xff]
    %v3310 = vld [vmem:[#allocation7 + $0x778] sm:$0xff]
    %v3311 = vld [vmem:[#allocation7 + $0x780] sm:$0xff]
    %v3312 = vld [vmem:[#allocation7 + $0x788] sm:$0xff]
    %v3313 = vld [vmem:[#allocation7 + $0x790] sm:$0xff]
    %v3314 = vld [vmem:[#allocation7 + $0x798] sm:$0xff]
    %v3315 = vld [vmem:[#allocation7 + $0x7a0] sm:$0xff]
    %v3316 = vld [vmem:[#allocation7 + $0x7a8] sm:$0xff]
    %v3317 = vld [vmem:[#allocation7 + $0x7b0] sm:$0xff]
    %v3318 = vld [vmem:[#allocation7 + $0x7b8] sm:$0xff]
    %v3319 = vld [vmem:[#allocation7 + $0x7c0] sm:$0xff]
    %v3320 = vld [vmem:[#allocation7 + $0x7c8] sm:$0xff]
    %v3321 = vld [vmem:[#allocation7 + $0x7d0] sm:$0xff]
    %v3322 = vld [vmem:[#allocation7 + $0x7d8] sm:$0xff]
    %v3323 = vld [vmem:[#allocation7 + $0x7e0] sm:$0xff]
    %v3324 = vld [vmem:[#allocation7 + $0x7e8] sm:$0xff]
    %v3325 = vld [vmem:[#allocation7 + $0x7f0] sm:$0xff]
    %v3326 = vld [vmem:[#allocation7 + $0x7f8] sm:$0xff]
    %v3327 = vld [vmem:[#allocation7 + $0x800] sm:$0xff]
    %v3328 = vld [vmem:[#allocation7 + $0x808] sm:$0xff]
    %v3329 = vld [vmem:[#allocation7 + $0x810] sm:$0xff]
    %v3330 = vld [vmem:[#allocation7 + $0x818] sm:$0xff]
    %v3331 = vld [vmem:[#allocation7 + $0x820] sm:$0xff]
    %v3332 = vld [vmem:[#allocation7 + $0x828] sm:$0xff]
    %v3333 = vld [vmem:[#allocation7 + $0x830] sm:$0xff]
    %v3334 = vld [vmem:[#allocation7 + $0x838] sm:$0xff]
    %v3335 = vld [vmem:[#allocation7 + $0x840] sm:$0xff]
    %v3336 = vld [vmem:[#allocation7 + $0x848] sm:$0xff]
    %v3337 = vld [vmem:[#allocation7 + $0x850] sm:$0xff]
    %v3338 = vld [vmem:[#allocation7 + $0x858] sm:$0xff]
    %v3339 = vld [vmem:[#allocation7 + $0x860] sm:$0xff]
    %v3340 = vld [vmem:[#allocation7 + $0x868] sm:$0xff]
    %v3341 = vld [vmem:[#allocation7 + $0x870] sm:$0xff]
    %v3342 = vld [vmem:[#allocation7 + $0x878] sm:$0xff]
    %v3343 = vld [vmem:[#allocation7 + $0x880] sm:$0xff]
    %v3344 = vld [vmem:[#allocation7 + $0x888] sm:$0xff]
    %v3345 = vld [vmem:[#allocation7 + $0x890] sm:$0xff]
    %v3346 = vld [vmem:[#allocation7 + $0x898] sm:$0xff]
    %v3347 = vld [vmem:[#allocation7 + $0x8a0] sm:$0xff]
    %v3348 = vld [vmem:[#allocation7 + $0x8a8] sm:$0xff]
    %v3349 = vld [vmem:[#allocation7 + $0x8b0] sm:$0xff]
    %v3350 = vld [vmem:[#allocation7 + $0x8b8] sm:$0xff]
    %v3351 = vld [vmem:[#allocation7 + $0x8c0] sm:$0xff]
    %v3352 = vld [vmem:[#allocation7 + $0x8c8] sm:$0xff]
    %v3353 = vld [vmem:[#allocation7 + $0x8d0] sm:$0xff]
    %v3354 = vld [vmem:[#allocation7 + $0x8d8] sm:$0xff]
    %v3355 = vld [vmem:[#allocation7 + $0x8e0] sm:$0xff]
    %v3356 = vld [vmem:[#allocation7 + $0x8e8] sm:$0xff]
    %v3357 = vld [vmem:[#allocation7 + $0x8f0] sm:$0xff]
    %v3358 = vld [vmem:[#allocation7 + $0x8f8] sm:$0xff]
    %v3359 = vld [vmem:[#allocation7 + $0x900] sm:$0xff]
    %v3360 = vld [vmem:[#allocation7 + $0x908] sm:$0xff]
    %v3361 = vld [vmem:[#allocation7 + $0x910] sm:$0xff]
    %v3362 = vld [vmem:[#allocation7 + $0x918] sm:$0xff]
    %v3363 = vld [vmem:[#allocation7 + $0x920] sm:$0xff]
    %v3364 = vld [vmem:[#allocation7 + $0x928] sm:$0xff]
    %v3365 = vld [vmem:[#allocation7 + $0x930] sm:$0xff]
    %v3366 = vld [vmem:[#allocation7 + $0x938] sm:$0xff]
    %v3367 = vld [vmem:[#allocation7 + $0x940] sm:$0xff]
    %v3368 = vld [vmem:[#allocation7 + $0x948] sm:$0xff]
    %v3369 = vld [vmem:[#allocation7 + $0x950] sm:$0xff]
    %v3370 = vld [vmem:[#allocation7 + $0x958] sm:$0xff]
    %v3371 = vld [vmem:[#allocation7 + $0x960] sm:$0xff]
    %v3372 = vld [vmem:[#allocation7 + $0x968] sm:$0xff]
    %v3373 = vld [vmem:[#allocation7 + $0x970] sm:$0xff]
    %v3374 = vld [vmem:[#allocation7 + $0x978] sm:$0xff]
    %v3375 = vld [vmem:[#allocation7 + $0x980] sm:$0xff]
    %v3376 = vld [vmem:[#allocation7 + $0x988] sm:$0xff]
    %v3377 = vld [vmem:[#allocation7 + $0x990] sm:$0xff]
    %v3378 = vld [vmem:[#allocation7 + $0x998] sm:$0xff]
    %v3379 = vld [vmem:[#allocation7 + $0x9a0] sm:$0xff]
    %v3380 = vld [vmem:[#allocation7 + $0x9a8] sm:$0xff]
    %v3381 = vld [vmem:[#allocation7 + $0x9b0] sm:$0xff]
    %v3382 = vld [vmem:[#allocation7 + $0x9b8] sm:$0xff]
    %v3383 = vld [vmem:[#allocation7 + $0x9c0] sm:$0xff]
    %v3384 = vld [vmem:[#allocation7 + $0x9c8] sm:$0xff]
    %v3385 = vld [vmem:[#allocation7 + $0x9d0] sm:$0xff]
    %v3386 = vld [vmem:[#allocation7 + $0x9d8] sm:$0xff]
    %v3387 = vld [vmem:[#allocation7 + $0x9e0] sm:$0xff]
    %v3388 = vld [vmem:[#allocation7 + $0x9e8] sm:$0xff]
    %v3389 = vld [vmem:[#allocation7 + $0x9f0] sm:$0xff]
    %v3390 = vld [vmem:[#allocation7 + $0x9f8] sm:$0xff]
    %v3391 = vld [vmem:[#allocation7 + $0xa00] sm:$0xff]
    %v3392 = vld [vmem:[#allocation7 + $0xa08] sm:$0xff]
    %v3393 = vld [vmem:[#allocation7 + $0xa10] sm:$0xff]
    %v3394 = vld [vmem:[#allocation7 + $0xa18] sm:$0xff]
    %v3395 = vld [vmem:[#allocation7 + $0xa20] sm:$0xff]
    %v3396 = vld [vmem:[#allocation7 + $0xa28] sm:$0xff]
    %v3397 = vld [vmem:[#allocation7 + $0xa30] sm:$0xff]
    %v3398 = vld [vmem:[#allocation7 + $0xa38] sm:$0xff]
    %v3399 = vld [vmem:[#allocation7 + $0xa40] sm:$0xff]
    %v3400 = vld [vmem:[#allocation7 + $0xa48] sm:$0xff]
    %v3401 = vld [vmem:[#allocation7 + $0xa50] sm:$0xff]
    %v3402 = vld [vmem:[#allocation7 + $0xa58] sm:$0xff]
    %v3403 = vld [vmem:[#allocation7 + $0xa60] sm:$0xff]
    %v3404 = vld [vmem:[#allocation7 + $0xa68] sm:$0xff]
    %v3405 = vld [vmem:[#allocation7 + $0xa70] sm:$0xff]
    %v3406 = vld [vmem:[#allocation7 + $0xa78] sm:$0xff]
    %v3407 = vld [vmem:[#allocation7 + $0xa80] sm:$0xff]
    %v3408 = vld [vmem:[#allocation7 + $0xa88] sm:$0xff]
    %v3409 = vld [vmem:[#allocation7 + $0xa90] sm:$0xff]
    %v3410 = vld [vmem:[#allocation7 + $0xa98] sm:$0xff]
    %v3411 = vld [vmem:[#allocation7 + $0xaa0] sm:$0xff]
    %v3412 = vld [vmem:[#allocation7 + $0xaa8] sm:$0xff]
    %v3413 = vld [vmem:[#allocation7 + $0xab0] sm:$0xff]
    %v3414 = vld [vmem:[#allocation7 + $0xab8] sm:$0xff]
    %v3415 = vld [vmem:[#allocation7 + $0xac0] sm:$0xff]
    %v3416 = vld [vmem:[#allocation7 + $0xac8] sm:$0xff]
    %v3417 = vld [vmem:[#allocation7 + $0xad0] sm:$0xff]
    %v3418 = vld [vmem:[#allocation7 + $0xad8] sm:$0xff]
    %v3419 = vld [vmem:[#allocation7 + $0xae0] sm:$0xff]
    %v3420 = vld [vmem:[#allocation7 + $0xae8] sm:$0xff]
    %v3421 = vld [vmem:[#allocation7 + $0xaf0] sm:$0xff]
    %v3422 = vld [vmem:[#allocation7 + $0xaf8] sm:$0xff]
    %v3423 = vld [vmem:[#allocation7 + $0xb00] sm:$0xff]
    %v3424 = vld [vmem:[#allocation7 + $0xb08] sm:$0xff]
    %v3425 = vld [vmem:[#allocation7 + $0xb10] sm:$0xff]
    %v3426 = vld [vmem:[#allocation7 + $0xb18] sm:$0xff]
    %v3427 = vld [vmem:[#allocation7 + $0xb20] sm:$0xff]
    %v3428 = vld [vmem:[#allocation7 + $0xb28] sm:$0xff]
    %v3429 = vld [vmem:[#allocation7 + $0xb30] sm:$0xff]
    %v3430 = vld [vmem:[#allocation7 + $0xb38] sm:$0xff]
    %v3431 = vld [vmem:[#allocation7 + $0xb40] sm:$0xff]
    %v3432 = vld [vmem:[#allocation7 + $0xb48] sm:$0xff]
    %v3433 = vld [vmem:[#allocation7 + $0xb50] sm:$0xff]
    %v3434 = vld [vmem:[#allocation7 + $0xb58] sm:$0xff]
    %v3435 = vld [vmem:[#allocation7 + $0xb60] sm:$0xff]
    %v3436 = vld [vmem:[#allocation7 + $0xb68] sm:$0xff]
    %v3437 = vld [vmem:[#allocation7 + $0xb70] sm:$0xff]
    %v3438 = vld [vmem:[#allocation7 + $0xb78] sm:$0xff]
    %v3439 = vld [vmem:[#allocation7 + $0xb80] sm:$0xff]
    %v3440 = vld [vmem:[#allocation7 + $0xb88] sm:$0xff]
    %v3441 = vld [vmem:[#allocation7 + $0xb90] sm:$0xff]
    %v3442 = vld [vmem:[#allocation7 + $0xb98] sm:$0xff]
    %v3443 = vld [vmem:[#allocation7 + $0xba0] sm:$0xff]
    %v3444 = vld [vmem:[#allocation7 + $0xba8] sm:$0xff]
    %v3445 = vld [vmem:[#allocation7 + $0xbb0] sm:$0xff]
    %v3446 = vld [vmem:[#allocation7 + $0xbb8] sm:$0xff]
    %v3447 = vld [vmem:[#allocation7 + $0xbc0] sm:$0xff]
    %v3448 = vld [vmem:[#allocation7 + $0xbc8] sm:$0xff]
    %v3449 = vld [vmem:[#allocation7 + $0xbd0] sm:$0xff]
    %v3450 = vld [vmem:[#allocation7 + $0xbd8] sm:$0xff]
    %v3451 = vld [vmem:[#allocation7 + $0xbe0] sm:$0xff]
    %v3452 = vld [vmem:[#allocation7 + $0xbe8] sm:$0xff]
    %v3453 = vld [vmem:[#allocation7 + $0xbf0] sm:$0xff]
    %v3454 = vld [vmem:[#allocation7 + $0xbf8] sm:$0xff]
    %v3455 = vld [vmem:[#allocation7 + $0xc00] sm:$0xff]
    %v3456 = vld [vmem:[#allocation7 + $0xc08] sm:$0xff]
    %v3457 = vld [vmem:[#allocation7 + $0xc10] sm:$0xff]
    %v3458 = vld [vmem:[#allocation7 + $0xc18] sm:$0xff]
    %v3459 = vld [vmem:[#allocation7 + $0xc20] sm:$0xff]
    %v3460 = vld [vmem:[#allocation7 + $0xc28] sm:$0xff]
    %v3461 = vld [vmem:[#allocation7 + $0xc30] sm:$0xff]
    %v3462 = vld [vmem:[#allocation7 + $0xc38] sm:$0xff]
    %v3463 = vld [vmem:[#allocation7 + $0xc40] sm:$0xff]
    %v3464 = vld [vmem:[#allocation7 + $0xc48] sm:$0xff]
    %v3465 = vld [vmem:[#allocation7 + $0xc50] sm:$0xff]
    %v3466 = vld [vmem:[#allocation7 + $0xc58] sm:$0xff]
    %v3467 = vld [vmem:[#allocation7 + $0xc60] sm:$0xff]
    %v3468 = vld [vmem:[#allocation7 + $0xc68] sm:$0xff]
    %v3469 = vld [vmem:[#allocation7 + $0xc70] sm:$0xff]
    %v3470 = vld [vmem:[#allocation7 + $0xc78] sm:$0xff]
    %v3471 = vld [vmem:[#allocation7 + $0xc80] sm:$0xff]
    %v3472 = vld [vmem:[#allocation7 + $0xc88] sm:$0xff]
    %v3473 = vld [vmem:[#allocation7 + $0xc90] sm:$0xff]
    %v3474 = vld [vmem:[#allocation7 + $0xc98] sm:$0xff]
    %v3475 = vld [vmem:[#allocation7 + $0xca0] sm:$0xff]
    %v3476 = vld [vmem:[#allocation7 + $0xca8] sm:$0xff]
    %v3477 = vld [vmem:[#allocation7 + $0xcb0] sm:$0xff]
    %v3478 = vld [vmem:[#allocation7 + $0xcb8] sm:$0xff]
    %v3479 = vld [vmem:[#allocation7 + $0xcc0] sm:$0xff]
    %v3480 = vld [vmem:[#allocation7 + $0xcc8] sm:$0xff]
    %v3481 = vld [vmem:[#allocation7 + $0xcd0] sm:$0xff]
    %v3482 = vld [vmem:[#allocation7 + $0xcd8] sm:$0xff]
    %v3483 = vld [vmem:[#allocation7 + $0xce0] sm:$0xff]
    %v3484 = vld [vmem:[#allocation7 + $0xce8] sm:$0xff]
    %v3485 = vld [vmem:[#allocation7 + $0xcf0] sm:$0xff]
    %v3486 = vld [vmem:[#allocation7 + $0xcf8] sm:$0xff]
    %v3487 = vld [vmem:[#allocation7 + $0xd00] sm:$0xff]
    %v3488 = vld [vmem:[#allocation7 + $0xd08] sm:$0xff]
    %v3489 = vld [vmem:[#allocation7 + $0xd10] sm:$0xff]
    %v3490 = vld [vmem:[#allocation7 + $0xd18] sm:$0xff]
    %v3491 = vld [vmem:[#allocation7 + $0xd20] sm:$0xff]
    %v3492 = vld [vmem:[#allocation7 + $0xd28] sm:$0xff]
    %v3493 = vld [vmem:[#allocation7 + $0xd30] sm:$0xff]
    %v3494 = vld [vmem:[#allocation7 + $0xd38] sm:$0xff]
    %v3495 = vld [vmem:[#allocation7 + $0xd40] sm:$0xff]
    %v3496 = vld [vmem:[#allocation7 + $0xd48] sm:$0xff]
    %v3497 = vld [vmem:[#allocation7 + $0xd50] sm:$0xff]
    %v3498 = vld [vmem:[#allocation7 + $0xd58] sm:$0xff]
    %v3499 = vld [vmem:[#allocation7 + $0xd60] sm:$0xff]
    %v3500 = vld [vmem:[#allocation7 + $0xd68] sm:$0xff]
    %v3501 = vld [vmem:[#allocation7 + $0xd70] sm:$0xff]
    %v3502 = vld [vmem:[#allocation7 + $0xd78] sm:$0xff]
    %v3503 = vld [vmem:[#allocation7 + $0xd80] sm:$0xff]
    %v3504 = vld [vmem:[#allocation7 + $0xd88] sm:$0xff]
    %v3505 = vld [vmem:[#allocation7 + $0xd90] sm:$0xff]
    %v3506 = vld [vmem:[#allocation7 + $0xd98] sm:$0xff]
    %v3507 = vld [vmem:[#allocation7 + $0xda0] sm:$0xff]
    %v3508 = vld [vmem:[#allocation7 + $0xda8] sm:$0xff]
    %v3509 = vld [vmem:[#allocation7 + $0xdb0] sm:$0xff]
    %v3510 = vld [vmem:[#allocation7 + $0xdb8] sm:$0xff]
    %v3511 = vld [vmem:[#allocation7 + $0xdc0] sm:$0xff]
    %v3512 = vld [vmem:[#allocation7 + $0xdc8] sm:$0xff]
    %v3513 = vld [vmem:[#allocation7 + $0xdd0] sm:$0xff]
    %v3514 = vld [vmem:[#allocation7 + $0xdd8] sm:$0xff]
    %v3515 = vld [vmem:[#allocation7 + $0xde0] sm:$0xff]
    %v3516 = vld [vmem:[#allocation7 + $0xde8] sm:$0xff]
    %v3517 = vld [vmem:[#allocation7 + $0xdf0] sm:$0xff]
    %v3518 = vld [vmem:[#allocation7 + $0xdf8] sm:$0xff]
    %v3519 = vld [vmem:[#allocation7 + $0xe00] sm:$0xff]
    %v3520 = vld [vmem:[#allocation7 + $0xe08] sm:$0xff]
    %v3521 = vld [vmem:[#allocation7 + $0xe10] sm:$0xff]
    %v3522 = vld [vmem:[#allocation7 + $0xe18] sm:$0xff]
    %v3523 = vld [vmem:[#allocation7 + $0xe20] sm:$0xff]
    %v3524 = vld [vmem:[#allocation7 + $0xe28] sm:$0xff]
    %v3525 = vld [vmem:[#allocation7 + $0xe30] sm:$0xff]
    %v3526 = vld [vmem:[#allocation7 + $0xe38] sm:$0xff]
    %v3527 = vld [vmem:[#allocation7 + $0xe40] sm:$0xff]
    %v3528 = vld [vmem:[#allocation7 + $0xe48] sm:$0xff]
    %v3529 = vld [vmem:[#allocation7 + $0xe50] sm:$0xff]
    %v3530 = vld [vmem:[#allocation7 + $0xe58] sm:$0xff]
    %v3531 = vld [vmem:[#allocation7 + $0xe60] sm:$0xff]
    %v3532 = vld [vmem:[#allocation7 + $0xe68] sm:$0xff]
    %v3533 = vld [vmem:[#allocation7 + $0xe70] sm:$0xff]
    %v3534 = vld [vmem:[#allocation7 + $0xe78] sm:$0xff]
    %v3535 = vld [vmem:[#allocation7 + $0xe80] sm:$0xff]
    %v3536 = vld [vmem:[#allocation7 + $0xe88] sm:$0xff]
    %v3537 = vld [vmem:[#allocation7 + $0xe90] sm:$0xff]
    %v3538 = vld [vmem:[#allocation7 + $0xe98] sm:$0xff]
    %v3539 = vld [vmem:[#allocation7 + $0xea0] sm:$0xff]
    %v3540 = vld [vmem:[#allocation7 + $0xea8] sm:$0xff]
    %v3541 = vld [vmem:[#allocation7 + $0xeb0] sm:$0xff]
    %v3542 = vld [vmem:[#allocation7 + $0xeb8] sm:$0xff]
    %v3543 = vld [vmem:[#allocation7 + $0xec0] sm:$0xff]
    %v3544 = vld [vmem:[#allocation7 + $0xec8] sm:$0xff]
    %v3545 = vld [vmem:[#allocation7 + $0xed0] sm:$0xff]
    %v3546 = vld [vmem:[#allocation7 + $0xed8] sm:$0xff]
    %v3547 = vld [vmem:[#allocation7 + $0xee0] sm:$0xff]
    %v3548 = vld [vmem:[#allocation7 + $0xee8] sm:$0xff]
    %v3549 = vld [vmem:[#allocation7 + $0xef0] sm:$0xff]
    %v3550 = vld [vmem:[#allocation7 + $0xef8] sm:$0xff]
    %v3551 = vld [vmem:[#allocation7 + $0xf00] sm:$0xff]
    %v3552 = vld [vmem:[#allocation7 + $0xf08] sm:$0xff]
    %v3553 = vld [vmem:[#allocation7 + $0xf10] sm:$0xff]
    %v3554 = vld [vmem:[#allocation7 + $0xf18] sm:$0xff]
    %v3555 = vld [vmem:[#allocation7 + $0xf20] sm:$0xff]
    %v3556 = vld [vmem:[#allocation7 + $0xf28] sm:$0xff]
    %v3557 = vld [vmem:[#allocation7 + $0xf30] sm:$0xff]
    %v3558 = vld [vmem:[#allocation7 + $0xf38] sm:$0xff]
    %v3559 = vld [vmem:[#allocation7 + $0xf40] sm:$0xff]
    %v3560 = vld [vmem:[#allocation7 + $0xf48] sm:$0xff]
    %v3561 = vld [vmem:[#allocation7 + $0xf50] sm:$0xff]
    %v3562 = vld [vmem:[#allocation7 + $0xf58] sm:$0xff]
    %v3563 = vld [vmem:[#allocation7 + $0xf60] sm:$0xff]
    %v3564 = vld [vmem:[#allocation7 + $0xf68] sm:$0xff]
    %v3565 = vld [vmem:[#allocation7 + $0xf70] sm:$0xff]
    %v3566 = vld [vmem:[#allocation7 + $0xf78] sm:$0xff]
    %v3567 = vld [vmem:[#allocation7 + $0xf80] sm:$0xff]
    %v3568 = vld [vmem:[#allocation7 + $0xf88] sm:$0xff]
    %v3569 = vld [vmem:[#allocation7 + $0xf90] sm:$0xff]
    %v3570 = vld [vmem:[#allocation7 + $0xf98] sm:$0xff]
    %v3571 = vld [vmem:[#allocation7 + $0xfa0] sm:$0xff]
    %v3572 = vld [vmem:[#allocation7 + $0xfa8] sm:$0xff]
    %v3573 = vld [vmem:[#allocation7 + $0xfb0] sm:$0xff]
    %v3574 = vld [vmem:[#allocation7 + $0xfb8] sm:$0xff]
    %v3575 = vld [vmem:[#allocation7 + $0xfc0] sm:$0xff]
    %v3576 = vld [vmem:[#allocation7 + $0xfc8] sm:$0xff]
    %v3577 = vld [vmem:[#allocation7 + $0xfd0] sm:$0xff]
    %v3578 = vld [vmem:[#allocation7 + $0xfd8] sm:$0xff]
    %v3579 = vld [vmem:[#allocation7 + $0xfe0] sm:$0xff]
    %v3580 = vld [vmem:[#allocation7 + $0xfe8] sm:$0xff]
    %v3581 = vld [vmem:[#allocation7 + $0xff0] sm:$0xff]
    %v3582 = vld [vmem:[#allocation7 + $0xff8] sm:$0xff]
    %v4095 = vunpack.c.l.b16 %v3071
    %v4096 = vunpack.c.h.b16 %v3071
    %v4097 = vunpack.c.l.b16 %v3072
    %v4098 = vunpack.c.h.b16 %v3072
    %v4099 = vunpack.c.l.b16 %v3073
    %v4100 = vunpack.c.h.b16 %v3073
    %v4101 = vunpack.c.l.b16 %v3074
    %v4102 = vunpack.c.h.b16 %v3074
    %v4103 = vunpack.c.l.b16 %v3075
    %v4104 = vunpack.c.h.b16 %v3075
    %v4105 = vunpack.c.l.b16 %v3076
    %v4106 = vunpack.c.h.b16 %v3076
    %v4107 = vunpack.c.l.b16 %v3077
    %v4108 = vunpack.c.h.b16 %v3077
    %v4109 = vunpack.c.l.b16 %v3078
    %v4110 = vunpack.c.h.b16 %v3078
    %v4111 = vunpack.c.l.b16 %v3079
    %v4112 = vunpack.c.h.b16 %v3079
    %v4113 = vunpack.c.l.b16 %v3080
    %v4114 = vunpack.c.h.b16 %v3080
    %v4115 = vunpack.c.l.b16 %v3081
    %v4116 = vunpack.c.h.b16 %v3081
    %v4117 = vunpack.c.l.b16 %v3082
    %v4118 = vunpack.c.h.b16 %v3082
    %v4119 = vunpack.c.l.b16 %v3083
    %v4120 = vunpack.c.h.b16 %v3083
    %v4121 = vunpack.c.l.b16 %v3084
    %v4122 = vunpack.c.h.b16 %v3084
    %v4123 = vunpack.c.l.b16 %v3085
    %v4124 = vunpack.c.h.b16 %v3085
    %v4125 = vunpack.c.l.b16 %v3086
    %v4126 = vunpack.c.h.b16 %v3086
    %v4127 = vunpack.c.l.b16 %v3087
    %v4128 = vunpack.c.h.b16 %v3087
    %v4129 = vunpack.c.l.b16 %v3088
    %v4130 = vunpack.c.h.b16 %v3088
    %v4131 = vunpack.c.l.b16 %v3089
    %v4132 = vunpack.c.h.b16 %v3089
    %v4133 = vunpack.c.l.b16 %v3090
    %v4134 = vunpack.c.h.b16 %v3090
    %v4135 = vunpack.c.l.b16 %v3091
    %v4136 = vunpack.c.h.b16 %v3091
    %v4137 = vunpack.c.l.b16 %v3092
    %v4138 = vunpack.c.h.b16 %v3092
    %v4139 = vunpack.c.l.b16 %v3093
    %v4140 = vunpack.c.h.b16 %v3093
    %v4141 = vunpack.c.l.b16 %v3094
    %v4142 = vunpack.c.h.b16 %v3094
    %v4143 = vunpack.c.l.b16 %v3095
    %v4144 = vunpack.c.h.b16 %v3095
    %v4145 = vunpack.c.l.b16 %v3096
    %v4146 = vunpack.c.h.b16 %v3096
    %v4147 = vunpack.c.l.b16 %v3097
    %v4148 = vunpack.c.h.b16 %v3097
    %v4149 = vunpack.c.l.b16 %v3098
    %v4150 = vunpack.c.h.b16 %v3098
    %v4151 = vunpack.c.l.b16 %v3099
    %v4152 = vunpack.c.h.b16 %v3099
    %v4153 = vunpack.c.l.b16 %v3100
    %v4154 = vunpack.c.h.b16 %v3100
    %v4155 = vunpack.c.l.b16 %v3101
    %v4156 = vunpack.c.h.b16 %v3101
    %v4157 = vunpack.c.l.b16 %v3102
    %v4158 = vunpack.c.h.b16 %v3102
    %v4159 = vunpack.c.l.b16 %v3103
    %v4160 = vunpack.c.h.b16 %v3103
    %v4161 = vunpack.c.l.b16 %v3104
    %v4162 = vunpack.c.h.b16 %v3104
    %v4163 = vunpack.c.l.b16 %v3105
    %v4164 = vunpack.c.h.b16 %v3105
    %v4165 = vunpack.c.l.b16 %v3106
    %v4166 = vunpack.c.h.b16 %v3106
    %v4167 = vunpack.c.l.b16 %v3107
    %v4168 = vunpack.c.h.b16 %v3107
    %v4169 = vunpack.c.l.b16 %v3108
    %v4170 = vunpack.c.h.b16 %v3108
    %v4171 = vunpack.c.l.b16 %v3109
    %v4172 = vunpack.c.h.b16 %v3109
    %v4173 = vunpack.c.l.b16 %v3110
    %v4174 = vunpack.c.h.b16 %v3110
    %v4175 = vunpack.c.l.b16 %v3111
    %v4176 = vunpack.c.h.b16 %v3111
    %v4177 = vunpack.c.l.b16 %v3112
    %v4178 = vunpack.c.h.b16 %v3112
    %v4179 = vunpack.c.l.b16 %v3113
    %v4180 = vunpack.c.h.b16 %v3113
    %v4181 = vunpack.c.l.b16 %v3114
    %v4182 = vunpack.c.h.b16 %v3114
    %v4183 = vunpack.c.l.b16 %v3115
    %v4184 = vunpack.c.h.b16 %v3115
    %v4185 = vunpack.c.l.b16 %v3116
    %v4186 = vunpack.c.h.b16 %v3116
    %v4187 = vunpack.c.l.b16 %v3117
    %v4188 = vunpack.c.h.b16 %v3117
    %v4189 = vunpack.c.l.b16 %v3118
    %v4190 = vunpack.c.h.b16 %v3118
    %v4191 = vunpack.c.l.b16 %v3119
    %v4192 = vunpack.c.h.b16 %v3119
    %v4193 = vunpack.c.l.b16 %v3120
    %v4194 = vunpack.c.h.b16 %v3120
    %v4195 = vunpack.c.l.b16 %v3121
    %v4196 = vunpack.c.h.b16 %v3121
    %v4197 = vunpack.c.l.b16 %v3122
    %v4198 = vunpack.c.h.b16 %v3122
    %v4199 = vunpack.c.l.b16 %v3123
    %v4200 = vunpack.c.h.b16 %v3123
    %v4201 = vunpack.c.l.b16 %v3124
    %v4202 = vunpack.c.h.b16 %v3124
    %v4203 = vunpack.c.l.b16 %v3125
    %v4204 = vunpack.c.h.b16 %v3125
    %v4205 = vunpack.c.l.b16 %v3126
    %v4206 = vunpack.c.h.b16 %v3126
    %v4207 = vunpack.c.l.b16 %v3127
    %v4208 = vunpack.c.h.b16 %v3127
    %v4209 = vunpack.c.l.b16 %v3128
    %v4210 = vunpack.c.h.b16 %v3128
    %v4211 = vunpack.c.l.b16 %v3129
    %v4212 = vunpack.c.h.b16 %v3129
    %v4213 = vunpack.c.l.b16 %v3130
    %v4214 = vunpack.c.h.b16 %v3130
    %v4215 = vunpack.c.l.b16 %v3131
    %v4216 = vunpack.c.h.b16 %v3131
    %v4217 = vunpack.c.l.b16 %v3132
    %v4218 = vunpack.c.h.b16 %v3132
    %v4219 = vunpack.c.l.b16 %v3133
    %v4220 = vunpack.c.h.b16 %v3133
    %v4221 = vunpack.c.l.b16 %v3134
    %v4222 = vunpack.c.h.b16 %v3134
    %v4223 = vunpack.c.l.b16 %v3135
    %v4224 = vunpack.c.h.b16 %v3135
    %v4225 = vunpack.c.l.b16 %v3136
    %v4226 = vunpack.c.h.b16 %v3136
    %v4227 = vunpack.c.l.b16 %v3137
    %v4228 = vunpack.c.h.b16 %v3137
    %v4229 = vunpack.c.l.b16 %v3138
    %v4230 = vunpack.c.h.b16 %v3138
    %v4231 = vunpack.c.l.b16 %v3139
    %v4232 = vunpack.c.h.b16 %v3139
    %v4233 = vunpack.c.l.b16 %v3140
    %v4234 = vunpack.c.h.b16 %v3140
    %v4235 = vunpack.c.l.b16 %v3141
    %v4236 = vunpack.c.h.b16 %v3141
    %v4237 = vunpack.c.l.b16 %v3142
    %v4238 = vunpack.c.h.b16 %v3142
    %v4239 = vunpack.c.l.b16 %v3143
    %v4240 = vunpack.c.h.b16 %v3143
    %v4241 = vunpack.c.l.b16 %v3144
    %v4242 = vunpack.c.h.b16 %v3144
    %v4243 = vunpack.c.l.b16 %v3145
    %v4244 = vunpack.c.h.b16 %v3145
    %v4245 = vunpack.c.l.b16 %v3146
    %v4246 = vunpack.c.h.b16 %v3146
    %v4247 = vunpack.c.l.b16 %v3147
    %v4248 = vunpack.c.h.b16 %v3147
    %v4249 = vunpack.c.l.b16 %v3148
    %v4250 = vunpack.c.h.b16 %v3148
    %v4251 = vunpack.c.l.b16 %v3149
    %v4252 = vunpack.c.h.b16 %v3149
    %v4253 = vunpack.c.l.b16 %v3150
    %v4254 = vunpack.c.h.b16 %v3150
    %v4255 = vunpack.c.l.b16 %v3151
    %v4256 = vunpack.c.h.b16 %v3151
    %v4257 = vunpack.c.l.b16 %v3152
    %v4258 = vunpack.c.h.b16 %v3152
    %v4259 = vunpack.c.l.b16 %v3153
    %v4260 = vunpack.c.h.b16 %v3153
    %v4261 = vunpack.c.l.b16 %v3154
    %v4262 = vunpack.c.h.b16 %v3154
    %v4263 = vunpack.c.l.b16 %v3155
    %v4264 = vunpack.c.h.b16 %v3155
    %v4265 = vunpack.c.l.b16 %v3156
    %v4266 = vunpack.c.h.b16 %v3156
    %v4267 = vunpack.c.l.b16 %v3157
    %v4268 = vunpack.c.h.b16 %v3157
    %v4269 = vunpack.c.l.b16 %v3158
    %v4270 = vunpack.c.h.b16 %v3158
    %v4271 = vunpack.c.l.b16 %v3159
    %v4272 = vunpack.c.h.b16 %v3159
    %v4273 = vunpack.c.l.b16 %v3160
    %v4274 = vunpack.c.h.b16 %v3160
    %v4275 = vunpack.c.l.b16 %v3161
    %v4276 = vunpack.c.h.b16 %v3161
    %v4277 = vunpack.c.l.b16 %v3162
    %v4278 = vunpack.c.h.b16 %v3162
    %v4279 = vunpack.c.l.b16 %v3163
    %v4280 = vunpack.c.h.b16 %v3163
    %v4281 = vunpack.c.l.b16 %v3164
    %v4282 = vunpack.c.h.b16 %v3164
    %v4283 = vunpack.c.l.b16 %v3165
    %v4284 = vunpack.c.h.b16 %v3165
    %v4285 = vunpack.c.l.b16 %v3166
    %v4286 = vunpack.c.h.b16 %v3166
    %v4287 = vunpack.c.l.b16 %v3167
    %v4288 = vunpack.c.h.b16 %v3167
    %v4289 = vunpack.c.l.b16 %v3168
    %v4290 = vunpack.c.h.b16 %v3168
    %v4291 = vunpack.c.l.b16 %v3169
    %v4292 = vunpack.c.h.b16 %v3169
    %v4293 = vunpack.c.l.b16 %v3170
    %v4294 = vunpack.c.h.b16 %v3170
    %v4295 = vunpack.c.l.b16 %v3171
    %v4296 = vunpack.c.h.b16 %v3171
    %v4297 = vunpack.c.l.b16 %v3172
    %v4298 = vunpack.c.h.b16 %v3172
    %v4299 = vunpack.c.l.b16 %v3173
    %v4300 = vunpack.c.h.b16 %v3173
    %v4301 = vunpack.c.l.b16 %v3174
    %v4302 = vunpack.c.h.b16 %v3174
    %v4303 = vunpack.c.l.b16 %v3175
    %v4304 = vunpack.c.h.b16 %v3175
    %v4305 = vunpack.c.l.b16 %v3176
    %v4306 = vunpack.c.h.b16 %v3176
    %v4307 = vunpack.c.l.b16 %v3177
    %v4308 = vunpack.c.h.b16 %v3177
    %v4309 = vunpack.c.l.b16 %v3178
    %v4310 = vunpack.c.h.b16 %v3178
    %v4311 = vunpack.c.l.b16 %v3179
    %v4312 = vunpack.c.h.b16 %v3179
    %v4313 = vunpack.c.l.b16 %v3180
    %v4314 = vunpack.c.h.b16 %v3180
    %v4315 = vunpack.c.l.b16 %v3181
    %v4316 = vunpack.c.h.b16 %v3181
    %v4317 = vunpack.c.l.b16 %v3182
    %v4318 = vunpack.c.h.b16 %v3182
    %v4319 = vunpack.c.l.b16 %v3183
    %v4320 = vunpack.c.h.b16 %v3183
    %v4321 = vunpack.c.l.b16 %v3184
    %v4322 = vunpack.c.h.b16 %v3184
    %v4323 = vunpack.c.l.b16 %v3185
    %v4324 = vunpack.c.h.b16 %v3185
    %v4325 = vunpack.c.l.b16 %v3186
    %v4326 = vunpack.c.h.b16 %v3186
    %v4327 = vunpack.c.l.b16 %v3187
    %v4328 = vunpack.c.h.b16 %v3187
    %v4329 = vunpack.c.l.b16 %v3188
    %v4330 = vunpack.c.h.b16 %v3188
    %v4331 = vunpack.c.l.b16 %v3189
    %v4332 = vunpack.c.h.b16 %v3189
    %v4333 = vunpack.c.l.b16 %v3190
    %v4334 = vunpack.c.h.b16 %v3190
    %v4335 = vunpack.c.l.b16 %v3191
    %v4336 = vunpack.c.h.b16 %v3191
    %v4337 = vunpack.c.l.b16 %v3192
    %v4338 = vunpack.c.h.b16 %v3192
    %v4339 = vunpack.c.l.b16 %v3193
    %v4340 = vunpack.c.h.b16 %v3193
    %v4341 = vunpack.c.l.b16 %v3194
    %v4342 = vunpack.c.h.b16 %v3194
    %v4343 = vunpack.c.l.b16 %v3195
    %v4344 = vunpack.c.h.b16 %v3195
    %v4345 = vunpack.c.l.b16 %v3196
    %v4346 = vunpack.c.h.b16 %v3196
    %v4347 = vunpack.c.l.b16 %v3197
    %v4348 = vunpack.c.h.b16 %v3197
    %v4349 = vunpack.c.l.b16 %v3198
    %v4350 = vunpack.c.h.b16 %v3198
    %v4351 = vunpack.c.l.b16 %v3199
    %v4352 = vunpack.c.h.b16 %v3199
    %v4353 = vunpack.c.l.b16 %v3200
    %v4354 = vunpack.c.h.b16 %v3200
    %v4355 = vunpack.c.l.b16 %v3201
    %v4356 = vunpack.c.h.b16 %v3201
    %v4357 = vunpack.c.l.b16 %v3202
    %v4358 = vunpack.c.h.b16 %v3202
    %v4359 = vunpack.c.l.b16 %v3203
    %v4360 = vunpack.c.h.b16 %v3203
    %v4361 = vunpack.c.l.b16 %v3204
    %v4362 = vunpack.c.h.b16 %v3204
    %v4363 = vunpack.c.l.b16 %v3205
    %v4364 = vunpack.c.h.b16 %v3205
    %v4365 = vunpack.c.l.b16 %v3206
    %v4366 = vunpack.c.h.b16 %v3206
    %v4367 = vunpack.c.l.b16 %v3207
    %v4368 = vunpack.c.h.b16 %v3207
    %v4369 = vunpack.c.l.b16 %v3208
    %v4370 = vunpack.c.h.b16 %v3208
    %v4371 = vunpack.c.l.b16 %v3209
    %v4372 = vunpack.c.h.b16 %v3209
    %v4373 = vunpack.c.l.b16 %v3210
    %v4374 = vunpack.c.h.b16 %v3210
    %v4375 = vunpack.c.l.b16 %v3211
    %v4376 = vunpack.c.h.b16 %v3211
    %v4377 = vunpack.c.l.b16 %v3212
    %v4378 = vunpack.c.h.b16 %v3212
    %v4379 = vunpack.c.l.b16 %v3213
    %v4380 = vunpack.c.h.b16 %v3213
    %v4381 = vunpack.c.l.b16 %v3214
    %v4382 = vunpack.c.h.b16 %v3214
    %v4383 = vunpack.c.l.b16 %v3215
    %v4384 = vunpack.c.h.b16 %v3215
    %v4385 = vunpack.c.l.b16 %v3216
    %v4386 = vunpack.c.h.b16 %v3216
    %v4387 = vunpack.c.l.b16 %v3217
    %v4388 = vunpack.c.h.b16 %v3217
    %v4389 = vunpack.c.l.b16 %v3218
    %v4390 = vunpack.c.h.b16 %v3218
    %v4391 = vunpack.c.l.b16 %v3219
    %v4392 = vunpack.c.h.b16 %v3219
    %v4393 = vunpack.c.l.b16 %v3220
    %v4394 = vunpack.c.h.b16 %v3220
    %v4395 = vunpack.c.l.b16 %v3221
    %v4396 = vunpack.c.h.b16 %v3221
    %v4397 = vunpack.c.l.b16 %v3222
    %v4398 = vunpack.c.h.b16 %v3222
    %v4399 = vunpack.c.l.b16 %v3223
    %v4400 = vunpack.c.h.b16 %v3223
    %v4401 = vunpack.c.l.b16 %v3224
    %v4402 = vunpack.c.h.b16 %v3224
    %v4403 = vunpack.c.l.b16 %v3225
    %v4404 = vunpack.c.h.b16 %v3225
    %v4405 = vunpack.c.l.b16 %v3226
    %v4406 = vunpack.c.h.b16 %v3226
    %v4407 = vunpack.c.l.b16 %v3227
    %v4408 = vunpack.c.h.b16 %v3227
    %v4409 = vunpack.c.l.b16 %v3228
    %v4410 = vunpack.c.h.b16 %v3228
    %v4411 = vunpack.c.l.b16 %v3229
    %v4412 = vunpack.c.h.b16 %v3229
    %v4413 = vunpack.c.l.b16 %v3230
    %v4414 = vunpack.c.h.b16 %v3230
    %v4415 = vunpack.c.l.b16 %v3231
    %v4416 = vunpack.c.h.b16 %v3231
    %v4417 = vunpack.c.l.b16 %v3232
    %v4418 = vunpack.c.h.b16 %v3232
    %v4419 = vunpack.c.l.b16 %v3233
    %v4420 = vunpack.c.h.b16 %v3233
    %v4421 = vunpack.c.l.b16 %v3234
    %v4422 = vunpack.c.h.b16 %v3234
    %v4423 = vunpack.c.l.b16 %v3235
    %v4424 = vunpack.c.h.b16 %v3235
    %v4425 = vunpack.c.l.b16 %v3236
    %v4426 = vunpack.c.h.b16 %v3236
    %v4427 = vunpack.c.l.b16 %v3237
    %v4428 = vunpack.c.h.b16 %v3237
    %v4429 = vunpack.c.l.b16 %v3238
    %v4430 = vunpack.c.h.b16 %v3238
    %v4431 = vunpack.c.l.b16 %v3239
    %v4432 = vunpack.c.h.b16 %v3239
    %v4433 = vunpack.c.l.b16 %v3240
    %v4434 = vunpack.c.h.b16 %v3240
    %v4435 = vunpack.c.l.b16 %v3241
    %v4436 = vunpack.c.h.b16 %v3241
    %v4437 = vunpack.c.l.b16 %v3242
    %v4438 = vunpack.c.h.b16 %v3242
    %v4439 = vunpack.c.l.b16 %v3243
    %v4440 = vunpack.c.h.b16 %v3243
    %v4441 = vunpack.c.l.b16 %v3244
    %v4442 = vunpack.c.h.b16 %v3244
    %v4443 = vunpack.c.l.b16 %v3245
    %v4444 = vunpack.c.h.b16 %v3245
    %v4445 = vunpack.c.l.b16 %v3246
    %v4446 = vunpack.c.h.b16 %v3246
    %v4447 = vunpack.c.l.b16 %v3247
    %v4448 = vunpack.c.h.b16 %v3247
    %v4449 = vunpack.c.l.b16 %v3248
    %v4450 = vunpack.c.h.b16 %v3248
    %v4451 = vunpack.c.l.b16 %v3249
    %v4452 = vunpack.c.h.b16 %v3249
    %v4453 = vunpack.c.l.b16 %v3250
    %v4454 = vunpack.c.h.b16 %v3250
    %v4455 = vunpack.c.l.b16 %v3251
    %v4456 = vunpack.c.h.b16 %v3251
    %v4457 = vunpack.c.l.b16 %v3252
    %v4458 = vunpack.c.h.b16 %v3252
    %v4459 = vunpack.c.l.b16 %v3253
    %v4460 = vunpack.c.h.b16 %v3253
    %v4461 = vunpack.c.l.b16 %v3254
    %v4462 = vunpack.c.h.b16 %v3254
    %v4463 = vunpack.c.l.b16 %v3255
    %v4464 = vunpack.c.h.b16 %v3255
    %v4465 = vunpack.c.l.b16 %v3256
    %v4466 = vunpack.c.h.b16 %v3256
    %v4467 = vunpack.c.l.b16 %v3257
    %v4468 = vunpack.c.h.b16 %v3257
    %v4469 = vunpack.c.l.b16 %v3258
    %v4470 = vunpack.c.h.b16 %v3258
    %v4471 = vunpack.c.l.b16 %v3259
    %v4472 = vunpack.c.h.b16 %v3259
    %v4473 = vunpack.c.l.b16 %v3260
    %v4474 = vunpack.c.h.b16 %v3260
    %v4475 = vunpack.c.l.b16 %v3261
    %v4476 = vunpack.c.h.b16 %v3261
    %v4477 = vunpack.c.l.b16 %v3262
    %v4478 = vunpack.c.h.b16 %v3262
    %v4479 = vunpack.c.l.b16 %v3263
    %v4480 = vunpack.c.h.b16 %v3263
    %v4481 = vunpack.c.l.b16 %v3264
    %v4482 = vunpack.c.h.b16 %v3264
    %v4483 = vunpack.c.l.b16 %v3265
    %v4484 = vunpack.c.h.b16 %v3265
    %v4485 = vunpack.c.l.b16 %v3266
    %v4486 = vunpack.c.h.b16 %v3266
    %v4487 = vunpack.c.l.b16 %v3267
    %v4488 = vunpack.c.h.b16 %v3267
    %v4489 = vunpack.c.l.b16 %v3268
    %v4490 = vunpack.c.h.b16 %v3268
    %v4491 = vunpack.c.l.b16 %v3269
    %v4492 = vunpack.c.h.b16 %v3269
    %v4493 = vunpack.c.l.b16 %v3270
    %v4494 = vunpack.c.h.b16 %v3270
    %v4495 = vunpack.c.l.b16 %v3271
    %v4496 = vunpack.c.h.b16 %v3271
    %v4497 = vunpack.c.l.b16 %v3272
    %v4498 = vunpack.c.h.b16 %v3272
    %v4499 = vunpack.c.l.b16 %v3273
    %v4500 = vunpack.c.h.b16 %v3273
    %v4501 = vunpack.c.l.b16 %v3274
    %v4502 = vunpack.c.h.b16 %v3274
    %v4503 = vunpack.c.l.b16 %v3275
    %v4504 = vunpack.c.h.b16 %v3275
    %v4505 = vunpack.c.l.b16 %v3276
    %v4506 = vunpack.c.h.b16 %v3276
    %v4507 = vunpack.c.l.b16 %v3277
    %v4508 = vunpack.c.h.b16 %v3277
    %v4509 = vunpack.c.l.b16 %v3278
    %v4510 = vunpack.c.h.b16 %v3278
    %v4511 = vunpack.c.l.b16 %v3279
    %v4512 = vunpack.c.h.b16 %v3279
    %v4513 = vunpack.c.l.b16 %v3280
    %v4514 = vunpack.c.h.b16 %v3280
    %v4515 = vunpack.c.l.b16 %v3281
    %v4516 = vunpack.c.h.b16 %v3281
    %v4517 = vunpack.c.l.b16 %v3282
    %v4518 = vunpack.c.h.b16 %v3282
    %v4519 = vunpack.c.l.b16 %v3283
    %v4520 = vunpack.c.h.b16 %v3283
    %v4521 = vunpack.c.l.b16 %v3284
    %v4522 = vunpack.c.h.b16 %v3284
    %v4523 = vunpack.c.l.b16 %v3285
    %v4524 = vunpack.c.h.b16 %v3285
    %v4525 = vunpack.c.l.b16 %v3286
    %v4526 = vunpack.c.h.b16 %v3286
    %v4527 = vunpack.c.l.b16 %v3287
    %v4528 = vunpack.c.h.b16 %v3287
    %v4529 = vunpack.c.l.b16 %v3288
    %v4530 = vunpack.c.h.b16 %v3288
    %v4531 = vunpack.c.l.b16 %v3289
    %v4532 = vunpack.c.h.b16 %v3289
    %v4533 = vunpack.c.l.b16 %v3290
    %v4534 = vunpack.c.h.b16 %v3290
    %v4535 = vunpack.c.l.b16 %v3291
    %v4536 = vunpack.c.h.b16 %v3291
    %v4537 = vunpack.c.l.b16 %v3292
    %v4538 = vunpack.c.h.b16 %v3292
    %v4539 = vunpack.c.l.b16 %v3293
    %v4540 = vunpack.c.h.b16 %v3293
    %v4541 = vunpack.c.l.b16 %v3294
    %v4542 = vunpack.c.h.b16 %v3294
    %v4543 = vunpack.c.l.b16 %v3295
    %v4544 = vunpack.c.h.b16 %v3295
    %v4545 = vunpack.c.l.b16 %v3296
    %v4546 = vunpack.c.h.b16 %v3296
    %v4547 = vunpack.c.l.b16 %v3297
    %v4548 = vunpack.c.h.b16 %v3297
    %v4549 = vunpack.c.l.b16 %v3298
    %v4550 = vunpack.c.h.b16 %v3298
    %v4551 = vunpack.c.l.b16 %v3299
    %v4552 = vunpack.c.h.b16 %v3299
    %v4553 = vunpack.c.l.b16 %v3300
    %v4554 = vunpack.c.h.b16 %v3300
    %v4555 = vunpack.c.l.b16 %v3301
    %v4556 = vunpack.c.h.b16 %v3301
    %v4557 = vunpack.c.l.b16 %v3302
    %v4558 = vunpack.c.h.b16 %v3302
    %v4559 = vunpack.c.l.b16 %v3303
    %v4560 = vunpack.c.h.b16 %v3303
    %v4561 = vunpack.c.l.b16 %v3304
    %v4562 = vunpack.c.h.b16 %v3304
    %v4563 = vunpack.c.l.b16 %v3305
    %v4564 = vunpack.c.h.b16 %v3305
    %v4565 = vunpack.c.l.b16 %v3306
    %v4566 = vunpack.c.h.b16 %v3306
    %v4567 = vunpack.c.l.b16 %v3307
    %v4568 = vunpack.c.h.b16 %v3307
    %v4569 = vunpack.c.l.b16 %v3308
    %v4570 = vunpack.c.h.b16 %v3308
    %v4571 = vunpack.c.l.b16 %v3309
    %v4572 = vunpack.c.h.b16 %v3309
    %v4573 = vunpack.c.l.b16 %v3310
    %v4574 = vunpack.c.h.b16 %v3310
    %v4575 = vunpack.c.l.b16 %v3311
    %v4576 = vunpack.c.h.b16 %v3311
    %v4577 = vunpack.c.l.b16 %v3312
    %v4578 = vunpack.c.h.b16 %v3312
    %v4579 = vunpack.c.l.b16 %v3313
    %v4580 = vunpack.c.h.b16 %v3313
    %v4581 = vunpack.c.l.b16 %v3314
    %v4582 = vunpack.c.h.b16 %v3314
    %v4583 = vunpack.c.l.b16 %v3315
    %v4584 = vunpack.c.h.b16 %v3315
    %v4585 = vunpack.c.l.b16 %v3316
    %v4586 = vunpack.c.h.b16 %v3316
    %v4587 = vunpack.c.l.b16 %v3317
    %v4588 = vunpack.c.h.b16 %v3317
    %v4589 = vunpack.c.l.b16 %v3318
    %v4590 = vunpack.c.h.b16 %v3318
    %v4591 = vunpack.c.l.b16 %v3319
    %v4592 = vunpack.c.h.b16 %v3319
    %v4593 = vunpack.c.l.b16 %v3320
    %v4594 = vunpack.c.h.b16 %v3320
    %v4595 = vunpack.c.l.b16 %v3321
    %v4596 = vunpack.c.h.b16 %v3321
    %v4597 = vunpack.c.l.b16 %v3322
    %v4598 = vunpack.c.h.b16 %v3322
    %v4599 = vunpack.c.l.b16 %v3323
    %v4600 = vunpack.c.h.b16 %v3323
    %v4601 = vunpack.c.l.b16 %v3324
    %v4602 = vunpack.c.h.b16 %v3324
    %v4603 = vunpack.c.l.b16 %v3325
    %v4604 = vunpack.c.h.b16 %v3325
    %v4605 = vunpack.c.l.b16 %v3326
    %v4606 = vunpack.c.h.b16 %v3326
    %v4607 = vunpack.c.l.b16 %v3327
    %v4608 = vunpack.c.h.b16 %v3327
    %v4609 = vunpack.c.l.b16 %v3328
    %v4610 = vunpack.c.h.b16 %v3328
    %v4611 = vunpack.c.l.b16 %v3329
    %v4612 = vunpack.c.h.b16 %v3329
    %v4613 = vunpack.c.l.b16 %v3330
    %v4614 = vunpack.c.h.b16 %v3330
    %v4615 = vunpack.c.l.b16 %v3331
    %v4616 = vunpack.c.h.b16 %v3331
    %v4617 = vunpack.c.l.b16 %v3332
    %v4618 = vunpack.c.h.b16 %v3332
    %v4619 = vunpack.c.l.b16 %v3333
    %v4620 = vunpack.c.h.b16 %v3333
    %v4621 = vunpack.c.l.b16 %v3334
    %v4622 = vunpack.c.h.b16 %v3334
    %v4623 = vunpack.c.l.b16 %v3335
    %v4624 = vunpack.c.h.b16 %v3335
    %v4625 = vunpack.c.l.b16 %v3336
    %v4626 = vunpack.c.h.b16 %v3336
    %v4627 = vunpack.c.l.b16 %v3337
    %v4628 = vunpack.c.h.b16 %v3337
    %v4629 = vunpack.c.l.b16 %v3338
    %v4630 = vunpack.c.h.b16 %v3338
    %v4631 = vunpack.c.l.b16 %v3339
    %v4632 = vunpack.c.h.b16 %v3339
    %v4633 = vunpack.c.l.b16 %v3340
    %v4634 = vunpack.c.h.b16 %v3340
    %v4635 = vunpack.c.l.b16 %v3341
    %v4636 = vunpack.c.h.b16 %v3341
    %v4637 = vunpack.c.l.b16 %v3342
    %v4638 = vunpack.c.h.b16 %v3342
    %v4639 = vunpack.c.l.b16 %v3343
    %v4640 = vunpack.c.h.b16 %v3343
    %v4641 = vunpack.c.l.b16 %v3344
    %v4642 = vunpack.c.h.b16 %v3344
    %v4643 = vunpack.c.l.b16 %v3345
    %v4644 = vunpack.c.h.b16 %v3345
    %v4645 = vunpack.c.l.b16 %v3346
    %v4646 = vunpack.c.h.b16 %v3346
    %v4647 = vunpack.c.l.b16 %v3347
    %v4648 = vunpack.c.h.b16 %v3347
    %v4649 = vunpack.c.l.b16 %v3348
    %v4650 = vunpack.c.h.b16 %v3348
    %v4651 = vunpack.c.l.b16 %v3349
    %v4652 = vunpack.c.h.b16 %v3349
    %v4653 = vunpack.c.l.b16 %v3350
    %v4654 = vunpack.c.h.b16 %v3350
    %v4655 = vunpack.c.l.b16 %v3351
    %v4656 = vunpack.c.h.b16 %v3351
    %v4657 = vunpack.c.l.b16 %v3352
    %v4658 = vunpack.c.h.b16 %v3352
    %v4659 = vunpack.c.l.b16 %v3353
    %v4660 = vunpack.c.h.b16 %v3353
    %v4661 = vunpack.c.l.b16 %v3354
    %v4662 = vunpack.c.h.b16 %v3354
    %v4663 = vunpack.c.l.b16 %v3355
    %v4664 = vunpack.c.h.b16 %v3355
    %v4665 = vunpack.c.l.b16 %v3356
    %v4666 = vunpack.c.h.b16 %v3356
    %v4667 = vunpack.c.l.b16 %v3357
    %v4668 = vunpack.c.h.b16 %v3357
    %v4669 = vunpack.c.l.b16 %v3358
    %v4670 = vunpack.c.h.b16 %v3358
    %v4671 = vunpack.c.l.b16 %v3359
    %v4672 = vunpack.c.h.b16 %v3359
    %v4673 = vunpack.c.l.b16 %v3360
    %v4674 = vunpack.c.h.b16 %v3360
    %v4675 = vunpack.c.l.b16 %v3361
    %v4676 = vunpack.c.h.b16 %v3361
    %v4677 = vunpack.c.l.b16 %v3362
    %v4678 = vunpack.c.h.b16 %v3362
    %v4679 = vunpack.c.l.b16 %v3363
    %v4680 = vunpack.c.h.b16 %v3363
    %v4681 = vunpack.c.l.b16 %v3364
    %v4682 = vunpack.c.h.b16 %v3364
    %v4683 = vunpack.c.l.b16 %v3365
    %v4684 = vunpack.c.h.b16 %v3365
    %v4685 = vunpack.c.l.b16 %v3366
    %v4686 = vunpack.c.h.b16 %v3366
    %v4687 = vunpack.c.l.b16 %v3367
    %v4688 = vunpack.c.h.b16 %v3367
    %v4689 = vunpack.c.l.b16 %v3368
    %v4690 = vunpack.c.h.b16 %v3368
    %v4691 = vunpack.c.l.b16 %v3369
    %v4692 = vunpack.c.h.b16 %v3369
    %v4693 = vunpack.c.l.b16 %v3370
    %v4694 = vunpack.c.h.b16 %v3370
    %v4695 = vunpack.c.l.b16 %v3371
    %v4696 = vunpack.c.h.b16 %v3371
    %v4697 = vunpack.c.l.b16 %v3372
    %v4698 = vunpack.c.h.b16 %v3372
    %v4699 = vunpack.c.l.b16 %v3373
    %v4700 = vunpack.c.h.b16 %v3373
    %v4701 = vunpack.c.l.b16 %v3374
    %v4702 = vunpack.c.h.b16 %v3374
    %v4703 = vunpack.c.l.b16 %v3375
    %v4704 = vunpack.c.h.b16 %v3375
    %v4705 = vunpack.c.l.b16 %v3376
    %v4706 = vunpack.c.h.b16 %v3376
    %v4707 = vunpack.c.l.b16 %v3377
    %v4708 = vunpack.c.h.b16 %v3377
    %v4709 = vunpack.c.l.b16 %v3378
    %v4710 = vunpack.c.h.b16 %v3378
    %v4711 = vunpack.c.l.b16 %v3379
    %v4712 = vunpack.c.h.b16 %v3379
    %v4713 = vunpack.c.l.b16 %v3380
    %v4714 = vunpack.c.h.b16 %v3380
    %v4715 = vunpack.c.l.b16 %v3381
    %v4716 = vunpack.c.h.b16 %v3381
    %v4717 = vunpack.c.l.b16 %v3382
    %v4718 = vunpack.c.h.b16 %v3382
    %v4719 = vunpack.c.l.b16 %v3383
    %v4720 = vunpack.c.h.b16 %v3383
    %v4721 = vunpack.c.l.b16 %v3384
    %v4722 = vunpack.c.h.b16 %v3384
    %v4723 = vunpack.c.l.b16 %v3385
    %v4724 = vunpack.c.h.b16 %v3385
    %v4725 = vunpack.c.l.b16 %v3386
    %v4726 = vunpack.c.h.b16 %v3386
    %v4727 = vunpack.c.l.b16 %v3387
    %v4728 = vunpack.c.h.b16 %v3387
    %v4729 = vunpack.c.l.b16 %v3388
    %v4730 = vunpack.c.h.b16 %v3388
    %v4731 = vunpack.c.l.b16 %v3389
    %v4732 = vunpack.c.h.b16 %v3389
    %v4733 = vunpack.c.l.b16 %v3390
    %v4734 = vunpack.c.h.b16 %v3390
    %v4735 = vunpack.c.l.b16 %v3391
    %v4736 = vunpack.c.h.b16 %v3391
    %v4737 = vunpack.c.l.b16 %v3392
    %v4738 = vunpack.c.h.b16 %v3392
    %v4739 = vunpack.c.l.b16 %v3393
    %v4740 = vunpack.c.h.b16 %v3393
    %v4741 = vunpack.c.l.b16 %v3394
    %v4742 = vunpack.c.h.b16 %v3394
    %v4743 = vunpack.c.l.b16 %v3395
    %v4744 = vunpack.c.h.b16 %v3395
    %v4745 = vunpack.c.l.b16 %v3396
    %v4746 = vunpack.c.h.b16 %v3396
    %v4747 = vunpack.c.l.b16 %v3397
    %v4748 = vunpack.c.h.b16 %v3397
    %v4749 = vunpack.c.l.b16 %v3398
    %v4750 = vunpack.c.h.b16 %v3398
    %v4751 = vunpack.c.l.b16 %v3399
    %v4752 = vunpack.c.h.b16 %v3399
    %v4753 = vunpack.c.l.b16 %v3400
    %v4754 = vunpack.c.h.b16 %v3400
    %v4755 = vunpack.c.l.b16 %v3401
    %v4756 = vunpack.c.h.b16 %v3401
    %v4757 = vunpack.c.l.b16 %v3402
    %v4758 = vunpack.c.h.b16 %v3402
    %v4759 = vunpack.c.l.b16 %v3403
    %v4760 = vunpack.c.h.b16 %v3403
    %v4761 = vunpack.c.l.b16 %v3404
    %v4762 = vunpack.c.h.b16 %v3404
    %v4763 = vunpack.c.l.b16 %v3405
    %v4764 = vunpack.c.h.b16 %v3405
    %v4765 = vunpack.c.l.b16 %v3406
    %v4766 = vunpack.c.h.b16 %v3406
    %v4767 = vunpack.c.l.b16 %v3407
    %v4768 = vunpack.c.h.b16 %v3407
    %v4769 = vunpack.c.l.b16 %v3408
    %v4770 = vunpack.c.h.b16 %v3408
    %v4771 = vunpack.c.l.b16 %v3409
    %v4772 = vunpack.c.h.b16 %v3409
    %v4773 = vunpack.c.l.b16 %v3410
    %v4774 = vunpack.c.h.b16 %v3410
    %v4775 = vunpack.c.l.b16 %v3411
    %v4776 = vunpack.c.h.b16 %v3411
    %v4777 = vunpack.c.l.b16 %v3412
    %v4778 = vunpack.c.h.b16 %v3412
    %v4779 = vunpack.c.l.b16 %v3413
    %v4780 = vunpack.c.h.b16 %v3413
    %v4781 = vunpack.c.l.b16 %v3414
    %v4782 = vunpack.c.h.b16 %v3414
    %v4783 = vunpack.c.l.b16 %v3415
    %v4784 = vunpack.c.h.b16 %v3415
    %v4785 = vunpack.c.l.b16 %v3416
    %v4786 = vunpack.c.h.b16 %v3416
    %v4787 = vunpack.c.l.b16 %v3417
    %v4788 = vunpack.c.h.b16 %v3417
    %v4789 = vunpack.c.l.b16 %v3418
    %v4790 = vunpack.c.h.b16 %v3418
    %v4791 = vunpack.c.l.b16 %v3419
    %v4792 = vunpack.c.h.b16 %v3419
    %v4793 = vunpack.c.l.b16 %v3420
    %v4794 = vunpack.c.h.b16 %v3420
    %v4795 = vunpack.c.l.b16 %v3421
    %v4796 = vunpack.c.h.b16 %v3421
    %v4797 = vunpack.c.l.b16 %v3422
    %v4798 = vunpack.c.h.b16 %v3422
    %v4799 = vunpack.c.l.b16 %v3423
    %v4800 = vunpack.c.h.b16 %v3423
    %v4801 = vunpack.c.l.b16 %v3424
    %v4802 = vunpack.c.h.b16 %v3424
    %v4803 = vunpack.c.l.b16 %v3425
    %v4804 = vunpack.c.h.b16 %v3425
    %v4805 = vunpack.c.l.b16 %v3426
    %v4806 = vunpack.c.h.b16 %v3426
    %v4807 = vunpack.c.l.b16 %v3427
    %v4808 = vunpack.c.h.b16 %v3427
    %v4809 = vunpack.c.l.b16 %v3428
    %v4810 = vunpack.c.h.b16 %v3428
    %v4811 = vunpack.c.l.b16 %v3429
    %v4812 = vunpack.c.h.b16 %v3429
    %v4813 = vunpack.c.l.b16 %v3430
    %v4814 = vunpack.c.h.b16 %v3430
    %v4815 = vunpack.c.l.b16 %v3431
    %v4816 = vunpack.c.h.b16 %v3431
    %v4817 = vunpack.c.l.b16 %v3432
    %v4818 = vunpack.c.h.b16 %v3432
    %v4819 = vunpack.c.l.b16 %v3433
    %v4820 = vunpack.c.h.b16 %v3433
    %v4821 = vunpack.c.l.b16 %v3434
    %v4822 = vunpack.c.h.b16 %v3434
    %v4823 = vunpack.c.l.b16 %v3435
    %v4824 = vunpack.c.h.b16 %v3435
    %v4825 = vunpack.c.l.b16 %v3436
    %v4826 = vunpack.c.h.b16 %v3436
    %v4827 = vunpack.c.l.b16 %v3437
    %v4828 = vunpack.c.h.b16 %v3437
    %v4829 = vunpack.c.l.b16 %v3438
    %v4830 = vunpack.c.h.b16 %v3438
    %v4831 = vunpack.c.l.b16 %v3439
    %v4832 = vunpack.c.h.b16 %v3439
    %v4833 = vunpack.c.l.b16 %v3440
    %v4834 = vunpack.c.h.b16 %v3440
    %v4835 = vunpack.c.l.b16 %v3441
    %v4836 = vunpack.c.h.b16 %v3441
    %v4837 = vunpack.c.l.b16 %v3442
    %v4838 = vunpack.c.h.b16 %v3442
    %v4839 = vunpack.c.l.b16 %v3443
    %v4840 = vunpack.c.h.b16 %v3443
    %v4841 = vunpack.c.l.b16 %v3444
    %v4842 = vunpack.c.h.b16 %v3444
    %v4843 = vunpack.c.l.b16 %v3445
    %v4844 = vunpack.c.h.b16 %v3445
    %v4845 = vunpack.c.l.b16 %v3446
    %v4846 = vunpack.c.h.b16 %v3446
    %v4847 = vunpack.c.l.b16 %v3447
    %v4848 = vunpack.c.h.b16 %v3447
    %v4849 = vunpack.c.l.b16 %v3448
    %v4850 = vunpack.c.h.b16 %v3448
    %v4851 = vunpack.c.l.b16 %v3449
    %v4852 = vunpack.c.h.b16 %v3449
    %v4853 = vunpack.c.l.b16 %v3450
    %v4854 = vunpack.c.h.b16 %v3450
    %v4855 = vunpack.c.l.b16 %v3451
    %v4856 = vunpack.c.h.b16 %v3451
    %v4857 = vunpack.c.l.b16 %v3452
    %v4858 = vunpack.c.h.b16 %v3452
    %v4859 = vunpack.c.l.b16 %v3453
    %v4860 = vunpack.c.h.b16 %v3453
    %v4861 = vunpack.c.l.b16 %v3454
    %v4862 = vunpack.c.h.b16 %v3454
    %v4863 = vunpack.c.l.b16 %v3455
    %v4864 = vunpack.c.h.b16 %v3455
    %v4865 = vunpack.c.l.b16 %v3456
    %v4866 = vunpack.c.h.b16 %v3456
    %v4867 = vunpack.c.l.b16 %v3457
    %v4868 = vunpack.c.h.b16 %v3457
    %v4869 = vunpack.c.l.b16 %v3458
    %v4870 = vunpack.c.h.b16 %v3458
    %v4871 = vunpack.c.l.b16 %v3459
    %v4872 = vunpack.c.h.b16 %v3459
    %v4873 = vunpack.c.l.b16 %v3460
    %v4874 = vunpack.c.h.b16 %v3460
    %v4875 = vunpack.c.l.b16 %v3461
    %v4876 = vunpack.c.h.b16 %v3461
    %v4877 = vunpack.c.l.b16 %v3462
    %v4878 = vunpack.c.h.b16 %v3462
    %v4879 = vunpack.c.l.b16 %v3463
    %v4880 = vunpack.c.h.b16 %v3463
    %v4881 = vunpack.c.l.b16 %v3464
    %v4882 = vunpack.c.h.b16 %v3464
    %v4883 = vunpack.c.l.b16 %v3465
    %v4884 = vunpack.c.h.b16 %v3465
    %v4885 = vunpack.c.l.b16 %v3466
    %v4886 = vunpack.c.h.b16 %v3466
    %v4887 = vunpack.c.l.b16 %v3467
    %v4888 = vunpack.c.h.b16 %v3467
    %v4889 = vunpack.c.l.b16 %v3468
    %v4890 = vunpack.c.h.b16 %v3468
    %v4891 = vunpack.c.l.b16 %v3469
    %v4892 = vunpack.c.h.b16 %v3469
    %v4893 = vunpack.c.l.b16 %v3470
    %v4894 = vunpack.c.h.b16 %v3470
    %v4895 = vunpack.c.l.b16 %v3471
    %v4896 = vunpack.c.h.b16 %v3471
    %v4897 = vunpack.c.l.b16 %v3472
    %v4898 = vunpack.c.h.b16 %v3472
    %v4899 = vunpack.c.l.b16 %v3473
    %v4900 = vunpack.c.h.b16 %v3473
    %v4901 = vunpack.c.l.b16 %v3474
    %v4902 = vunpack.c.h.b16 %v3474
    %v4903 = vunpack.c.l.b16 %v3475
    %v4904 = vunpack.c.h.b16 %v3475
    %v4905 = vunpack.c.l.b16 %v3476
    %v4906 = vunpack.c.h.b16 %v3476
    %v4907 = vunpack.c.l.b16 %v3477
    %v4908 = vunpack.c.h.b16 %v3477
    %v4909 = vunpack.c.l.b16 %v3478
    %v4910 = vunpack.c.h.b16 %v3478
    %v4911 = vunpack.c.l.b16 %v3479
    %v4912 = vunpack.c.h.b16 %v3479
    %v4913 = vunpack.c.l.b16 %v3480
    %v4914 = vunpack.c.h.b16 %v3480
    %v4915 = vunpack.c.l.b16 %v3481
    %v4916 = vunpack.c.h.b16 %v3481
    %v4917 = vunpack.c.l.b16 %v3482
    %v4918 = vunpack.c.h.b16 %v3482
    %v4919 = vunpack.c.l.b16 %v3483
    %v4920 = vunpack.c.h.b16 %v3483
    %v4921 = vunpack.c.l.b16 %v3484
    %v4922 = vunpack.c.h.b16 %v3484
    %v4923 = vunpack.c.l.b16 %v3485
    %v4924 = vunpack.c.h.b16 %v3485
    %v4925 = vunpack.c.l.b16 %v3486
    %v4926 = vunpack.c.h.b16 %v3486
    %v4927 = vunpack.c.l.b16 %v3487
    %v4928 = vunpack.c.h.b16 %v3487
    %v4929 = vunpack.c.l.b16 %v3488
    %v4930 = vunpack.c.h.b16 %v3488
    %v4931 = vunpack.c.l.b16 %v3489
    %v4932 = vunpack.c.h.b16 %v3489
    %v4933 = vunpack.c.l.b16 %v3490
    %v4934 = vunpack.c.h.b16 %v3490
    %v4935 = vunpack.c.l.b16 %v3491
    %v4936 = vunpack.c.h.b16 %v3491
    %v4937 = vunpack.c.l.b16 %v3492
    %v4938 = vunpack.c.h.b16 %v3492
    %v4939 = vunpack.c.l.b16 %v3493
    %v4940 = vunpack.c.h.b16 %v3493
    %v4941 = vunpack.c.l.b16 %v3494
    %v4942 = vunpack.c.h.b16 %v3494
    %v4943 = vunpack.c.l.b16 %v3495
    %v4944 = vunpack.c.h.b16 %v3495
    %v4945 = vunpack.c.l.b16 %v3496
    %v4946 = vunpack.c.h.b16 %v3496
    %v4947 = vunpack.c.l.b16 %v3497
    %v4948 = vunpack.c.h.b16 %v3497
    %v4949 = vunpack.c.l.b16 %v3498
    %v4950 = vunpack.c.h.b16 %v3498
    %v4951 = vunpack.c.l.b16 %v3499
    %v4952 = vunpack.c.h.b16 %v3499
    %v4953 = vunpack.c.l.b16 %v3500
    %v4954 = vunpack.c.h.b16 %v3500
    %v4955 = vunpack.c.l.b16 %v3501
    %v4956 = vunpack.c.h.b16 %v3501
    %v4957 = vunpack.c.l.b16 %v3502
    %v4958 = vunpack.c.h.b16 %v3502
    %v4959 = vunpack.c.l.b16 %v3503
    %v4960 = vunpack.c.h.b16 %v3503
    %v4961 = vunpack.c.l.b16 %v3504
    %v4962 = vunpack.c.h.b16 %v3504
    %v4963 = vunpack.c.l.b16 %v3505
    %v4964 = vunpack.c.h.b16 %v3505
    %v4965 = vunpack.c.l.b16 %v3506
    %v4966 = vunpack.c.h.b16 %v3506
    %v4967 = vunpack.c.l.b16 %v3507
    %v4968 = vunpack.c.h.b16 %v3507
    %v4969 = vunpack.c.l.b16 %v3508
    %v4970 = vunpack.c.h.b16 %v3508
    %v4971 = vunpack.c.l.b16 %v3509
    %v4972 = vunpack.c.h.b16 %v3509
    %v4973 = vunpack.c.l.b16 %v3510
    %v4974 = vunpack.c.h.b16 %v3510
    %v4975 = vunpack.c.l.b16 %v3511
    %v4976 = vunpack.c.h.b16 %v3511
    %v4977 = vunpack.c.l.b16 %v3512
    %v4978 = vunpack.c.h.b16 %v3512
    %v4979 = vunpack.c.l.b16 %v3513
    %v4980 = vunpack.c.h.b16 %v3513
    %v4981 = vunpack.c.l.b16 %v3514
    %v4982 = vunpack.c.h.b16 %v3514
    %v4983 = vunpack.c.l.b16 %v3515
    %v4984 = vunpack.c.h.b16 %v3515
    %v4985 = vunpack.c.l.b16 %v3516
    %v4986 = vunpack.c.h.b16 %v3516
    %v4987 = vunpack.c.l.b16 %v3517
    %v4988 = vunpack.c.h.b16 %v3517
    %v4989 = vunpack.c.l.b16 %v3518
    %v4990 = vunpack.c.h.b16 %v3518
    %v4991 = vunpack.c.l.b16 %v3519
    %v4992 = vunpack.c.h.b16 %v3519
    %v4993 = vunpack.c.l.b16 %v3520
    %v4994 = vunpack.c.h.b16 %v3520
    %v4995 = vunpack.c.l.b16 %v3521
    %v4996 = vunpack.c.h.b16 %v3521
    %v4997 = vunpack.c.l.b16 %v3522
    %v4998 = vunpack.c.h.b16 %v3522
    %v4999 = vunpack.c.l.b16 %v3523
    %v5000 = vunpack.c.h.b16 %v3523
    %v5001 = vunpack.c.l.b16 %v3524
    %v5002 = vunpack.c.h.b16 %v3524
    %v5003 = vunpack.c.l.b16 %v3525
    %v5004 = vunpack.c.h.b16 %v3525
    %v5005 = vunpack.c.l.b16 %v3526
    %v5006 = vunpack.c.h.b16 %v3526
    %v5007 = vunpack.c.l.b16 %v3527
    %v5008 = vunpack.c.h.b16 %v3527
    %v5009 = vunpack.c.l.b16 %v3528
    %v5010 = vunpack.c.h.b16 %v3528
    %v5011 = vunpack.c.l.b16 %v3529
    %v5012 = vunpack.c.h.b16 %v3529
    %v5013 = vunpack.c.l.b16 %v3530
    %v5014 = vunpack.c.h.b16 %v3530
    %v5015 = vunpack.c.l.b16 %v3531
    %v5016 = vunpack.c.h.b16 %v3531
    %v5017 = vunpack.c.l.b16 %v3532
    %v5018 = vunpack.c.h.b16 %v3532
    %v5019 = vunpack.c.l.b16 %v3533
    %v5020 = vunpack.c.h.b16 %v3533
    %v5021 = vunpack.c.l.b16 %v3534
    %v5022 = vunpack.c.h.b16 %v3534
    %v5023 = vunpack.c.l.b16 %v3535
    %v5024 = vunpack.c.h.b16 %v3535
    %v5025 = vunpack.c.l.b16 %v3536
    %v5026 = vunpack.c.h.b16 %v3536
    %v5027 = vunpack.c.l.b16 %v3537
    %v5028 = vunpack.c.h.b16 %v3537
    %v5029 = vunpack.c.l.b16 %v3538
    %v5030 = vunpack.c.h.b16 %v3538
    %v5031 = vunpack.c.l.b16 %v3539
    %v5032 = vunpack.c.h.b16 %v3539
    %v5033 = vunpack.c.l.b16 %v3540
    %v5034 = vunpack.c.h.b16 %v3540
    %v5035 = vunpack.c.l.b16 %v3541
    %v5036 = vunpack.c.h.b16 %v3541
    %v5037 = vunpack.c.l.b16 %v3542
    %v5038 = vunpack.c.h.b16 %v3542
    %v5039 = vunpack.c.l.b16 %v3543
    %v5040 = vunpack.c.h.b16 %v3543
    %v5041 = vunpack.c.l.b16 %v3544
    %v5042 = vunpack.c.h.b16 %v3544
    %v5043 = vunpack.c.l.b16 %v3545
    %v5044 = vunpack.c.h.b16 %v3545
    %v5045 = vunpack.c.l.b16 %v3546
    %v5046 = vunpack.c.h.b16 %v3546
    %v5047 = vunpack.c.l.b16 %v3547
    %v5048 = vunpack.c.h.b16 %v3547
    %v5049 = vunpack.c.l.b16 %v3548
    %v5050 = vunpack.c.h.b16 %v3548
    %v5051 = vunpack.c.l.b16 %v3549
    %v5052 = vunpack.c.h.b16 %v3549
    %v5053 = vunpack.c.l.b16 %v3550
    %v5054 = vunpack.c.h.b16 %v3550
    %v5055 = vunpack.c.l.b16 %v3551
    %v5056 = vunpack.c.h.b16 %v3551
    %v5057 = vunpack.c.l.b16 %v3552
    %v5058 = vunpack.c.h.b16 %v3552
    %v5059 = vunpack.c.l.b16 %v3553
    %v5060 = vunpack.c.h.b16 %v3553
    %v5061 = vunpack.c.l.b16 %v3554
    %v5062 = vunpack.c.h.b16 %v3554
    %v5063 = vunpack.c.l.b16 %v3555
    %v5064 = vunpack.c.h.b16 %v3555
    %v5065 = vunpack.c.l.b16 %v3556
    %v5066 = vunpack.c.h.b16 %v3556
    %v5067 = vunpack.c.l.b16 %v3557
    %v5068 = vunpack.c.h.b16 %v3557
    %v5069 = vunpack.c.l.b16 %v3558
    %v5070 = vunpack.c.h.b16 %v3558
    %v5071 = vunpack.c.l.b16 %v3559
    %v5072 = vunpack.c.h.b16 %v3559
    %v5073 = vunpack.c.l.b16 %v3560
    %v5074 = vunpack.c.h.b16 %v3560
    %v5075 = vunpack.c.l.b16 %v3561
    %v5076 = vunpack.c.h.b16 %v3561
    %v5077 = vunpack.c.l.b16 %v3562
    %v5078 = vunpack.c.h.b16 %v3562
    %v5079 = vunpack.c.l.b16 %v3563
    %v5080 = vunpack.c.h.b16 %v3563
    %v5081 = vunpack.c.l.b16 %v3564
    %v5082 = vunpack.c.h.b16 %v3564
    %v5083 = vunpack.c.l.b16 %v3565
    %v5084 = vunpack.c.h.b16 %v3565
    %v5085 = vunpack.c.l.b16 %v3566
    %v5086 = vunpack.c.h.b16 %v3566
    %v5087 = vunpack.c.l.b16 %v3567
    %v5088 = vunpack.c.h.b16 %v3567
    %v5089 = vunpack.c.l.b16 %v3568
    %v5090 = vunpack.c.h.b16 %v3568
    %v5091 = vunpack.c.l.b16 %v3569
    %v5092 = vunpack.c.h.b16 %v3569
    %v5093 = vunpack.c.l.b16 %v3570
    %v5094 = vunpack.c.h.b16 %v3570
    %v5095 = vunpack.c.l.b16 %v3571
    %v5096 = vunpack.c.h.b16 %v3571
    %v5097 = vunpack.c.l.b16 %v3572
    %v5098 = vunpack.c.h.b16 %v3572
    %v5099 = vunpack.c.l.b16 %v3573
    %v5100 = vunpack.c.h.b16 %v3573
    %v5101 = vunpack.c.l.b16 %v3574
    %v5102 = vunpack.c.h.b16 %v3574
    %v5103 = vunpack.c.l.b16 %v3575
    %v5104 = vunpack.c.h.b16 %v3575
    %v5105 = vunpack.c.l.b16 %v3576
    %v5106 = vunpack.c.h.b16 %v3576
    %v5107 = vunpack.c.l.b16 %v3577
    %v5108 = vunpack.c.h.b16 %v3577
    %v5109 = vunpack.c.l.b16 %v3578
    %v5110 = vunpack.c.h.b16 %v3578
    %v5111 = vunpack.c.l.b16 %v3579
    %v5112 = vunpack.c.h.b16 %v3579
    %v5113 = vunpack.c.l.b16 %v3580
    %v5114 = vunpack.c.h.b16 %v3580
    %v5115 = vunpack.c.l.b16 %v3581
    %v5116 = vunpack.c.h.b16 %v3581
    %v5117 = vunpack.c.l.b16 %v3582
    %v5118 = vunpack.c.h.b16 %v3582
    %v5119 = vpack.c.b16 %v4103, %v4095
    %v5120 = vpack.c.b16 %v4104, %v4096
    %v5121 = vpack.c.b16 %v4105, %v4097
    %v5122 = vpack.c.b16 %v4106, %v4098
    %v5123 = vpack.c.b16 %v4107, %v4099
    %v5124 = vpack.c.b16 %v4108, %v4100
    %v5125 = vpack.c.b16 %v4109, %v4101
    %v5126 = vpack.c.b16 %v4110, %v4102
    %v5127 = vpack.c.b16 %v4119, %v4111
    %v5128 = vpack.c.b16 %v4120, %v4112
    %v5129 = vpack.c.b16 %v4121, %v4113
    %v5130 = vpack.c.b16 %v4122, %v4114
    %v5131 = vpack.c.b16 %v4123, %v4115
    %v5132 = vpack.c.b16 %v4124, %v4116
    %v5133 = vpack.c.b16 %v4125, %v4117
    %v5134 = vpack.c.b16 %v4126, %v4118
    %v5135 = vpack.c.b16 %v4135, %v4127
    %v5136 = vpack.c.b16 %v4136, %v4128
    %v5137 = vpack.c.b16 %v4137, %v4129
    %v5138 = vpack.c.b16 %v4138, %v4130
    %v5139 = vpack.c.b16 %v4139, %v4131
    %v5140 = vpack.c.b16 %v4140, %v4132
    %v5141 = vpack.c.b16 %v4141, %v4133
    %v5142 = vpack.c.b16 %v4142, %v4134
    %v5143 = vpack.c.b16 %v4151, %v4143
    %v5144 = vpack.c.b16 %v4152, %v4144
    %v5145 = vpack.c.b16 %v4153, %v4145
    %v5146 = vpack.c.b16 %v4154, %v4146
    %v5147 = vpack.c.b16 %v4155, %v4147
    %v5148 = vpack.c.b16 %v4156, %v4148
    %v5149 = vpack.c.b16 %v4157, %v4149
    %v5150 = vpack.c.b16 %v4158, %v4150
    %v5151 = vpack.c.b16 %v4167, %v4159
    %v5152 = vpack.c.b16 %v4168, %v4160
    %v5153 = vpack.c.b16 %v4169, %v4161
    %v5154 = vpack.c.b16 %v4170, %v4162
    %v5155 = vpack.c.b16 %v4171, %v4163
    %v5156 = vpack.c.b16 %v4172, %v4164
    %v5157 = vpack.c.b16 %v4173, %v4165
    %v5158 = vpack.c.b16 %v4174, %v4166
    %v5159 = vpack.c.b16 %v4183, %v4175
    %v5160 = vpack.c.b16 %v4184, %v4176
    %v5161 = vpack.c.b16 %v4185, %v4177
    %v5162 = vpack.c.b16 %v4186, %v4178
    %v5163 = vpack.c.b16 %v4187, %v4179
    %v5164 = vpack.c.b16 %v4188, %v4180
    %v5165 = vpack.c.b16 %v4189, %v4181
    %v5166 = vpack.c.b16 %v4190, %v4182
    %v5167 = vpack.c.b16 %v4199, %v4191
    %v5168 = vpack.c.b16 %v4200, %v4192
    %v5169 = vpack.c.b16 %v4201, %v4193
    %v5170 = vpack.c.b16 %v4202, %v4194
    %v5171 = vpack.c.b16 %v4203, %v4195
    %v5172 = vpack.c.b16 %v4204, %v4196
    %v5173 = vpack.c.b16 %v4205, %v4197
    %v5174 = vpack.c.b16 %v4206, %v4198
    %v5175 = vpack.c.b16 %v4215, %v4207
    %v5176 = vpack.c.b16 %v4216, %v4208
    %v5177 = vpack.c.b16 %v4217, %v4209
    %v5178 = vpack.c.b16 %v4218, %v4210
    %v5179 = vpack.c.b16 %v4219, %v4211
    %v5180 = vpack.c.b16 %v4220, %v4212
    %v5181 = vpack.c.b16 %v4221, %v4213
    %v5182 = vpack.c.b16 %v4222, %v4214
    %v5183 = vpack.c.b16 %v4231, %v4223
    %v5184 = vpack.c.b16 %v4232, %v4224
    %v5185 = vpack.c.b16 %v4233, %v4225
    %v5186 = vpack.c.b16 %v4234, %v4226
    %v5187 = vpack.c.b16 %v4235, %v4227
    %v5188 = vpack.c.b16 %v4236, %v4228
    %v5189 = vpack.c.b16 %v4237, %v4229
    %v5190 = vpack.c.b16 %v4238, %v4230
    %v5191 = vpack.c.b16 %v4247, %v4239
    %v5192 = vpack.c.b16 %v4248, %v4240
    %v5193 = vpack.c.b16 %v4249, %v4241
    %v5194 = vpack.c.b16 %v4250, %v4242
    %v5195 = vpack.c.b16 %v4251, %v4243
    %v5196 = vpack.c.b16 %v4252, %v4244
    %v5197 = vpack.c.b16 %v4253, %v4245
    %v5198 = vpack.c.b16 %v4254, %v4246
    %v5199 = vpack.c.b16 %v4263, %v4255
    %v5200 = vpack.c.b16 %v4264, %v4256
    %v5201 = vpack.c.b16 %v4265, %v4257
    %v5202 = vpack.c.b16 %v4266, %v4258
    %v5203 = vpack.c.b16 %v4267, %v4259
    %v5204 = vpack.c.b16 %v4268, %v4260
    %v5205 = vpack.c.b16 %v4269, %v4261
    %v5206 = vpack.c.b16 %v4270, %v4262
    %v5207 = vpack.c.b16 %v4279, %v4271
    %v5208 = vpack.c.b16 %v4280, %v4272
    %v5209 = vpack.c.b16 %v4281, %v4273
    %v5210 = vpack.c.b16 %v4282, %v4274
    %v5211 = vpack.c.b16 %v4283, %v4275
    %v5212 = vpack.c.b16 %v4284, %v4276
    %v5213 = vpack.c.b16 %v4285, %v4277
    %v5214 = vpack.c.b16 %v4286, %v4278
    %v5215 = vpack.c.b16 %v4295, %v4287
    %v5216 = vpack.c.b16 %v4296, %v4288
    %v5217 = vpack.c.b16 %v4297, %v4289
    %v5218 = vpack.c.b16 %v4298, %v4290
    %v5219 = vpack.c.b16 %v4299, %v4291
    %v5220 = vpack.c.b16 %v4300, %v4292
    %v5221 = vpack.c.b16 %v4301, %v4293
    %v5222 = vpack.c.b16 %v4302, %v4294
    %v5223 = vpack.c.b16 %v4311, %v4303
    %v5224 = vpack.c.b16 %v4312, %v4304
    %v5225 = vpack.c.b16 %v4313, %v4305
    %v5226 = vpack.c.b16 %v4314, %v4306
    %v5227 = vpack.c.b16 %v4315, %v4307
    %v5228 = vpack.c.b16 %v4316, %v4308
    %v5229 = vpack.c.b16 %v4317, %v4309
    %v5230 = vpack.c.b16 %v4318, %v4310
    %v5231 = vpack.c.b16 %v4327, %v4319
    %v5232 = vpack.c.b16 %v4328, %v4320
    %v5233 = vpack.c.b16 %v4329, %v4321
    %v5234 = vpack.c.b16 %v4330, %v4322
    %v5235 = vpack.c.b16 %v4331, %v4323
    %v5236 = vpack.c.b16 %v4332, %v4324
    %v5237 = vpack.c.b16 %v4333, %v4325
    %v5238 = vpack.c.b16 %v4334, %v4326
    %v5239 = vpack.c.b16 %v4343, %v4335
    %v5240 = vpack.c.b16 %v4344, %v4336
    %v5241 = vpack.c.b16 %v4345, %v4337
    %v5242 = vpack.c.b16 %v4346, %v4338
    %v5243 = vpack.c.b16 %v4347, %v4339
    %v5244 = vpack.c.b16 %v4348, %v4340
    %v5245 = vpack.c.b16 %v4349, %v4341
    %v5246 = vpack.c.b16 %v4350, %v4342
    %v5247 = vpack.c.b16 %v4359, %v4351
    %v5248 = vpack.c.b16 %v4360, %v4352
    %v5249 = vpack.c.b16 %v4361, %v4353
    %v5250 = vpack.c.b16 %v4362, %v4354
    %v5251 = vpack.c.b16 %v4363, %v4355
    %v5252 = vpack.c.b16 %v4364, %v4356
    %v5253 = vpack.c.b16 %v4365, %v4357
    %v5254 = vpack.c.b16 %v4366, %v4358
    %v5255 = vpack.c.b16 %v4375, %v4367
    %v5256 = vpack.c.b16 %v4376, %v4368
    %v5257 = vpack.c.b16 %v4377, %v4369
    %v5258 = vpack.c.b16 %v4378, %v4370
    %v5259 = vpack.c.b16 %v4379, %v4371
    %v5260 = vpack.c.b16 %v4380, %v4372
    %v5261 = vpack.c.b16 %v4381, %v4373
    %v5262 = vpack.c.b16 %v4382, %v4374
    %v5263 = vpack.c.b16 %v4391, %v4383
    %v5264 = vpack.c.b16 %v4392, %v4384
    %v5265 = vpack.c.b16 %v4393, %v4385
    %v5266 = vpack.c.b16 %v4394, %v4386
    %v5267 = vpack.c.b16 %v4395, %v4387
    %v5268 = vpack.c.b16 %v4396, %v4388
    %v5269 = vpack.c.b16 %v4397, %v4389
    %v5270 = vpack.c.b16 %v4398, %v4390
    %v5271 = vpack.c.b16 %v4407, %v4399
    %v5272 = vpack.c.b16 %v4408, %v4400
    %v5273 = vpack.c.b16 %v4409, %v4401
    %v5274 = vpack.c.b16 %v4410, %v4402
    %v5275 = vpack.c.b16 %v4411, %v4403
    %v5276 = vpack.c.b16 %v4412, %v4404
    %v5277 = vpack.c.b16 %v4413, %v4405
    %v5278 = vpack.c.b16 %v4414, %v4406
    %v5279 = vpack.c.b16 %v4423, %v4415
    %v5280 = vpack.c.b16 %v4424, %v4416
    %v5281 = vpack.c.b16 %v4425, %v4417
    %v5282 = vpack.c.b16 %v4426, %v4418
    %v5283 = vpack.c.b16 %v4427, %v4419
    %v5284 = vpack.c.b16 %v4428, %v4420
    %v5285 = vpack.c.b16 %v4429, %v4421
    %v5286 = vpack.c.b16 %v4430, %v4422
    %v5287 = vpack.c.b16 %v4439, %v4431
    %v5288 = vpack.c.b16 %v4440, %v4432
    %v5289 = vpack.c.b16 %v4441, %v4433
    %v5290 = vpack.c.b16 %v4442, %v4434
    %v5291 = vpack.c.b16 %v4443, %v4435
    %v5292 = vpack.c.b16 %v4444, %v4436
    %v5293 = vpack.c.b16 %v4445, %v4437
    %v5294 = vpack.c.b16 %v4446, %v4438
    %v5295 = vpack.c.b16 %v4455, %v4447
    %v5296 = vpack.c.b16 %v4456, %v4448
    %v5297 = vpack.c.b16 %v4457, %v4449
    %v5298 = vpack.c.b16 %v4458, %v4450
    %v5299 = vpack.c.b16 %v4459, %v4451
    %v5300 = vpack.c.b16 %v4460, %v4452
    %v5301 = vpack.c.b16 %v4461, %v4453
    %v5302 = vpack.c.b16 %v4462, %v4454
    %v5303 = vpack.c.b16 %v4471, %v4463
    %v5304 = vpack.c.b16 %v4472, %v4464
    %v5305 = vpack.c.b16 %v4473, %v4465
    %v5306 = vpack.c.b16 %v4474, %v4466
    %v5307 = vpack.c.b16 %v4475, %v4467
    %v5308 = vpack.c.b16 %v4476, %v4468
    %v5309 = vpack.c.b16 %v4477, %v4469
    %v5310 = vpack.c.b16 %v4478, %v4470
    %v5311 = vpack.c.b16 %v4487, %v4479
    %v5312 = vpack.c.b16 %v4488, %v4480
    %v5313 = vpack.c.b16 %v4489, %v4481
    %v5314 = vpack.c.b16 %v4490, %v4482
    %v5315 = vpack.c.b16 %v4491, %v4483
    %v5316 = vpack.c.b16 %v4492, %v4484
    %v5317 = vpack.c.b16 %v4493, %v4485
    %v5318 = vpack.c.b16 %v4494, %v4486
    %v5319 = vpack.c.b16 %v4503, %v4495
    %v5320 = vpack.c.b16 %v4504, %v4496
    %v5321 = vpack.c.b16 %v4505, %v4497
    %v5322 = vpack.c.b16 %v4506, %v4498
    %v5323 = vpack.c.b16 %v4507, %v4499
    %v5324 = vpack.c.b16 %v4508, %v4500
    %v5325 = vpack.c.b16 %v4509, %v4501
    %v5326 = vpack.c.b16 %v4510, %v4502
    %v5327 = vpack.c.b16 %v4519, %v4511
    %v5328 = vpack.c.b16 %v4520, %v4512
    %v5329 = vpack.c.b16 %v4521, %v4513
    %v5330 = vpack.c.b16 %v4522, %v4514
    %v5331 = vpack.c.b16 %v4523, %v4515
    %v5332 = vpack.c.b16 %v4524, %v4516
    %v5333 = vpack.c.b16 %v4525, %v4517
    %v5334 = vpack.c.b16 %v4526, %v4518
    %v5335 = vpack.c.b16 %v4535, %v4527
    %v5336 = vpack.c.b16 %v4536, %v4528
    %v5337 = vpack.c.b16 %v4537, %v4529
    %v5338 = vpack.c.b16 %v4538, %v4530
    %v5339 = vpack.c.b16 %v4539, %v4531
    %v5340 = vpack.c.b16 %v4540, %v4532
    %v5341 = vpack.c.b16 %v4541, %v4533
    %v5342 = vpack.c.b16 %v4542, %v4534
    %v5343 = vpack.c.b16 %v4551, %v4543
    %v5344 = vpack.c.b16 %v4552, %v4544
    %v5345 = vpack.c.b16 %v4553, %v4545
    %v5346 = vpack.c.b16 %v4554, %v4546
    %v5347 = vpack.c.b16 %v4555, %v4547
    %v5348 = vpack.c.b16 %v4556, %v4548
    %v5349 = vpack.c.b16 %v4557, %v4549
    %v5350 = vpack.c.b16 %v4558, %v4550
    %v5351 = vpack.c.b16 %v4567, %v4559
    %v5352 = vpack.c.b16 %v4568, %v4560
    %v5353 = vpack.c.b16 %v4569, %v4561
    %v5354 = vpack.c.b16 %v4570, %v4562
    %v5355 = vpack.c.b16 %v4571, %v4563
    %v5356 = vpack.c.b16 %v4572, %v4564
    %v5357 = vpack.c.b16 %v4573, %v4565
    %v5358 = vpack.c.b16 %v4574, %v4566
    %v5359 = vpack.c.b16 %v4583, %v4575
    %v5360 = vpack.c.b16 %v4584, %v4576
    %v5361 = vpack.c.b16 %v4585, %v4577
    %v5362 = vpack.c.b16 %v4586, %v4578
    %v5363 = vpack.c.b16 %v4587, %v4579
    %v5364 = vpack.c.b16 %v4588, %v4580
    %v5365 = vpack.c.b16 %v4589, %v4581
    %v5366 = vpack.c.b16 %v4590, %v4582
    %v5367 = vpack.c.b16 %v4599, %v4591
    %v5368 = vpack.c.b16 %v4600, %v4592
    %v5369 = vpack.c.b16 %v4601, %v4593
    %v5370 = vpack.c.b16 %v4602, %v4594
    %v5371 = vpack.c.b16 %v4603, %v4595
    %v5372 = vpack.c.b16 %v4604, %v4596
    %v5373 = vpack.c.b16 %v4605, %v4597
    %v5374 = vpack.c.b16 %v4606, %v4598
    %v5375 = vpack.c.b16 %v4615, %v4607
    %v5376 = vpack.c.b16 %v4616, %v4608
    %v5377 = vpack.c.b16 %v4617, %v4609
    %v5378 = vpack.c.b16 %v4618, %v4610
    %v5379 = vpack.c.b16 %v4619, %v4611
    %v5380 = vpack.c.b16 %v4620, %v4612
    %v5381 = vpack.c.b16 %v4621, %v4613
    %v5382 = vpack.c.b16 %v4622, %v4614
    %v5383 = vpack.c.b16 %v4631, %v4623
    %v5384 = vpack.c.b16 %v4632, %v4624
    %v5385 = vpack.c.b16 %v4633, %v4625
    %v5386 = vpack.c.b16 %v4634, %v4626
    %v5387 = vpack.c.b16 %v4635, %v4627
    %v5388 = vpack.c.b16 %v4636, %v4628
    %v5389 = vpack.c.b16 %v4637, %v4629
    %v5390 = vpack.c.b16 %v4638, %v4630
    %v5391 = vpack.c.b16 %v4647, %v4639
    %v5392 = vpack.c.b16 %v4648, %v4640
    %v5393 = vpack.c.b16 %v4649, %v4641
    %v5394 = vpack.c.b16 %v4650, %v4642
    %v5395 = vpack.c.b16 %v4651, %v4643
    %v5396 = vpack.c.b16 %v4652, %v4644
    %v5397 = vpack.c.b16 %v4653, %v4645
    %v5398 = vpack.c.b16 %v4654, %v4646
    %v5399 = vpack.c.b16 %v4663, %v4655
    %v5400 = vpack.c.b16 %v4664, %v4656
    %v5401 = vpack.c.b16 %v4665, %v4657
    %v5402 = vpack.c.b16 %v4666, %v4658
    %v5403 = vpack.c.b16 %v4667, %v4659
    %v5404 = vpack.c.b16 %v4668, %v4660
    %v5405 = vpack.c.b16 %v4669, %v4661
    %v5406 = vpack.c.b16 %v4670, %v4662
    %v5407 = vpack.c.b16 %v4679, %v4671
    %v5408 = vpack.c.b16 %v4680, %v4672
    %v5409 = vpack.c.b16 %v4681, %v4673
    %v5410 = vpack.c.b16 %v4682, %v4674
    %v5411 = vpack.c.b16 %v4683, %v4675
    %v5412 = vpack.c.b16 %v4684, %v4676
    %v5413 = vpack.c.b16 %v4685, %v4677
    %v5414 = vpack.c.b16 %v4686, %v4678
    %v5415 = vpack.c.b16 %v4695, %v4687
    %v5416 = vpack.c.b16 %v4696, %v4688
    %v5417 = vpack.c.b16 %v4697, %v4689
    %v5418 = vpack.c.b16 %v4698, %v4690
    %v5419 = vpack.c.b16 %v4699, %v4691
    %v5420 = vpack.c.b16 %v4700, %v4692
    %v5421 = vpack.c.b16 %v4701, %v4693
    %v5422 = vpack.c.b16 %v4702, %v4694
    %v5423 = vpack.c.b16 %v4711, %v4703
    %v5424 = vpack.c.b16 %v4712, %v4704
    %v5425 = vpack.c.b16 %v4713, %v4705
    %v5426 = vpack.c.b16 %v4714, %v4706
    %v5427 = vpack.c.b16 %v4715, %v4707
    %v5428 = vpack.c.b16 %v4716, %v4708
    %v5429 = vpack.c.b16 %v4717, %v4709
    %v5430 = vpack.c.b16 %v4718, %v4710
    %v5431 = vpack.c.b16 %v4727, %v4719
    %v5432 = vpack.c.b16 %v4728, %v4720
    %v5433 = vpack.c.b16 %v4729, %v4721
    %v5434 = vpack.c.b16 %v4730, %v4722
    %v5435 = vpack.c.b16 %v4731, %v4723
    %v5436 = vpack.c.b16 %v4732, %v4724
    %v5437 = vpack.c.b16 %v4733, %v4725
    %v5438 = vpack.c.b16 %v4734, %v4726
    %v5439 = vpack.c.b16 %v4743, %v4735
    %v5440 = vpack.c.b16 %v4744, %v4736
    %v5441 = vpack.c.b16 %v4745, %v4737
    %v5442 = vpack.c.b16 %v4746, %v4738
    %v5443 = vpack.c.b16 %v4747, %v4739
    %v5444 = vpack.c.b16 %v4748, %v4740
    %v5445 = vpack.c.b16 %v4749, %v4741
    %v5446 = vpack.c.b16 %v4750, %v4742
    %v5447 = vpack.c.b16 %v4759, %v4751
    %v5448 = vpack.c.b16 %v4760, %v4752
    %v5449 = vpack.c.b16 %v4761, %v4753
    %v5450 = vpack.c.b16 %v4762, %v4754
    %v5451 = vpack.c.b16 %v4763, %v4755
    %v5452 = vpack.c.b16 %v4764, %v4756
    %v5453 = vpack.c.b16 %v4765, %v4757
    %v5454 = vpack.c.b16 %v4766, %v4758
    %v5455 = vpack.c.b16 %v4775, %v4767
    %v5456 = vpack.c.b16 %v4776, %v4768
    %v5457 = vpack.c.b16 %v4777, %v4769
    %v5458 = vpack.c.b16 %v4778, %v4770
    %v5459 = vpack.c.b16 %v4779, %v4771
    %v5460 = vpack.c.b16 %v4780, %v4772
    %v5461 = vpack.c.b16 %v4781, %v4773
    %v5462 = vpack.c.b16 %v4782, %v4774
    %v5463 = vpack.c.b16 %v4791, %v4783
    %v5464 = vpack.c.b16 %v4792, %v4784
    %v5465 = vpack.c.b16 %v4793, %v4785
    %v5466 = vpack.c.b16 %v4794, %v4786
    %v5467 = vpack.c.b16 %v4795, %v4787
    %v5468 = vpack.c.b16 %v4796, %v4788
    %v5469 = vpack.c.b16 %v4797, %v4789
    %v5470 = vpack.c.b16 %v4798, %v4790
    %v5471 = vpack.c.b16 %v4807, %v4799
    %v5472 = vpack.c.b16 %v4808, %v4800
    %v5473 = vpack.c.b16 %v4809, %v4801
    %v5474 = vpack.c.b16 %v4810, %v4802
    %v5475 = vpack.c.b16 %v4811, %v4803
    %v5476 = vpack.c.b16 %v4812, %v4804
    %v5477 = vpack.c.b16 %v4813, %v4805
    %v5478 = vpack.c.b16 %v4814, %v4806
    %v5479 = vpack.c.b16 %v4823, %v4815
    %v5480 = vpack.c.b16 %v4824, %v4816
    %v5481 = vpack.c.b16 %v4825, %v4817
    %v5482 = vpack.c.b16 %v4826, %v4818
    %v5483 = vpack.c.b16 %v4827, %v4819
    %v5484 = vpack.c.b16 %v4828, %v4820
    %v5485 = vpack.c.b16 %v4829, %v4821
    %v5486 = vpack.c.b16 %v4830, %v4822
    %v5487 = vpack.c.b16 %v4839, %v4831
    %v5488 = vpack.c.b16 %v4840, %v4832
    %v5489 = vpack.c.b16 %v4841, %v4833
    %v5490 = vpack.c.b16 %v4842, %v4834
    %v5491 = vpack.c.b16 %v4843, %v4835
    %v5492 = vpack.c.b16 %v4844, %v4836
    %v5493 = vpack.c.b16 %v4845, %v4837
    %v5494 = vpack.c.b16 %v4846, %v4838
    %v5495 = vpack.c.b16 %v4855, %v4847
    %v5496 = vpack.c.b16 %v4856, %v4848
    %v5497 = vpack.c.b16 %v4857, %v4849
    %v5498 = vpack.c.b16 %v4858, %v4850
    %v5499 = vpack.c.b16 %v4859, %v4851
    %v5500 = vpack.c.b16 %v4860, %v4852
    %v5501 = vpack.c.b16 %v4861, %v4853
    %v5502 = vpack.c.b16 %v4862, %v4854
    %v5503 = vpack.c.b16 %v4871, %v4863
    %v5504 = vpack.c.b16 %v4872, %v4864
    %v5505 = vpack.c.b16 %v4873, %v4865
    %v5506 = vpack.c.b16 %v4874, %v4866
    %v5507 = vpack.c.b16 %v4875, %v4867
    %v5508 = vpack.c.b16 %v4876, %v4868
    %v5509 = vpack.c.b16 %v4877, %v4869
    %v5510 = vpack.c.b16 %v4878, %v4870
    %v5511 = vpack.c.b16 %v4887, %v4879
    %v5512 = vpack.c.b16 %v4888, %v4880
    %v5513 = vpack.c.b16 %v4889, %v4881
    %v5514 = vpack.c.b16 %v4890, %v4882
    %v5515 = vpack.c.b16 %v4891, %v4883
    %v5516 = vpack.c.b16 %v4892, %v4884
    %v5517 = vpack.c.b16 %v4893, %v4885
    %v5518 = vpack.c.b16 %v4894, %v4886
    %v5519 = vpack.c.b16 %v4903, %v4895
    %v5520 = vpack.c.b16 %v4904, %v4896
    %v5521 = vpack.c.b16 %v4905, %v4897
    %v5522 = vpack.c.b16 %v4906, %v4898
    %v5523 = vpack.c.b16 %v4907, %v4899
    %v5524 = vpack.c.b16 %v4908, %v4900
    %v5525 = vpack.c.b16 %v4909, %v4901
    %v5526 = vpack.c.b16 %v4910, %v4902
    %v5527 = vpack.c.b16 %v4919, %v4911
    %v5528 = vpack.c.b16 %v4920, %v4912
    %v5529 = vpack.c.b16 %v4921, %v4913
    %v5530 = vpack.c.b16 %v4922, %v4914
    %v5531 = vpack.c.b16 %v4923, %v4915
    %v5532 = vpack.c.b16 %v4924, %v4916
    %v5533 = vpack.c.b16 %v4925, %v4917
    %v5534 = vpack.c.b16 %v4926, %v4918
    %v5535 = vpack.c.b16 %v4935, %v4927
    %v5536 = vpack.c.b16 %v4936, %v4928
    %v5537 = vpack.c.b16 %v4937, %v4929
    %v5538 = vpack.c.b16 %v4938, %v4930
    %v5539 = vpack.c.b16 %v4939, %v4931
    %v5540 = vpack.c.b16 %v4940, %v4932
    %v5541 = vpack.c.b16 %v4941, %v4933
    %v5542 = vpack.c.b16 %v4942, %v4934
    %v5543 = vpack.c.b16 %v4951, %v4943
    %v5544 = vpack.c.b16 %v4952, %v4944
    %v5545 = vpack.c.b16 %v4953, %v4945
    %v5546 = vpack.c.b16 %v4954, %v4946
    %v5547 = vpack.c.b16 %v4955, %v4947
    %v5548 = vpack.c.b16 %v4956, %v4948
    %v5549 = vpack.c.b16 %v4957, %v4949
    %v5550 = vpack.c.b16 %v4958, %v4950
    %v5551 = vpack.c.b16 %v4967, %v4959
    %v5552 = vpack.c.b16 %v4968, %v4960
    %v5553 = vpack.c.b16 %v4969, %v4961
    %v5554 = vpack.c.b16 %v4970, %v4962
    %v5555 = vpack.c.b16 %v4971, %v4963
    %v5556 = vpack.c.b16 %v4972, %v4964
    %v5557 = vpack.c.b16 %v4973, %v4965
    %v5558 = vpack.c.b16 %v4974, %v4966
    %v5559 = vpack.c.b16 %v4983, %v4975
    %v5560 = vpack.c.b16 %v4984, %v4976
    %v5561 = vpack.c.b16 %v4985, %v4977
    %v5562 = vpack.c.b16 %v4986, %v4978
    %v5563 = vpack.c.b16 %v4987, %v4979
    %v5564 = vpack.c.b16 %v4988, %v4980
    %v5565 = vpack.c.b16 %v4989, %v4981
    %v5566 = vpack.c.b16 %v4990, %v4982
    %v5567 = vpack.c.b16 %v4999, %v4991
    %v5568 = vpack.c.b16 %v5000, %v4992
    %v5569 = vpack.c.b16 %v5001, %v4993
    %v5570 = vpack.c.b16 %v5002, %v4994
    %v5571 = vpack.c.b16 %v5003, %v4995
    %v5572 = vpack.c.b16 %v5004, %v4996
    %v5573 = vpack.c.b16 %v5005, %v4997
    %v5574 = vpack.c.b16 %v5006, %v4998
    %v5575 = vpack.c.b16 %v5015, %v5007
    %v5576 = vpack.c.b16 %v5016, %v5008
    %v5577 = vpack.c.b16 %v5017, %v5009
    %v5578 = vpack.c.b16 %v5018, %v5010
    %v5579 = vpack.c.b16 %v5019, %v5011
    %v5580 = vpack.c.b16 %v5020, %v5012
    %v5581 = vpack.c.b16 %v5021, %v5013
    %v5582 = vpack.c.b16 %v5022, %v5014
    %v5583 = vpack.c.b16 %v5031, %v5023
    %v5584 = vpack.c.b16 %v5032, %v5024
    %v5585 = vpack.c.b16 %v5033, %v5025
    %v5586 = vpack.c.b16 %v5034, %v5026
    %v5587 = vpack.c.b16 %v5035, %v5027
    %v5588 = vpack.c.b16 %v5036, %v5028
    %v5589 = vpack.c.b16 %v5037, %v5029
    %v5590 = vpack.c.b16 %v5038, %v5030
    %v5591 = vpack.c.b16 %v5047, %v5039
    %v5592 = vpack.c.b16 %v5048, %v5040
    %v5593 = vpack.c.b16 %v5049, %v5041
    %v5594 = vpack.c.b16 %v5050, %v5042
    %v5595 = vpack.c.b16 %v5051, %v5043
    %v5596 = vpack.c.b16 %v5052, %v5044
    %v5597 = vpack.c.b16 %v5053, %v5045
    %v5598 = vpack.c.b16 %v5054, %v5046
    %v5599 = vpack.c.b16 %v5063, %v5055
    %v5600 = vpack.c.b16 %v5064, %v5056
    %v5601 = vpack.c.b16 %v5065, %v5057
    %v5602 = vpack.c.b16 %v5066, %v5058
    %v5603 = vpack.c.b16 %v5067, %v5059
    %v5604 = vpack.c.b16 %v5068, %v5060
    %v5605 = vpack.c.b16 %v5069, %v5061
    %v5606 = vpack.c.b16 %v5070, %v5062
    %v5607 = vpack.c.b16 %v5079, %v5071
    %v5608 = vpack.c.b16 %v5080, %v5072
    %v5609 = vpack.c.b16 %v5081, %v5073
    %v5610 = vpack.c.b16 %v5082, %v5074
    %v5611 = vpack.c.b16 %v5083, %v5075
    %v5612 = vpack.c.b16 %v5084, %v5076
    %v5613 = vpack.c.b16 %v5085, %v5077
    %v5614 = vpack.c.b16 %v5086, %v5078
    %v5615 = vpack.c.b16 %v5095, %v5087
    %v5616 = vpack.c.b16 %v5096, %v5088
    %v5617 = vpack.c.b16 %v5097, %v5089
    %v5618 = vpack.c.b16 %v5098, %v5090
    %v5619 = vpack.c.b16 %v5099, %v5091
    %v5620 = vpack.c.b16 %v5100, %v5092
    %v5621 = vpack.c.b16 %v5101, %v5093
    %v5622 = vpack.c.b16 %v5102, %v5094
    %v5623 = vpack.c.b16 %v5111, %v5103
    %v5624 = vpack.c.b16 %v5112, %v5104
    %v5625 = vpack.c.b16 %v5113, %v5105
    %v5626 = vpack.c.b16 %v5114, %v5106
    %v5627 = vpack.c.b16 %v5115, %v5107
    %v5628 = vpack.c.b16 %v5116, %v5108
    %v5629 = vpack.c.b16 %v5117, %v5109
    %v5630 = vpack.c.b16 %v5118, %v5110
    %6143 = vmatprep.subr.bf16.mxu0 %v5120
    %6144 = vmatpush1.bf16.msra.mxu0 %v5119
    %6145 = vmatprep.subr.bf16.mxu0 %v5128
    %6146 = vmatpush1.bf16.msra.mxu0 %v5127
    %6147 = vmatprep.subr.bf16.mxu0 %v5136
    %6148 = vmatpush1.bf16.msra.mxu0 %v5135
    %6149 = vmatprep.subr.bf16.mxu0 %v5144
    %6150 = vmatpush1.bf16.msra.mxu0 %v5143
    %6151 = vmatprep.subr.bf16.mxu0 %v5152
    %6152 = vmatpush1.bf16.msra.mxu0 %v5151
    %6153 = vmatprep.subr.bf16.mxu0 %v5160
    %6154 = vmatpush1.bf16.msra.mxu0 %v5159
    %6155 = vmatprep.subr.bf16.mxu0 %v5168
    %6156 = vmatpush1.bf16.msra.mxu0 %v5167
    %6157 = vmatprep.subr.bf16.mxu0 %v5176
    %6158 = vmatpush1.bf16.msra.mxu0 %v5175
    %6159 = vmatprep.subr.bf16.mxu0 %v5184
    %6160 = vmatpush1.bf16.msra.mxu0 %v5183
    %6161 = vmatprep.subr.bf16.mxu0 %v5192
    %6162 = vmatpush1.bf16.msra.mxu0 %v5191
    %6163 = vmatprep.subr.bf16.mxu0 %v5200
    %6164 = vmatpush1.bf16.msra.mxu0 %v5199
    %6165 = vmatprep.subr.bf16.mxu0 %v5208
    %6166 = vmatpush1.bf16.msra.mxu0 %v5207
    %6167 = vmatprep.subr.bf16.mxu0 %v5216
    %6168 = vmatpush1.bf16.msra.mxu0 %v5215
    %6169 = vmatprep.subr.bf16.mxu0 %v5224
    %6170 = vmatpush1.bf16.msra.mxu0 %v5223
    %6171 = vmatprep.subr.bf16.mxu0 %v5232
    %6172 = vmatpush1.bf16.msra.mxu0 %v5231
    %6173 = vmatprep.subr.bf16.mxu0 %v5240
    %6174 = vmatpush1.bf16.msra.mxu0 %v5239
    %6175 = vmatprep.mubr.bf16.mxu0 %v3064
    %6176 = vmatmul.mubr.bf16.gmra.mrb[0].mxu0 %v3063
    %v6177 = vpop.f32.mrb[0].mxu0
    %v6178 = vadd.f32 0.0, %v6177
    %v6179 = vpop.f32.mrb[0].mxu0
    %v6180 = vadd.f32 0.0, %v6179
    %v6181 = vpop.f32.mrb[0].mxu0
    %v6182 = vpop.f32.mrb[0].mxu0
    %6183 = vdwg.mxu0
    %6184 = vmatprep.subr.bf16.mxu0 %v5248
    %6185 = vmatpush1.bf16.msra.mxu0 %v5247
    %6186 = vmatprep.subr.bf16.mxu0 %v5256
    %6187 = vmatpush1.bf16.msra.mxu0 %v5255
    %6188 = vmatprep.subr.bf16.mxu0 %v5264
    %6189 = vmatpush1.bf16.msra.mxu0 %v5263
    %6190 = vmatprep.subr.bf16.mxu0 %v5272
    %6191 = vmatpush1.bf16.msra.mxu0 %v5271
    %6192 = vmatprep.subr.bf16.mxu0 %v5280
    %6193 = vmatpush1.bf16.msra.mxu0 %v5279
    %6194 = vmatprep.subr.bf16.mxu0 %v5288
    %6195 = vmatpush1.bf16.msra.mxu0 %v5287
    %6196 = vmatprep.subr.bf16.mxu0 %v5296
    %6197 = vmatpush1.bf16.msra.mxu0 %v5295
    %6198 = vmatprep.subr.bf16.mxu0 %v5304
    %6199 = vmatpush1.bf16.msra.mxu0 %v5303
    %6200 = vmatprep.subr.bf16.mxu0 %v5312
    %6201 = vmatpush1.bf16.msra.mxu0 %v5311
    %6202 = vmatprep.subr.bf16.mxu0 %v5320
    %6203 = vmatpush1.bf16.msra.mxu0 %v5319
    %6204 = vmatprep.subr.bf16.mxu0 %v5328
    %6205 = vmatpush1.bf16.msra.mxu0 %v5327
    %6206 = vmatprep.subr.bf16.mxu0 %v5336
    %6207 = vmatpush1.bf16.msra.mxu0 %v5335
    %6208 = vmatprep.subr.bf16.mxu0 %v5344
    %6209 = vmatpush1.bf16.msra.mxu0 %v5343
    %6210 = vmatprep.subr.bf16.mxu0 %v5352
    %6211 = vmatpush1.bf16.msra.mxu0 %v5351
    %6212 = vmatprep.subr.bf16.mxu0 %v5360
    %6213 = vmatpush1.bf16.msra.mxu0 %v5359
    %6214 = vmatprep.subr.bf16.mxu0 %v5368
    %6215 = vmatpush1.bf16.msra.mxu0 %v5367
    %6216 = vmatprep.mubr.bf16.mxu0 %v3066
    %6217 = vmatmul.mubr.bf16.gmra.mrb[0].mxu0 %v3065
    %v6218 = vpop.f32.mrb[0].mxu0
    %v6219 = vadd.f32 %v6178, %v6218
    %v6220 = vpop.f32.mrb[0].mxu0
    %v6221 = vadd.f32 %v6180, %v6220
    %v6222 = vpop.f32.mrb[0].mxu0
    %v6223 = vpop.f32.mrb[0].mxu0
    %6224 = vdwg.mxu0
    %6225 = vmatprep.subr.bf16.mxu0 %v5376
    %6226 = vmatpush1.bf16.msra.mxu0 %v5375
    %6227 = vmatprep.subr.bf16.mxu0 %v5384
    %6228 = vmatpush1.bf16.msra.mxu0 %v5383
    %6229 = vmatprep.subr.bf16.mxu0 %v5392
    %6230 = vmatpush1.bf16.msra.mxu0 %v5391
    %6231 = vmatprep.subr.bf16.mxu0 %v5400
    %6232 = vmatpush1.bf16.msra.mxu0 %v5399
    %6233 = vmatprep.subr.bf16.mxu0 %v5408
    %6234 = vmatpush1.bf16.msra.mxu0 %v5407
    %6235 = vmatprep.subr.bf16.mxu0 %v5416
    %6236 = vmatpush1.bf16.msra.mxu0 %v5415
    %6237 = vmatprep.subr.bf16.mxu0 %v5424
    %6238 = vmatpush1.bf16.msra.mxu0 %v5423
    %6239 = vmatprep.subr.bf16.mxu0 %v5432
    %6240 = vmatpush1.bf16.msra.mxu0 %v5431
    %6241 = vmatprep.subr.bf16.mxu0 %v5440
    %6242 = vmatpush1.bf16.msra.mxu0 %v5439
    %6243 = vmatprep.subr.bf16.mxu0 %v5448
    %6244 = vmatpush1.bf16.msra.mxu0 %v5447
    %6245 = vmatprep.subr.bf16.mxu0 %v5456
    %6246 = vmatpush1.bf16.msra.mxu0 %v5455
    %6247 = vmatprep.subr.bf16.mxu0 %v5464
    %6248 = vmatpush1.bf16.msra.mxu0 %v5463
    %6249 = vmatprep.subr.bf16.mxu0 %v5472
    %6250 = vmatpush1.bf16.msra.mxu0 %v5471
    %6251 = vmatprep.subr.bf16.mxu0 %v5480
    %6252 = vmatpush1.bf16.msra.mxu0 %v5479
    %6253 = vmatprep.subr.bf16.mxu0 %v5488
    %6254 = vmatpush1.bf16.msra.mxu0 %v5487
    %6255 = vmatprep.subr.bf16.mxu0 %v5496
    %6256 = vmatpush1.bf16.msra.mxu0 %v5495
    %6257 = vmatprep.mubr.bf16.mxu0 %v3068
    %6258 = vmatmul.mubr.bf16.gmra.mrb[0].mxu0 %v3067
    %v6259 = vpop.f32.mrb[0].mxu0
    %v6260 = vadd.f32 %v6219, %v6259
    %v6261 = vpop.f32.mrb[0].mxu0
    %v6262 = vadd.f32 %v6221, %v6261
    %v6263 = vpop.f32.mrb[0].mxu0
    %v6264 = vpop.f32.mrb[0].mxu0
    %6265 = vdwg.mxu0
    %6266 = vmatprep.subr.bf16.mxu0 %v5504
    %6267 = vmatpush1.bf16.msra.mxu0 %v5503
    %6268 = vmatprep.subr.bf16.mxu0 %v5512
    %6269 = vmatpush1.bf16.msra.mxu0 %v5511
    %6270 = vmatprep.subr.bf16.mxu0 %v5520
    %6271 = vmatpush1.bf16.msra.mxu0 %v5519
    %6272 = vmatprep.subr.bf16.mxu0 %v5528
    %6273 = vmatpush1.bf16.msra.mxu0 %v5527
    %6274 = vmatprep.subr.bf16.mxu0 %v5536
    %6275 = vmatpush1.bf16.msra.mxu0 %v5535
    %6276 = vmatprep.subr.bf16.mxu0 %v5544
    %6277 = vmatpush1.bf16.msra.mxu0 %v5543
    %6278 = vmatprep.subr.bf16.mxu0 %v5552
    %6279 = vmatpush1.bf16.msra.mxu0 %v5551
    %6280 = vmatprep.subr.bf16.mxu0 %v5560
    %6281 = vmatpush1.bf16.msra.mxu0 %v5559
    %6282 = vmatprep.subr.bf16.mxu0 %v5568
    %6283 = vmatpush1.bf16.msra.mxu0 %v5567
    %6284 = vmatprep.subr.bf16.mxu0 %v5576
    %6285 = vmatpush1.bf16.msra.mxu0 %v5575
    %6286 = vmatprep.subr.bf16.mxu0 %v5584
    %6287 = vmatpush1.bf16.msra.mxu0 %v5583
    %6288 = vmatprep.subr.bf16.mxu0 %v5592
    %6289 = vmatpush1.bf16.msra.mxu0 %v5591
    %6290 = vmatprep.subr.bf16.mxu0 %v5600
    %6291 = vmatpush1.bf16.msra.mxu0 %v5599
    %6292 = vmatprep.subr.bf16.mxu0 %v5608
    %6293 = vmatpush1.bf16.msra.mxu0 %v5607
    %6294 = vmatprep.subr.bf16.mxu0 %v5616
    %6295 = vmatpush1.bf16.msra.mxu0 %v5615
    %6296 = vmatprep.subr.bf16.mxu0 %v5624
    %6297 = vmatpush1.bf16.msra.mxu0 %v5623
    %6298 = vmatprep.mubr.bf16.mxu0 %v3070
    %6299 = vmatmul.mubr.bf16.gmra.mrb[0].mxu0 %v3069
    %v6300 = vpop.f32.mrb[0].mxu0
    %v6301 = vadd.f32 %v6260, %v6300
    %v6302 = vpop.f32.mrb[0].mxu0
    %v6303 = vadd.f32 %v6262, %v6302
    %v6304 = vpop.f32.mrb[0].mxu0
    %v6305 = vpop.f32.mrb[0].mxu0
    %6306 = vdwg.mxu0
    %6307 = vmatprep.subr.bf16.mxu0 %v5122
    %6308 = vmatpush1.bf16.msra.mxu0 %v5121
    %6309 = vmatprep.subr.bf16.mxu0 %v5130
    %6310 = vmatpush1.bf16.msra.mxu0 %v5129
    %6311 = vmatprep.subr.bf16.mxu0 %v5138
    %6312 = vmatpush1.bf16.msra.mxu0 %v5137
    %6313 = vmatprep.subr.bf16.mxu0 %v5146
    %6314 = vmatpush1.bf16.msra.mxu0 %v5145
    %6315 = vmatprep.subr.bf16.mxu0 %v5154
    %6316 = vmatpush1.bf16.msra.mxu0 %v5153
    %6317 = vmatprep.subr.bf16.mxu0 %v5162
    %6318 = vmatpush1.bf16.msra.mxu0 %v5161
    %6319 = vmatprep.subr.bf16.mxu0 %v5170
    %6320 = vmatpush1.bf16.msra.mxu0 %v5169
    %6321 = vmatprep.subr.bf16.mxu0 %v5178
    %6322 = vmatpush1.bf16.msra.mxu0 %v5177
    %6323 = vmatprep.subr.bf16.mxu0 %v5186
    %6324 = vmatpush1.bf16.msra.mxu0 %v5185
    %6325 = vmatprep.subr.bf16.mxu0 %v5194
    %6326 = vmatpush1.bf16.msra.mxu0 %v5193
    %6327 = vmatprep.subr.bf16.mxu0 %v5202
    %6328 = vmatpush1.bf16.msra.mxu0 %v5201
    %6329 = vmatprep.subr.bf16.mxu0 %v5210
    %6330 = vmatpush1.bf16.msra.mxu0 %v5209
    %6331 = vmatprep.subr.bf16.mxu0 %v5218
    %6332 = vmatpush1.bf16.msra.mxu0 %v5217
    %6333 = vmatprep.subr.bf16.mxu0 %v5226
    %6334 = vmatpush1.bf16.msra.mxu0 %v5225
    %6335 = vmatprep.subr.bf16.mxu0 %v5234
    %6336 = vmatpush1.bf16.msra.mxu0 %v5233
    %6337 = vmatprep.subr.bf16.mxu0 %v5242
    %6338 = vmatpush1.bf16.msra.mxu0 %v5241
    %6339 = vmatprep.mubr.bf16.mxu0 %v3064
    %6340 = vmatmul.mubr.bf16.gmra.mrb[0].mxu0 %v3063
    %v6341 = vpop.f32.mrb[0].mxu0
    %v6342 = vadd.f32 0.0, %v6341
    %v6343 = vpop.f32.mrb[0].mxu0
    %v6344 = vadd.f32 0.0, %v6343
    %v6345 = vpop.f32.mrb[0].mxu0
    %v6346 = vpop.f32.mrb[0].mxu0
    %6347 = vdwg.mxu0
    %6348 = vmatprep.subr.bf16.mxu0 %v5250
    %6349 = vmatpush1.bf16.msra.mxu0 %v5249
    %6350 = vmatprep.subr.bf16.mxu0 %v5258
    %6351 = vmatpush1.bf16.msra.mxu0 %v5257
    %6352 = vmatprep.subr.bf16.mxu0 %v5266
    %6353 = vmatpush1.bf16.msra.mxu0 %v5265
    %6354 = vmatprep.subr.bf16.mxu0 %v5274
    %6355 = vmatpush1.bf16.msra.mxu0 %v5273
    %6356 = vmatprep.subr.bf16.mxu0 %v5282
    %6357 = vmatpush1.bf16.msra.mxu0 %v5281
    %6358 = vmatprep.subr.bf16.mxu0 %v5290
    %6359 = vmatpush1.bf16.msra.mxu0 %v5289
    %6360 = vmatprep.subr.bf16.mxu0 %v5298
    %6361 = vmatpush1.bf16.msra.mxu0 %v5297
    %6362 = vmatprep.subr.bf16.mxu0 %v5306
    %6363 = vmatpush1.bf16.msra.mxu0 %v5305
    %6364 = vmatprep.subr.bf16.mxu0 %v5314
    %6365 = vmatpush1.bf16.msra.mxu0 %v5313
    %6366 = vmatprep.subr.bf16.mxu0 %v5322
    %6367 = vmatpush1.bf16.msra.mxu0 %v5321
    %6368 = vmatprep.subr.bf16.mxu0 %v5330
    %6369 = vmatpush1.bf16.msra.mxu0 %v5329
    %6370 = vmatprep.subr.bf16.mxu0 %v5338
    %6371 = vmatpush1.bf16.msra.mxu0 %v5337
    %6372 = vmatprep.subr.bf16.mxu0 %v5346
    %6373 = vmatpush1.bf16.msra.mxu0 %v5345
    %6374 = vmatprep.subr.bf16.mxu0 %v5354
    %6375 = vmatpush1.bf16.msra.mxu0 %v5353
    %6376 = vmatprep.subr.bf16.mxu0 %v5362
    %6377 = vmatpush1.bf16.msra.mxu0 %v5361
    %6378 = vmatprep.subr.bf16.mxu0 %v5370
    %6379 = vmatpush1.bf16.msra.mxu0 %v5369
    %6380 = vmatprep.mubr.bf16.mxu0 %v3066
    %6381 = vmatmul.mubr.bf16.gmra.mrb[0].mxu0 %v3065
    %v6382 = vpop.f32.mrb[0].mxu0
    %v6383 = vadd.f32 %v6342, %v6382
    %v6384 = vpop.f32.mrb[0].mxu0
    %v6385 = vadd.f32 %v6344, %v6384
    %v6386 = vpop.f32.mrb[0].mxu0
    %v6387 = vpop.f32.mrb[0].mxu0
    %6388 = vdwg.mxu0
    %6389 = vmatprep.subr.bf16.mxu0 %v5378
    %6390 = vmatpush1.bf16.msra.mxu0 %v5377
    %6391 = vmatprep.subr.bf16.mxu0 %v5386
    %6392 = vmatpush1.bf16.msra.mxu0 %v5385
    %6393 = vmatprep.subr.bf16.mxu0 %v5394
    %6394 = vmatpush1.bf16.msra.mxu0 %v5393
    %6395 = vmatprep.subr.bf16.mxu0 %v5402
    %6396 = vmatpush1.bf16.msra.mxu0 %v5401
    %6397 = vmatprep.subr.bf16.mxu0 %v5410
    %6398 = vmatpush1.bf16.msra.mxu0 %v5409
    %6399 = vmatprep.subr.bf16.mxu0 %v5418
    %6400 = vmatpush1.bf16.msra.mxu0 %v5417
    %6401 = vmatprep.subr.bf16.mxu0 %v5426
    %6402 = vmatpush1.bf16.msra.mxu0 %v5425
    %6403 = vmatprep.subr.bf16.mxu0 %v5434
    %6404 = vmatpush1.bf16.msra.mxu0 %v5433
    %6405 = vmatprep.subr.bf16.mxu0 %v5442
    %6406 = vmatpush1.bf16.msra.mxu0 %v5441
    %6407 = vmatprep.subr.bf16.mxu0 %v5450
    %6408 = vmatpush1.bf16.msra.mxu0 %v5449
    %6409 = vmatprep.subr.bf16.mxu0 %v5458
    %6410 = vmatpush1.bf16.msra.mxu0 %v5457
    %6411 = vmatprep.subr.bf16.mxu0 %v5466
    %6412 = vmatpush1.bf16.msra.mxu0 %v5465
    %6413 = vmatprep.subr.bf16.mxu0 %v5474
    %6414 = vmatpush1.bf16.msra.mxu0 %v5473
    %6415 = vmatprep.subr.bf16.mxu0 %v5482
    %6416 = vmatpush1.bf16.msra.mxu0 %v5481
    %6417 = vmatprep.subr.bf16.mxu0 %v5490
    %6418 = vmatpush1.bf16.msra.mxu0 %v5489
    %6419 = vmatprep.subr.bf16.mxu0 %v5498
    %6420 = vmatpush1.bf16.msra.mxu0 %v5497
    %6421 = vmatprep.mubr.bf16.mxu0 %v3068
    %6422 = vmatmul.mubr.bf16.gmra.mrb[0].mxu0 %v3067
    %v6423 = vpop.f32.mrb[0].mxu0
    %v6424 = vadd.f32 %v6383, %v6423
    %v6425 = vpop.f32.mrb[0].mxu0
    %v6426 = vadd.f32 %v6385, %v6425
    %v6427 = vpop.f32.mrb[0].mxu0
    %v6428 = vpop.f32.mrb[0].mxu0
    %6429 = vdwg.mxu0
    %6430 = vmatprep.subr.bf16.mxu0 %v5506
    %6431 = vmatpush1.bf16.msra.mxu0 %v5505
    %6432 = vmatprep.subr.bf16.mxu0 %v5514
    %6433 = vmatpush1.bf16.msra.mxu0 %v5513
    %6434 = vmatprep.subr.bf16.mxu0 %v5522
    %6435 = vmatpush1.bf16.msra.mxu0 %v5521
    %6436 = vmatprep.subr.bf16.mxu0 %v5530
    %6437 = vmatpush1.bf16.msra.mxu0 %v5529
    %6438 = vmatprep.subr.bf16.mxu0 %v5538
    %6439 = vmatpush1.bf16.msra.mxu0 %v5537
    %6440 = vmatprep.subr.bf16.mxu0 %v5546
    %6441 = vmatpush1.bf16.msra.mxu0 %v5545
    %6442 = vmatprep.subr.bf16.mxu0 %v5554
    %6443 = vmatpush1.bf16.msra.mxu0 %v5553
    %6444 = vmatprep.subr.bf16.mxu0 %v5562
    %6445 = vmatpush1.bf16.msra.mxu0 %v5561
    %6446 = vmatprep.subr.bf16.mxu0 %v5570
    %6447 = vmatpush1.bf16.msra.mxu0 %v5569
    %6448 = vmatprep.subr.bf16.mxu0 %v5578
    %6449 = vmatpush1.bf16.msra.mxu0 %v5577
    %6450 = vmatprep.subr.bf16.mxu0 %v5586
    %6451 = vmatpush1.bf16.msra.mxu0 %v5585
    %6452 = vmatprep.subr.bf16.mxu0 %v5594
    %6453 = vmatpush1.bf16.msra.mxu0 %v5593
    %6454 = vmatprep.subr.bf16.mxu0 %v5602
    %6455 = vmatpush1.bf16.msra.mxu0 %v5601
    %6456 = vmatprep.subr.bf16.mxu0 %v5610
    %6457 = vmatpush1.bf16.msra.mxu0 %v5609
    %6458 = vmatprep.subr.bf16.mxu0 %v5618
    %6459 = vmatpush1.bf16.msra.mxu0 %v5617
    %6460 = vmatprep.subr.bf16.mxu0 %v5626
    %6461 = vmatpush1.bf16.msra.mxu0 %v5625
    %6462 = vmatprep.mubr.bf16.mxu0 %v3070
    %6463 = vmatmul.mubr.bf16.gmra.mrb[0].mxu0 %v3069
    %v6464 = vpop.f32.mrb[0].mxu0
    %v6465 = vadd.f32 %v6424, %v6464
    %v6466 = vpop.f32.mrb[0].mxu0
    %v6467 = vadd.f32 %v6426, %v6466
    %v6468 = vpop.f32.mrb[0].mxu0
    %v6469 = vpop.f32.mrb[0].mxu0
    %6470 = vdwg.mxu0
    %6471 = vmatprep.subr.bf16.mxu0 %v5124
    %6472 = vmatpush1.bf16.msra.mxu0 %v5123
    %6473 = vmatprep.subr.bf16.mxu0 %v5132
    %6474 = vmatpush1.bf16.msra.mxu0 %v5131
    %6475 = vmatprep.subr.bf16.mxu0 %v5140
    %6476 = vmatpush1.bf16.msra.mxu0 %v5139
    %6477 = vmatprep.subr.bf16.mxu0 %v5148
    %6478 = vmatpush1.bf16.msra.mxu0 %v5147
    %6479 = vmatprep.subr.bf16.mxu0 %v5156
    %6480 = vmatpush1.bf16.msra.mxu0 %v5155
    %6481 = vmatprep.subr.bf16.mxu0 %v5164
    %6482 = vmatpush1.bf16.msra.mxu0 %v5163
    %6483 = vmatprep.subr.bf16.mxu0 %v5172
    %6484 = vmatpush1.bf16.msra.mxu0 %v5171
    %6485 = vmatprep.subr.bf16.mxu0 %v5180
    %6486 = vmatpush1.bf16.msra.mxu0 %v5179
    %6487 = vmatprep.subr.bf16.mxu0 %v5188
    %6488 = vmatpush1.bf16.msra.mxu0 %v5187
    %6489 = vmatprep.subr.bf16.mxu0 %v5196
    %6490 = vmatpush1.bf16.msra.mxu0 %v5195
    %6491 = vmatprep.subr.bf16.mxu0 %v5204
    %6492 = vmatpush1.bf16.msra.mxu0 %v5203
    %6493 = vmatprep.subr.bf16.mxu0 %v5212
    %6494 = vmatpush1.bf16.msra.mxu0 %v5211
    %6495 = vmatprep.subr.bf16.mxu0 %v5220
    %6496 = vmatpush1.bf16.msra.mxu0 %v5219
    %6497 = vmatprep.subr.bf16.mxu0 %v5228
    %6498 = vmatpush1.bf16.msra.mxu0 %v5227
    %6499 = vmatprep.subr.bf16.mxu0 %v5236
    %6500 = vmatpush1.bf16.msra.mxu0 %v5235
    %6501 = vmatprep.subr.bf16.mxu0 %v5244
    %6502 = vmatpush1.bf16.msra.mxu0 %v5243
    %6503 = vmatprep.mubr.bf16.mxu0 %v3064
    %6504 = vmatmul.mubr.bf16.gmra.mrb[0].mxu0 %v3063
    %v6505 = vpop.f32.mrb[0].mxu0
    %v6506 = vadd.f32 0.0, %v6505
    %v6507 = vpop.f32.mrb[0].mxu0
    %v6508 = vadd.f32 0.0, %v6507
    %v6509 = vpop.f32.mrb[0].mxu0
    %v6510 = vpop.f32.mrb[0].mxu0
    %6511 = vdwg.mxu0
    %6512 = vmatprep.subr.bf16.mxu0 %v5252
    %6513 = vmatpush1.bf16.msra.mxu0 %v5251
    %6514 = vmatprep.subr.bf16.mxu0 %v5260
    %6515 = vmatpush1.bf16.msra.mxu0 %v5259
    %6516 = vmatprep.subr.bf16.mxu0 %v5268
    %6517 = vmatpush1.bf16.msra.mxu0 %v5267
    %6518 = vmatprep.subr.bf16.mxu0 %v5276
    %6519 = vmatpush1.bf16.msra.mxu0 %v5275
    %6520 = vmatprep.subr.bf16.mxu0 %v5284
    %6521 = vmatpush1.bf16.msra.mxu0 %v5283
    %6522 = vmatprep.subr.bf16.mxu0 %v5292
    %6523 = vmatpush1.bf16.msra.mxu0 %v5291
    %6524 = vmatprep.subr.bf16.mxu0 %v5300
    %6525 = vmatpush1.bf16.msra.mxu0 %v5299
    %6526 = vmatprep.subr.bf16.mxu0 %v5308
    %6527 = vmatpush1.bf16.msra.mxu0 %v5307
    %6528 = vmatprep.subr.bf16.mxu0 %v5316
    %6529 = vmatpush1.bf16.msra.mxu0 %v5315
    %6530 = vmatprep.subr.bf16.mxu0 %v5324
    %6531 = vmatpush1.bf16.msra.mxu0 %v5323
    %6532 = vmatprep.subr.bf16.mxu0 %v5332
    %6533 = vmatpush1.bf16.msra.mxu0 %v5331
    %6534 = vmatprep.subr.bf16.mxu0 %v5340
    %6535 = vmatpush1.bf16.msra.mxu0 %v5339
    %6536 = vmatprep.subr.bf16.mxu0 %v5348
    %6537 = vmatpush1.bf16.msra.mxu0 %v5347
    %6538 = vmatprep.subr.bf16.mxu0 %v5356
    %6539 = vmatpush1.bf16.msra.mxu0 %v5355
    %6540 = vmatprep.subr.bf16.mxu0 %v5364
    %6541 = vmatpush1.bf16.msra.mxu0 %v5363
    %6542 = vmatprep.subr.bf16.mxu0 %v5372
    %6543 = vmatpush1.bf16.msra.mxu0 %v5371
    %6544 = vmatprep.mubr.bf16.mxu0 %v3066
    %6545 = vmatmul.mubr.bf16.gmra.mrb[0].mxu0 %v3065
    %v6546 = vpop.f32.mrb[0].mxu0
    %v6547 = vadd.f32 %v6506, %v6546
    %v6548 = vpop.f32.mrb[0].mxu0
    %v6549 = vadd.f32 %v6508, %v6548
    %v6550 = vpop.f32.mrb[0].mxu0
    %v6551 = vpop.f32.mrb[0].mxu0
    %6552 = vdwg.mxu0
    %6553 = vmatprep.subr.bf16.mxu0 %v5380
    %6554 = vmatpush1.bf16.msra.mxu0 %v5379
    %6555 = vmatprep.subr.bf16.mxu0 %v5388
    %6556 = vmatpush1.bf16.msra.mxu0 %v5387
    %6557 = vmatprep.subr.bf16.mxu0 %v5396
    %6558 = vmatpush1.bf16.msra.mxu0 %v5395
    %6559 = vmatprep.subr.bf16.mxu0 %v5404
    %6560 = vmatpush1.bf16.msra.mxu0 %v5403
    %6561 = vmatprep.subr.bf16.mxu0 %v5412
    %6562 = vmatpush1.bf16.msra.mxu0 %v5411
    %6563 = vmatprep.subr.bf16.mxu0 %v5420
    %6564 = vmatpush1.bf16.msra.mxu0 %v5419
    %6565 = vmatprep.subr.bf16.mxu0 %v5428
    %6566 = vmatpush1.bf16.msra.mxu0 %v5427
    %6567 = vmatprep.subr.bf16.mxu0 %v5436
    %6568 = vmatpush1.bf16.msra.mxu0 %v5435
    %6569 = vmatprep.subr.bf16.mxu0 %v5444
    %6570 = vmatpush1.bf16.msra.mxu0 %v5443
    %6571 = vmatprep.subr.bf16.mxu0 %v5452
    %6572 = vmatpush1.bf16.msra.mxu0 %v5451
    %6573 = vmatprep.subr.bf16.mxu0 %v5460
    %6574 = vmatpush1.bf16.msra.mxu0 %v5459
    %6575 = vmatprep.subr.bf16.mxu0 %v5468
    %6576 = vmatpush1.bf16.msra.mxu0 %v5467
    %6577 = vmatprep.subr.bf16.mxu0 %v5476
    %6578 = vmatpush1.bf16.msra.mxu0 %v5475
    %6579 = vmatprep.subr.bf16.mxu0 %v5484
    %6580 = vmatpush1.bf16.msra.mxu0 %v5483
    %6581 = vmatprep.subr.bf16.mxu0 %v5492
    %6582 = vmatpush1.bf16.msra.mxu0 %v5491
    %6583 = vmatprep.subr.bf16.mxu0 %v5500
    %6584 = vmatpush1.bf16.msra.mxu0 %v5499
    %6585 = vmatprep.mubr.bf16.mxu0 %v3068
    %6586 = vmatmul.mubr.bf16.gmra.mrb[0].mxu0 %v3067
    %v6587 = vpop.f32.mrb[0].mxu0
    %v6588 = vadd.f32 %v6547, %v6587
    %v6589 = vpop.f32.mrb[0].mxu0
    %v6590 = vadd.f32 %v6549, %v6589
    %v6591 = vpop.f32.mrb[0].mxu0
    %v6592 = vpop.f32.mrb[0].mxu0
    %6593 = vdwg.mxu0
    %6594 = vmatprep.subr.bf16.mxu0 %v5508
    %6595 = vmatpush1.bf16.msra.mxu0 %v5507
    %6596 = vmatprep.subr.bf16.mxu0 %v5516
    %6597 = vmatpush1.bf16.msra.mxu0 %v5515
    %6598 = vmatprep.subr.bf16.mxu0 %v5524
    %6599 = vmatpush1.bf16.msra.mxu0 %v5523
    %6600 = vmatprep.subr.bf16.mxu0 %v5532
    %6601 = vmatpush1.bf16.msra.mxu0 %v5531
    %6602 = vmatprep.subr.bf16.mxu0 %v5540
    %6603 = vmatpush1.bf16.msra.mxu0 %v5539
    %6604 = vmatprep.subr.bf16.mxu0 %v5548
    %6605 = vmatpush1.bf16.msra.mxu0 %v5547
    %6606 = vmatprep.subr.bf16.mxu0 %v5556
    %6607 = vmatpush1.bf16.msra.mxu0 %v5555
    %6608 = vmatprep.subr.bf16.mxu0 %v5564
    %6609 = vmatpush1.bf16.msra.mxu0 %v5563
    %6610 = vmatprep.subr.bf16.mxu0 %v5572
    %6611 = vmatpush1.bf16.msra.mxu0 %v5571
    %6612 = vmatprep.subr.bf16.mxu0 %v5580
    %6613 = vmatpush1.bf16.msra.mxu0 %v5579
    %6614 = vmatprep.subr.bf16.mxu0 %v5588
    %6615 = vmatpush1.bf16.msra.mxu0 %v5587
    %6616 = vmatprep.subr.bf16.mxu0 %v5596
    %6617 = vmatpush1.bf16.msra.mxu0 %v5595
    %6618 = vmatprep.subr.bf16.mxu0 %v5604
    %6619 = vmatpush1.bf16.msra.mxu0 %v5603
    %6620 = vmatprep.subr.bf16.mxu0 %v5612
    %6621 = vmatpush1.bf16.msra.mxu0 %v5611
    %6622 = vmatprep.subr.bf16.mxu0 %v5620
    %6623 = vmatpush1.bf16.msra.mxu0 %v5619
    %6624 = vmatprep.subr.bf16.mxu0 %v5628
    %6625 = vmatpush1.bf16.msra.mxu0 %v5627
    %6626 = vmatprep.mubr.bf16.mxu0 %v3070
    %6627 = vmatmul.mubr.bf16.gmra.mrb[0].mxu0 %v3069
    %v6628 = vpop.f32.mrb[0].mxu0
    %v6629 = vadd.f32 %v6588, %v6628
    %v6630 = vpop.f32.mrb[0].mxu0
    %v6631 = vadd.f32 %v6590, %v6630
    %v6632 = vpop.f32.mrb[0].mxu0
    %v6633 = vpop.f32.mrb[0].mxu0
    %6634 = vdwg.mxu0
    %6635 = vmatprep.subr.bf16.mxu0 %v5126
    %6636 = vmatpush1.bf16.msra.mxu0 %v5125
    %6637 = vmatprep.subr.bf16.mxu0 %v5134
    %6638 = vmatpush1.bf16.msra.mxu0 %v5133
    %6639 = vmatprep.subr.bf16.mxu0 %v5142
    %6640 = vmatpush1.bf16.msra.mxu0 %v5141
    %6641 = vmatprep.subr.bf16.mxu0 %v5150
    %6642 = vmatpush1.bf16.msra.mxu0 %v5149
    %6643 = vmatprep.subr.bf16.mxu0 %v5158
    %6644 = vmatpush1.bf16.msra.mxu0 %v5157
    %6645 = vmatprep.subr.bf16.mxu0 %v5166
    %6646 = vmatpush1.bf16.msra.mxu0 %v5165
    %6647 = vmatprep.subr.bf16.mxu0 %v5174
    %6648 = vmatpush1.bf16.msra.mxu0 %v5173
    %6649 = vmatprep.subr.bf16.mxu0 %v5182
    %6650 = vmatpush1.bf16.msra.mxu0 %v5181
    %6651 = vmatprep.subr.bf16.mxu0 %v5190
    %6652 = vmatpush1.bf16.msra.mxu0 %v5189
    %6653 = vmatprep.subr.bf16.mxu0 %v5198
    %6654 = vmatpush1.bf16.msra.mxu0 %v5197
    %6655 = vmatprep.subr.bf16.mxu0 %v5206
    %6656 = vmatpush1.bf16.msra.mxu0 %v5205
    %6657 = vmatprep.subr.bf16.mxu0 %v5214
    %6658 = vmatpush1.bf16.msra.mxu0 %v5213
    %6659 = vmatprep.subr.bf16.mxu0 %v5222
    %6660 = vmatpush1.bf16.msra.mxu0 %v5221
    %6661 = vmatprep.subr.bf16.mxu0 %v5230
    %6662 = vmatpush1.bf16.msra.mxu0 %v5229
    %6663 = vmatprep.subr.bf16.mxu0 %v5238
    %6664 = vmatpush1.bf16.msra.mxu0 %v5237
    %6665 = vmatprep.subr.bf16.mxu0 %v5246
    %6666 = vmatpush1.bf16.msra.mxu0 %v5245
    %6667 = vmatprep.mubr.bf16.mxu0 %v3064
    %6668 = vmatmul.mubr.bf16.gmra.mrb[0].mxu0 %v3063
    %v6669 = vpop.f32.mrb[0].mxu0
    %v6670 = vadd.f32 0.0, %v6669
    %v6671 = vpop.f32.mrb[0].mxu0
    %v6672 = vadd.f32 0.0, %v6671
    %v6673 = vpop.f32.mrb[0].mxu0
    %v6674 = vpop.f32.mrb[0].mxu0
    %6675 = vdwg.mxu0
    %6676 = vmatprep.subr.bf16.mxu0 %v5254
    %6677 = vmatpush1.bf16.msra.mxu0 %v5253
    %6678 = vmatprep.subr.bf16.mxu0 %v5262
    %6679 = vmatpush1.bf16.msra.mxu0 %v5261
    %6680 = vmatprep.subr.bf16.mxu0 %v5270
    %6681 = vmatpush1.bf16.msra.mxu0 %v5269
    %6682 = vmatprep.subr.bf16.mxu0 %v5278
    %6683 = vmatpush1.bf16.msra.mxu0 %v5277
    %6684 = vmatprep.subr.bf16.mxu0 %v5286
    %6685 = vmatpush1.bf16.msra.mxu0 %v5285
    %6686 = vmatprep.subr.bf16.mxu0 %v5294
    %6687 = vmatpush1.bf16.msra.mxu0 %v5293
    %6688 = vmatprep.subr.bf16.mxu0 %v5302
    %6689 = vmatpush1.bf16.msra.mxu0 %v5301
    %6690 = vmatprep.subr.bf16.mxu0 %v5310
    %6691 = vmatpush1.bf16.msra.mxu0 %v5309
    %6692 = vmatprep.subr.bf16.mxu0 %v5318
    %6693 = vmatpush1.bf16.msra.mxu0 %v5317
    %6694 = vmatprep.subr.bf16.mxu0 %v5326
    %6695 = vmatpush1.bf16.msra.mxu0 %v5325
    %6696 = vmatprep.subr.bf16.mxu0 %v5334
    %6697 = vmatpush1.bf16.msra.mxu0 %v5333
    %6698 = vmatprep.subr.bf16.mxu0 %v5342
    %6699 = vmatpush1.bf16.msra.mxu0 %v5341
    %6700 = vmatprep.subr.bf16.mxu0 %v5350
    %6701 = vmatpush1.bf16.msra.mxu0 %v5349
    %6702 = vmatprep.subr.bf16.mxu0 %v5358
    %6703 = vmatpush1.bf16.msra.mxu0 %v5357
    %6704 = vmatprep.subr.bf16.mxu0 %v5366
    %6705 = vmatpush1.bf16.msra.mxu0 %v5365
    %6706 = vmatprep.subr.bf16.mxu0 %v5374
    %6707 = vmatpush1.bf16.msra.mxu0 %v5373
    %6708 = vmatprep.mubr.bf16.mxu0 %v3066
    %6709 = vmatmul.mubr.bf16.gmra.mrb[0].mxu0 %v3065
    %v6710 = vpop.f32.mrb[0].mxu0
    %v6711 = vadd.f32 %v6670, %v6710
    %v6712 = vpop.f32.mrb[0].mxu0
    %v6713 = vadd.f32 %v6672, %v6712
    %v6714 = vpop.f32.mrb[0].mxu0
    %v6715 = vpop.f32.mrb[0].mxu0
    %6716 = vdwg.mxu0
    %6717 = vmatprep.subr.bf16.mxu0 %v5382
    %6718 = vmatpush1.bf16.msra.mxu0 %v5381
    %6719 = vmatprep.subr.bf16.mxu0 %v5390
    %6720 = vmatpush1.bf16.msra.mxu0 %v5389
    %6721 = vmatprep.subr.bf16.mxu0 %v5398
    %6722 = vmatpush1.bf16.msra.mxu0 %v5397
    %6723 = vmatprep.subr.bf16.mxu0 %v5406
    %6724 = vmatpush1.bf16.msra.mxu0 %v5405
    %6725 = vmatprep.subr.bf16.mxu0 %v5414
    %6726 = vmatpush1.bf16.msra.mxu0 %v5413
    %6727 = vmatprep.subr.bf16.mxu0 %v5422
    %6728 = vmatpush1.bf16.msra.mxu0 %v5421
    %6729 = vmatprep.subr.bf16.mxu0 %v5430
    %6730 = vmatpush1.bf16.msra.mxu0 %v5429
    %6731 = vmatprep.subr.bf16.mxu0 %v5438
    %6732 = vmatpush1.bf16.msra.mxu0 %v5437
    %6733 = vmatprep.subr.bf16.mxu0 %v5446
    %6734 = vmatpush1.bf16.msra.mxu0 %v5445
    %6735 = vmatprep.subr.bf16.mxu0 %v5454
    %6736 = vmatpush1.bf16.msra.mxu0 %v5453
    %6737 = vmatprep.subr.bf16.mxu0 %v5462
    %6738 = vmatpush1.bf16.msra.mxu0 %v5461
    %6739 = vmatprep.subr.bf16.mxu0 %v5470
    %6740 = vmatpush1.bf16.msra.mxu0 %v5469
    %6741 = vmatprep.subr.bf16.mxu0 %v5478
    %6742 = vmatpush1.bf16.msra.mxu0 %v5477
    %6743 = vmatprep.subr.bf16.mxu0 %v5486
    %6744 = vmatpush1.bf16.msra.mxu0 %v5485
    %6745 = vmatprep.subr.bf16.mxu0 %v5494
    %6746 = vmatpush1.bf16.msra.mxu0 %v5493
    %6747 = vmatprep.subr.bf16.mxu0 %v5502
    %6748 = vmatpush1.bf16.msra.mxu0 %v5501
    %6749 = vmatprep.mubr.bf16.mxu0 %v3068
    %6750 = vmatmul.mubr.bf16.gmra.mrb[0].mxu0 %v3067
    %v6751 = vpop.f32.mrb[0].mxu0
    %v6752 = vadd.f32 %v6711, %v6751
    %v6753 = vpop.f32.mrb[0].mxu0
    %v6754 = vadd.f32 %v6713, %v6753
    %v6755 = vpop.f32.mrb[0].mxu0
    %v6756 = vpop.f32.mrb[0].mxu0
    %6757 = vdwg.mxu0
    %6758 = vmatprep.subr.bf16.mxu0 %v5510
    %6759 = vmatpush1.bf16.msra.mxu0 %v5509
    %6760 = vmatprep.subr.bf16.mxu0 %v5518
    %6761 = vmatpush1.bf16.msra.mxu0 %v5517
    %6762 = vmatprep.subr.bf16.mxu0 %v5526
    %6763 = vmatpush1.bf16.msra.mxu0 %v5525
    %6764 = vmatprep.subr.bf16.mxu0 %v5534
    %6765 = vmatpush1.bf16.msra.mxu0 %v5533
    %6766 = vmatprep.subr.bf16.mxu0 %v5542
    %6767 = vmatpush1.bf16.msra.mxu0 %v5541
    %6768 = vmatprep.subr.bf16.mxu0 %v5550
    %6769 = vmatpush1.bf16.msra.mxu0 %v5549
    %6770 = vmatprep.subr.bf16.mxu0 %v5558
    %6771 = vmatpush1.bf16.msra.mxu0 %v5557
    %6772 = vmatprep.subr.bf16.mxu0 %v5566
    %6773 = vmatpush1.bf16.msra.mxu0 %v5565
    %6774 = vmatprep.subr.bf16.mxu0 %v5574
    %6775 = vmatpush1.bf16.msra.mxu0 %v5573
    %6776 = vmatprep.subr.bf16.mxu0 %v5582
    %6777 = vmatpush1.bf16.msra.mxu0 %v5581
    %6778 = vmatprep.subr.bf16.mxu0 %v5590
    %6779 = vmatpush1.bf16.msra.mxu0 %v5589
    %6780 = vmatprep.subr.bf16.mxu0 %v5598
    %6781 = vmatpush1.bf16.msra.mxu0 %v5597
    %6782 = vmatprep.subr.bf16.mxu0 %v5606
    %6783 = vmatpush1.bf16.msra.mxu0 %v5605
    %6784 = vmatprep.subr.bf16.mxu0 %v5614
    %6785 = vmatpush1.bf16.msra.mxu0 %v5613
    %6786 = vmatprep.subr.bf16.mxu0 %v5622
    %6787 = vmatpush1.bf16.msra.mxu0 %v5621
    %6788 = vmatprep.subr.bf16.mxu0 %v5630
    %6789 = vmatpush1.bf16.msra.mxu0 %v5629
    %6790 = vmatprep.mubr.bf16.mxu0 %v3070
    %6791 = vmatmul.mubr.bf16.gmra.mrb[0].mxu0 %v3069
    %v6792 = vpop.f32.mrb[0].mxu0
    %v6793 = vadd.f32 %v6752, %v6792
    %v6794 = vpop.f32.mrb[0].mxu0
    %v6795 = vadd.f32 %v6754, %v6794
    %v6796 = vpop.f32.mrb[0].mxu0
    %v6797 = vpop.f32.mrb[0].mxu0
    %6798 = vdwg.mxu0
    %v6799 = vld [vmem:[#allocation16] sm:$0xff]
    %v6800 = vld [vmem:[#allocation17] sm:$0xff]
    %v6801 = vrot.slane %v6301, 4
    %v6802 = vadd.f32 %v6301, %v6801
    %v6803 = vrot.slane %v6802, 2
    %v6804 = vadd.f32 %v6802, %v6803
    %v6805 = vrot.slane %v6804, 1
    %v6806 = vadd.f32 %v6804, %v6805
    %v6807 = vrot.slane %v6303, 4
    %v6808 = vadd.f32 %v6303, %v6807
    %v6809 = vrot.slane %v6808, 2
    %v6810 = vadd.f32 %v6808, %v6809
    %v6811 = vrot.slane %v6810, 1
    %v6812 = vadd.f32 %v6810, %v6811
    %v6813 = vrot.slane %v6465, 4
    %v6814 = vadd.f32 %v6465, %v6813
    %v6815 = vrot.slane %v6814, 2
    %v6816 = vadd.f32 %v6814, %v6815
    %v6817 = vrot.slane %v6816, 1
    %v6818 = vadd.f32 %v6816, %v6817
    %v6819 = vrot.slane %v6467, 4
    %v6820 = vadd.f32 %v6467, %v6819
    %v6821 = vrot.slane %v6820, 2
    %v6822 = vadd.f32 %v6820, %v6821
    %v6823 = vrot.slane %v6822, 1
    %v6824 = vadd.f32 %v6822, %v6823
    %v6825 = vrot.slane %v6629, 4
    %v6826 = vadd.f32 %v6629, %v6825
    %v6827 = vrot.slane %v6826, 2
    %v6828 = vadd.f32 %v6826, %v6827
    %v6829 = vrot.slane %v6828, 1
    %v6830 = vadd.f32 %v6828, %v6829
    %v6831 = vrot.slane %v6631, 4
    %v6832 = vadd.f32 %v6631, %v6831
    %v6833 = vrot.slane %v6832, 2
    %v6834 = vadd.f32 %v6832, %v6833
    %v6835 = vrot.slane %v6834, 1
    %v6836 = vadd.f32 %v6834, %v6835
    %v6837 = vrot.slane %v6793, 4
    %v6838 = vadd.f32 %v6793, %v6837
    %v6839 = vrot.slane %v6838, 2
    %v6840 = vadd.f32 %v6838, %v6839
    %v6841 = vrot.slane %v6840, 1
    %v6842 = vadd.f32 %v6840, %v6841
    %v6843 = vrot.slane %v6795, 4
    %v6844 = vadd.f32 %v6795, %v6843
    %v6845 = vrot.slane %v6844, 2
    %v6846 = vadd.f32 %v6844, %v6845
    %v6847 = vrot.slane %v6846, 1
    %v6848 = vadd.f32 %v6846, %v6847
    %v6849 = vmul.f32 %v6806, %v2726
    %v6850 = vmul.f32 %v6812, %v2726
    %v6851 = vmul.f32 %v6818, %v2726
    %v6852 = vmul.f32 %v6824, %v2726
    %v6853 = vmul.f32 %v6830, %v2726
    %v6854 = vmul.f32 %v6836, %v2726
    %v6855 = vmul.f32 %v6842, %v2726
    %v6856 = vmul.f32 %v6848, %v2726
    %v6857 = vsub.f32 %v6301, %v6849
    %v6858 = vsub.f32 %v6303, %v6850
    %v6859 = vsub.f32 %v6465, %v6851
    %v6860 = vsub.f32 %v6467, %v6852
    %v6861 = vsub.f32 %v6629, %v6853
    %v6862 = vsub.f32 %v6631, %v6854
    %v6863 = vsub.f32 %v6793, %v6855
    %v6864 = vsub.f32 %v6795, %v6856
    %v6865 = vmul.f32 %v6857, %v6857
    %v6866 = vmul.f32 %v6858, %v6858
    %v6867 = vmul.f32 %v6859, %v6859
    %v6868 = vmul.f32 %v6860, %v6860
    %v6869 = vmul.f32 %v6861, %v6861
    %v6870 = vmul.f32 %v6862, %v6862
    %v6871 = vmul.f32 %v6863, %v6863
    %v6872 = vmul.f32 %v6864, %v6864
    %v6873 = vrot.slane %v6865, 4
    %v6874 = vadd.f32 %v6865, %v6873
    %v6875 = vrot.slane %v6874, 2
    %v6876 = vadd.f32 %v6874, %v6875
    %v6877 = vrot.slane %v6876, 1
    %v6878 = vadd.f32 %v6876, %v6877
    %v6879 = vrot.slane %v6866, 4
    %v6880 = vadd.f32 %v6866, %v6879
    %v6881 = vrot.slane %v6880, 2
    %v6882 = vadd.f32 %v6880, %v6881
    %v6883 = vrot.slane %v6882, 1
    %v6884 = vadd.f32 %v6882, %v6883
    %v6885 = vrot.slane %v6867, 4
    %v6886 = vadd.f32 %v6867, %v6885
    %v6887 = vrot.slane %v6886, 2
    %v6888 = vadd.f32 %v6886, %v6887
    %v6889 = vrot.slane %v6888, 1
    %v6890 = vadd.f32 %v6888, %v6889
    %v6891 = vrot.slane %v6868, 4
    %v6892 = vadd.f32 %v6868, %v6891
    %v6893 = vrot.slane %v6892, 2
    %v6894 = vadd.f32 %v6892, %v6893
    %v6895 = vrot.slane %v6894, 1
    %v6896 = vadd.f32 %v6894, %v6895
    %v6897 = vrot.slane %v6869, 4
    %v6898 = vadd.f32 %v6869, %v6897
    %v6899 = vrot.slane %v6898, 2
    %v6900 = vadd.f32 %v6898, %v6899
    %v6901 = vrot.slane %v6900, 1
    %v6902 = vadd.f32 %v6900, %v6901
    %v6903 = vrot.slane %v6870, 4
    %v6904 = vadd.f32 %v6870, %v6903
    %v6905 = vrot.slane %v6904, 2
    %v6906 = vadd.f32 %v6904, %v6905
    %v6907 = vrot.slane %v6906, 1
    %v6908 = vadd.f32 %v6906, %v6907
    %v6909 = vrot.slane %v6871, 4
    %v6910 = vadd.f32 %v6871, %v6909
    %v6911 = vrot.slane %v6910, 2
    %v6912 = vadd.f32 %v6910, %v6911
    %v6913 = vrot.slane %v6912, 1
    %v6914 = vadd.f32 %v6912, %v6913
    %v6915 = vrot.slane %v6872, 4
    %v6916 = vadd.f32 %v6872, %v6915
    %v6917 = vrot.slane %v6916, 2
    %v6918 = vadd.f32 %v6916, %v6917
    %v6919 = vrot.slane %v6918, 1
    %v6920 = vadd.f32 %v6918, %v6919
    %v6921 = vmul.f32 %v6878, %v2726
    %v6922 = vmul.f32 %v6884, %v2726
    %v6923 = vmul.f32 %v6890, %v2726
    %v6924 = vmul.f32 %v6896, %v2726
    %v6925 = vmul.f32 %v6902, %v2726
    %v6926 = vmul.f32 %v6908, %v2726
    %v6927 = vmul.f32 %v6914, %v2726
    %v6928 = vmul.f32 %v6920, %v2726
    %v6929 = vadd.f32 %v6921, 1e-05
    %v6930 = vadd.f32 %v6922, 1e-05
    %v6931 = vadd.f32 %v6923, 1e-05
    %v6932 = vadd.f32 %v6924, 1e-05
    %v6933 = vadd.f32 %v6925, 1e-05
    %v6934 = vadd.f32 %v6926, 1e-05
    %v6935 = vadd.f32 %v6927, 1e-05
    %v6936 = vadd.f32 %v6928, 1e-05
    %v6937 = vrsqrt.pop %v6929
    %v6938 = vrsqrt.pop %v6930
    %v6939 = vrsqrt.pop %v6931
    %v6940 = vrsqrt.pop %v6932
    %v6941 = vrsqrt.pop %v6933
    %v6942 = vrsqrt.pop %v6934
    %v6943 = vrsqrt.pop %v6935
    %v6944 = vrsqrt.pop %v6936
    %v6953 = vcombine.low %v6937, %v6938
    %v6954 = vcombine.low %v6939, %v6940
    %v6955 = vcombine.low %v6941, %v6942
    %v6956 = vcombine.low %v6943, %v6944
    %v6958 = vunpack.c.l.s4 1966171168
    %v6959 = vunpack.c.0.s8 %v6958
    %v6960 = vlaneseq
    %v6961 = vshrl.u32 %v6960, 7
    %v6962 = vsub.s32 %v6959, %v6961
    %v6963 = vrot.slane %v6953, %v6962
    %v6965 = vunpack.c.l.s4 1966171168
    %v6966 = vunpack.c.0.s8 %v6965
    %v6967 = vlaneseq
    %v6968 = vshrl.u32 %v6967, 7
    %v6969 = vsub.s32 %v6966, %v6968
    %v6970 = vrot.slane %v6954, %v6969
    %v6972 = vunpack.c.l.s4 1966171168
    %v6973 = vunpack.c.0.s8 %v6972
    %v6974 = vlaneseq
    %v6975 = vshrl.u32 %v6974, 7
    %v6976 = vsub.s32 %v6973, %v6975
    %v6977 = vrot.slane %v6955, %v6976
    %v6979 = vunpack.c.l.s4 1966171168
    %v6980 = vunpack.c.0.s8 %v6979
    %v6981 = vlaneseq
    %v6982 = vshrl.u32 %v6981, 7
    %v6983 = vsub.s32 %v6980, %v6982
    %v6984 = vrot.slane %v6956, %v6983
    %v6985 = vcombine.low %v6963, %v6970
    %v6986 = vcombine.low %v6977, %v6984
    %v6988 = vunpack.c.l.s4 1966171168
    %v6989 = vunpack.c.0.s8 %v6988
    %v6990 = vlaneseq
    %v6991 = vshrl.u32 %v6990, 7
    %v6992 = vsub.s32 %v6989, %v6991
    %v6993 = vrot.slane %v6985, %v6992
    %v6995 = vunpack.c.l.s4 1966171168
    %v6996 = vunpack.c.0.s8 %v6995
    %v6997 = vlaneseq
    %v6998 = vshrl.u32 %v6997, 7
    %v6999 = vsub.s32 %v6996, %v6998
    %v7000 = vrot.slane %v6986, %v6999
    %v7001 = vcombine.low %v6993, %v7000
    %v7003 = vmul.f32 %v6799, %v7001
    %v7005 = vlaneseq
    %v7006 = vshrl.u32 %v7005, 7
    %v7007 = vsub.s32 0, %v7006
    %v7008 = vrot.slane %v7003, %v7007
    %v7009 = vlaneseq
    %v7010 = vshrl.u32 %v7009, 7
    %v7011 = vsub.s32 1, %v7010
    %v7012 = vrot.slane %v7003, %v7011
    %v7013 = vlaneseq
    %v7014 = vshrl.u32 %v7013, 7
    %v7015 = vsub.s32 2, %v7014
    %v7016 = vrot.slane %v7003, %v7015
    %v7017 = vlaneseq
    %v7018 = vshrl.u32 %v7017, 7
    %v7019 = vsub.s32 3, %v7018
    %v7020 = vrot.slane %v7003, %v7019
    %v7021 = vlaneseq
    %v7022 = vshrl.u32 %v7021, 7
    %v7023 = vsub.s32 4, %v7022
    %v7024 = vrot.slane %v7003, %v7023
    %v7025 = vlaneseq
    %v7026 = vshrl.u32 %v7025, 7
    %v7027 = vsub.s32 5, %v7026
    %v7028 = vrot.slane %v7003, %v7027
    %v7029 = vlaneseq
    %v7030 = vshrl.u32 %v7029, 7
    %v7031 = vsub.s32 6, %v7030
    %v7032 = vrot.slane %v7003, %v7031
    %v7033 = vlaneseq
    %v7034 = vshrl.u32 %v7033, 7
    %v7035 = vsub.s32 7, %v7034
    %v7036 = vrot.slane %v7003, %v7035
    %v7045 = vmul.f32 %v6849, %v7008
    %v7046 = vmul.f32 %v6850, %v7012
    %v7047 = vmul.f32 %v6851, %v7016
    %v7048 = vmul.f32 %v6852, %v7020
    %v7049 = vmul.f32 %v6853, %v7024
    %v7050 = vmul.f32 %v6854, %v7028
    %v7051 = vmul.f32 %v6855, %v7032
    %v7052 = vmul.f32 %v6856, %v7036
    %v7061 = vcombine.low %v7045, %v7046
    %v7062 = vcombine.low %v7047, %v7048
    %v7063 = vcombine.low %v7049, %v7050
    %v7064 = vcombine.low %v7051, %v7052
    %v7066 = vunpack.c.l.s4 1966171168
    %v7067 = vunpack.c.0.s8 %v7066
    %v7068 = vlaneseq
    %v7069 = vshrl.u32 %v7068, 7
    %v7070 = vsub.s32 %v7067, %v7069
    %v7071 = vrot.slane %v7061, %v7070
    %v7073 = vunpack.c.l.s4 1966171168
    %v7074 = vunpack.c.0.s8 %v7073
    %v7075 = vlaneseq
    %v7076 = vshrl.u32 %v7075, 7
    %v7077 = vsub.s32 %v7074, %v7076
    %v7078 = vrot.slane %v7062, %v7077
    %v7080 = vunpack.c.l.s4 1966171168
    %v7081 = vunpack.c.0.s8 %v7080
    %v7082 = vlaneseq
    %v7083 = vshrl.u32 %v7082, 7
    %v7084 = vsub.s32 %v7081, %v7083
    %v7085 = vrot.slane %v7063, %v7084
    %v7087 = vunpack.c.l.s4 1966171168
    %v7088 = vunpack.c.0.s8 %v7087
    %v7089 = vlaneseq
    %v7090 = vshrl.u32 %v7089, 7
    %v7091 = vsub.s32 %v7088, %v7090
    %v7092 = vrot.slane %v7064, %v7091
    %v7093 = vcombine.low %v7071, %v7078
    %v7094 = vcombine.low %v7085, %v7092
    %v7096 = vunpack.c.l.s4 1966171168
    %v7097 = vunpack.c.0.s8 %v7096
    %v7098 = vlaneseq
    %v7099 = vshrl.u32 %v7098, 7
    %v7100 = vsub.s32 %v7097, %v7099
    %v7101 = vrot.slane %v7093, %v7100
    %v7103 = vunpack.c.l.s4 1966171168
    %v7104 = vunpack.c.0.s8 %v7103
    %v7105 = vlaneseq
    %v7106 = vshrl.u32 %v7105, 7
    %v7107 = vsub.s32 %v7104, %v7106
    %v7108 = vrot.slane %v7094, %v7107
    %v7109 = vcombine.low %v7101, %v7108
    %v7111 = vsub.f32 %v6800, %v7109
    %v7112 = vmul.f32 %v6301, %v7008
    %v7113 = vmul.f32 %v6303, %v7012
    %v7114 = vmul.f32 %v6465, %v7016
    %v7115 = vmul.f32 %v6467, %v7020
    %v7116 = vmul.f32 %v6629, %v7024
    %v7117 = vmul.f32 %v6631, %v7028
    %v7118 = vmul.f32 %v6793, %v7032
    %v7119 = vmul.f32 %v6795, %v7036
    %v7121 = vlaneseq
    %v7122 = vshrl.u32 %v7121, 7
    %v7123 = vsub.s32 0, %v7122
    %v7124 = vrot.slane %v7111, %v7123
    %v7125 = vlaneseq
    %v7126 = vshrl.u32 %v7125, 7
    %v7127 = vsub.s32 1, %v7126
    %v7128 = vrot.slane %v7111, %v7127
    %v7129 = vlaneseq
    %v7130 = vshrl.u32 %v7129, 7
    %v7131 = vsub.s32 2, %v7130
    %v7132 = vrot.slane %v7111, %v7131
    %v7133 = vlaneseq
    %v7134 = vshrl.u32 %v7133, 7
    %v7135 = vsub.s32 3, %v7134
    %v7136 = vrot.slane %v7111, %v7135
    %v7137 = vlaneseq
    %v7138 = vshrl.u32 %v7137, 7
    %v7139 = vsub.s32 4, %v7138
    %v7140 = vrot.slane %v7111, %v7139
    %v7141 = vlaneseq
    %v7142 = vshrl.u32 %v7141, 7
    %v7143 = vsub.s32 5, %v7142
    %v7144 = vrot.slane %v7111, %v7143
    %v7145 = vlaneseq
    %v7146 = vshrl.u32 %v7145, 7
    %v7147 = vsub.s32 6, %v7146
    %v7148 = vrot.slane %v7111, %v7147
    %v7149 = vlaneseq
    %v7150 = vshrl.u32 %v7149, 7
    %v7151 = vsub.s32 7, %v7150
    %v7152 = vrot.slane %v7111, %v7151
    %v7161 = vadd.f32 %v7112, %v7124
    %v7162 = vadd.f32 %v7113, %v7128
    %v7163 = vadd.f32 %v7114, %v7132
    %v7164 = vadd.f32 %v7115, %v7136
    %v7165 = vadd.f32 %v7116, %v7140
    %v7166 = vadd.f32 %v7117, %v7144
    %v7167 = vadd.f32 %v7118, %v7148
    %v7168 = vadd.f32 %v7119, %v7152
    %vm7169 = vcmp.ge.f32.partialorder %v7161, 0.0
    %vm7170 = vcmp.ge.f32.partialorder %v7162, 0.0
    %vm7171 = vcmp.ge.f32.partialorder %v7163, 0.0
    %vm7172 = vcmp.ge.f32.partialorder %v7164, 0.0
    %vm7173 = vcmp.ge.f32.partialorder %v7165, 0.0
    %vm7174 = vcmp.ge.f32.partialorder %v7166, 0.0
    %vm7175 = vcmp.ge.f32.partialorder %v7167, 0.0
    %vm7176 = vcmp.ge.f32.partialorder %v7168, 0.0
    %v7177 = vsel %vm7169, 1.0, -1.0
    %v7178 = vsel %vm7170, 1.0, -1.0
    %v7179 = vsel %vm7171, 1.0, -1.0
    %v7180 = vsel %vm7172, 1.0, -1.0
    %v7181 = vsel %vm7173, 1.0, -1.0
    %v7182 = vsel %vm7174, 1.0, -1.0
    %v7183 = vsel %vm7175, 1.0, -1.0
    %v7184 = vsel %vm7176, 1.0, -1.0
    %v7185 = vpack.c.bf16 %v7177, %v7177
    %v7186 = vpack.c.bf16 %v7178, %v7178
    %v7187 = vpack.c.bf16 %v7179, %v7179
    %v7188 = vpack.c.bf16 %v7180, %v7180
    %v7189 = vpack.c.bf16 %v7181, %v7181
    %v7190 = vpack.c.bf16 %v7182, %v7182
    %v7191 = vpack.c.bf16 %v7183, %v7183
    %v7192 = vpack.c.bf16 %v7184, %v7184
    %v7193 = vld [vmem:[#allocation8] sm:$0xff]
    %v7194 = vld [vmem:[#allocation8 + $0x8] sm:$0xff]
    %v7195 = vld [vmem:[#allocation8 + $0x10] sm:$0xff]
    %v7196 = vld [vmem:[#allocation8 + $0x18] sm:$0xff]
    %v7197 = vld [vmem:[#allocation8 + $0x20] sm:$0xff]
    %v7198 = vld [vmem:[#allocation8 + $0x28] sm:$0xff]
    %v7199 = vld [vmem:[#allocation8 + $0x30] sm:$0xff]
    %v7200 = vld [vmem:[#allocation8 + $0x38] sm:$0xff]
    %v7201 = vld [vmem:[#allocation8 + $0x40] sm:$0xff]
    %v7202 = vld [vmem:[#allocation8 + $0x48] sm:$0xff]
    %v7203 = vld [vmem:[#allocation8 + $0x50] sm:$0xff]
    %v7204 = vld [vmem:[#allocation8 + $0x58] sm:$0xff]
    %v7205 = vld [vmem:[#allocation8 + $0x60] sm:$0xff]
    %v7206 = vld [vmem:[#allocation8 + $0x68] sm:$0xff]
    %v7207 = vld [vmem:[#allocation8 + $0x70] sm:$0xff]
    %v7208 = vld [vmem:[#allocation8 + $0x78] sm:$0xff]
    %v7209 = vld [vmem:[#allocation8 + $0x80] sm:$0xff]
    %v7210 = vld [vmem:[#allocation8 + $0x88] sm:$0xff]
    %v7211 = vld [vmem:[#allocation8 + $0x90] sm:$0xff]
    %v7212 = vld [vmem:[#allocation8 + $0x98] sm:$0xff]
    %v7213 = vld [vmem:[#allocation8 + $0xa0] sm:$0xff]
    %v7214 = vld [vmem:[#allocation8 + $0xa8] sm:$0xff]
    %v7215 = vld [vmem:[#allocation8 + $0xb0] sm:$0xff]
    %v7216 = vld [vmem:[#allocation8 + $0xb8] sm:$0xff]
    %v7217 = vld [vmem:[#allocation8 + $0xc0] sm:$0xff]
    %v7218 = vld [vmem:[#allocation8 + $0xc8] sm:$0xff]
    %v7219 = vld [vmem:[#allocation8 + $0xd0] sm:$0xff]
    %v7220 = vld [vmem:[#allocation8 + $0xd8] sm:$0xff]
    %v7221 = vld [vmem:[#allocation8 + $0xe0] sm:$0xff]
    %v7222 = vld [vmem:[#allocation8 + $0xe8] sm:$0xff]
    %v7223 = vld [vmem:[#allocation8 + $0xf0] sm:$0xff]
    %v7224 = vld [vmem:[#allocation8 + $0xf8] sm:$0xff]
    %v7225 = vld [vmem:[#allocation8 + $0x100] sm:$0xff]
    %v7226 = vld [vmem:[#allocation8 + $0x108] sm:$0xff]
    %v7227 = vld [vmem:[#allocation8 + $0x110] sm:$0xff]
    %v7228 = vld [vmem:[#allocation8 + $0x118] sm:$0xff]
    %v7229 = vld [vmem:[#allocation8 + $0x120] sm:$0xff]
    %v7230 = vld [vmem:[#allocation8 + $0x128] sm:$0xff]
    %v7231 = vld [vmem:[#allocation8 + $0x130] sm:$0xff]
    %v7232 = vld [vmem:[#allocation8 + $0x138] sm:$0xff]
    %v7233 = vld [vmem:[#allocation8 + $0x140] sm:$0xff]
    %v7234 = vld [vmem:[#allocation8 + $0x148] sm:$0xff]
    %v7235 = vld [vmem:[#allocation8 + $0x150] sm:$0xff]
    %v7236 = vld [vmem:[#allocation8 + $0x158] sm:$0xff]
    %v7237 = vld [vmem:[#allocation8 + $0x160] sm:$0xff]
    %v7238 = vld [vmem:[#allocation8 + $0x168] sm:$0xff]
    %v7239 = vld [vmem:[#allocation8 + $0x170] sm:$0xff]
    %v7240 = vld [vmem:[#allocation8 + $0x178] sm:$0xff]
    %v7241 = vld [vmem:[#allocation8 + $0x180] sm:$0xff]
    %v7242 = vld [vmem:[#allocation8 + $0x188] sm:$0xff]
    %v7243 = vld [vmem:[#allocation8 + $0x190] sm:$0xff]
    %v7244 = vld [vmem:[#allocation8 + $0x198] sm:$0xff]
    %v7245 = vld [vmem:[#allocation8 + $0x1a0] sm:$0xff]
    %v7246 = vld [vmem:[#allocation8 + $0x1a8] sm:$0xff]
    %v7247 = vld [vmem:[#allocation8 + $0x1b0] sm:$0xff]
    %v7248 = vld [vmem:[#allocation8 + $0x1b8] sm:$0xff]
    %v7249 = vld [vmem:[#allocation8 + $0x1c0] sm:$0xff]
    %v7250 = vld [vmem:[#allocation8 + $0x1c8] sm:$0xff]
    %v7251 = vld [vmem:[#allocation8 + $0x1d0] sm:$0xff]
    %v7252 = vld [vmem:[#allocation8 + $0x1d8] sm:$0xff]
    %v7253 = vld [vmem:[#allocation8 + $0x1e0] sm:$0xff]
    %v7254 = vld [vmem:[#allocation8 + $0x1e8] sm:$0xff]
    %v7255 = vld [vmem:[#allocation8 + $0x1f0] sm:$0xff]
    %v7256 = vld [vmem:[#allocation8 + $0x1f8] sm:$0xff]
    %v7257 = vld [vmem:[#allocation8 + $0x200] sm:$0xff]
    %v7258 = vld [vmem:[#allocation8 + $0x208] sm:$0xff]
    %v7259 = vld [vmem:[#allocation8 + $0x210] sm:$0xff]
    %v7260 = vld [vmem:[#allocation8 + $0x218] sm:$0xff]
    %v7261 = vld [vmem:[#allocation8 + $0x220] sm:$0xff]
    %v7262 = vld [vmem:[#allocation8 + $0x228] sm:$0xff]
    %v7263 = vld [vmem:[#allocation8 + $0x230] sm:$0xff]
    %v7264 = vld [vmem:[#allocation8 + $0x238] sm:$0xff]
    %v7265 = vld [vmem:[#allocation8 + $0x240] sm:$0xff]
    %v7266 = vld [vmem:[#allocation8 + $0x248] sm:$0xff]
    %v7267 = vld [vmem:[#allocation8 + $0x250] sm:$0xff]
    %v7268 = vld [vmem:[#allocation8 + $0x258] sm:$0xff]
    %v7269 = vld [vmem:[#allocation8 + $0x260] sm:$0xff]
    %v7270 = vld [vmem:[#allocation8 + $0x268] sm:$0xff]
    %v7271 = vld [vmem:[#allocation8 + $0x270] sm:$0xff]
    %v7272 = vld [vmem:[#allocation8 + $0x278] sm:$0xff]
    %v7273 = vld [vmem:[#allocation8 + $0x280] sm:$0xff]
    %v7274 = vld [vmem:[#allocation8 + $0x288] sm:$0xff]
    %v7275 = vld [vmem:[#allocation8 + $0x290] sm:$0xff]
    %v7276 = vld [vmem:[#allocation8 + $0x298] sm:$0xff]
    %v7277 = vld [vmem:[#allocation8 + $0x2a0] sm:$0xff]
    %v7278 = vld [vmem:[#allocation8 + $0x2a8] sm:$0xff]
    %v7279 = vld [vmem:[#allocation8 + $0x2b0] sm:$0xff]
    %v7280 = vld [vmem:[#allocation8 + $0x2b8] sm:$0xff]
    %v7281 = vld [vmem:[#allocation8 + $0x2c0] sm:$0xff]
    %v7282 = vld [vmem:[#allocation8 + $0x2c8] sm:$0xff]
    %v7283 = vld [vmem:[#allocation8 + $0x2d0] sm:$0xff]
    %v7284 = vld [vmem:[#allocation8 + $0x2d8] sm:$0xff]
    %v7285 = vld [vmem:[#allocation8 + $0x2e0] sm:$0xff]
    %v7286 = vld [vmem:[#allocation8 + $0x2e8] sm:$0xff]
    %v7287 = vld [vmem:[#allocation8 + $0x2f0] sm:$0xff]
    %v7288 = vld [vmem:[#allocation8 + $0x2f8] sm:$0xff]
    %v7289 = vld [vmem:[#allocation8 + $0x300] sm:$0xff]
    %v7290 = vld [vmem:[#allocation8 + $0x308] sm:$0xff]
    %v7291 = vld [vmem:[#allocation8 + $0x310] sm:$0xff]
    %v7292 = vld [vmem:[#allocation8 + $0x318] sm:$0xff]
    %v7293 = vld [vmem:[#allocation8 + $0x320] sm:$0xff]
    %v7294 = vld [vmem:[#allocation8 + $0x328] sm:$0xff]
    %v7295 = vld [vmem:[#allocation8 + $0x330] sm:$0xff]
    %v7296 = vld [vmem:[#allocation8 + $0x338] sm:$0xff]
    %v7297 = vld [vmem:[#allocation8 + $0x340] sm:$0xff]
    %v7298 = vld [vmem:[#allocation8 + $0x348] sm:$0xff]
    %v7299 = vld [vmem:[#allocation8 + $0x350] sm:$0xff]
    %v7300 = vld [vmem:[#allocation8 + $0x358] sm:$0xff]
    %v7301 = vld [vmem:[#allocation8 + $0x360] sm:$0xff]
    %v7302 = vld [vmem:[#allocation8 + $0x368] sm:$0xff]
    %v7303 = vld [vmem:[#allocation8 + $0x370] sm:$0xff]
    %v7304 = vld [vmem:[#allocation8 + $0x378] sm:$0xff]
    %v7305 = vld [vmem:[#allocation8 + $0x380] sm:$0xff]
    %v7306 = vld [vmem:[#allocation8 + $0x388] sm:$0xff]
    %v7307 = vld [vmem:[#allocation8 + $0x390] sm:$0xff]
    %v7308 = vld [vmem:[#allocation8 + $0x398] sm:$0xff]
    %v7309 = vld [vmem:[#allocation8 + $0x3a0] sm:$0xff]
    %v7310 = vld [vmem:[#allocation8 + $0x3a8] sm:$0xff]
    %v7311 = vld [vmem:[#allocation8 + $0x3b0] sm:$0xff]
    %v7312 = vld [vmem:[#allocation8 + $0x3b8] sm:$0xff]
    %v7313 = vld [vmem:[#allocation8 + $0x3c0] sm:$0xff]
    %v7314 = vld [vmem:[#allocation8 + $0x3c8] sm:$0xff]
    %v7315 = vld [vmem:[#allocation8 + $0x3d0] sm:$0xff]
    %v7316 = vld [vmem:[#allocation8 + $0x3d8] sm:$0xff]
    %v7317 = vld [vmem:[#allocation8 + $0x3e0] sm:$0xff]
    %v7318 = vld [vmem:[#allocation8 + $0x3e8] sm:$0xff]
    %v7319 = vld [vmem:[#allocation8 + $0x3f0] sm:$0xff]
    %v7320 = vld [vmem:[#allocation8 + $0x3f8] sm:$0xff]
    %v7321 = vld [vmem:[#allocation8 + $0x400] sm:$0xff]
    %v7322 = vld [vmem:[#allocation8 + $0x408] sm:$0xff]
    %v7323 = vld [vmem:[#allocation8 + $0x410] sm:$0xff]
    %v7324 = vld [vmem:[#allocation8 + $0x418] sm:$0xff]
    %v7325 = vld [vmem:[#allocation8 + $0x420] sm:$0xff]
    %v7326 = vld [vmem:[#allocation8 + $0x428] sm:$0xff]
    %v7327 = vld [vmem:[#allocation8 + $0x430] sm:$0xff]
    %v7328 = vld [vmem:[#allocation8 + $0x438] sm:$0xff]
    %v7329 = vld [vmem:[#allocation8 + $0x440] sm:$0xff]
    %v7330 = vld [vmem:[#allocation8 + $0x448] sm:$0xff]
    %v7331 = vld [vmem:[#allocation8 + $0x450] sm:$0xff]
    %v7332 = vld [vmem:[#allocation8 + $0x458] sm:$0xff]
    %v7333 = vld [vmem:[#allocation8 + $0x460] sm:$0xff]
    %v7334 = vld [vmem:[#allocation8 + $0x468] sm:$0xff]
    %v7335 = vld [vmem:[#allocation8 + $0x470] sm:$0xff]
    %v7336 = vld [vmem:[#allocation8 + $0x478] sm:$0xff]
    %v7337 = vld [vmem:[#allocation8 + $0x480] sm:$0xff]
    %v7338 = vld [vmem:[#allocation8 + $0x488] sm:$0xff]
    %v7339 = vld [vmem:[#allocation8 + $0x490] sm:$0xff]
    %v7340 = vld [vmem:[#allocation8 + $0x498] sm:$0xff]
    %v7341 = vld [vmem:[#allocation8 + $0x4a0] sm:$0xff]
    %v7342 = vld [vmem:[#allocation8 + $0x4a8] sm:$0xff]
    %v7343 = vld [vmem:[#allocation8 + $0x4b0] sm:$0xff]
    %v7344 = vld [vmem:[#allocation8 + $0x4b8] sm:$0xff]
    %v7345 = vld [vmem:[#allocation8 + $0x4c0] sm:$0xff]
    %v7346 = vld [vmem:[#allocation8 + $0x4c8] sm:$0xff]
    %v7347 = vld [vmem:[#allocation8 + $0x4d0] sm:$0xff]
    %v7348 = vld [vmem:[#allocation8 + $0x4d8] sm:$0xff]
    %v7349 = vld [vmem:[#allocation8 + $0x4e0] sm:$0xff]
    %v7350 = vld [vmem:[#allocation8 + $0x4e8] sm:$0xff]
    %v7351 = vld [vmem:[#allocation8 + $0x4f0] sm:$0xff]
    %v7352 = vld [vmem:[#allocation8 + $0x4f8] sm:$0xff]
    %v7353 = vld [vmem:[#allocation8 + $0x500] sm:$0xff]
    %v7354 = vld [vmem:[#allocation8 + $0x508] sm:$0xff]
    %v7355 = vld [vmem:[#allocation8 + $0x510] sm:$0xff]
    %v7356 = vld [vmem:[#allocation8 + $0x518] sm:$0xff]
    %v7357 = vld [vmem:[#allocation8 + $0x520] sm:$0xff]
    %v7358 = vld [vmem:[#allocation8 + $0x528] sm:$0xff]
    %v7359 = vld [vmem:[#allocation8 + $0x530] sm:$0xff]
    %v7360 = vld [vmem:[#allocation8 + $0x538] sm:$0xff]
    %v7361 = vld [vmem:[#allocation8 + $0x540] sm:$0xff]
    %v7362 = vld [vmem:[#allocation8 + $0x548] sm:$0xff]
    %v7363 = vld [vmem:[#allocation8 + $0x550] sm:$0xff]
    %v7364 = vld [vmem:[#allocation8 + $0x558] sm:$0xff]
    %v7365 = vld [vmem:[#allocation8 + $0x560] sm:$0xff]
    %v7366 = vld [vmem:[#allocation8 + $0x568] sm:$0xff]
    %v7367 = vld [vmem:[#allocation8 + $0x570] sm:$0xff]
    %v7368 = vld [vmem:[#allocation8 + $0x578] sm:$0xff]
    %v7369 = vld [vmem:[#allocation8 + $0x580] sm:$0xff]
    %v7370 = vld [vmem:[#allocation8 + $0x588] sm:$0xff]
    %v7371 = vld [vmem:[#allocation8 + $0x590] sm:$0xff]
    %v7372 = vld [vmem:[#allocation8 + $0x598] sm:$0xff]
    %v7373 = vld [vmem:[#allocation8 + $0x5a0] sm:$0xff]
    %v7374 = vld [vmem:[#allocation8 + $0x5a8] sm:$0xff]
    %v7375 = vld [vmem:[#allocation8 + $0x5b0] sm:$0xff]
    %v7376 = vld [vmem:[#allocation8 + $0x5b8] sm:$0xff]
    %v7377 = vld [vmem:[#allocation8 + $0x5c0] sm:$0xff]
    %v7378 = vld [vmem:[#allocation8 + $0x5c8] sm:$0xff]
    %v7379 = vld [vmem:[#allocation8 + $0x5d0] sm:$0xff]
    %v7380 = vld [vmem:[#allocation8 + $0x5d8] sm:$0xff]
    %v7381 = vld [vmem:[#allocation8 + $0x5e0] sm:$0xff]
    %v7382 = vld [vmem:[#allocation8 + $0x5e8] sm:$0xff]
    %v7383 = vld [vmem:[#allocation8 + $0x5f0] sm:$0xff]
    %v7384 = vld [vmem:[#allocation8 + $0x5f8] sm:$0xff]
    %v7385 = vld [vmem:[#allocation8 + $0x600] sm:$0xff]
    %v7386 = vld [vmem:[#allocation8 + $0x608] sm:$0xff]
    %v7387 = vld [vmem:[#allocation8 + $0x610] sm:$0xff]
    %v7388 = vld [vmem:[#allocation8 + $0x618] sm:$0xff]
    %v7389 = vld [vmem:[#allocation8 + $0x620] sm:$0xff]
    %v7390 = vld [vmem:[#allocation8 + $0x628] sm:$0xff]
    %v7391 = vld [vmem:[#allocation8 + $0x630] sm:$0xff]
    %v7392 = vld [vmem:[#allocation8 + $0x638] sm:$0xff]
    %v7393 = vld [vmem:[#allocation8 + $0x640] sm:$0xff]
    %v7394 = vld [vmem:[#allocation8 + $0x648] sm:$0xff]
    %v7395 = vld [vmem:[#allocation8 + $0x650] sm:$0xff]
    %v7396 = vld [vmem:[#allocation8 + $0x658] sm:$0xff]
    %v7397 = vld [vmem:[#allocation8 + $0x660] sm:$0xff]
    %v7398 = vld [vmem:[#allocation8 + $0x668] sm:$0xff]
    %v7399 = vld [vmem:[#allocation8 + $0x670] sm:$0xff]
    %v7400 = vld [vmem:[#allocation8 + $0x678] sm:$0xff]
    %v7401 = vld [vmem:[#allocation8 + $0x680] sm:$0xff]
    %v7402 = vld [vmem:[#allocation8 + $0x688] sm:$0xff]
    %v7403 = vld [vmem:[#allocation8 + $0x690] sm:$0xff]
    %v7404 = vld [vmem:[#allocation8 + $0x698] sm:$0xff]
    %v7405 = vld [vmem:[#allocation8 + $0x6a0] sm:$0xff]
    %v7406 = vld [vmem:[#allocation8 + $0x6a8] sm:$0xff]
    %v7407 = vld [vmem:[#allocation8 + $0x6b0] sm:$0xff]
    %v7408 = vld [vmem:[#allocation8 + $0x6b8] sm:$0xff]
    %v7409 = vld [vmem:[#allocation8 + $0x6c0] sm:$0xff]
    %v7410 = vld [vmem:[#allocation8 + $0x6c8] sm:$0xff]
    %v7411 = vld [vmem:[#allocation8 + $0x6d0] sm:$0xff]
    %v7412 = vld [vmem:[#allocation8 + $0x6d8] sm:$0xff]
    %v7413 = vld [vmem:[#allocation8 + $0x6e0] sm:$0xff]
    %v7414 = vld [vmem:[#allocation8 + $0x6e8] sm:$0xff]
    %v7415 = vld [vmem:[#allocation8 + $0x6f0] sm:$0xff]
    %v7416 = vld [vmem:[#allocation8 + $0x6f8] sm:$0xff]
    %v7417 = vld [vmem:[#allocation8 + $0x700] sm:$0xff]
    %v7418 = vld [vmem:[#allocation8 + $0x708] sm:$0xff]
    %v7419 = vld [vmem:[#allocation8 + $0x710] sm:$0xff]
    %v7420 = vld [vmem:[#allocation8 + $0x718] sm:$0xff]
    %v7421 = vld [vmem:[#allocation8 + $0x720] sm:$0xff]
    %v7422 = vld [vmem:[#allocation8 + $0x728] sm:$0xff]
    %v7423 = vld [vmem:[#allocation8 + $0x730] sm:$0xff]
    %v7424 = vld [vmem:[#allocation8 + $0x738] sm:$0xff]
    %v7425 = vld [vmem:[#allocation8 + $0x740] sm:$0xff]
    %v7426 = vld [vmem:[#allocation8 + $0x748] sm:$0xff]
    %v7427 = vld [vmem:[#allocation8 + $0x750] sm:$0xff]
    %v7428 = vld [vmem:[#allocation8 + $0x758] sm:$0xff]
    %v7429 = vld [vmem:[#allocation8 + $0x760] sm:$0xff]
    %v7430 = vld [vmem:[#allocation8 + $0x768] sm:$0xff]
    %v7431 = vld [vmem:[#allocation8 + $0x770] sm:$0xff]
    %v7432 = vld [vmem:[#allocation8 + $0x778] sm:$0xff]
    %v7433 = vld [vmem:[#allocation8 + $0x780] sm:$0xff]
    %v7434 = vld [vmem:[#allocation8 + $0x788] sm:$0xff]
    %v7435 = vld [vmem:[#allocation8 + $0x790] sm:$0xff]
    %v7436 = vld [vmem:[#allocation8 + $0x798] sm:$0xff]
    %v7437 = vld [vmem:[#allocation8 + $0x7a0] sm:$0xff]
    %v7438 = vld [vmem:[#allocation8 + $0x7a8] sm:$0xff]
    %v7439 = vld [vmem:[#allocation8 + $0x7b0] sm:$0xff]
    %v7440 = vld [vmem:[#allocation8 + $0x7b8] sm:$0xff]
    %v7441 = vld [vmem:[#allocation8 + $0x7c0] sm:$0xff]
    %v7442 = vld [vmem:[#allocation8 + $0x7c8] sm:$0xff]
    %v7443 = vld [vmem:[#allocation8 + $0x7d0] sm:$0xff]
    %v7444 = vld [vmem:[#allocation8 + $0x7d8] sm:$0xff]
    %v7445 = vld [vmem:[#allocation8 + $0x7e0] sm:$0xff]
    %v7446 = vld [vmem:[#allocation8 + $0x7e8] sm:$0xff]
    %v7447 = vld [vmem:[#allocation8 + $0x7f0] sm:$0xff]
    %v7448 = vld [vmem:[#allocation8 + $0x7f8] sm:$0xff]
    %v7449 = vld [vmem:[#allocation8 + $0x800] sm:$0xff]
    %v7450 = vld [vmem:[#allocation8 + $0x808] sm:$0xff]
    %v7451 = vld [vmem:[#allocation8 + $0x810] sm:$0xff]
    %v7452 = vld [vmem:[#allocation8 + $0x818] sm:$0xff]
    %v7453 = vld [vmem:[#allocation8 + $0x820] sm:$0xff]
    %v7454 = vld [vmem:[#allocation8 + $0x828] sm:$0xff]
    %v7455 = vld [vmem:[#allocation8 + $0x830] sm:$0xff]
    %v7456 = vld [vmem:[#allocation8 + $0x838] sm:$0xff]
    %v7457 = vld [vmem:[#allocation8 + $0x840] sm:$0xff]
    %v7458 = vld [vmem:[#allocation8 + $0x848] sm:$0xff]
    %v7459 = vld [vmem:[#allocation8 + $0x850] sm:$0xff]
    %v7460 = vld [vmem:[#allocation8 + $0x858] sm:$0xff]
    %v7461 = vld [vmem:[#allocation8 + $0x860] sm:$0xff]
    %v7462 = vld [vmem:[#allocation8 + $0x868] sm:$0xff]
    %v7463 = vld [vmem:[#allocation8 + $0x870] sm:$0xff]
    %v7464 = vld [vmem:[#allocation8 + $0x878] sm:$0xff]
    %v7465 = vld [vmem:[#allocation8 + $0x880] sm:$0xff]
    %v7466 = vld [vmem:[#allocation8 + $0x888] sm:$0xff]
    %v7467 = vld [vmem:[#allocation8 + $0x890] sm:$0xff]
    %v7468 = vld [vmem:[#allocation8 + $0x898] sm:$0xff]
    %v7469 = vld [vmem:[#allocation8 + $0x8a0] sm:$0xff]
    %v7470 = vld [vmem:[#allocation8 + $0x8a8] sm:$0xff]
    %v7471 = vld [vmem:[#allocation8 + $0x8b0] sm:$0xff]
    %v7472 = vld [vmem:[#allocation8 + $0x8b8] sm:$0xff]
    %v7473 = vld [vmem:[#allocation8 + $0x8c0] sm:$0xff]
    %v7474 = vld [vmem:[#allocation8 + $0x8c8] sm:$0xff]
    %v7475 = vld [vmem:[#allocation8 + $0x8d0] sm:$0xff]
    %v7476 = vld [vmem:[#allocation8 + $0x8d8] sm:$0xff]
    %v7477 = vld [vmem:[#allocation8 + $0x8e0] sm:$0xff]
    %v7478 = vld [vmem:[#allocation8 + $0x8e8] sm:$0xff]
    %v7479 = vld [vmem:[#allocation8 + $0x8f0] sm:$0xff]
    %v7480 = vld [vmem:[#allocation8 + $0x8f8] sm:$0xff]
    %v7481 = vld [vmem:[#allocation8 + $0x900] sm:$0xff]
    %v7482 = vld [vmem:[#allocation8 + $0x908] sm:$0xff]
    %v7483 = vld [vmem:[#allocation8 + $0x910] sm:$0xff]
    %v7484 = vld [vmem:[#allocation8 + $0x918] sm:$0xff]
    %v7485 = vld [vmem:[#allocation8 + $0x920] sm:$0xff]
    %v7486 = vld [vmem:[#allocation8 + $0x928] sm:$0xff]
    %v7487 = vld [vmem:[#allocation8 + $0x930] sm:$0xff]
    %v7488 = vld [vmem:[#allocation8 + $0x938] sm:$0xff]
    %v7489 = vld [vmem:[#allocation8 + $0x940] sm:$0xff]
    %v7490 = vld [vmem:[#allocation8 + $0x948] sm:$0xff]
    %v7491 = vld [vmem:[#allocation8 + $0x950] sm:$0xff]
    %v7492 = vld [vmem:[#allocation8 + $0x958] sm:$0xff]
    %v7493 = vld [vmem:[#allocation8 + $0x960] sm:$0xff]
    %v7494 = vld [vmem:[#allocation8 + $0x968] sm:$0xff]
    %v7495 = vld [vmem:[#allocation8 + $0x970] sm:$0xff]
    %v7496 = vld [vmem:[#allocation8 + $0x978] sm:$0xff]
    %v7497 = vld [vmem:[#allocation8 + $0x980] sm:$0xff]
    %v7498 = vld [vmem:[#allocation8 + $0x988] sm:$0xff]
    %v7499 = vld [vmem:[#allocation8 + $0x990] sm:$0xff]
    %v7500 = vld [vmem:[#allocation8 + $0x998] sm:$0xff]
    %v7501 = vld [vmem:[#allocation8 + $0x9a0] sm:$0xff]
    %v7502 = vld [vmem:[#allocation8 + $0x9a8] sm:$0xff]
    %v7503 = vld [vmem:[#allocation8 + $0x9b0] sm:$0xff]
    %v7504 = vld [vmem:[#allocation8 + $0x9b8] sm:$0xff]
    %v7505 = vld [vmem:[#allocation8 + $0x9c0] sm:$0xff]
    %v7506 = vld [vmem:[#allocation8 + $0x9c8] sm:$0xff]
    %v7507 = vld [vmem:[#allocation8 + $0x9d0] sm:$0xff]
    %v7508 = vld [vmem:[#allocation8 + $0x9d8] sm:$0xff]
    %v7509 = vld [vmem:[#allocation8 + $0x9e0] sm:$0xff]
    %v7510 = vld [vmem:[#allocation8 + $0x9e8] sm:$0xff]
    %v7511 = vld [vmem:[#allocation8 + $0x9f0] sm:$0xff]
    %v7512 = vld [vmem:[#allocation8 + $0x9f8] sm:$0xff]
    %v7513 = vld [vmem:[#allocation8 + $0xa00] sm:$0xff]
    %v7514 = vld [vmem:[#allocation8 + $0xa08] sm:$0xff]
    %v7515 = vld [vmem:[#allocation8 + $0xa10] sm:$0xff]
    %v7516 = vld [vmem:[#allocation8 + $0xa18] sm:$0xff]
    %v7517 = vld [vmem:[#allocation8 + $0xa20] sm:$0xff]
    %v7518 = vld [vmem:[#allocation8 + $0xa28] sm:$0xff]
    %v7519 = vld [vmem:[#allocation8 + $0xa30] sm:$0xff]
    %v7520 = vld [vmem:[#allocation8 + $0xa38] sm:$0xff]
    %v7521 = vld [vmem:[#allocation8 + $0xa40] sm:$0xff]
    %v7522 = vld [vmem:[#allocation8 + $0xa48] sm:$0xff]
    %v7523 = vld [vmem:[#allocation8 + $0xa50] sm:$0xff]
    %v7524 = vld [vmem:[#allocation8 + $0xa58] sm:$0xff]
    %v7525 = vld [vmem:[#allocation8 + $0xa60] sm:$0xff]
    %v7526 = vld [vmem:[#allocation8 + $0xa68] sm:$0xff]
    %v7527 = vld [vmem:[#allocation8 + $0xa70] sm:$0xff]
    %v7528 = vld [vmem:[#allocation8 + $0xa78] sm:$0xff]
    %v7529 = vld [vmem:[#allocation8 + $0xa80] sm:$0xff]
    %v7530 = vld [vmem:[#allocation8 + $0xa88] sm:$0xff]
    %v7531 = vld [vmem:[#allocation8 + $0xa90] sm:$0xff]
    %v7532 = vld [vmem:[#allocation8 + $0xa98] sm:$0xff]
    %v7533 = vld [vmem:[#allocation8 + $0xaa0] sm:$0xff]
    %v7534 = vld [vmem:[#allocation8 + $0xaa8] sm:$0xff]
    %v7535 = vld [vmem:[#allocation8 + $0xab0] sm:$0xff]
    %v7536 = vld [vmem:[#allocation8 + $0xab8] sm:$0xff]
    %v7537 = vld [vmem:[#allocation8 + $0xac0] sm:$0xff]
    %v7538 = vld [vmem:[#allocation8 + $0xac8] sm:$0xff]
    %v7539 = vld [vmem:[#allocation8 + $0xad0] sm:$0xff]
    %v7540 = vld [vmem:[#allocation8 + $0xad8] sm:$0xff]
    %v7541 = vld [vmem:[#allocation8 + $0xae0] sm:$0xff]
    %v7542 = vld [vmem:[#allocation8 + $0xae8] sm:$0xff]
    %v7543 = vld [vmem:[#allocation8 + $0xaf0] sm:$0xff]
    %v7544 = vld [vmem:[#allocation8 + $0xaf8] sm:$0xff]
    %v7545 = vld [vmem:[#allocation8 + $0xb00] sm:$0xff]
    %v7546 = vld [vmem:[#allocation8 + $0xb08] sm:$0xff]
    %v7547 = vld [vmem:[#allocation8 + $0xb10] sm:$0xff]
    %v7548 = vld [vmem:[#allocation8 + $0xb18] sm:$0xff]
    %v7549 = vld [vmem:[#allocation8 + $0xb20] sm:$0xff]
    %v7550 = vld [vmem:[#allocation8 + $0xb28] sm:$0xff]
    %v7551 = vld [vmem:[#allocation8 + $0xb30] sm:$0xff]
    %v7552 = vld [vmem:[#allocation8 + $0xb38] sm:$0xff]
    %v7553 = vld [vmem:[#allocation8 + $0xb40] sm:$0xff]
    %v7554 = vld [vmem:[#allocation8 + $0xb48] sm:$0xff]
    %v7555 = vld [vmem:[#allocation8 + $0xb50] sm:$0xff]
    %v7556 = vld [vmem:[#allocation8 + $0xb58] sm:$0xff]
    %v7557 = vld [vmem:[#allocation8 + $0xb60] sm:$0xff]
    %v7558 = vld [vmem:[#allocation8 + $0xb68] sm:$0xff]
    %v7559 = vld [vmem:[#allocation8 + $0xb70] sm:$0xff]
    %v7560 = vld [vmem:[#allocation8 + $0xb78] sm:$0xff]
    %v7561 = vld [vmem:[#allocation8 + $0xb80] sm:$0xff]
    %v7562 = vld [vmem:[#allocation8 + $0xb88] sm:$0xff]
    %v7563 = vld [vmem:[#allocation8 + $0xb90] sm:$0xff]
    %v7564 = vld [vmem:[#allocation8 + $0xb98] sm:$0xff]
    %v7565 = vld [vmem:[#allocation8 + $0xba0] sm:$0xff]
    %v7566 = vld [vmem:[#allocation8 + $0xba8] sm:$0xff]
    %v7567 = vld [vmem:[#allocation8 + $0xbb0] sm:$0xff]
    %v7568 = vld [vmem:[#allocation8 + $0xbb8] sm:$0xff]
    %v7569 = vld [vmem:[#allocation8 + $0xbc0] sm:$0xff]
    %v7570 = vld [vmem:[#allocation8 + $0xbc8] sm:$0xff]
    %v7571 = vld [vmem:[#allocation8 + $0xbd0] sm:$0xff]
    %v7572 = vld [vmem:[#allocation8 + $0xbd8] sm:$0xff]
    %v7573 = vld [vmem:[#allocation8 + $0xbe0] sm:$0xff]
    %v7574 = vld [vmem:[#allocation8 + $0xbe8] sm:$0xff]
    %v7575 = vld [vmem:[#allocation8 + $0xbf0] sm:$0xff]
    %v7576 = vld [vmem:[#allocation8 + $0xbf8] sm:$0xff]
    %v7577 = vld [vmem:[#allocation8 + $0xc00] sm:$0xff]
    %v7578 = vld [vmem:[#allocation8 + $0xc08] sm:$0xff]
    %v7579 = vld [vmem:[#allocation8 + $0xc10] sm:$0xff]
    %v7580 = vld [vmem:[#allocation8 + $0xc18] sm:$0xff]
    %v7581 = vld [vmem:[#allocation8 + $0xc20] sm:$0xff]
    %v7582 = vld [vmem:[#allocation8 + $0xc28] sm:$0xff]
    %v7583 = vld [vmem:[#allocation8 + $0xc30] sm:$0xff]
    %v7584 = vld [vmem:[#allocation8 + $0xc38] sm:$0xff]
    %v7585 = vld [vmem:[#allocation8 + $0xc40] sm:$0xff]
    %v7586 = vld [vmem:[#allocation8 + $0xc48] sm:$0xff]
    %v7587 = vld [vmem:[#allocation8 + $0xc50] sm:$0xff]
    %v7588 = vld [vmem:[#allocation8 + $0xc58] sm:$0xff]
    %v7589 = vld [vmem:[#allocation8 + $0xc60] sm:$0xff]
    %v7590 = vld [vmem:[#allocation8 + $0xc68] sm:$0xff]
    %v7591 = vld [vmem:[#allocation8 + $0xc70] sm:$0xff]
    %v7592 = vld [vmem:[#allocation8 + $0xc78] sm:$0xff]
    %v7593 = vld [vmem:[#allocation8 + $0xc80] sm:$0xff]
    %v7594 = vld [vmem:[#allocation8 + $0xc88] sm:$0xff]
    %v7595 = vld [vmem:[#allocation8 + $0xc90] sm:$0xff]
    %v7596 = vld [vmem:[#allocation8 + $0xc98] sm:$0xff]
    %v7597 = vld [vmem:[#allocation8 + $0xca0] sm:$0xff]
    %v7598 = vld [vmem:[#allocation8 + $0xca8] sm:$0xff]
    %v7599 = vld [vmem:[#allocation8 + $0xcb0] sm:$0xff]
    %v7600 = vld [vmem:[#allocation8 + $0xcb8] sm:$0xff]
    %v7601 = vld [vmem:[#allocation8 + $0xcc0] sm:$0xff]
    %v7602 = vld [vmem:[#allocation8 + $0xcc8] sm:$0xff]
    %v7603 = vld [vmem:[#allocation8 + $0xcd0] sm:$0xff]
    %v7604 = vld [vmem:[#allocation8 + $0xcd8] sm:$0xff]
    %v7605 = vld [vmem:[#allocation8 + $0xce0] sm:$0xff]
    %v7606 = vld [vmem:[#allocation8 + $0xce8] sm:$0xff]
    %v7607 = vld [vmem:[#allocation8 + $0xcf0] sm:$0xff]
    %v7608 = vld [vmem:[#allocation8 + $0xcf8] sm:$0xff]
    %v7609 = vld [vmem:[#allocation8 + $0xd00] sm:$0xff]
    %v7610 = vld [vmem:[#allocation8 + $0xd08] sm:$0xff]
    %v7611 = vld [vmem:[#allocation8 + $0xd10] sm:$0xff]
    %v7612 = vld [vmem:[#allocation8 + $0xd18] sm:$0xff]
    %v7613 = vld [vmem:[#allocation8 + $0xd20] sm:$0xff]
    %v7614 = vld [vmem:[#allocation8 + $0xd28] sm:$0xff]
    %v7615 = vld [vmem:[#allocation8 + $0xd30] sm:$0xff]
    %v7616 = vld [vmem:[#allocation8 + $0xd38] sm:$0xff]
    %v7617 = vld [vmem:[#allocation8 + $0xd40] sm:$0xff]
    %v7618 = vld [vmem:[#allocation8 + $0xd48] sm:$0xff]
    %v7619 = vld [vmem:[#allocation8 + $0xd50] sm:$0xff]
    %v7620 = vld [vmem:[#allocation8 + $0xd58] sm:$0xff]
    %v7621 = vld [vmem:[#allocation8 + $0xd60] sm:$0xff]
    %v7622 = vld [vmem:[#allocation8 + $0xd68] sm:$0xff]
    %v7623 = vld [vmem:[#allocation8 + $0xd70] sm:$0xff]
    %v7624 = vld [vmem:[#allocation8 + $0xd78] sm:$0xff]
    %v7625 = vld [vmem:[#allocation8 + $0xd80] sm:$0xff]
    %v7626 = vld [vmem:[#allocation8 + $0xd88] sm:$0xff]
    %v7627 = vld [vmem:[#allocation8 + $0xd90] sm:$0xff]
    %v7628 = vld [vmem:[#allocation8 + $0xd98] sm:$0xff]
    %v7629 = vld [vmem:[#allocation8 + $0xda0] sm:$0xff]
    %v7630 = vld [vmem:[#allocation8 + $0xda8] sm:$0xff]
    %v7631 = vld [vmem:[#allocation8 + $0xdb0] sm:$0xff]
    %v7632 = vld [vmem:[#allocation8 + $0xdb8] sm:$0xff]
    %v7633 = vld [vmem:[#allocation8 + $0xdc0] sm:$0xff]
    %v7634 = vld [vmem:[#allocation8 + $0xdc8] sm:$0xff]
    %v7635 = vld [vmem:[#allocation8 + $0xdd0] sm:$0xff]
    %v7636 = vld [vmem:[#allocation8 + $0xdd8] sm:$0xff]
    %v7637 = vld [vmem:[#allocation8 + $0xde0] sm:$0xff]
    %v7638 = vld [vmem:[#allocation8 + $0xde8] sm:$0xff]
    %v7639 = vld [vmem:[#allocation8 + $0xdf0] sm:$0xff]
    %v7640 = vld [vmem:[#allocation8 + $0xdf8] sm:$0xff]
    %v7641 = vld [vmem:[#allocation8 + $0xe00] sm:$0xff]
    %v7642 = vld [vmem:[#allocation8 + $0xe08] sm:$0xff]
    %v7643 = vld [vmem:[#allocation8 + $0xe10] sm:$0xff]
    %v7644 = vld [vmem:[#allocation8 + $0xe18] sm:$0xff]
    %v7645 = vld [vmem:[#allocation8 + $0xe20] sm:$0xff]
    %v7646 = vld [vmem:[#allocation8 + $0xe28] sm:$0xff]
    %v7647 = vld [vmem:[#allocation8 + $0xe30] sm:$0xff]
    %v7648 = vld [vmem:[#allocation8 + $0xe38] sm:$0xff]
    %v7649 = vld [vmem:[#allocation8 + $0xe40] sm:$0xff]
    %v7650 = vld [vmem:[#allocation8 + $0xe48] sm:$0xff]
    %v7651 = vld [vmem:[#allocation8 + $0xe50] sm:$0xff]
    %v7652 = vld [vmem:[#allocation8 + $0xe58] sm:$0xff]
    %v7653 = vld [vmem:[#allocation8 + $0xe60] sm:$0xff]
    %v7654 = vld [vmem:[#allocation8 + $0xe68] sm:$0xff]
    %v7655 = vld [vmem:[#allocation8 + $0xe70] sm:$0xff]
    %v7656 = vld [vmem:[#allocation8 + $0xe78] sm:$0xff]
    %v7657 = vld [vmem:[#allocation8 + $0xe80] sm:$0xff]
    %v7658 = vld [vmem:[#allocation8 + $0xe88] sm:$0xff]
    %v7659 = vld [vmem:[#allocation8 + $0xe90] sm:$0xff]
    %v7660 = vld [vmem:[#allocation8 + $0xe98] sm:$0xff]
    %v7661 = vld [vmem:[#allocation8 + $0xea0] sm:$0xff]
    %v7662 = vld [vmem:[#allocation8 + $0xea8] sm:$0xff]
    %v7663 = vld [vmem:[#allocation8 + $0xeb0] sm:$0xff]
    %v7664 = vld [vmem:[#allocation8 + $0xeb8] sm:$0xff]
    %v7665 = vld [vmem:[#allocation8 + $0xec0] sm:$0xff]
    %v7666 = vld [vmem:[#allocation8 + $0xec8] sm:$0xff]
    %v7667 = vld [vmem:[#allocation8 + $0xed0] sm:$0xff]
    %v7668 = vld [vmem:[#allocation8 + $0xed8] sm:$0xff]
    %v7669 = vld [vmem:[#allocation8 + $0xee0] sm:$0xff]
    %v7670 = vld [vmem:[#allocation8 + $0xee8] sm:$0xff]
    %v7671 = vld [vmem:[#allocation8 + $0xef0] sm:$0xff]
    %v7672 = vld [vmem:[#allocation8 + $0xef8] sm:$0xff]
    %v7673 = vld [vmem:[#allocation8 + $0xf00] sm:$0xff]
    %v7674 = vld [vmem:[#allocation8 + $0xf08] sm:$0xff]
    %v7675 = vld [vmem:[#allocation8 + $0xf10] sm:$0xff]
    %v7676 = vld [vmem:[#allocation8 + $0xf18] sm:$0xff]
    %v7677 = vld [vmem:[#allocation8 + $0xf20] sm:$0xff]
    %v7678 = vld [vmem:[#allocation8 + $0xf28] sm:$0xff]
    %v7679 = vld [vmem:[#allocation8 + $0xf30] sm:$0xff]
    %v7680 = vld [vmem:[#allocation8 + $0xf38] sm:$0xff]
    %v7681 = vld [vmem:[#allocation8 + $0xf40] sm:$0xff]
    %v7682 = vld [vmem:[#allocation8 + $0xf48] sm:$0xff]
    %v7683 = vld [vmem:[#allocation8 + $0xf50] sm:$0xff]
    %v7684 = vld [vmem:[#allocation8 + $0xf58] sm:$0xff]
    %v7685 = vld [vmem:[#allocation8 + $0xf60] sm:$0xff]
    %v7686 = vld [vmem:[#allocation8 + $0xf68] sm:$0xff]
    %v7687 = vld [vmem:[#allocation8 + $0xf70] sm:$0xff]
    %v7688 = vld [vmem:[#allocation8 + $0xf78] sm:$0xff]
    %v7689 = vld [vmem:[#allocation8 + $0xf80] sm:$0xff]
    %v7690 = vld [vmem:[#allocation8 + $0xf88] sm:$0xff]
    %v7691 = vld [vmem:[#allocation8 + $0xf90] sm:$0xff]
    %v7692 = vld [vmem:[#allocation8 + $0xf98] sm:$0xff]
    %v7693 = vld [vmem:[#allocation8 + $0xfa0] sm:$0xff]
    %v7694 = vld [vmem:[#allocation8 + $0xfa8] sm:$0xff]
    %v7695 = vld [vmem:[#allocation8 + $0xfb0] sm:$0xff]
    %v7696 = vld [vmem:[#allocation8 + $0xfb8] sm:$0xff]
    %v7697 = vld [vmem:[#allocation8 + $0xfc0] sm:$0xff]
    %v7698 = vld [vmem:[#allocation8 + $0xfc8] sm:$0xff]
    %v7699 = vld [vmem:[#allocation8 + $0xfd0] sm:$0xff]
    %v7700 = vld [vmem:[#allocation8 + $0xfd8] sm:$0xff]
    %v7701 = vld [vmem:[#allocation8 + $0xfe0] sm:$0xff]
    %v7702 = vld [vmem:[#allocation8 + $0xfe8] sm:$0xff]
    %v7703 = vld [vmem:[#allocation8 + $0xff0] sm:$0xff]
    %v7704 = vld [vmem:[#allocation8 + $0xff8] sm:$0xff]
    %v8217 = vunpack.c.l.b16 %v7193
    %v8218 = vunpack.c.h.b16 %v7193
    %v8219 = vunpack.c.l.b16 %v7194
    %v8220 = vunpack.c.h.b16 %v7194
    %v8221 = vunpack.c.l.b16 %v7195
    %v8222 = vunpack.c.h.b16 %v7195
    %v8223 = vunpack.c.l.b16 %v7196
    %v8224 = vunpack.c.h.b16 %v7196
    %v8225 = vunpack.c.l.b16 %v7197
    %v8226 = vunpack.c.h.b16 %v7197
    %v8227 = vunpack.c.l.b16 %v7198
    %v8228 = vunpack.c.h.b16 %v7198
    %v8229 = vunpack.c.l.b16 %v7199
    %v8230 = vunpack.c.h.b16 %v7199
    %v8231 = vunpack.c.l.b16 %v7200
    %v8232 = vunpack.c.h.b16 %v7200
    %v8233 = vunpack.c.l.b16 %v7201
    %v8234 = vunpack.c.h.b16 %v7201
    %v8235 = vunpack.c.l.b16 %v7202
    %v8236 = vunpack.c.h.b16 %v7202
    %v8237 = vunpack.c.l.b16 %v7203
    %v8238 = vunpack.c.h.b16 %v7203
    %v8239 = vunpack.c.l.b16 %v7204
    %v8240 = vunpack.c.h.b16 %v7204
    %v8241 = vunpack.c.l.b16 %v7205
    %v8242 = vunpack.c.h.b16 %v7205
    %v8243 = vunpack.c.l.b16 %v7206
    %v8244 = vunpack.c.h.b16 %v7206
    %v8245 = vunpack.c.l.b16 %v7207
    %v8246 = vunpack.c.h.b16 %v7207
    %v8247 = vunpack.c.l.b16 %v7208
    %v8248 = vunpack.c.h.b16 %v7208
    %v8249 = vunpack.c.l.b16 %v7209
    %v8250 = vunpack.c.h.b16 %v7209
    %v8251 = vunpack.c.l.b16 %v7210
    %v8252 = vunpack.c.h.b16 %v7210
    %v8253 = vunpack.c.l.b16 %v7211
    %v8254 = vunpack.c.h.b16 %v7211
    %v8255 = vunpack.c.l.b16 %v7212
    %v8256 = vunpack.c.h.b16 %v7212
    %v8257 = vunpack.c.l.b16 %v7213
    %v8258 = vunpack.c.h.b16 %v7213
    %v8259 = vunpack.c.l.b16 %v7214
    %v8260 = vunpack.c.h.b16 %v7214
    %v8261 = vunpack.c.l.b16 %v7215
    %v8262 = vunpack.c.h.b16 %v7215
    %v8263 = vunpack.c.l.b16 %v7216
    %v8264 = vunpack.c.h.b16 %v7216
    %v8265 = vunpack.c.l.b16 %v7217
    %v8266 = vunpack.c.h.b16 %v7217
    %v8267 = vunpack.c.l.b16 %v7218
    %v8268 = vunpack.c.h.b16 %v7218
    %v8269 = vunpack.c.l.b16 %v7219
    %v8270 = vunpack.c.h.b16 %v7219
    %v8271 = vunpack.c.l.b16 %v7220
    %v8272 = vunpack.c.h.b16 %v7220
    %v8273 = vunpack.c.l.b16 %v7221
    %v8274 = vunpack.c.h.b16 %v7221
    %v8275 = vunpack.c.l.b16 %v7222
    %v8276 = vunpack.c.h.b16 %v7222
    %v8277 = vunpack.c.l.b16 %v7223
    %v8278 = vunpack.c.h.b16 %v7223
    %v8279 = vunpack.c.l.b16 %v7224
    %v8280 = vunpack.c.h.b16 %v7224
    %v8281 = vunpack.c.l.b16 %v7225
    %v8282 = vunpack.c.h.b16 %v7225
    %v8283 = vunpack.c.l.b16 %v7226
    %v8284 = vunpack.c.h.b16 %v7226
    %v8285 = vunpack.c.l.b16 %v7227
    %v8286 = vunpack.c.h.b16 %v7227
    %v8287 = vunpack.c.l.b16 %v7228
    %v8288 = vunpack.c.h.b16 %v7228
    %v8289 = vunpack.c.l.b16 %v7229
    %v8290 = vunpack.c.h.b16 %v7229
    %v8291 = vunpack.c.l.b16 %v7230
    %v8292 = vunpack.c.h.b16 %v7230
    %v8293 = vunpack.c.l.b16 %v7231
    %v8294 = vunpack.c.h.b16 %v7231
    %v8295 = vunpack.c.l.b16 %v7232
    %v8296 = vunpack.c.h.b16 %v7232
    %v8297 = vunpack.c.l.b16 %v7233
    %v8298 = vunpack.c.h.b16 %v7233
    %v8299 = vunpack.c.l.b16 %v7234
    %v8300 = vunpack.c.h.b16 %v7234
    %v8301 = vunpack.c.l.b16 %v7235
    %v8302 = vunpack.c.h.b16 %v7235
    %v8303 = vunpack.c.l.b16 %v7236
    %v8304 = vunpack.c.h.b16 %v7236
    %v8305 = vunpack.c.l.b16 %v7237
    %v8306 = vunpack.c.h.b16 %v7237
    %v8307 = vunpack.c.l.b16 %v7238
    %v8308 = vunpack.c.h.b16 %v7238
    %v8309 = vunpack.c.l.b16 %v7239
    %v8310 = vunpack.c.h.b16 %v7239
    %v8311 = vunpack.c.l.b16 %v7240
    %v8312 = vunpack.c.h.b16 %v7240
    %v8313 = vunpack.c.l.b16 %v7241
    %v8314 = vunpack.c.h.b16 %v7241
    %v8315 = vunpack.c.l.b16 %v7242
    %v8316 = vunpack.c.h.b16 %v7242
    %v8317 = vunpack.c.l.b16 %v7243
    %v8318 = vunpack.c.h.b16 %v7243
    %v8319 = vunpack.c.l.b16 %v7244
    %v8320 = vunpack.c.h.b16 %v7244
    %v8321 = vunpack.c.l.b16 %v7245
    %v8322 = vunpack.c.h.b16 %v7245
    %v8323 = vunpack.c.l.b16 %v7246
    %v8324 = vunpack.c.h.b16 %v7246
    %v8325 = vunpack.c.l.b16 %v7247
    %v8326 = vunpack.c.h.b16 %v7247
    %v8327 = vunpack.c.l.b16 %v7248
    %v8328 = vunpack.c.h.b16 %v7248
    %v8329 = vunpack.c.l.b16 %v7249
    %v8330 = vunpack.c.h.b16 %v7249
    %v8331 = vunpack.c.l.b16 %v7250
    %v8332 = vunpack.c.h.b16 %v7250
    %v8333 = vunpack.c.l.b16 %v7251
    %v8334 = vunpack.c.h.b16 %v7251
    %v8335 = vunpack.c.l.b16 %v7252
    %v8336 = vunpack.c.h.b16 %v7252
    %v8337 = vunpack.c.l.b16 %v7253
    %v8338 = vunpack.c.h.b16 %v7253
    %v8339 = vunpack.c.l.b16 %v7254
    %v8340 = vunpack.c.h.b16 %v7254
    %v8341 = vunpack.c.l.b16 %v7255
    %v8342 = vunpack.c.h.b16 %v7255
    %v8343 = vunpack.c.l.b16 %v7256
    %v8344 = vunpack.c.h.b16 %v7256
    %v8345 = vunpack.c.l.b16 %v7257
    %v8346 = vunpack.c.h.b16 %v7257
    %v8347 = vunpack.c.l.b16 %v7258
    %v8348 = vunpack.c.h.b16 %v7258
    %v8349 = vunpack.c.l.b16 %v7259
    %v8350 = vunpack.c.h.b16 %v7259
    %v8351 = vunpack.c.l.b16 %v7260
    %v8352 = vunpack.c.h.b16 %v7260
    %v8353 = vunpack.c.l.b16 %v7261
    %v8354 = vunpack.c.h.b16 %v7261
    %v8355 = vunpack.c.l.b16 %v7262
    %v8356 = vunpack.c.h.b16 %v7262
    %v8357 = vunpack.c.l.b16 %v7263
    %v8358 = vunpack.c.h.b16 %v7263
    %v8359 = vunpack.c.l.b16 %v7264
    %v8360 = vunpack.c.h.b16 %v7264
    %v8361 = vunpack.c.l.b16 %v7265
    %v8362 = vunpack.c.h.b16 %v7265
    %v8363 = vunpack.c.l.b16 %v7266
    %v8364 = vunpack.c.h.b16 %v7266
    %v8365 = vunpack.c.l.b16 %v7267
    %v8366 = vunpack.c.h.b16 %v7267
    %v8367 = vunpack.c.l.b16 %v7268
    %v8368 = vunpack.c.h.b16 %v7268
    %v8369 = vunpack.c.l.b16 %v7269
    %v8370 = vunpack.c.h.b16 %v7269
    %v8371 = vunpack.c.l.b16 %v7270
    %v8372 = vunpack.c.h.b16 %v7270
    %v8373 = vunpack.c.l.b16 %v7271
    %v8374 = vunpack.c.h.b16 %v7271
    %v8375 = vunpack.c.l.b16 %v7272
    %v8376 = vunpack.c.h.b16 %v7272
    %v8377 = vunpack.c.l.b16 %v7273
    %v8378 = vunpack.c.h.b16 %v7273
    %v8379 = vunpack.c.l.b16 %v7274
    %v8380 = vunpack.c.h.b16 %v7274
    %v8381 = vunpack.c.l.b16 %v7275
    %v8382 = vunpack.c.h.b16 %v7275
    %v8383 = vunpack.c.l.b16 %v7276
    %v8384 = vunpack.c.h.b16 %v7276
    %v8385 = vunpack.c.l.b16 %v7277
    %v8386 = vunpack.c.h.b16 %v7277
    %v8387 = vunpack.c.l.b16 %v7278
    %v8388 = vunpack.c.h.b16 %v7278
    %v8389 = vunpack.c.l.b16 %v7279
    %v8390 = vunpack.c.h.b16 %v7279
    %v8391 = vunpack.c.l.b16 %v7280
    %v8392 = vunpack.c.h.b16 %v7280
    %v8393 = vunpack.c.l.b16 %v7281
    %v8394 = vunpack.c.h.b16 %v7281
    %v8395 = vunpack.c.l.b16 %v7282
    %v8396 = vunpack.c.h.b16 %v7282
    %v8397 = vunpack.c.l.b16 %v7283
    %v8398 = vunpack.c.h.b16 %v7283
    %v8399 = vunpack.c.l.b16 %v7284
    %v8400 = vunpack.c.h.b16 %v7284
    %v8401 = vunpack.c.l.b16 %v7285
    %v8402 = vunpack.c.h.b16 %v7285
    %v8403 = vunpack.c.l.b16 %v7286
    %v8404 = vunpack.c.h.b16 %v7286
    %v8405 = vunpack.c.l.b16 %v7287
    %v8406 = vunpack.c.h.b16 %v7287
    %v8407 = vunpack.c.l.b16 %v7288
    %v8408 = vunpack.c.h.b16 %v7288
    %v8409 = vunpack.c.l.b16 %v7289
    %v8410 = vunpack.c.h.b16 %v7289
    %v8411 = vunpack.c.l.b16 %v7290
    %v8412 = vunpack.c.h.b16 %v7290
    %v8413 = vunpack.c.l.b16 %v7291
    %v8414 = vunpack.c.h.b16 %v7291
    %v8415 = vunpack.c.l.b16 %v7292
    %v8416 = vunpack.c.h.b16 %v7292
    %v8417 = vunpack.c.l.b16 %v7293
    %v8418 = vunpack.c.h.b16 %v7293
    %v8419 = vunpack.c.l.b16 %v7294
    %v8420 = vunpack.c.h.b16 %v7294
    %v8421 = vunpack.c.l.b16 %v7295
    %v8422 = vunpack.c.h.b16 %v7295
    %v8423 = vunpack.c.l.b16 %v7296
    %v8424 = vunpack.c.h.b16 %v7296
    %v8425 = vunpack.c.l.b16 %v7297
    %v8426 = vunpack.c.h.b16 %v7297
    %v8427 = vunpack.c.l.b16 %v7298
    %v8428 = vunpack.c.h.b16 %v7298
    %v8429 = vunpack.c.l.b16 %v7299
    %v8430 = vunpack.c.h.b16 %v7299
    %v8431 = vunpack.c.l.b16 %v7300
    %v8432 = vunpack.c.h.b16 %v7300
    %v8433 = vunpack.c.l.b16 %v7301
    %v8434 = vunpack.c.h.b16 %v7301
    %v8435 = vunpack.c.l.b16 %v7302
    %v8436 = vunpack.c.h.b16 %v7302
    %v8437 = vunpack.c.l.b16 %v7303
    %v8438 = vunpack.c.h.b16 %v7303
    %v8439 = vunpack.c.l.b16 %v7304
    %v8440 = vunpack.c.h.b16 %v7304
    %v8441 = vunpack.c.l.b16 %v7305
    %v8442 = vunpack.c.h.b16 %v7305
    %v8443 = vunpack.c.l.b16 %v7306
    %v8444 = vunpack.c.h.b16 %v7306
    %v8445 = vunpack.c.l.b16 %v7307
    %v8446 = vunpack.c.h.b16 %v7307
    %v8447 = vunpack.c.l.b16 %v7308
    %v8448 = vunpack.c.h.b16 %v7308
    %v8449 = vunpack.c.l.b16 %v7309
    %v8450 = vunpack.c.h.b16 %v7309
    %v8451 = vunpack.c.l.b16 %v7310
    %v8452 = vunpack.c.h.b16 %v7310
    %v8453 = vunpack.c.l.b16 %v7311
    %v8454 = vunpack.c.h.b16 %v7311
    %v8455 = vunpack.c.l.b16 %v7312
    %v8456 = vunpack.c.h.b16 %v7312
    %v8457 = vunpack.c.l.b16 %v7313
    %v8458 = vunpack.c.h.b16 %v7313
    %v8459 = vunpack.c.l.b16 %v7314
    %v8460 = vunpack.c.h.b16 %v7314
    %v8461 = vunpack.c.l.b16 %v7315
    %v8462 = vunpack.c.h.b16 %v7315
    %v8463 = vunpack.c.l.b16 %v7316
    %v8464 = vunpack.c.h.b16 %v7316
    %v8465 = vunpack.c.l.b16 %v7317
    %v8466 = vunpack.c.h.b16 %v7317
    %v8467 = vunpack.c.l.b16 %v7318
    %v8468 = vunpack.c.h.b16 %v7318
    %v8469 = vunpack.c.l.b16 %v7319
    %v8470 = vunpack.c.h.b16 %v7319
    %v8471 = vunpack.c.l.b16 %v7320
    %v8472 = vunpack.c.h.b16 %v7320
    %v8473 = vunpack.c.l.b16 %v7321
    %v8474 = vunpack.c.h.b16 %v7321
    %v8475 = vunpack.c.l.b16 %v7322
    %v8476 = vunpack.c.h.b16 %v7322
    %v8477 = vunpack.c.l.b16 %v7323
    %v8478 = vunpack.c.h.b16 %v7323
    %v8479 = vunpack.c.l.b16 %v7324
    %v8480 = vunpack.c.h.b16 %v7324
    %v8481 = vunpack.c.l.b16 %v7325
    %v8482 = vunpack.c.h.b16 %v7325
    %v8483 = vunpack.c.l.b16 %v7326
    %v8484 = vunpack.c.h.b16 %v7326
    %v8485 = vunpack.c.l.b16 %v7327
    %v8486 = vunpack.c.h.b16 %v7327
    %v8487 = vunpack.c.l.b16 %v7328
    %v8488 = vunpack.c.h.b16 %v7328
    %v8489 = vunpack.c.l.b16 %v7329
    %v8490 = vunpack.c.h.b16 %v7329
    %v8491 = vunpack.c.l.b16 %v7330
    %v8492 = vunpack.c.h.b16 %v7330
    %v8493 = vunpack.c.l.b16 %v7331
    %v8494 = vunpack.c.h.b16 %v7331
    %v8495 = vunpack.c.l.b16 %v7332
    %v8496 = vunpack.c.h.b16 %v7332
    %v8497 = vunpack.c.l.b16 %v7333
    %v8498 = vunpack.c.h.b16 %v7333
    %v8499 = vunpack.c.l.b16 %v7334
    %v8500 = vunpack.c.h.b16 %v7334
    %v8501 = vunpack.c.l.b16 %v7335
    %v8502 = vunpack.c.h.b16 %v7335
    %v8503 = vunpack.c.l.b16 %v7336
    %v8504 = vunpack.c.h.b16 %v7336
    %v8505 = vunpack.c.l.b16 %v7337
    %v8506 = vunpack.c.h.b16 %v7337
    %v8507 = vunpack.c.l.b16 %v7338
    %v8508 = vunpack.c.h.b16 %v7338
    %v8509 = vunpack.c.l.b16 %v7339
    %v8510 = vunpack.c.h.b16 %v7339
    %v8511 = vunpack.c.l.b16 %v7340
    %v8512 = vunpack.c.h.b16 %v7340
    %v8513 = vunpack.c.l.b16 %v7341
    %v8514 = vunpack.c.h.b16 %v7341
    %v8515 = vunpack.c.l.b16 %v7342
    %v8516 = vunpack.c.h.b16 %v7342
    %v8517 = vunpack.c.l.b16 %v7343
    %v8518 = vunpack.c.h.b16 %v7343
    %v8519 = vunpack.c.l.b16 %v7344
    %v8520 = vunpack.c.h.b16 %v7344
    %v8521 = vunpack.c.l.b16 %v7345
    %v8522 = vunpack.c.h.b16 %v7345
    %v8523 = vunpack.c.l.b16 %v7346
    %v8524 = vunpack.c.h.b16 %v7346
    %v8525 = vunpack.c.l.b16 %v7347
    %v8526 = vunpack.c.h.b16 %v7347
    %v8527 = vunpack.c.l.b16 %v7348
    %v8528 = vunpack.c.h.b16 %v7348
    %v8529 = vunpack.c.l.b16 %v7349
    %v8530 = vunpack.c.h.b16 %v7349
    %v8531 = vunpack.c.l.b16 %v7350
    %v8532 = vunpack.c.h.b16 %v7350
    %v8533 = vunpack.c.l.b16 %v7351
    %v8534 = vunpack.c.h.b16 %v7351
    %v8535 = vunpack.c.l.b16 %v7352
    %v8536 = vunpack.c.h.b16 %v7352
    %v8537 = vunpack.c.l.b16 %v7353
    %v8538 = vunpack.c.h.b16 %v7353
    %v8539 = vunpack.c.l.b16 %v7354
    %v8540 = vunpack.c.h.b16 %v7354
    %v8541 = vunpack.c.l.b16 %v7355
    %v8542 = vunpack.c.h.b16 %v7355
    %v8543 = vunpack.c.l.b16 %v7356
    %v8544 = vunpack.c.h.b16 %v7356
    %v8545 = vunpack.c.l.b16 %v7357
    %v8546 = vunpack.c.h.b16 %v7357
    %v8547 = vunpack.c.l.b16 %v7358
    %v8548 = vunpack.c.h.b16 %v7358
    %v8549 = vunpack.c.l.b16 %v7359
    %v8550 = vunpack.c.h.b16 %v7359
    %v8551 = vunpack.c.l.b16 %v7360
    %v8552 = vunpack.c.h.b16 %v7360
    %v8553 = vunpack.c.l.b16 %v7361
    %v8554 = vunpack.c.h.b16 %v7361
    %v8555 = vunpack.c.l.b16 %v7362
    %v8556 = vunpack.c.h.b16 %v7362
    %v8557 = vunpack.c.l.b16 %v7363
    %v8558 = vunpack.c.h.b16 %v7363
    %v8559 = vunpack.c.l.b16 %v7364
    %v8560 = vunpack.c.h.b16 %v7364
    %v8561 = vunpack.c.l.b16 %v7365
    %v8562 = vunpack.c.h.b16 %v7365
    %v8563 = vunpack.c.l.b16 %v7366
    %v8564 = vunpack.c.h.b16 %v7366
    %v8565 = vunpack.c.l.b16 %v7367
    %v8566 = vunpack.c.h.b16 %v7367
    %v8567 = vunpack.c.l.b16 %v7368
    %v8568 = vunpack.c.h.b16 %v7368
    %v8569 = vunpack.c.l.b16 %v7369
    %v8570 = vunpack.c.h.b16 %v7369
    %v8571 = vunpack.c.l.b16 %v7370
    %v8572 = vunpack.c.h.b16 %v7370
    %v8573 = vunpack.c.l.b16 %v7371
    %v8574 = vunpack.c.h.b16 %v7371
    %v8575 = vunpack.c.l.b16 %v7372
    %v8576 = vunpack.c.h.b16 %v7372
    %v8577 = vunpack.c.l.b16 %v7373
    %v8578 = vunpack.c.h.b16 %v7373
    %v8579 = vunpack.c.l.b16 %v7374
    %v8580 = vunpack.c.h.b16 %v7374
    %v8581 = vunpack.c.l.b16 %v7375
    %v8582 = vunpack.c.h.b16 %v7375
    %v8583 = vunpack.c.l.b16 %v7376
    %v8584 = vunpack.c.h.b16 %v7376
    %v8585 = vunpack.c.l.b16 %v7377
    %v8586 = vunpack.c.h.b16 %v7377
    %v8587 = vunpack.c.l.b16 %v7378
    %v8588 = vunpack.c.h.b16 %v7378
    %v8589 = vunpack.c.l.b16 %v7379
    %v8590 = vunpack.c.h.b16 %v7379
    %v8591 = vunpack.c.l.b16 %v7380
    %v8592 = vunpack.c.h.b16 %v7380
    %v8593 = vunpack.c.l.b16 %v7381
    %v8594 = vunpack.c.h.b16 %v7381
    %v8595 = vunpack.c.l.b16 %v7382
    %v8596 = vunpack.c.h.b16 %v7382
    %v8597 = vunpack.c.l.b16 %v7383
    %v8598 = vunpack.c.h.b16 %v7383
    %v8599 = vunpack.c.l.b16 %v7384
    %v8600 = vunpack.c.h.b16 %v7384
    %v8601 = vunpack.c.l.b16 %v7385
    %v8602 = vunpack.c.h.b16 %v7385
    %v8603 = vunpack.c.l.b16 %v7386
    %v8604 = vunpack.c.h.b16 %v7386
    %v8605 = vunpack.c.l.b16 %v7387
    %v8606 = vunpack.c.h.b16 %v7387
    %v8607 = vunpack.c.l.b16 %v7388
    %v8608 = vunpack.c.h.b16 %v7388
    %v8609 = vunpack.c.l.b16 %v7389
    %v8610 = vunpack.c.h.b16 %v7389
    %v8611 = vunpack.c.l.b16 %v7390
    %v8612 = vunpack.c.h.b16 %v7390
    %v8613 = vunpack.c.l.b16 %v7391
    %v8614 = vunpack.c.h.b16 %v7391
    %v8615 = vunpack.c.l.b16 %v7392
    %v8616 = vunpack.c.h.b16 %v7392
    %v8617 = vunpack.c.l.b16 %v7393
    %v8618 = vunpack.c.h.b16 %v7393
    %v8619 = vunpack.c.l.b16 %v7394
    %v8620 = vunpack.c.h.b16 %v7394
    %v8621 = vunpack.c.l.b16 %v7395
    %v8622 = vunpack.c.h.b16 %v7395
    %v8623 = vunpack.c.l.b16 %v7396
    %v8624 = vunpack.c.h.b16 %v7396
    %v8625 = vunpack.c.l.b16 %v7397
    %v8626 = vunpack.c.h.b16 %v7397
    %v8627 = vunpack.c.l.b16 %v7398
    %v8628 = vunpack.c.h.b16 %v7398
    %v8629 = vunpack.c.l.b16 %v7399
    %v8630 = vunpack.c.h.b16 %v7399
    %v8631 = vunpack.c.l.b16 %v7400
    %v8632 = vunpack.c.h.b16 %v7400
    %v8633 = vunpack.c.l.b16 %v7401
    %v8634 = vunpack.c.h.b16 %v7401
    %v8635 = vunpack.c.l.b16 %v7402
    %v8636 = vunpack.c.h.b16 %v7402
    %v8637 = vunpack.c.l.b16 %v7403
    %v8638 = vunpack.c.h.b16 %v7403
    %v8639 = vunpack.c.l.b16 %v7404
    %v8640 = vunpack.c.h.b16 %v7404
    %v8641 = vunpack.c.l.b16 %v7405
    %v8642 = vunpack.c.h.b16 %v7405
    %v8643 = vunpack.c.l.b16 %v7406
    %v8644 = vunpack.c.h.b16 %v7406
    %v8645 = vunpack.c.l.b16 %v7407
    %v8646 = vunpack.c.h.b16 %v7407
    %v8647 = vunpack.c.l.b16 %v7408
    %v8648 = vunpack.c.h.b16 %v7408
    %v8649 = vunpack.c.l.b16 %v7409
    %v8650 = vunpack.c.h.b16 %v7409
    %v8651 = vunpack.c.l.b16 %v7410
    %v8652 = vunpack.c.h.b16 %v7410
    %v8653 = vunpack.c.l.b16 %v7411
    %v8654 = vunpack.c.h.b16 %v7411
    %v8655 = vunpack.c.l.b16 %v7412
    %v8656 = vunpack.c.h.b16 %v7412
    %v8657 = vunpack.c.l.b16 %v7413
    %v8658 = vunpack.c.h.b16 %v7413
    %v8659 = vunpack.c.l.b16 %v7414
    %v8660 = vunpack.c.h.b16 %v7414
    %v8661 = vunpack.c.l.b16 %v7415
    %v8662 = vunpack.c.h.b16 %v7415
    %v8663 = vunpack.c.l.b16 %v7416
    %v8664 = vunpack.c.h.b16 %v7416
    %v8665 = vunpack.c.l.b16 %v7417
    %v8666 = vunpack.c.h.b16 %v7417
    %v8667 = vunpack.c.l.b16 %v7418
    %v8668 = vunpack.c.h.b16 %v7418
    %v8669 = vunpack.c.l.b16 %v7419
    %v8670 = vunpack.c.h.b16 %v7419
    %v8671 = vunpack.c.l.b16 %v7420
    %v8672 = vunpack.c.h.b16 %v7420
    %v8673 = vunpack.c.l.b16 %v7421
    %v8674 = vunpack.c.h.b16 %v7421
    %v8675 = vunpack.c.l.b16 %v7422
    %v8676 = vunpack.c.h.b16 %v7422
    %v8677 = vunpack.c.l.b16 %v7423
    %v8678 = vunpack.c.h.b16 %v7423
    %v8679 = vunpack.c.l.b16 %v7424
    %v8680 = vunpack.c.h.b16 %v7424
    %v8681 = vunpack.c.l.b16 %v7425
    %v8682 = vunpack.c.h.b16 %v7425
    %v8683 = vunpack.c.l.b16 %v7426
    %v8684 = vunpack.c.h.b16 %v7426
    %v8685 = vunpack.c.l.b16 %v7427
    %v8686 = vunpack.c.h.b16 %v7427
    %v8687 = vunpack.c.l.b16 %v7428
    %v8688 = vunpack.c.h.b16 %v7428
    %v8689 = vunpack.c.l.b16 %v7429
    %v8690 = vunpack.c.h.b16 %v7429
    %v8691 = vunpack.c.l.b16 %v7430
    %v8692 = vunpack.c.h.b16 %v7430
    %v8693 = vunpack.c.l.b16 %v7431
    %v8694 = vunpack.c.h.b16 %v7431
    %v8695 = vunpack.c.l.b16 %v7432
    %v8696 = vunpack.c.h.b16 %v7432
    %v8697 = vunpack.c.l.b16 %v7433
    %v8698 = vunpack.c.h.b16 %v7433
    %v8699 = vunpack.c.l.b16 %v7434
    %v8700 = vunpack.c.h.b16 %v7434
    %v8701 = vunpack.c.l.b16 %v7435
    %v8702 = vunpack.c.h.b16 %v7435
    %v8703 = vunpack.c.l.b16 %v7436
    %v8704 = vunpack.c.h.b16 %v7436
    %v8705 = vunpack.c.l.b16 %v7437
    %v8706 = vunpack.c.h.b16 %v7437
    %v8707 = vunpack.c.l.b16 %v7438
    %v8708 = vunpack.c.h.b16 %v7438
    %v8709 = vunpack.c.l.b16 %v7439
    %v8710 = vunpack.c.h.b16 %v7439
    %v8711 = vunpack.c.l.b16 %v7440
    %v8712 = vunpack.c.h.b16 %v7440
    %v8713 = vunpack.c.l.b16 %v7441
    %v8714 = vunpack.c.h.b16 %v7441
    %v8715 = vunpack.c.l.b16 %v7442
    %v8716 = vunpack.c.h.b16 %v7442
    %v8717 = vunpack.c.l.b16 %v7443
    %v8718 = vunpack.c.h.b16 %v7443
    %v8719 = vunpack.c.l.b16 %v7444
    %v8720 = vunpack.c.h.b16 %v7444
    %v8721 = vunpack.c.l.b16 %v7445
    %v8722 = vunpack.c.h.b16 %v7445
    %v8723 = vunpack.c.l.b16 %v7446
    %v8724 = vunpack.c.h.b16 %v7446
    %v8725 = vunpack.c.l.b16 %v7447
    %v8726 = vunpack.c.h.b16 %v7447
    %v8727 = vunpack.c.l.b16 %v7448
    %v8728 = vunpack.c.h.b16 %v7448
    %v8729 = vunpack.c.l.b16 %v7449
    %v8730 = vunpack.c.h.b16 %v7449
    %v8731 = vunpack.c.l.b16 %v7450
    %v8732 = vunpack.c.h.b16 %v7450
    %v8733 = vunpack.c.l.b16 %v7451
    %v8734 = vunpack.c.h.b16 %v7451
    %v8735 = vunpack.c.l.b16 %v7452
    %v8736 = vunpack.c.h.b16 %v7452
    %v8737 = vunpack.c.l.b16 %v7453
    %v8738 = vunpack.c.h.b16 %v7453
    %v8739 = vunpack.c.l.b16 %v7454
    %v8740 = vunpack.c.h.b16 %v7454
    %v8741 = vunpack.c.l.b16 %v7455
    %v8742 = vunpack.c.h.b16 %v7455
    %v8743 = vunpack.c.l.b16 %v7456
    %v8744 = vunpack.c.h.b16 %v7456
    %v8745 = vunpack.c.l.b16 %v7457
    %v8746 = vunpack.c.h.b16 %v7457
    %v8747 = vunpack.c.l.b16 %v7458
    %v8748 = vunpack.c.h.b16 %v7458
    %v8749 = vunpack.c.l.b16 %v7459
    %v8750 = vunpack.c.h.b16 %v7459
    %v8751 = vunpack.c.l.b16 %v7460
    %v8752 = vunpack.c.h.b16 %v7460
    %v8753 = vunpack.c.l.b16 %v7461
    %v8754 = vunpack.c.h.b16 %v7461
    %v8755 = vunpack.c.l.b16 %v7462
    %v8756 = vunpack.c.h.b16 %v7462
    %v8757 = vunpack.c.l.b16 %v7463
    %v8758 = vunpack.c.h.b16 %v7463
    %v8759 = vunpack.c.l.b16 %v7464
    %v8760 = vunpack.c.h.b16 %v7464
    %v8761 = vunpack.c.l.b16 %v7465
    %v8762 = vunpack.c.h.b16 %v7465
    %v8763 = vunpack.c.l.b16 %v7466
    %v8764 = vunpack.c.h.b16 %v7466
    %v8765 = vunpack.c.l.b16 %v7467
    %v8766 = vunpack.c.h.b16 %v7467
    %v8767 = vunpack.c.l.b16 %v7468
    %v8768 = vunpack.c.h.b16 %v7468
    %v8769 = vunpack.c.l.b16 %v7469
    %v8770 = vunpack.c.h.b16 %v7469
    %v8771 = vunpack.c.l.b16 %v7470
    %v8772 = vunpack.c.h.b16 %v7470
    %v8773 = vunpack.c.l.b16 %v7471
    %v8774 = vunpack.c.h.b16 %v7471
    %v8775 = vunpack.c.l.b16 %v7472
    %v8776 = vunpack.c.h.b16 %v7472
    %v8777 = vunpack.c.l.b16 %v7473
    %v8778 = vunpack.c.h.b16 %v7473
    %v8779 = vunpack.c.l.b16 %v7474
    %v8780 = vunpack.c.h.b16 %v7474
    %v8781 = vunpack.c.l.b16 %v7475
    %v8782 = vunpack.c.h.b16 %v7475
    %v8783 = vunpack.c.l.b16 %v7476
    %v8784 = vunpack.c.h.b16 %v7476
    %v8785 = vunpack.c.l.b16 %v7477
    %v8786 = vunpack.c.h.b16 %v7477
    %v8787 = vunpack.c.l.b16 %v7478
    %v8788 = vunpack.c.h.b16 %v7478
    %v8789 = vunpack.c.l.b16 %v7479
    %v8790 = vunpack.c.h.b16 %v7479
    %v8791 = vunpack.c.l.b16 %v7480
    %v8792 = vunpack.c.h.b16 %v7480
    %v8793 = vunpack.c.l.b16 %v7481
    %v8794 = vunpack.c.h.b16 %v7481
    %v8795 = vunpack.c.l.b16 %v7482
    %v8796 = vunpack.c.h.b16 %v7482
    %v8797 = vunpack.c.l.b16 %v7483
    %v8798 = vunpack.c.h.b16 %v7483
    %v8799 = vunpack.c.l.b16 %v7484
    %v8800 = vunpack.c.h.b16 %v7484
    %v8801 = vunpack.c.l.b16 %v7485
    %v8802 = vunpack.c.h.b16 %v7485
    %v8803 = vunpack.c.l.b16 %v7486
    %v8804 = vunpack.c.h.b16 %v7486
    %v8805 = vunpack.c.l.b16 %v7487
    %v8806 = vunpack.c.h.b16 %v7487
    %v8807 = vunpack.c.l.b16 %v7488
    %v8808 = vunpack.c.h.b16 %v7488
    %v8809 = vunpack.c.l.b16 %v7489
    %v8810 = vunpack.c.h.b16 %v7489
    %v8811 = vunpack.c.l.b16 %v7490
    %v8812 = vunpack.c.h.b16 %v7490
    %v8813 = vunpack.c.l.b16 %v7491
    %v8814 = vunpack.c.h.b16 %v7491
    %v8815 = vunpack.c.l.b16 %v7492
    %v8816 = vunpack.c.h.b16 %v7492
    %v8817 = vunpack.c.l.b16 %v7493
    %v8818 = vunpack.c.h.b16 %v7493
    %v8819 = vunpack.c.l.b16 %v7494
    %v8820 = vunpack.c.h.b16 %v7494
    %v8821 = vunpack.c.l.b16 %v7495
    %v8822 = vunpack.c.h.b16 %v7495
    %v8823 = vunpack.c.l.b16 %v7496
    %v8824 = vunpack.c.h.b16 %v7496
    %v8825 = vunpack.c.l.b16 %v7497
    %v8826 = vunpack.c.h.b16 %v7497
    %v8827 = vunpack.c.l.b16 %v7498
    %v8828 = vunpack.c.h.b16 %v7498
    %v8829 = vunpack.c.l.b16 %v7499
    %v8830 = vunpack.c.h.b16 %v7499
    %v8831 = vunpack.c.l.b16 %v7500
    %v8832 = vunpack.c.h.b16 %v7500
    %v8833 = vunpack.c.l.b16 %v7501
    %v8834 = vunpack.c.h.b16 %v7501
    %v8835 = vunpack.c.l.b16 %v7502
    %v8836 = vunpack.c.h.b16 %v7502
    %v8837 = vunpack.c.l.b16 %v7503
    %v8838 = vunpack.c.h.b16 %v7503
    %v8839 = vunpack.c.l.b16 %v7504
    %v8840 = vunpack.c.h.b16 %v7504
    %v8841 = vunpack.c.l.b16 %v7505
    %v8842 = vunpack.c.h.b16 %v7505
    %v8843 = vunpack.c.l.b16 %v7506
    %v8844 = vunpack.c.h.b16 %v7506
    %v8845 = vunpack.c.l.b16 %v7507
    %v8846 = vunpack.c.h.b16 %v7507
    %v8847 = vunpack.c.l.b16 %v7508
    %v8848 = vunpack.c.h.b16 %v7508
    %v8849 = vunpack.c.l.b16 %v7509
    %v8850 = vunpack.c.h.b16 %v7509
    %v8851 = vunpack.c.l.b16 %v7510
    %v8852 = vunpack.c.h.b16 %v7510
    %v8853 = vunpack.c.l.b16 %v7511
    %v8854 = vunpack.c.h.b16 %v7511
    %v8855 = vunpack.c.l.b16 %v7512
    %v8856 = vunpack.c.h.b16 %v7512
    %v8857 = vunpack.c.l.b16 %v7513
    %v8858 = vunpack.c.h.b16 %v7513
    %v8859 = vunpack.c.l.b16 %v7514
    %v8860 = vunpack.c.h.b16 %v7514
    %v8861 = vunpack.c.l.b16 %v7515
    %v8862 = vunpack.c.h.b16 %v7515
    %v8863 = vunpack.c.l.b16 %v7516
    %v8864 = vunpack.c.h.b16 %v7516
    %v8865 = vunpack.c.l.b16 %v7517
    %v8866 = vunpack.c.h.b16 %v7517
    %v8867 = vunpack.c.l.b16 %v7518
    %v8868 = vunpack.c.h.b16 %v7518
    %v8869 = vunpack.c.l.b16 %v7519
    %v8870 = vunpack.c.h.b16 %v7519
    %v8871 = vunpack.c.l.b16 %v7520
    %v8872 = vunpack.c.h.b16 %v7520
    %v8873 = vunpack.c.l.b16 %v7521
    %v8874 = vunpack.c.h.b16 %v7521
    %v8875 = vunpack.c.l.b16 %v7522
    %v8876 = vunpack.c.h.b16 %v7522
    %v8877 = vunpack.c.l.b16 %v7523
    %v8878 = vunpack.c.h.b16 %v7523
    %v8879 = vunpack.c.l.b16 %v7524
    %v8880 = vunpack.c.h.b16 %v7524
    %v8881 = vunpack.c.l.b16 %v7525
    %v8882 = vunpack.c.h.b16 %v7525
    %v8883 = vunpack.c.l.b16 %v7526
    %v8884 = vunpack.c.h.b16 %v7526
    %v8885 = vunpack.c.l.b16 %v7527
    %v8886 = vunpack.c.h.b16 %v7527
    %v8887 = vunpack.c.l.b16 %v7528
    %v8888 = vunpack.c.h.b16 %v7528
    %v8889 = vunpack.c.l.b16 %v7529
    %v8890 = vunpack.c.h.b16 %v7529
    %v8891 = vunpack.c.l.b16 %v7530
    %v8892 = vunpack.c.h.b16 %v7530
    %v8893 = vunpack.c.l.b16 %v7531
    %v8894 = vunpack.c.h.b16 %v7531
    %v8895 = vunpack.c.l.b16 %v7532
    %v8896 = vunpack.c.h.b16 %v7532
    %v8897 = vunpack.c.l.b16 %v7533
    %v8898 = vunpack.c.h.b16 %v7533
    %v8899 = vunpack.c.l.b16 %v7534
    %v8900 = vunpack.c.h.b16 %v7534
    %v8901 = vunpack.c.l.b16 %v7535
    %v8902 = vunpack.c.h.b16 %v7535
    %v8903 = vunpack.c.l.b16 %v7536
    %v8904 = vunpack.c.h.b16 %v7536
    %v8905 = vunpack.c.l.b16 %v7537
    %v8906 = vunpack.c.h.b16 %v7537
    %v8907 = vunpack.c.l.b16 %v7538
    %v8908 = vunpack.c.h.b16 %v7538
    %v8909 = vunpack.c.l.b16 %v7539
    %v8910 = vunpack.c.h.b16 %v7539
    %v8911 = vunpack.c.l.b16 %v7540
    %v8912 = vunpack.c.h.b16 %v7540
    %v8913 = vunpack.c.l.b16 %v7541
    %v8914 = vunpack.c.h.b16 %v7541
    %v8915 = vunpack.c.l.b16 %v7542
    %v8916 = vunpack.c.h.b16 %v7542
    %v8917 = vunpack.c.l.b16 %v7543
    %v8918 = vunpack.c.h.b16 %v7543
    %v8919 = vunpack.c.l.b16 %v7544
    %v8920 = vunpack.c.h.b16 %v7544
    %v8921 = vunpack.c.l.b16 %v7545
    %v8922 = vunpack.c.h.b16 %v7545
    %v8923 = vunpack.c.l.b16 %v7546
    %v8924 = vunpack.c.h.b16 %v7546
    %v8925 = vunpack.c.l.b16 %v7547
    %v8926 = vunpack.c.h.b16 %v7547
    %v8927 = vunpack.c.l.b16 %v7548
    %v8928 = vunpack.c.h.b16 %v7548
    %v8929 = vunpack.c.l.b16 %v7549
    %v8930 = vunpack.c.h.b16 %v7549
    %v8931 = vunpack.c.l.b16 %v7550
    %v8932 = vunpack.c.h.b16 %v7550
    %v8933 = vunpack.c.l.b16 %v7551
    %v8934 = vunpack.c.h.b16 %v7551
    %v8935 = vunpack.c.l.b16 %v7552
    %v8936 = vunpack.c.h.b16 %v7552
    %v8937 = vunpack.c.l.b16 %v7553
    %v8938 = vunpack.c.h.b16 %v7553
    %v8939 = vunpack.c.l.b16 %v7554
    %v8940 = vunpack.c.h.b16 %v7554
    %v8941 = vunpack.c.l.b16 %v7555
    %v8942 = vunpack.c.h.b16 %v7555
    %v8943 = vunpack.c.l.b16 %v7556
    %v8944 = vunpack.c.h.b16 %v7556
    %v8945 = vunpack.c.l.b16 %v7557
    %v8946 = vunpack.c.h.b16 %v7557
    %v8947 = vunpack.c.l.b16 %v7558
    %v8948 = vunpack.c.h.b16 %v7558
    %v8949 = vunpack.c.l.b16 %v7559
    %v8950 = vunpack.c.h.b16 %v7559
    %v8951 = vunpack.c.l.b16 %v7560
    %v8952 = vunpack.c.h.b16 %v7560
    %v8953 = vunpack.c.l.b16 %v7561
    %v8954 = vunpack.c.h.b16 %v7561
    %v8955 = vunpack.c.l.b16 %v7562
    %v8956 = vunpack.c.h.b16 %v7562
    %v8957 = vunpack.c.l.b16 %v7563
    %v8958 = vunpack.c.h.b16 %v7563
    %v8959 = vunpack.c.l.b16 %v7564
    %v8960 = vunpack.c.h.b16 %v7564
    %v8961 = vunpack.c.l.b16 %v7565
    %v8962 = vunpack.c.h.b16 %v7565
    %v8963 = vunpack.c.l.b16 %v7566
    %v8964 = vunpack.c.h.b16 %v7566
    %v8965 = vunpack.c.l.b16 %v7567
    %v8966 = vunpack.c.h.b16 %v7567
    %v8967 = vunpack.c.l.b16 %v7568
    %v8968 = vunpack.c.h.b16 %v7568
    %v8969 = vunpack.c.l.b16 %v7569
    %v8970 = vunpack.c.h.b16 %v7569
    %v8971 = vunpack.c.l.b16 %v7570
    %v8972 = vunpack.c.h.b16 %v7570
    %v8973 = vunpack.c.l.b16 %v7571
    %v8974 = vunpack.c.h.b16 %v7571
    %v8975 = vunpack.c.l.b16 %v7572
    %v8976 = vunpack.c.h.b16 %v7572
    %v8977 = vunpack.c.l.b16 %v7573
    %v8978 = vunpack.c.h.b16 %v7573
    %v8979 = vunpack.c.l.b16 %v7574
    %v8980 = vunpack.c.h.b16 %v7574
    %v8981 = vunpack.c.l.b16 %v7575
    %v8982 = vunpack.c.h.b16 %v7575
    %v8983 = vunpack.c.l.b16 %v7576
    %v8984 = vunpack.c.h.b16 %v7576
    %v8985 = vunpack.c.l.b16 %v7577
    %v8986 = vunpack.c.h.b16 %v7577
    %v8987 = vunpack.c.l.b16 %v7578
    %v8988 = vunpack.c.h.b16 %v7578
    %v8989 = vunpack.c.l.b16 %v7579
    %v8990 = vunpack.c.h.b16 %v7579
    %v8991 = vunpack.c.l.b16 %v7580
    %v8992 = vunpack.c.h.b16 %v7580
    %v8993 = vunpack.c.l.b16 %v7581
    %v8994 = vunpack.c.h.b16 %v7581
    %v8995 = vunpack.c.l.b16 %v7582
    %v8996 = vunpack.c.h.b16 %v7582
    %v8997 = vunpack.c.l.b16 %v7583
    %v8998 = vunpack.c.h.b16 %v7583
    %v8999 = vunpack.c.l.b16 %v7584
    %v9000 = vunpack.c.h.b16 %v7584
    %v9001 = vunpack.c.l.b16 %v7585
    %v9002 = vunpack.c.h.b16 %v7585
    %v9003 = vunpack.c.l.b16 %v7586
    %v9004 = vunpack.c.h.b16 %v7586
    %v9005 = vunpack.c.l.b16 %v7587
    %v9006 = vunpack.c.h.b16 %v7587
    %v9007 = vunpack.c.l.b16 %v7588
    %v9008 = vunpack.c.h.b16 %v7588
    %v9009 = vunpack.c.l.b16 %v7589
    %v9010 = vunpack.c.h.b16 %v7589
    %v9011 = vunpack.c.l.b16 %v7590
    %v9012 = vunpack.c.h.b16 %v7590
    %v9013 = vunpack.c.l.b16 %v7591
    %v9014 = vunpack.c.h.b16 %v7591
    %v9015 = vunpack.c.l.b16 %v7592
    %v9016 = vunpack.c.h.b16 %v7592
    %v9017 = vunpack.c.l.b16 %v7593
    %v9018 = vunpack.c.h.b16 %v7593
    %v9019 = vunpack.c.l.b16 %v7594
    %v9020 = vunpack.c.h.b16 %v7594
    %v9021 = vunpack.c.l.b16 %v7595
    %v9022 = vunpack.c.h.b16 %v7595
    %v9023 = vunpack.c.l.b16 %v7596
    %v9024 = vunpack.c.h.b16 %v7596
    %v9025 = vunpack.c.l.b16 %v7597
    %v9026 = vunpack.c.h.b16 %v7597
    %v9027 = vunpack.c.l.b16 %v7598
    %v9028 = vunpack.c.h.b16 %v7598
    %v9029 = vunpack.c.l.b16 %v7599
    %v9030 = vunpack.c.h.b16 %v7599
    %v9031 = vunpack.c.l.b16 %v7600
    %v9032 = vunpack.c.h.b16 %v7600
    %v9033 = vunpack.c.l.b16 %v7601
    %v9034 = vunpack.c.h.b16 %v7601
    %v9035 = vunpack.c.l.b16 %v7602
    %v9036 = vunpack.c.h.b16 %v7602
    %v9037 = vunpack.c.l.b16 %v7603
    %v9038 = vunpack.c.h.b16 %v7603
    %v9039 = vunpack.c.l.b16 %v7604
    %v9040 = vunpack.c.h.b16 %v7604
    %v9041 = vunpack.c.l.b16 %v7605
    %v9042 = vunpack.c.h.b16 %v7605
    %v9043 = vunpack.c.l.b16 %v7606
    %v9044 = vunpack.c.h.b16 %v7606
    %v9045 = vunpack.c.l.b16 %v7607
    %v9046 = vunpack.c.h.b16 %v7607
    %v9047 = vunpack.c.l.b16 %v7608
    %v9048 = vunpack.c.h.b16 %v7608
    %v9049 = vunpack.c.l.b16 %v7609
    %v9050 = vunpack.c.h.b16 %v7609
    %v9051 = vunpack.c.l.b16 %v7610
    %v9052 = vunpack.c.h.b16 %v7610
    %v9053 = vunpack.c.l.b16 %v7611
    %v9054 = vunpack.c.h.b16 %v7611
    %v9055 = vunpack.c.l.b16 %v7612
    %v9056 = vunpack.c.h.b16 %v7612
    %v9057 = vunpack.c.l.b16 %v7613
    %v9058 = vunpack.c.h.b16 %v7613
    %v9059 = vunpack.c.l.b16 %v7614
    %v9060 = vunpack.c.h.b16 %v7614
    %v9061 = vunpack.c.l.b16 %v7615
    %v9062 = vunpack.c.h.b16 %v7615
    %v9063 = vunpack.c.l.b16 %v7616
    %v9064 = vunpack.c.h.b16 %v7616
    %v9065 = vunpack.c.l.b16 %v7617
    %v9066 = vunpack.c.h.b16 %v7617
    %v9067 = vunpack.c.l.b16 %v7618
    %v9068 = vunpack.c.h.b16 %v7618
    %v9069 = vunpack.c.l.b16 %v7619
    %v9070 = vunpack.c.h.b16 %v7619
    %v9071 = vunpack.c.l.b16 %v7620
    %v9072 = vunpack.c.h.b16 %v7620
    %v9073 = vunpack.c.l.b16 %v7621
    %v9074 = vunpack.c.h.b16 %v7621
    %v9075 = vunpack.c.l.b16 %v7622
    %v9076 = vunpack.c.h.b16 %v7622
    %v9077 = vunpack.c.l.b16 %v7623
    %v9078 = vunpack.c.h.b16 %v7623
    %v9079 = vunpack.c.l.b16 %v7624
    %v9080 = vunpack.c.h.b16 %v7624
    %v9081 = vunpack.c.l.b16 %v7625
    %v9082 = vunpack.c.h.b16 %v7625
    %v9083 = vunpack.c.l.b16 %v7626
    %v9084 = vunpack.c.h.b16 %v7626
    %v9085 = vunpack.c.l.b16 %v7627
    %v9086 = vunpack.c.h.b16 %v7627
    %v9087 = vunpack.c.l.b16 %v7628
    %v9088 = vunpack.c.h.b16 %v7628
    %v9089 = vunpack.c.l.b16 %v7629
    %v9090 = vunpack.c.h.b16 %v7629
    %v9091 = vunpack.c.l.b16 %v7630
    %v9092 = vunpack.c.h.b16 %v7630
    %v9093 = vunpack.c.l.b16 %v7631
    %v9094 = vunpack.c.h.b16 %v7631
    %v9095 = vunpack.c.l.b16 %v7632
    %v9096 = vunpack.c.h.b16 %v7632
    %v9097 = vunpack.c.l.b16 %v7633
    %v9098 = vunpack.c.h.b16 %v7633
    %v9099 = vunpack.c.l.b16 %v7634
    %v9100 = vunpack.c.h.b16 %v7634
    %v9101 = vunpack.c.l.b16 %v7635
    %v9102 = vunpack.c.h.b16 %v7635
    %v9103 = vunpack.c.l.b16 %v7636
    %v9104 = vunpack.c.h.b16 %v7636
    %v9105 = vunpack.c.l.b16 %v7637
    %v9106 = vunpack.c.h.b16 %v7637
    %v9107 = vunpack.c.l.b16 %v7638
    %v9108 = vunpack.c.h.b16 %v7638
    %v9109 = vunpack.c.l.b16 %v7639
    %v9110 = vunpack.c.h.b16 %v7639
    %v9111 = vunpack.c.l.b16 %v7640
    %v9112 = vunpack.c.h.b16 %v7640
    %v9113 = vunpack.c.l.b16 %v7641
    %v9114 = vunpack.c.h.b16 %v7641
    %v9115 = vunpack.c.l.b16 %v7642
    %v9116 = vunpack.c.h.b16 %v7642
    %v9117 = vunpack.c.l.b16 %v7643
    %v9118 = vunpack.c.h.b16 %v7643
    %v9119 = vunpack.c.l.b16 %v7644
    %v9120 = vunpack.c.h.b16 %v7644
    %v9121 = vunpack.c.l.b16 %v7645
    %v9122 = vunpack.c.h.b16 %v7645
    %v9123 = vunpack.c.l.b16 %v7646
    %v9124 = vunpack.c.h.b16 %v7646
    %v9125 = vunpack.c.l.b16 %v7647
    %v9126 = vunpack.c.h.b16 %v7647
    %v9127 = vunpack.c.l.b16 %v7648
    %v9128 = vunpack.c.h.b16 %v7648
    %v9129 = vunpack.c.l.b16 %v7649
    %v9130 = vunpack.c.h.b16 %v7649
    %v9131 = vunpack.c.l.b16 %v7650
    %v9132 = vunpack.c.h.b16 %v7650
    %v9133 = vunpack.c.l.b16 %v7651
    %v9134 = vunpack.c.h.b16 %v7651
    %v9135 = vunpack.c.l.b16 %v7652
    %v9136 = vunpack.c.h.b16 %v7652
    %v9137 = vunpack.c.l.b16 %v7653
    %v9138 = vunpack.c.h.b16 %v7653
    %v9139 = vunpack.c.l.b16 %v7654
    %v9140 = vunpack.c.h.b16 %v7654
    %v9141 = vunpack.c.l.b16 %v7655
    %v9142 = vunpack.c.h.b16 %v7655
    %v9143 = vunpack.c.l.b16 %v7656
    %v9144 = vunpack.c.h.b16 %v7656
    %v9145 = vunpack.c.l.b16 %v7657
    %v9146 = vunpack.c.h.b16 %v7657
    %v9147 = vunpack.c.l.b16 %v7658
    %v9148 = vunpack.c.h.b16 %v7658
    %v9149 = vunpack.c.l.b16 %v7659
    %v9150 = vunpack.c.h.b16 %v7659
    %v9151 = vunpack.c.l.b16 %v7660
    %v9152 = vunpack.c.h.b16 %v7660
    %v9153 = vunpack.c.l.b16 %v7661
    %v9154 = vunpack.c.h.b16 %v7661
    %v9155 = vunpack.c.l.b16 %v7662
    %v9156 = vunpack.c.h.b16 %v7662
    %v9157 = vunpack.c.l.b16 %v7663
    %v9158 = vunpack.c.h.b16 %v7663
    %v9159 = vunpack.c.l.b16 %v7664
    %v9160 = vunpack.c.h.b16 %v7664
    %v9161 = vunpack.c.l.b16 %v7665
    %v9162 = vunpack.c.h.b16 %v7665
    %v9163 = vunpack.c.l.b16 %v7666
    %v9164 = vunpack.c.h.b16 %v7666
    %v9165 = vunpack.c.l.b16 %v7667
    %v9166 = vunpack.c.h.b16 %v7667
    %v9167 = vunpack.c.l.b16 %v7668
    %v9168 = vunpack.c.h.b16 %v7668
    %v9169 = vunpack.c.l.b16 %v7669
    %v9170 = vunpack.c.h.b16 %v7669
    %v9171 = vunpack.c.l.b16 %v7670
    %v9172 = vunpack.c.h.b16 %v7670
    %v9173 = vunpack.c.l.b16 %v7671
    %v9174 = vunpack.c.h.b16 %v7671
    %v9175 = vunpack.c.l.b16 %v7672
    %v9176 = vunpack.c.h.b16 %v7672
    %v9177 = vunpack.c.l.b16 %v7673
    %v9178 = vunpack.c.h.b16 %v7673
    %v9179 = vunpack.c.l.b16 %v7674
    %v9180 = vunpack.c.h.b16 %v7674
    %v9181 = vunpack.c.l.b16 %v7675
    %v9182 = vunpack.c.h.b16 %v7675
    %v9183 = vunpack.c.l.b16 %v7676
    %v9184 = vunpack.c.h.b16 %v7676
    %v9185 = vunpack.c.l.b16 %v7677
    %v9186 = vunpack.c.h.b16 %v7677
    %v9187 = vunpack.c.l.b16 %v7678
    %v9188 = vunpack.c.h.b16 %v7678
    %v9189 = vunpack.c.l.b16 %v7679
    %v9190 = vunpack.c.h.b16 %v7679
    %v9191 = vunpack.c.l.b16 %v7680
    %v9192 = vunpack.c.h.b16 %v7680
    %v9193 = vunpack.c.l.b16 %v7681
    %v9194 = vunpack.c.h.b16 %v7681
    %v9195 = vunpack.c.l.b16 %v7682
    %v9196 = vunpack.c.h.b16 %v7682
    %v9197 = vunpack.c.l.b16 %v7683
    %v9198 = vunpack.c.h.b16 %v7683
    %v9199 = vunpack.c.l.b16 %v7684
    %v9200 = vunpack.c.h.b16 %v7684
    %v9201 = vunpack.c.l.b16 %v7685
    %v9202 = vunpack.c.h.b16 %v7685
    %v9203 = vunpack.c.l.b16 %v7686
    %v9204 = vunpack.c.h.b16 %v7686
    %v9205 = vunpack.c.l.b16 %v7687
    %v9206 = vunpack.c.h.b16 %v7687
    %v9207 = vunpack.c.l.b16 %v7688
    %v9208 = vunpack.c.h.b16 %v7688
    %v9209 = vunpack.c.l.b16 %v7689
    %v9210 = vunpack.c.h.b16 %v7689
    %v9211 = vunpack.c.l.b16 %v7690
    %v9212 = vunpack.c.h.b16 %v7690
    %v9213 = vunpack.c.l.b16 %v7691
    %v9214 = vunpack.c.h.b16 %v7691
    %v9215 = vunpack.c.l.b16 %v7692
    %v9216 = vunpack.c.h.b16 %v7692
    %v9217 = vunpack.c.l.b16 %v7693
    %v9218 = vunpack.c.h.b16 %v7693
    %v9219 = vunpack.c.l.b16 %v7694
    %v9220 = vunpack.c.h.b16 %v7694
    %v9221 = vunpack.c.l.b16 %v7695
    %v9222 = vunpack.c.h.b16 %v7695
    %v9223 = vunpack.c.l.b16 %v7696
    %v9224 = vunpack.c.h.b16 %v7696
    %v9225 = vunpack.c.l.b16 %v7697
    %v9226 = vunpack.c.h.b16 %v7697
    %v9227 = vunpack.c.l.b16 %v7698
    %v9228 = vunpack.c.h.b16 %v7698
    %v9229 = vunpack.c.l.b16 %v7699
    %v9230 = vunpack.c.h.b16 %v7699
    %v9231 = vunpack.c.l.b16 %v7700
    %v9232 = vunpack.c.h.b16 %v7700
    %v9233 = vunpack.c.l.b16 %v7701
    %v9234 = vunpack.c.h.b16 %v7701
    %v9235 = vunpack.c.l.b16 %v7702
    %v9236 = vunpack.c.h.b16 %v7702
    %v9237 = vunpack.c.l.b16 %v7703
    %v9238 = vunpack.c.h.b16 %v7703
    %v9239 = vunpack.c.l.b16 %v7704
    %v9240 = vunpack.c.h.b16 %v7704
    %v9241 = vpack.c.b16 %v8225, %v8217
    %v9242 = vpack.c.b16 %v8226, %v8218
    %v9243 = vpack.c.b16 %v8227, %v8219
    %v9244 = vpack.c.b16 %v8228, %v8220
    %v9245 = vpack.c.b16 %v8229, %v8221
    %v9246 = vpack.c.b16 %v8230, %v8222
    %v9247 = vpack.c.b16 %v8231, %v8223
    %v9248 = vpack.c.b16 %v8232, %v8224
    %v9249 = vpack.c.b16 %v8241, %v8233
    %v9250 = vpack.c.b16 %v8242, %v8234
    %v9251 = vpack.c.b16 %v8243, %v8235
    %v9252 = vpack.c.b16 %v8244, %v8236
    %v9253 = vpack.c.b16 %v8245, %v8237
    %v9254 = vpack.c.b16 %v8246, %v8238
    %v9255 = vpack.c.b16 %v8247, %v8239
    %v9256 = vpack.c.b16 %v8248, %v8240
    %v9257 = vpack.c.b16 %v8257, %v8249
    %v9258 = vpack.c.b16 %v8258, %v8250
    %v9259 = vpack.c.b16 %v8259, %v8251
    %v9260 = vpack.c.b16 %v8260, %v8252
    %v9261 = vpack.c.b16 %v8261, %v8253
    %v9262 = vpack.c.b16 %v8262, %v8254
    %v9263 = vpack.c.b16 %v8263, %v8255
    %v9264 = vpack.c.b16 %v8264, %v8256
    %v9265 = vpack.c.b16 %v8273, %v8265
    %v9266 = vpack.c.b16 %v8274, %v8266
    %v9267 = vpack.c.b16 %v8275, %v8267
    %v9268 = vpack.c.b16 %v8276, %v8268
    %v9269 = vpack.c.b16 %v8277, %v8269
    %v9270 = vpack.c.b16 %v8278, %v8270
    %v9271 = vpack.c.b16 %v8279, %v8271
    %v9272 = vpack.c.b16 %v8280, %v8272
    %v9273 = vpack.c.b16 %v8289, %v8281
    %v9274 = vpack.c.b16 %v8290, %v8282
    %v9275 = vpack.c.b16 %v8291, %v8283
    %v9276 = vpack.c.b16 %v8292, %v8284
    %v9277 = vpack.c.b16 %v8293, %v8285
    %v9278 = vpack.c.b16 %v8294, %v8286
    %v9279 = vpack.c.b16 %v8295, %v8287
    %v9280 = vpack.c.b16 %v8296, %v8288
    %v9281 = vpack.c.b16 %v8305, %v8297
    %v9282 = vpack.c.b16 %v8306, %v8298
    %v9283 = vpack.c.b16 %v8307, %v8299
    %v9284 = vpack.c.b16 %v8308, %v8300
    %v9285 = vpack.c.b16 %v8309, %v8301
    %v9286 = vpack.c.b16 %v8310, %v8302
    %v9287 = vpack.c.b16 %v8311, %v8303
    %v9288 = vpack.c.b16 %v8312, %v8304
    %v9289 = vpack.c.b16 %v8321, %v8313
    %v9290 = vpack.c.b16 %v8322, %v8314
    %v9291 = vpack.c.b16 %v8323, %v8315
    %v9292 = vpack.c.b16 %v8324, %v8316
    %v9293 = vpack.c.b16 %v8325, %v8317
    %v9294 = vpack.c.b16 %v8326, %v8318
    %v9295 = vpack.c.b16 %v8327, %v8319
    %v9296 = vpack.c.b16 %v8328, %v8320
    %v9297 = vpack.c.b16 %v8337, %v8329
    %v9298 = vpack.c.b16 %v8338, %v8330
    %v9299 = vpack.c.b16 %v8339, %v8331
    %v9300 = vpack.c.b16 %v8340, %v8332
    %v9301 = vpack.c.b16 %v8341, %v8333
    %v9302 = vpack.c.b16 %v8342, %v8334
    %v9303 = vpack.c.b16 %v8343, %v8335
    %v9304 = vpack.c.b16 %v8344, %v8336
    %v9305 = vpack.c.b16 %v8353, %v8345
    %v9306 = vpack.c.b16 %v8354, %v8346
    %v9307 = vpack.c.b16 %v8355, %v8347
    %v9308 = vpack.c.b16 %v8356, %v8348
    %v9309 = vpack.c.b16 %v8357, %v8349
    %v9310 = vpack.c.b16 %v8358, %v8350
    %v9311 = vpack.c.b16 %v8359, %v8351
    %v9312 = vpack.c.b16 %v8360, %v8352
    %v9313 = vpack.c.b16 %v8369, %v8361
    %v9314 = vpack.c.b16 %v8370, %v8362
    %v9315 = vpack.c.b16 %v8371, %v8363
    %v9316 = vpack.c.b16 %v8372, %v8364
    %v9317 = vpack.c.b16 %v8373, %v8365
    %v9318 = vpack.c.b16 %v8374, %v8366
    %v9319 = vpack.c.b16 %v8375, %v8367
    %v9320 = vpack.c.b16 %v8376, %v8368
    %v9321 = vpack.c.b16 %v8385, %v8377
    %v9322 = vpack.c.b16 %v8386, %v8378
    %v9323 = vpack.c.b16 %v8387, %v8379
    %v9324 = vpack.c.b16 %v8388, %v8380
    %v9325 = vpack.c.b16 %v8389, %v8381
    %v9326 = vpack.c.b16 %v8390, %v8382
    %v9327 = vpack.c.b16 %v8391, %v8383
    %v9328 = vpack.c.b16 %v8392, %v8384
    %v9329 = vpack.c.b16 %v8401, %v8393
    %v9330 = vpack.c.b16 %v8402, %v8394
    %v9331 = vpack.c.b16 %v8403, %v8395
    %v9332 = vpack.c.b16 %v8404, %v8396
    %v9333 = vpack.c.b16 %v8405, %v8397
    %v9334 = vpack.c.b16 %v8406, %v8398
    %v9335 = vpack.c.b16 %v8407, %v8399
    %v9336 = vpack.c.b16 %v8408, %v8400
    %v9337 = vpack.c.b16 %v8417, %v8409
    %v9338 = vpack.c.b16 %v8418, %v8410
    %v9339 = vpack.c.b16 %v8419, %v8411
    %v9340 = vpack.c.b16 %v8420, %v8412
    %v9341 = vpack.c.b16 %v8421, %v8413
    %v9342 = vpack.c.b16 %v8422, %v8414
    %v9343 = vpack.c.b16 %v8423, %v8415
    %v9344 = vpack.c.b16 %v8424, %v8416
    %v9345 = vpack.c.b16 %v8433, %v8425
    %v9346 = vpack.c.b16 %v8434, %v8426
    %v9347 = vpack.c.b16 %v8435, %v8427
    %v9348 = vpack.c.b16 %v8436, %v8428
    %v9349 = vpack.c.b16 %v8437, %v8429
    %v9350 = vpack.c.b16 %v8438, %v8430
    %v9351 = vpack.c.b16 %v8439, %v8431
    %v9352 = vpack.c.b16 %v8440, %v8432
    %v9353 = vpack.c.b16 %v8449, %v8441
    %v9354 = vpack.c.b16 %v8450, %v8442
    %v9355 = vpack.c.b16 %v8451, %v8443
    %v9356 = vpack.c.b16 %v8452, %v8444
    %v9357 = vpack.c.b16 %v8453, %v8445
    %v9358 = vpack.c.b16 %v8454, %v8446
    %v9359 = vpack.c.b16 %v8455, %v8447
    %v9360 = vpack.c.b16 %v8456, %v8448
    %v9361 = vpack.c.b16 %v8465, %v8457
    %v9362 = vpack.c.b16 %v8466, %v8458
    %v9363 = vpack.c.b16 %v8467, %v8459
    %v9364 = vpack.c.b16 %v8468, %v8460
    %v9365 = vpack.c.b16 %v8469, %v8461
    %v9366 = vpack.c.b16 %v8470, %v8462
    %v9367 = vpack.c.b16 %v8471, %v8463
    %v9368 = vpack.c.b16 %v8472, %v8464
    %v9369 = vpack.c.b16 %v8481, %v8473
    %v9370 = vpack.c.b16 %v8482, %v8474
    %v9371 = vpack.c.b16 %v8483, %v8475
    %v9372 = vpack.c.b16 %v8484, %v8476
    %v9373 = vpack.c.b16 %v8485, %v8477
    %v9374 = vpack.c.b16 %v8486, %v8478
    %v9375 = vpack.c.b16 %v8487, %v8479
    %v9376 = vpack.c.b16 %v8488, %v8480
    %v9377 = vpack.c.b16 %v8497, %v8489
    %v9378 = vpack.c.b16 %v8498, %v8490
    %v9379 = vpack.c.b16 %v8499, %v8491
    %v9380 = vpack.c.b16 %v8500, %v8492
    %v9381 = vpack.c.b16 %v8501, %v8493
    %v9382 = vpack.c.b16 %v8502, %v8494
    %v9383 = vpack.c.b16 %v8503, %v8495
    %v9384 = vpack.c.b16 %v8504, %v8496
    %v9385 = vpack.c.b16 %v8513, %v8505
    %v9386 = vpack.c.b16 %v8514, %v8506
    %v9387 = vpack.c.b16 %v8515, %v8507
    %v9388 = vpack.c.b16 %v8516, %v8508
    %v9389 = vpack.c.b16 %v8517, %v8509
    %v9390 = vpack.c.b16 %v8518, %v8510
    %v9391 = vpack.c.b16 %v8519, %v8511
    %v9392 = vpack.c.b16 %v8520, %v8512
    %v9393 = vpack.c.b16 %v8529, %v8521
    %v9394 = vpack.c.b16 %v8530, %v8522
    %v9395 = vpack.c.b16 %v8531, %v8523
    %v9396 = vpack.c.b16 %v8532, %v8524
    %v9397 = vpack.c.b16 %v8533, %v8525
    %v9398 = vpack.c.b16 %v8534, %v8526
    %v9399 = vpack.c.b16 %v8535, %v8527
    %v9400 = vpack.c.b16 %v8536, %v8528
    %v9401 = vpack.c.b16 %v8545, %v8537
    %v9402 = vpack.c.b16 %v8546, %v8538
    %v9403 = vpack.c.b16 %v8547, %v8539
    %v9404 = vpack.c.b16 %v8548, %v8540
    %v9405 = vpack.c.b16 %v8549, %v8541
    %v9406 = vpack.c.b16 %v8550, %v8542
    %v9407 = vpack.c.b16 %v8551, %v8543
    %v9408 = vpack.c.b16 %v8552, %v8544
    %v9409 = vpack.c.b16 %v8561, %v8553
    %v9410 = vpack.c.b16 %v8562, %v8554
    %v9411 = vpack.c.b16 %v8563, %v8555
    %v9412 = vpack.c.b16 %v8564, %v8556
    %v9413 = vpack.c.b16 %v8565, %v8557
    %v9414 = vpack.c.b16 %v8566, %v8558
    %v9415 = vpack.c.b16 %v8567, %v8559
    %v9416 = vpack.c.b16 %v8568, %v8560
    %v9417 = vpack.c.b16 %v8577, %v8569
    %v9418 = vpack.c.b16 %v8578, %v8570
    %v9419 = vpack.c.b16 %v8579, %v8571
    %v9420 = vpack.c.b16 %v8580, %v8572
    %v9421 = vpack.c.b16 %v8581, %v8573
    %v9422 = vpack.c.b16 %v8582, %v8574
    %v9423 = vpack.c.b16 %v8583, %v8575
    %v9424 = vpack.c.b16 %v8584, %v8576
    %v9425 = vpack.c.b16 %v8593, %v8585
    %v9426 = vpack.c.b16 %v8594, %v8586
    %v9427 = vpack.c.b16 %v8595, %v8587
    %v9428 = vpack.c.b16 %v8596, %v8588
    %v9429 = vpack.c.b16 %v8597, %v8589
    %v9430 = vpack.c.b16 %v8598, %v8590
    %v9431 = vpack.c.b16 %v8599, %v8591
    %v9432 = vpack.c.b16 %v8600, %v8592
    %v9433 = vpack.c.b16 %v8609, %v8601
    %v9434 = vpack.c.b16 %v8610, %v8602
    %v9435 = vpack.c.b16 %v8611, %v8603
    %v9436 = vpack.c.b16 %v8612, %v8604
    %v9437 = vpack.c.b16 %v8613, %v8605
    %v9438 = vpack.c.b16 %v8614, %v8606
    %v9439 = vpack.c.b16 %v8615, %v8607
    %v9440 = vpack.c.b16 %v8616, %v8608
    %v9441 = vpack.c.b16 %v8625, %v8617
    %v9442 = vpack.c.b16 %v8626, %v8618
    %v9443 = vpack.c.b16 %v8627, %v8619
    %v9444 = vpack.c.b16 %v8628, %v8620
    %v9445 = vpack.c.b16 %v8629, %v8621
    %v9446 = vpack.c.b16 %v8630, %v8622
    %v9447 = vpack.c.b16 %v8631, %v8623
    %v9448 = vpack.c.b16 %v8632, %v8624
    %v9449 = vpack.c.b16 %v8641, %v8633
    %v9450 = vpack.c.b16 %v8642, %v8634
    %v9451 = vpack.c.b16 %v8643, %v8635
    %v9452 = vpack.c.b16 %v8644, %v8636
    %v9453 = vpack.c.b16 %v8645, %v8637
    %v9454 = vpack.c.b16 %v8646, %v8638
    %v9455 = vpack.c.b16 %v8647, %v8639
    %v9456 = vpack.c.b16 %v8648, %v8640
    %v9457 = vpack.c.b16 %v8657, %v8649
    %v9458 = vpack.c.b16 %v8658, %v8650
    %v9459 = vpack.c.b16 %v8659, %v8651
    %v9460 = vpack.c.b16 %v8660, %v8652
    %v9461 = vpack.c.b16 %v8661, %v8653
    %v9462 = vpack.c.b16 %v8662, %v8654
    %v9463 = vpack.c.b16 %v8663, %v8655
    %v9464 = vpack.c.b16 %v8664, %v8656
    %v9465 = vpack.c.b16 %v8673, %v8665
    %v9466 = vpack.c.b16 %v8674, %v8666
    %v9467 = vpack.c.b16 %v8675, %v8667
    %v9468 = vpack.c.b16 %v8676, %v8668
    %v9469 = vpack.c.b16 %v8677, %v8669
    %v9470 = vpack.c.b16 %v8678, %v8670
    %v9471 = vpack.c.b16 %v8679, %v8671
    %v9472 = vpack.c.b16 %v8680, %v8672
    %v9473 = vpack.c.b16 %v8689, %v8681
    %v9474 = vpack.c.b16 %v8690, %v8682
    %v9475 = vpack.c.b16 %v8691, %v8683
    %v9476 = vpack.c.b16 %v8692, %v8684
    %v9477 = vpack.c.b16 %v8693, %v8685
    %v9478 = vpack.c.b16 %v8694, %v8686
    %v9479 = vpack.c.b16 %v8695, %v8687
    %v9480 = vpack.c.b16 %v8696, %v8688
    %v9481 = vpack.c.b16 %v8705, %v8697
    %v9482 = vpack.c.b16 %v8706, %v8698
    %v9483 = vpack.c.b16 %v8707, %v8699
    %v9484 = vpack.c.b16 %v8708, %v8700
    %v9485 = vpack.c.b16 %v8709, %v8701
    %v9486 = vpack.c.b16 %v8710, %v8702
    %v9487 = vpack.c.b16 %v8711, %v8703
    %v9488 = vpack.c.b16 %v8712, %v8704
    %v9489 = vpack.c.b16 %v8721, %v8713
    %v9490 = vpack.c.b16 %v8722, %v8714
    %v9491 = vpack.c.b16 %v8723, %v8715
    %v9492 = vpack.c.b16 %v8724, %v8716
    %v9493 = vpack.c.b16 %v8725, %v8717
    %v9494 = vpack.c.b16 %v8726, %v8718
    %v9495 = vpack.c.b16 %v8727, %v8719
    %v9496 = vpack.c.b16 %v8728, %v8720
    %v9497 = vpack.c.b16 %v8737, %v8729
    %v9498 = vpack.c.b16 %v8738, %v8730
    %v9499 = vpack.c.b16 %v8739, %v8731
    %v9500 = vpack.c.b16 %v8740, %v8732
    %v9501 = vpack.c.b16 %v8741, %v8733
    %v9502 = vpack.c.b16 %v8742, %v8734
    %v9503 = vpack.c.b16 %v8743, %v8735
    %v9504 = vpack.c.b16 %v8744, %v8736
    %v9505 = vpack.c.b16 %v8753, %v8745
    %v9506 = vpack.c.b16 %v8754, %v8746
    %v9507 = vpack.c.b16 %v8755, %v8747
    %v9508 = vpack.c.b16 %v8756, %v8748
    %v9509 = vpack.c.b16 %v8757, %v8749
    %v9510 = vpack.c.b16 %v8758, %v8750
    %v9511 = vpack.c.b16 %v8759, %v8751
    %v9512 = vpack.c.b16 %v8760, %v8752
    %v9513 = vpack.c.b16 %v8769, %v8761
    %v9514 = vpack.c.b16 %v8770, %v8762
    %v9515 = vpack.c.b16 %v8771, %v8763
    %v9516 = vpack.c.b16 %v8772, %v8764
    %v9517 = vpack.c.b16 %v8773, %v8765
    %v9518 = vpack.c.b16 %v8774, %v8766
    %v9519 = vpack.c.b16 %v8775, %v8767
    %v9520 = vpack.c.b16 %v8776, %v8768
    %v9521 = vpack.c.b16 %v8785, %v8777
    %v9522 = vpack.c.b16 %v8786, %v8778
    %v9523 = vpack.c.b16 %v8787, %v8779
    %v9524 = vpack.c.b16 %v8788, %v8780
    %v9525 = vpack.c.b16 %v8789, %v8781
    %v9526 = vpack.c.b16 %v8790, %v8782
    %v9527 = vpack.c.b16 %v8791, %v8783
    %v9528 = vpack.c.b16 %v8792, %v8784
    %v9529 = vpack.c.b16 %v8801, %v8793
    %v9530 = vpack.c.b16 %v8802, %v8794
    %v9531 = vpack.c.b16 %v8803, %v8795
    %v9532 = vpack.c.b16 %v8804, %v8796
    %v9533 = vpack.c.b16 %v8805, %v8797
    %v9534 = vpack.c.b16 %v8806, %v8798
    %v9535 = vpack.c.b16 %v8807, %v8799
    %v9536 = vpack.c.b16 %v8808, %v8800
    %v9537 = vpack.c.b16 %v8817, %v8809
    %v9538 = vpack.c.b16 %v8818, %v8810
    %v9539 = vpack.c.b16 %v8819, %v8811
    %v9540 = vpack.c.b16 %v8820, %v8812
    %v9541 = vpack.c.b16 %v8821, %v8813
    %v9542 = vpack.c.b16 %v8822, %v8814
    %v9543 = vpack.c.b16 %v8823, %v8815
    %v9544 = vpack.c.b16 %v8824, %v8816
    %v9545 = vpack.c.b16 %v8833, %v8825
    %v9546 = vpack.c.b16 %v8834, %v8826
    %v9547 = vpack.c.b16 %v8835, %v8827
    %v9548 = vpack.c.b16 %v8836, %v8828
    %v9549 = vpack.c.b16 %v8837, %v8829
    %v9550 = vpack.c.b16 %v8838, %v8830
    %v9551 = vpack.c.b16 %v8839, %v8831
    %v9552 = vpack.c.b16 %v8840, %v8832
    %v9553 = vpack.c.b16 %v8849, %v8841
    %v9554 = vpack.c.b16 %v8850, %v8842
    %v9555 = vpack.c.b16 %v8851, %v8843
    %v9556 = vpack.c.b16 %v8852, %v8844
    %v9557 = vpack.c.b16 %v8853, %v8845
    %v9558 = vpack.c.b16 %v8854, %v8846
    %v9559 = vpack.c.b16 %v8855, %v8847
    %v9560 = vpack.c.b16 %v8856, %v8848
    %v9561 = vpack.c.b16 %v8865, %v8857
    %v9562 = vpack.c.b16 %v8866, %v8858
    %v9563 = vpack.c.b16 %v8867, %v8859
    %v9564 = vpack.c.b16 %v8868, %v8860
    %v9565 = vpack.c.b16 %v8869, %v8861
    %v9566 = vpack.c.b16 %v8870, %v8862
    %v9567 = vpack.c.b16 %v8871, %v8863
    %v9568 = vpack.c.b16 %v8872, %v8864
    %v9569 = vpack.c.b16 %v8881, %v8873
    %v9570 = vpack.c.b16 %v8882, %v8874
    %v9571 = vpack.c.b16 %v8883, %v8875
    %v9572 = vpack.c.b16 %v8884, %v8876
    %v9573 = vpack.c.b16 %v8885, %v8877
    %v9574 = vpack.c.b16 %v8886, %v8878
    %v9575 = vpack.c.b16 %v8887, %v8879
    %v9576 = vpack.c.b16 %v8888, %v8880
    %v9577 = vpack.c.b16 %v8897, %v8889
    %v9578 = vpack.c.b16 %v8898, %v8890
    %v9579 = vpack.c.b16 %v8899, %v8891
    %v9580 = vpack.c.b16 %v8900, %v8892
    %v9581 = vpack.c.b16 %v8901, %v8893
    %v9582 = vpack.c.b16 %v8902, %v8894
    %v9583 = vpack.c.b16 %v8903, %v8895
    %v9584 = vpack.c.b16 %v8904, %v8896
    %v9585 = vpack.c.b16 %v8913, %v8905
    %v9586 = vpack.c.b16 %v8914, %v8906
    %v9587 = vpack.c.b16 %v8915, %v8907
    %v9588 = vpack.c.b16 %v8916, %v8908
    %v9589 = vpack.c.b16 %v8917, %v8909
    %v9590 = vpack.c.b16 %v8918, %v8910
    %v9591 = vpack.c.b16 %v8919, %v8911
    %v9592 = vpack.c.b16 %v8920, %v8912
    %v9593 = vpack.c.b16 %v8929, %v8921
    %v9594 = vpack.c.b16 %v8930, %v8922
    %v9595 = vpack.c.b16 %v8931, %v8923
    %v9596 = vpack.c.b16 %v8932, %v8924
    %v9597 = vpack.c.b16 %v8933, %v8925
    %v9598 = vpack.c.b16 %v8934, %v8926
    %v9599 = vpack.c.b16 %v8935, %v8927
    %v9600 = vpack.c.b16 %v8936, %v8928
    %v9601 = vpack.c.b16 %v8945, %v8937
    %v9602 = vpack.c.b16 %v8946, %v8938
    %v9603 = vpack.c.b16 %v8947, %v8939
    %v9604 = vpack.c.b16 %v8948, %v8940
    %v9605 = vpack.c.b16 %v8949, %v8941
    %v9606 = vpack.c.b16 %v8950, %v8942
    %v9607 = vpack.c.b16 %v8951, %v8943
    %v9608 = vpack.c.b16 %v8952, %v8944
    %v9609 = vpack.c.b16 %v8961, %v8953
    %v9610 = vpack.c.b16 %v8962, %v8954
    %v9611 = vpack.c.b16 %v8963, %v8955
    %v9612 = vpack.c.b16 %v8964, %v8956
    %v9613 = vpack.c.b16 %v8965, %v8957
    %v9614 = vpack.c.b16 %v8966, %v8958
    %v9615 = vpack.c.b16 %v8967, %v8959
    %v9616 = vpack.c.b16 %v8968, %v8960
    %v9617 = vpack.c.b16 %v8977, %v8969
    %v9618 = vpack.c.b16 %v8978, %v8970
    %v9619 = vpack.c.b16 %v8979, %v8971
    %v9620 = vpack.c.b16 %v8980, %v8972
    %v9621 = vpack.c.b16 %v8981, %v8973
    %v9622 = vpack.c.b16 %v8982, %v8974
    %v9623 = vpack.c.b16 %v8983, %v8975
    %v9624 = vpack.c.b16 %v8984, %v8976
    %v9625 = vpack.c.b16 %v8993, %v8985
    %v9626 = vpack.c.b16 %v8994, %v8986
    %v9627 = vpack.c.b16 %v8995, %v8987
    %v9628 = vpack.c.b16 %v8996, %v8988
    %v9629 = vpack.c.b16 %v8997, %v8989
    %v9630 = vpack.c.b16 %v8998, %v8990
    %v9631 = vpack.c.b16 %v8999, %v8991
    %v9632 = vpack.c.b16 %v9000, %v8992
    %v9633 = vpack.c.b16 %v9009, %v9001
    %v9634 = vpack.c.b16 %v9010, %v9002
    %v9635 = vpack.c.b16 %v9011, %v9003
    %v9636 = vpack.c.b16 %v9012, %v9004
    %v9637 = vpack.c.b16 %v9013, %v9005
    %v9638 = vpack.c.b16 %v9014, %v9006
    %v9639 = vpack.c.b16 %v9015, %v9007
    %v9640 = vpack.c.b16 %v9016, %v9008
    %v9641 = vpack.c.b16 %v9025, %v9017
    %v9642 = vpack.c.b16 %v9026, %v9018
    %v9643 = vpack.c.b16 %v9027, %v9019
    %v9644 = vpack.c.b16 %v9028, %v9020
    %v9645 = vpack.c.b16 %v9029, %v9021
    %v9646 = vpack.c.b16 %v9030, %v9022
    %v9647 = vpack.c.b16 %v9031, %v9023
    %v9648 = vpack.c.b16 %v9032, %v9024
    %v9649 = vpack.c.b16 %v9041, %v9033
    %v9650 = vpack.c.b16 %v9042, %v9034
    %v9651 = vpack.c.b16 %v9043, %v9035
    %v9652 = vpack.c.b16 %v9044, %v9036
    %v9653 = vpack.c.b16 %v9045, %v9037
    %v9654 = vpack.c.b16 %v9046, %v9038
    %v9655 = vpack.c.b16 %v9047, %v9039
    %v9656 = vpack.c.b16 %v9048, %v9040
    %v9657 = vpack.c.b16 %v9057, %v9049
    %v9658 = vpack.c.b16 %v9058, %v9050
    %v9659 = vpack.c.b16 %v9059, %v9051
    %v9660 = vpack.c.b16 %v9060, %v9052
    %v9661 = vpack.c.b16 %v9061, %v9053
    %v9662 = vpack.c.b16 %v9062, %v9054
    %v9663 = vpack.c.b16 %v9063, %v9055
    %v9664 = vpack.c.b16 %v9064, %v9056
    %v9665 = vpack.c.b16 %v9073, %v9065
    %v9666 = vpack.c.b16 %v9074, %v9066
    %v9667 = vpack.c.b16 %v9075, %v9067
    %v9668 = vpack.c.b16 %v9076, %v9068
    %v9669 = vpack.c.b16 %v9077, %v9069
    %v9670 = vpack.c.b16 %v9078, %v9070
    %v9671 = vpack.c.b16 %v9079, %v9071
    %v9672 = vpack.c.b16 %v9080, %v9072
    %v9673 = vpack.c.b16 %v9089, %v9081
    %v9674 = vpack.c.b16 %v9090, %v9082
    %v9675 = vpack.c.b16 %v9091, %v9083
    %v9676 = vpack.c.b16 %v9092, %v9084
    %v9677 = vpack.c.b16 %v9093, %v9085
    %v9678 = vpack.c.b16 %v9094, %v9086
    %v9679 = vpack.c.b16 %v9095, %v9087
    %v9680 = vpack.c.b16 %v9096, %v9088
    %v9681 = vpack.c.b16 %v9105, %v9097
    %v9682 = vpack.c.b16 %v9106, %v9098
    %v9683 = vpack.c.b16 %v9107, %v9099
    %v9684 = vpack.c.b16 %v9108, %v9100
    %v9685 = vpack.c.b16 %v9109, %v9101
    %v9686 = vpack.c.b16 %v9110, %v9102
    %v9687 = vpack.c.b16 %v9111, %v9103
    %v9688 = vpack.c.b16 %v9112, %v9104
    %v9689 = vpack.c.b16 %v9121, %v9113
    %v9690 = vpack.c.b16 %v9122, %v9114
    %v9691 = vpack.c.b16 %v9123, %v9115
    %v9692 = vpack.c.b16 %v9124, %v9116
    %v9693 = vpack.c.b16 %v9125, %v9117
    %v9694 = vpack.c.b16 %v9126, %v9118
    %v9695 = vpack.c.b16 %v9127, %v9119
    %v9696 = vpack.c.b16 %v9128, %v9120
    %v9697 = vpack.c.b16 %v9137, %v9129
    %v9698 = vpack.c.b16 %v9138, %v9130
    %v9699 = vpack.c.b16 %v9139, %v9131
    %v9700 = vpack.c.b16 %v9140, %v9132
    %v9701 = vpack.c.b16 %v9141, %v9133
    %v9702 = vpack.c.b16 %v9142, %v9134
    %v9703 = vpack.c.b16 %v9143, %v9135
    %v9704 = vpack.c.b16 %v9144, %v9136
    %v9705 = vpack.c.b16 %v9153, %v9145
    %v9706 = vpack.c.b16 %v9154, %v9146
    %v9707 = vpack.c.b16 %v9155, %v9147
    %v9708 = vpack.c.b16 %v9156, %v9148
    %v9709 = vpack.c.b16 %v9157, %v9149
    %v9710 = vpack.c.b16 %v9158, %v9150
    %v9711 = vpack.c.b16 %v9159, %v9151
    %v9712 = vpack.c.b16 %v9160, %v9152
    %v9713 = vpack.c.b16 %v9169, %v9161
    %v9714 = vpack.c.b16 %v9170, %v9162
    %v9715 = vpack.c.b16 %v9171, %v9163
    %v9716 = vpack.c.b16 %v9172, %v9164
    %v9717 = vpack.c.b16 %v9173, %v9165
    %v9718 = vpack.c.b16 %v9174, %v9166
    %v9719 = vpack.c.b16 %v9175, %v9167
    %v9720 = vpack.c.b16 %v9176, %v9168
    %v9721 = vpack.c.b16 %v9185, %v9177
    %v9722 = vpack.c.b16 %v9186, %v9178
    %v9723 = vpack.c.b16 %v9187, %v9179
    %v9724 = vpack.c.b16 %v9188, %v9180
    %v9725 = vpack.c.b16 %v9189, %v9181
    %v9726 = vpack.c.b16 %v9190, %v9182
    %v9727 = vpack.c.b16 %v9191, %v9183
    %v9728 = vpack.c.b16 %v9192, %v9184
    %v9729 = vpack.c.b16 %v9201, %v9193
    %v9730 = vpack.c.b16 %v9202, %v9194
    %v9731 = vpack.c.b16 %v9203, %v9195
    %v9732 = vpack.c.b16 %v9204, %v9196
    %v9733 = vpack.c.b16 %v9205, %v9197
    %v9734 = vpack.c.b16 %v9206, %v9198
    %v9735 = vpack.c.b16 %v9207, %v9199
    %v9736 = vpack.c.b16 %v9208, %v9200
    %v9737 = vpack.c.b16 %v9217, %v9209
    %v9738 = vpack.c.b16 %v9218, %v9210
    %v9739 = vpack.c.b16 %v9219, %v9211
    %v9740 = vpack.c.b16 %v9220, %v9212
    %v9741 = vpack.c.b16 %v9221, %v9213
    %v9742 = vpack.c.b16 %v9222, %v9214
    %v9743 = vpack.c.b16 %v9223, %v9215
    %v9744 = vpack.c.b16 %v9224, %v9216
    %v9745 = vpack.c.b16 %v9233, %v9225
    %v9746 = vpack.c.b16 %v9234, %v9226
    %v9747 = vpack.c.b16 %v9235, %v9227
    %v9748 = vpack.c.b16 %v9236, %v9228
    %v9749 = vpack.c.b16 %v9237, %v9229
    %v9750 = vpack.c.b16 %v9238, %v9230
    %v9751 = vpack.c.b16 %v9239, %v9231
    %v9752 = vpack.c.b16 %v9240, %v9232
    %10265 = vmatprep.subr.bf16.mxu0 %v9242
    %10266 = vmatpush1.bf16.msra.mxu0 %v9241
    %10267 = vmatprep.subr.bf16.mxu0 %v9250
    %10268 = vmatpush1.bf16.msra.mxu0 %v9249
    %10269 = vmatprep.subr.bf16.mxu0 %v9258
    %10270 = vmatpush1.bf16.msra.mxu0 %v9257
    %10271 = vmatprep.subr.bf16.mxu0 %v9266
    %10272 = vmatpush1.bf16.msra.mxu0 %v9265
    %10273 = vmatprep.subr.bf16.mxu0 %v9274
    %10274 = vmatpush1.bf16.msra.mxu0 %v9273
    %10275 = vmatprep.subr.bf16.mxu0 %v9282
    %10276 = vmatpush1.bf16.msra.mxu0 %v9281
    %10277 = vmatprep.subr.bf16.mxu0 %v9290
    %10278 = vmatpush1.bf16.msra.mxu0 %v9289
    %10279 = vmatprep.subr.bf16.mxu0 %v9298
    %10280 = vmatpush1.bf16.msra.mxu0 %v9297
    %10281 = vmatprep.subr.bf16.mxu0 %v9306
    %10282 = vmatpush1.bf16.msra.mxu0 %v9305
    %10283 = vmatprep.subr.bf16.mxu0 %v9314
    %10284 = vmatpush1.bf16.msra.mxu0 %v9313
    %10285 = vmatprep.subr.bf16.mxu0 %v9322
    %10286 = vmatpush1.bf16.msra.mxu0 %v9321
    %10287 = vmatprep.subr.bf16.mxu0 %v9330
    %10288 = vmatpush1.bf16.msra.mxu0 %v9329
    %10289 = vmatprep.subr.bf16.mxu0 %v9338
    %10290 = vmatpush1.bf16.msra.mxu0 %v9337
    %10291 = vmatprep.subr.bf16.mxu0 %v9346
    %10292 = vmatpush1.bf16.msra.mxu0 %v9345
    %10293 = vmatprep.subr.bf16.mxu0 %v9354
    %10294 = vmatpush1.bf16.msra.mxu0 %v9353
    %10295 = vmatprep.subr.bf16.mxu0 %v9362
    %10296 = vmatpush1.bf16.msra.mxu0 %v9361
    %10297 = vmatprep.mubr.bf16.mxu0 %v7186
    %10298 = vmatmul.mubr.bf16.gmra.mrb[0].mxu0 %v7185
    %v10299 = vpop.f32.mrb[0].mxu0
    %v10300 = vadd.f32 0.0, %v10299
    %v10301 = vpop.f32.mrb[0].mxu0
    %v10302 = vadd.f32 0.0, %v10301
    %v10303 = vpop.f32.mrb[0].mxu0
    %v10304 = vpop.f32.mrb[0].mxu0
    %10305 = vdwg.mxu0
    %10306 = vmatprep.subr.bf16.mxu0 %v9370
    %10307 = vmatpush1.bf16.msra.mxu0 %v9369
    %10308 = vmatprep.subr.bf16.mxu0 %v9378
    %10309 = vmatpush1.bf16.msra.mxu0 %v9377
    %10310 = vmatprep.subr.bf16.mxu0 %v9386
    %10311 = vmatpush1.bf16.msra.mxu0 %v9385
    %10312 = vmatprep.subr.bf16.mxu0 %v9394
    %10313 = vmatpush1.bf16.msra.mxu0 %v9393
    %10314 = vmatprep.subr.bf16.mxu0 %v9402
    %10315 = vmatpush1.bf16.msra.mxu0 %v9401
    %10316 = vmatprep.subr.bf16.mxu0 %v9410
    %10317 = vmatpush1.bf16.msra.mxu0 %v9409
    %10318 = vmatprep.subr.bf16.mxu0 %v9418
    %10319 = vmatpush1.bf16.msra.mxu0 %v9417
    %10320 = vmatprep.subr.bf16.mxu0 %v9426
    %10321 = vmatpush1.bf16.msra.mxu0 %v9425
    %10322 = vmatprep.subr.bf16.mxu0 %v9434
    %10323 = vmatpush1.bf16.msra.mxu0 %v9433
    %10324 = vmatprep.subr.bf16.mxu0 %v9442
    %10325 = vmatpush1.bf16.msra.mxu0 %v9441
    %10326 = vmatprep.subr.bf16.mxu0 %v9450
    %10327 = vmatpush1.bf16.msra.mxu0 %v9449
    %10328 = vmatprep.subr.bf16.mxu0 %v9458
    %10329 = vmatpush1.bf16.msra.mxu0 %v9457
    %10330 = vmatprep.subr.bf16.mxu0 %v9466
    %10331 = vmatpush1.bf16.msra.mxu0 %v9465
    %10332 = vmatprep.subr.bf16.mxu0 %v9474
    %10333 = vmatpush1.bf16.msra.mxu0 %v9473
    %10334 = vmatprep.subr.bf16.mxu0 %v9482
    %10335 = vmatpush1.bf16.msra.mxu0 %v9481
    %10336 = vmatprep.subr.bf16.mxu0 %v9490
    %10337 = vmatpush1.bf16.msra.mxu0 %v9489
    %10338 = vmatprep.mubr.bf16.mxu0 %v7188
    %10339 = vmatmul.mubr.bf16.gmra.mrb[0].mxu0 %v7187
    %v10340 = vpop.f32.mrb[0].mxu0
    %v10341 = vadd.f32 %v10300, %v10340
    %v10342 = vpop.f32.mrb[0].mxu0
    %v10343 = vadd.f32 %v10302, %v10342
    %v10344 = vpop.f32.mrb[0].mxu0
    %v10345 = vpop.f32.mrb[0].mxu0
    %10346 = vdwg.mxu0
    %10347 = vmatprep.subr.bf16.mxu0 %v9498
    %10348 = vmatpush1.bf16.msra.mxu0 %v9497
    %10349 = vmatprep.subr.bf16.mxu0 %v9506
    %10350 = vmatpush1.bf16.msra.mxu0 %v9505
    %10351 = vmatprep.subr.bf16.mxu0 %v9514
    %10352 = vmatpush1.bf16.msra.mxu0 %v9513
    %10353 = vmatprep.subr.bf16.mxu0 %v9522
    %10354 = vmatpush1.bf16.msra.mxu0 %v9521
    %10355 = vmatprep.subr.bf16.mxu0 %v9530
    %10356 = vmatpush1.bf16.msra.mxu0 %v9529
    %10357 = vmatprep.subr.bf16.mxu0 %v9538
    %10358 = vmatpush1.bf16.msra.mxu0 %v9537
    %10359 = vmatprep.subr.bf16.mxu0 %v9546
    %10360 = vmatpush1.bf16.msra.mxu0 %v9545
    %10361 = vmatprep.subr.bf16.mxu0 %v9554
    %10362 = vmatpush1.bf16.msra.mxu0 %v9553
    %10363 = vmatprep.subr.bf16.mxu0 %v9562
    %10364 = vmatpush1.bf16.msra.mxu0 %v9561
    %10365 = vmatprep.subr.bf16.mxu0 %v9570
    %10366 = vmatpush1.bf16.msra.mxu0 %v9569
    %10367 = vmatprep.subr.bf16.mxu0 %v9578
    %10368 = vmatpush1.bf16.msra.mxu0 %v9577
    %10369 = vmatprep.subr.bf16.mxu0 %v9586
    %10370 = vmatpush1.bf16.msra.mxu0 %v9585
    %10371 = vmatprep.subr.bf16.mxu0 %v9594
    %10372 = vmatpush1.bf16.msra.mxu0 %v9593
    %10373 = vmatprep.subr.bf16.mxu0 %v9602
    %10374 = vmatpush1.bf16.msra.mxu0 %v9601
    %10375 = vmatprep.subr.bf16.mxu0 %v9610
    %10376 = vmatpush1.bf16.msra.mxu0 %v9609
    %10377 = vmatprep.subr.bf16.mxu0 %v9618
    %10378 = vmatpush1.bf16.msra.mxu0 %v9617
    %10379 = vmatprep.mubr.bf16.mxu0 %v7190
    %10380 = vmatmul.mubr.bf16.gmra.mrb[0].mxu0 %v7189
    %v10381 = vpop.f32.mrb[0].mxu0
    %v10382 = vadd.f32 %v10341, %v10381
    %v10383 = vpop.f32.mrb[0].mxu0
    %v10384 = vadd.f32 %v10343, %v10383
    %v10385 = vpop.f32.mrb[0].mxu0
    %v10386 = vpop.f32.mrb[0].mxu0
    %10387 = vdwg.mxu0
    %10388 = vmatprep.subr.bf16.mxu0 %v9626
    %10389 = vmatpush1.bf16.msra.mxu0 %v9625
    %10390 = vmatprep.subr.bf16.mxu0 %v9634
    %10391 = vmatpush1.bf16.msra.mxu0 %v9633
    %10392 = vmatprep.subr.bf16.mxu0 %v9642
    %10393 = vmatpush1.bf16.msra.mxu0 %v9641
    %10394 = vmatprep.subr.bf16.mxu0 %v9650
    %10395 = vmatpush1.bf16.msra.mxu0 %v9649
    %10396 = vmatprep.subr.bf16.mxu0 %v9658
    %10397 = vmatpush1.bf16.msra.mxu0 %v9657
    %10398 = vmatprep.subr.bf16.mxu0 %v9666
    %10399 = vmatpush1.bf16.msra.mxu0 %v9665
    %10400 = vmatprep.subr.bf16.mxu0 %v9674
    %10401 = vmatpush1.bf16.msra.mxu0 %v9673
    %10402 = vmatprep.subr.bf16.mxu0 %v9682
    %10403 = vmatpush1.bf16.msra.mxu0 %v9681
    %10404 = vmatprep.subr.bf16.mxu0 %v9690
    %10405 = vmatpush1.bf16.msra.mxu0 %v9689
    %10406 = vmatprep.subr.bf16.mxu0 %v9698
    %10407 = vmatpush1.bf16.msra.mxu0 %v9697
    %10408 = vmatprep.subr.bf16.mxu0 %v9706
    %10409 = vmatpush1.bf16.msra.mxu0 %v9705
    %10410 = vmatprep.subr.bf16.mxu0 %v9714
    %10411 = vmatpush1.bf16.msra.mxu0 %v9713
    %10412 = vmatprep.subr.bf16.mxu0 %v9722
    %10413 = vmatpush1.bf16.msra.mxu0 %v9721
    %10414 = vmatprep.subr.bf16.mxu0 %v9730
    %10415 = vmatpush1.bf16.msra.mxu0 %v9729
    %10416 = vmatprep.subr.bf16.mxu0 %v9738
    %10417 = vmatpush1.bf16.msra.mxu0 %v9737
    %10418 = vmatprep.subr.bf16.mxu0 %v9746
    %10419 = vmatpush1.bf16.msra.mxu0 %v9745
    %10420 = vmatprep.mubr.bf16.mxu0 %v7192
    %10421 = vmatmul.mubr.bf16.gmra.mrb[0].mxu0 %v7191
    %v10422 = vpop.f32.mrb[0].mxu0
    %v10423 = vadd.f32 %v10382, %v10422
    %v10424 = vpop.f32.mrb[0].mxu0
    %v10425 = vadd.f32 %v10384, %v10424
    %v10426 = vpop.f32.mrb[0].mxu0
    %v10427 = vpop.f32.mrb[0].mxu0
    %10428 = vdwg.mxu0
    %10429 = vmatprep.subr.bf16.mxu0 %v9244
    %10430 = vmatpush1.bf16.msra.mxu0 %v9243
    %10431 = vmatprep.subr.bf16.mxu0 %v9252
    %10432 = vmatpush1.bf16.msra.mxu0 %v9251
    %10433 = vmatprep.subr.bf16.mxu0 %v9260
    %10434 = vmatpush1.bf16.msra.mxu0 %v9259
    %10435 = vmatprep.subr.bf16.mxu0 %v9268
    %10436 = vmatpush1.bf16.msra.mxu0 %v9267
    %10437 = vmatprep.subr.bf16.mxu0 %v9276
    %10438 = vmatpush1.bf16.msra.mxu0 %v9275
    %10439 = vmatprep.subr.bf16.mxu0 %v9284
    %10440 = vmatpush1.bf16.msra.mxu0 %v9283
    %10441 = vmatprep.subr.bf16.mxu0 %v9292
    %10442 = vmatpush1.bf16.msra.mxu0 %v9291
    %10443 = vmatprep.subr.bf16.mxu0 %v9300
    %10444 = vmatpush1.bf16.msra.mxu0 %v9299
    %10445 = vmatprep.subr.bf16.mxu0 %v9308
    %10446 = vmatpush1.bf16.msra.mxu0 %v9307
    %10447 = vmatprep.subr.bf16.mxu0 %v9316
    %10448 = vmatpush1.bf16.msra.mxu0 %v9315
    %10449 = vmatprep.subr.bf16.mxu0 %v9324
    %10450 = vmatpush1.bf16.msra.mxu0 %v9323
    %10451 = vmatprep.subr.bf16.mxu0 %v9332
    %10452 = vmatpush1.bf16.msra.mxu0 %v9331
    %10453 = vmatprep.subr.bf16.mxu0 %v9340
    %10454 = vmatpush1.bf16.msra.mxu0 %v9339
    %10455 = vmatprep.subr.bf16.mxu0 %v9348
    %10456 = vmatpush1.bf16.msra.mxu0 %v9347
    %10457 = vmatprep.subr.bf16.mxu0 %v9356
    %10458 = vmatpush1.bf16.msra.mxu0 %v9355
    %10459 = vmatprep.subr.bf16.mxu0 %v9364
    %10460 = vmatpush1.bf16.msra.mxu0 %v9363
    %10461 = vmatprep.mubr.bf16.mxu0 %v7186
    %10462 = vmatmul.mubr.bf16.gmra.mrb[0].mxu0 %v7185
    %v10463 = vpop.f32.mrb[0].mxu0
    %v10464 = vadd.f32 0.0, %v10463
    %v10465 = vpop.f32.mrb[0].mxu0
    %v10466 = vadd.f32 0.0, %v10465
    %v10467 = vpop.f32.mrb[0].mxu0
    %v10468 = vpop.f32.mrb[0].mxu0
    %10469 = vdwg.mxu0
    %10470 = vmatprep.subr.bf16.mxu0 %v9372
    %10471 = vmatpush1.bf16.msra.mxu0 %v9371
    %10472 = vmatprep.subr.bf16.mxu0 %v9380
    %10473 = vmatpush1.bf16.msra.mxu0 %v9379
    %10474 = vmatprep.subr.bf16.mxu0 %v9388
    %10475 = vmatpush1.bf16.msra.mxu0 %v9387
    %10476 = vmatprep.subr.bf16.mxu0 %v9396
    %10477 = vmatpush1.bf16.msra.mxu0 %v9395
    %10478 = vmatprep.subr.bf16.mxu0 %v9404
    %10479 = vmatpush1.bf16.msra.mxu0 %v9403
    %10480 = vmatprep.subr.bf16.mxu0 %v9412
    %10481 = vmatpush1.bf16.msra.mxu0 %v9411
    %10482 = vmatprep.subr.bf16.mxu0 %v9420
    %10483 = vmatpush1.bf16.msra.mxu0 %v9419
    %10484 = vmatprep.subr.bf16.mxu0 %v9428
    %10485 = vmatpush1.bf16.msra.mxu0 %v9427
    %10486 = vmatprep.subr.bf16.mxu0 %v9436
    %10487 = vmatpush1.bf16.msra.mxu0 %v9435
    %10488 = vmatprep.subr.bf16.mxu0 %v9444
    %10489 = vmatpush1.bf16.msra.mxu0 %v9443
    %10490 = vmatprep.subr.bf16.mxu0 %v9452
    %10491 = vmatpush1.bf16.msra.mxu0 %v9451
    %10492 = vmatprep.subr.bf16.mxu0 %v9460
    %10493 = vmatpush1.bf16.msra.mxu0 %v9459
    %10494 = vmatprep.subr.bf16.mxu0 %v9468
    %10495 = vmatpush1.bf16.msra.mxu0 %v9467
    %10496 = vmatprep.subr.bf16.mxu0 %v9476
    %10497 = vmatpush1.bf16.msra.mxu0 %v9475
    %10498 = vmatprep.subr.bf16.mxu0 %v9484
    %10499 = vmatpush1.bf16.msra.mxu0 %v9483
    %10500 = vmatprep.subr.bf16.mxu0 %v9492
    %10501 = vmatpush1.bf16.msra.mxu0 %v9491
    %10502 = vmatprep.mubr.bf16.mxu0 %v7188
    %10503 = vmatmul.mubr.bf16.gmra.mrb[0].mxu0 %v7187
    %v10504 = vpop.f32.mrb[0].mxu0
    %v10505 = vadd.f32 %v10464, %v10504
    %v10506 = vpop.f32.mrb[0].mxu0
    %v10507 = vadd.f32 %v10466, %v10506
    %v10508 = vpop.f32.mrb[0].mxu0
    %v10509 = vpop.f32.mrb[0].mxu0
    %10510 = vdwg.mxu0
    %10511 = vmatprep.subr.bf16.mxu0 %v9500
    %10512 = vmatpush1.bf16.msra.mxu0 %v9499
    %10513 = vmatprep.subr.bf16.mxu0 %v9508
    %10514 = vmatpush1.bf16.msra.mxu0 %v9507
    %10515 = vmatprep.subr.bf16.mxu0 %v9516
    %10516 = vmatpush1.bf16.msra.mxu0 %v9515
    %10517 = vmatprep.subr.bf16.mxu0 %v9524
    %10518 = vmatpush1.bf16.msra.mxu0 %v9523
    %10519 = vmatprep.subr.bf16.mxu0 %v9532
    %10520 = vmatpush1.bf16.msra.mxu0 %v9531
    %10521 = vmatprep.subr.bf16.mxu0 %v9540
    %10522 = vmatpush1.bf16.msra.mxu0 %v9539
    %10523 = vmatprep.subr.bf16.mxu0 %v9548
    %10524 = vmatpush1.bf16.msra.mxu0 %v9547
    %10525 = vmatprep.subr.bf16.mxu0 %v9556
    %10526 = vmatpush1.bf16.msra.mxu0 %v9555
    %10527 = vmatprep.subr.bf16.mxu0 %v9564
    %10528 = vmatpush1.bf16.msra.mxu0 %v9563
    %10529 = vmatprep.subr.bf16.mxu0 %v9572
    %10530 = vmatpush1.bf16.msra.mxu0 %v9571
    %10531 = vmatprep.subr.bf16.mxu0 %v9580
    %10532 = vmatpush1.bf16.msra.mxu0 %v9579
    %10533 = vmatprep.subr.bf16.mxu0 %v9588
    %10534 = vmatpush1.bf16.msra.mxu0 %v9587
    %10535 = vmatprep.subr.bf16.mxu0 %v9596
    %10536 = vmatpush1.bf16.msra.mxu0 %v9595
    %10537 = vmatprep.subr.bf16.mxu0 %v9604
    %10538 = vmatpush1.bf16.msra.mxu0 %v9603
    %10539 = vmatprep.subr.bf16.mxu0 %v9612
    %10540 = vmatpush1.bf16.msra.mxu0 %v9611
    %10541 = vmatprep.subr.bf16.mxu0 %v9620
    %10542 = vmatpush1.bf16.msra.mxu0 %v9619
    %10543 = vmatprep.mubr.bf16.mxu0 %v7190
    %10544 = vmatmul.mubr.bf16.gmra.mrb[0].mxu0 %v7189
    %v10545 = vpop.f32.mrb[0].mxu0
    %v10546 = vadd.f32 %v10505, %v10545
    %v10547 = vpop.f32.mrb[0].mxu0
    %v10548 = vadd.f32 %v10507, %v10547
    %v10549 = vpop.f32.mrb[0].mxu0
    %v10550 = vpop.f32.mrb[0].mxu0
    %10551 = vdwg.mxu0
    %10552 = vmatprep.subr.bf16.mxu0 %v9628
    %10553 = vmatpush1.bf16.msra.mxu0 %v9627
    %10554 = vmatprep.subr.bf16.mxu0 %v9636
    %10555 = vmatpush1.bf16.msra.mxu0 %v9635
    %10556 = vmatprep.subr.bf16.mxu0 %v9644
    %10557 = vmatpush1.bf16.msra.mxu0 %v9643
    %10558 = vmatprep.subr.bf16.mxu0 %v9652
    %10559 = vmatpush1.bf16.msra.mxu0 %v9651
    %10560 = vmatprep.subr.bf16.mxu0 %v9660
    %10561 = vmatpush1.bf16.msra.mxu0 %v9659
    %10562 = vmatprep.subr.bf16.mxu0 %v9668
    %10563 = vmatpush1.bf16.msra.mxu0 %v9667
    %10564 = vmatprep.subr.bf16.mxu0 %v9676
    %10565 = vmatpush1.bf16.msra.mxu0 %v9675
    %10566 = vmatprep.subr.bf16.mxu0 %v9684
    %10567 = vmatpush1.bf16.msra.mxu0 %v9683
    %10568 = vmatprep.subr.bf16.mxu0 %v9692
    %10569 = vmatpush1.bf16.msra.mxu0 %v9691
    %10570 = vmatprep.subr.bf16.mxu0 %v9700
    %10571 = vmatpush1.bf16.msra.mxu0 %v9699
    %10572 = vmatprep.subr.bf16.mxu0 %v9708
    %10573 = vmatpush1.bf16.msra.mxu0 %v9707
    %10574 = vmatprep.subr.bf16.mxu0 %v9716
    %10575 = vmatpush1.bf16.msra.mxu0 %v9715
    %10576 = vmatprep.subr.bf16.mxu0 %v9724
    %10577 = vmatpush1.bf16.msra.mxu0 %v9723
    %10578 = vmatprep.subr.bf16.mxu0 %v9732
    %10579 = vmatpush1.bf16.msra.mxu0 %v9731
    %10580 = vmatprep.subr.bf16.mxu0 %v9740
    %10581 = vmatpush1.bf16.msra.mxu0 %v9739
    %10582 = vmatprep.subr.bf16.mxu0 %v9748
    %10583 = vmatpush1.bf16.msra.mxu0 %v9747
    %10584 = vmatprep.mubr.bf16.mxu0 %v7192
    %10585 = vmatmul.mubr.bf16.gmra.mrb[0].mxu0 %v7191
    %v10586 = vpop.f32.mrb[0].mxu0
    %v10587 = vadd.f32 %v10546, %v10586
    %v10588 = vpop.f32.mrb[0].mxu0
    %v10589 = vadd.f32 %v10548, %v10588
    %v10590 = vpop.f32.mrb[0].mxu0
    %v10591 = vpop.f32.mrb[0].mxu0
    %10592 = vdwg.mxu0
    %10593 = vmatprep.subr.bf16.mxu0 %v9246
    %10594 = vmatpush1.bf16.msra.mxu0 %v9245
    %10595 = vmatprep.subr.bf16.mxu0 %v9254
    %10596 = vmatpush1.bf16.msra.mxu0 %v9253
    %10597 = vmatprep.subr.bf16.mxu0 %v9262
    %10598 = vmatpush1.bf16.msra.mxu0 %v9261
    %10599 = vmatprep.subr.bf16.mxu0 %v9270
    %10600 = vmatpush1.bf16.msra.mxu0 %v9269
    %10601 = vmatprep.subr.bf16.mxu0 %v9278
    %10602 = vmatpush1.bf16.msra.mxu0 %v9277
    %10603 = vmatprep.subr.bf16.mxu0 %v9286
    %10604 = vmatpush1.bf16.msra.mxu0 %v9285
    %10605 = vmatprep.subr.bf16.mxu0 %v9294
    %10606 = vmatpush1.bf16.msra.mxu0 %v9293
    %10607 = vmatprep.subr.bf16.mxu0 %v9302
    %10608 = vmatpush1.bf16.msra.mxu0 %v9301
    %10609 = vmatprep.subr.bf16.mxu0 %v9310
    %10610 = vmatpush1.bf16.msra.mxu0 %v9309
    %10611 = vmatprep.subr.bf16.mxu0 %v9318
    %10612 = vmatpush1.bf16.msra.mxu0 %v9317
    %10613 = vmatprep.subr.bf16.mxu0 %v9326
    %10614 = vmatpush1.bf16.msra.mxu0 %v9325
    %10615 = vmatprep.subr.bf16.mxu0 %v9334
    %10616 = vmatpush1.bf16.msra.mxu0 %v9333
    %10617 = vmatprep.subr.bf16.mxu0 %v9342
    %10618 = vmatpush1.bf16.msra.mxu0 %v9341
    %10619 = vmatprep.subr.bf16.mxu0 %v9350
    %10620 = vmatpush1.bf16.msra.mxu0 %v9349
    %10621 = vmatprep.subr.bf16.mxu0 %v9358
    %10622 = vmatpush1.bf16.msra.mxu0 %v9357
    %10623 = vmatprep.subr.bf16.mxu0 %v9366
    %10624 = vmatpush1.bf16.msra.mxu0 %v9365
    %10625 = vmatprep.mubr.bf16.mxu0 %v7186
    %10626 = vmatmul.mubr.bf16.gmra.mrb[0].mxu0 %v7185
    %v10627 = vpop.f32.mrb[0].mxu0
    %v10628 = vadd.f32 0.0, %v10627
    %v10629 = vpop.f32.mrb[0].mxu0
    %v10630 = vadd.f32 0.0, %v10629
    %v10631 = vpop.f32.mrb[0].mxu0
    %v10632 = vpop.f32.mrb[0].mxu0
    %10633 = vdwg.mxu0
    %10634 = vmatprep.subr.bf16.mxu0 %v9374
    %10635 = vmatpush1.bf16.msra.mxu0 %v9373
    %10636 = vmatprep.subr.bf16.mxu0 %v9382
    %10637 = vmatpush1.bf16.msra.mxu0 %v9381
    %10638 = vmatprep.subr.bf16.mxu0 %v9390
    %10639 = vmatpush1.bf16.msra.mxu0 %v9389
    %10640 = vmatprep.subr.bf16.mxu0 %v9398
    %10641 = vmatpush1.bf16.msra.mxu0 %v9397
    %10642 = vmatprep.subr.bf16.mxu0 %v9406
    %10643 = vmatpush1.bf16.msra.mxu0 %v9405
    %10644 = vmatprep.subr.bf16.mxu0 %v9414
    %10645 = vmatpush1.bf16.msra.mxu0 %v9413
    %10646 = vmatprep.subr.bf16.mxu0 %v9422
    %10647 = vmatpush1.bf16.msra.mxu0 %v9421
    %10648 = vmatprep.subr.bf16.mxu0 %v9430
    %10649 = vmatpush1.bf16.msra.mxu0 %v9429
    %10650 = vmatprep.subr.bf16.mxu0 %v9438
    %10651 = vmatpush1.bf16.msra.mxu0 %v9437
    %10652 = vmatprep.subr.bf16.mxu0 %v9446
    %10653 = vmatpush1.bf16.msra.mxu0 %v9445
    %10654 = vmatprep.subr.bf16.mxu0 %v9454
    %10655 = vmatpush1.bf16.msra.mxu0 %v9453
    %10656 = vmatprep.subr.bf16.mxu0 %v9462
    %10657 = vmatpush1.bf16.msra.mxu0 %v9461
    %10658 = vmatprep.subr.bf16.mxu0 %v9470
    %10659 = vmatpush1.bf16.msra.mxu0 %v9469
    %10660 = vmatprep.subr.bf16.mxu0 %v9478
    %10661 = vmatpush1.bf16.msra.mxu0 %v9477
    %10662 = vmatprep.subr.bf16.mxu0 %v9486
    %10663 = vmatpush1.bf16.msra.mxu0 %v9485
    %10664 = vmatprep.subr.bf16.mxu0 %v9494
    %10665 = vmatpush1.bf16.msra.mxu0 %v9493
    %10666 = vmatprep.mubr.bf16.mxu0 %v7188
    %10667 = vmatmul.mubr.bf16.gmra.mrb[0].mxu0 %v7187
    %v10668 = vpop.f32.mrb[0].mxu0
    %v10669 = vadd.f32 %v10628, %v10668
    %v10670 = vpop.f32.mrb[0].mxu0
    %v10671 = vadd.f32 %v10630, %v10670
    %v10672 = vpop.f32.mrb[0].mxu0
    %v10673 = vpop.f32.mrb[0].mxu0
    %10674 = vdwg.mxu0
    %10675 = vmatprep.subr.bf16.mxu0 %v9502
    %10676 = vmatpush1.bf16.msra.mxu0 %v9501
    %10677 = vmatprep.subr.bf16.mxu0 %v9510
    %10678 = vmatpush1.bf16.msra.mxu0 %v9509
    %10679 = vmatprep.subr.bf16.mxu0 %v9518
    %10680 = vmatpush1.bf16.msra.mxu0 %v9517
    %10681 = vmatprep.subr.bf16.mxu0 %v9526
    %10682 = vmatpush1.bf16.msra.mxu0 %v9525
    %10683 = vmatprep.subr.bf16.mxu0 %v9534
    %10684 = vmatpush1.bf16.msra.mxu0 %v9533
    %10685 = vmatprep.subr.bf16.mxu0 %v9542
    %10686 = vmatpush1.bf16.msra.mxu0 %v9541
    %10687 = vmatprep.subr.bf16.mxu0 %v9550
    %10688 = vmatpush1.bf16.msra.mxu0 %v9549
    %10689 = vmatprep.subr.bf16.mxu0 %v9558
    %10690 = vmatpush1.bf16.msra.mxu0 %v9557
    %10691 = vmatprep.subr.bf16.mxu0 %v9566
    %10692 = vmatpush1.bf16.msra.mxu0 %v9565
    %10693 = vmatprep.subr.bf16.mxu0 %v9574
    %10694 = vmatpush1.bf16.msra.mxu0 %v9573
    %10695 = vmatprep.subr.bf16.mxu0 %v9582
    %10696 = vmatpush1.bf16.msra.mxu0 %v9581
    %10697 = vmatprep.subr.bf16.mxu0 %v9590
    %10698 = vmatpush1.bf16.msra.mxu0 %v9589
    %10699 = vmatprep.subr.bf16.mxu0 %v9598
    %10700 = vmatpush1.bf16.msra.mxu0 %v9597
    %10701 = vmatprep.subr.bf16.mxu0 %v9606
    %10702 = vmatpush1.bf16.msra.mxu0 %v9605
    %10703 = vmatprep.subr.bf16.mxu0 %v9614
    %10704 = vmatpush1.bf16.msra.mxu0 %v9613
    %10705 = vmatprep.subr.bf16.mxu0 %v9622
    %10706 = vmatpush1.bf16.msra.mxu0 %v9621
    %10707 = vmatprep.mubr.bf16.mxu0 %v7190
    %10708 = vmatmul.mubr.bf16.gmra.mrb[0].mxu0 %v7189
    %v10709 = vpop.f32.mrb[0].mxu0
    %v10710 = vadd.f32 %v10669, %v10709
    %v10711 = vpop.f32.mrb[0].mxu0
    %v10712 = vadd.f32 %v10671, %v10711
    %v10713 = vpop.f32.mrb[0].mxu0
    %v10714 = vpop.f32.mrb[0].mxu0
    %10715 = vdwg.mxu0
    %10716 = vmatprep.subr.bf16.mxu0 %v9630
    %10717 = vmatpush1.bf16.msra.mxu0 %v9629
    %10718 = vmatprep.subr.bf16.mxu0 %v9638
    %10719 = vmatpush1.bf16.msra.mxu0 %v9637
    %10720 = vmatprep.subr.bf16.mxu0 %v9646
    %10721 = vmatpush1.bf16.msra.mxu0 %v9645
    %10722 = vmatprep.subr.bf16.mxu0 %v9654
    %10723 = vmatpush1.bf16.msra.mxu0 %v9653
    %10724 = vmatprep.subr.bf16.mxu0 %v9662
    %10725 = vmatpush1.bf16.msra.mxu0 %v9661
    %10726 = vmatprep.subr.bf16.mxu0 %v9670
    %10727 = vmatpush1.bf16.msra.mxu0 %v9669
    %10728 = vmatprep.subr.bf16.mxu0 %v9678
    %10729 = vmatpush1.bf16.msra.mxu0 %v9677
    %10730 = vmatprep.subr.bf16.mxu0 %v9686
    %10731 = vmatpush1.bf16.msra.mxu0 %v9685
    %10732 = vmatprep.subr.bf16.mxu0 %v9694
    %10733 = vmatpush1.bf16.msra.mxu0 %v9693
    %10734 = vmatprep.subr.bf16.mxu0 %v9702
    %10735 = vmatpush1.bf16.msra.mxu0 %v9701
    %10736 = vmatprep.subr.bf16.mxu0 %v9710
    %10737 = vmatpush1.bf16.msra.mxu0 %v9709
    %10738 = vmatprep.subr.bf16.mxu0 %v9718
    %10739 = vmatpush1.bf16.msra.mxu0 %v9717
    %10740 = vmatprep.subr.bf16.mxu0 %v9726
    %10741 = vmatpush1.bf16.msra.mxu0 %v9725
    %10742 = vmatprep.subr.bf16.mxu0 %v9734
    %10743 = vmatpush1.bf16.msra.mxu0 %v9733
    %10744 = vmatprep.subr.bf16.mxu0 %v9742
    %10745 = vmatpush1.bf16.msra.mxu0 %v9741
    %10746 = vmatprep.subr.bf16.mxu0 %v9750
    %10747 = vmatpush1.bf16.msra.mxu0 %v9749
    %10748 = vmatprep.mubr.bf16.mxu0 %v7192
    %10749 = vmatmul.mubr.bf16.gmra.mrb[0].mxu0 %v7191
    %v10750 = vpop.f32.mrb[0].mxu0
    %v10751 = vadd.f32 %v10710, %v10750
    %v10752 = vpop.f32.mrb[0].mxu0
    %v10753 = vadd.f32 %v10712, %v10752
    %v10754 = vpop.f32.mrb[0].mxu0
    %v10755 = vpop.f32.mrb[0].mxu0
    %10756 = vdwg.mxu0
    %10757 = vmatprep.subr.bf16.mxu0 %v9248
    %10758 = vmatpush1.bf16.msra.mxu0 %v9247
    %10759 = vmatprep.subr.bf16.mxu0 %v9256
    %10760 = vmatpush1.bf16.msra.mxu0 %v9255
    %10761 = vmatprep.subr.bf16.mxu0 %v9264
    %10762 = vmatpush1.bf16.msra.mxu0 %v9263
    %10763 = vmatprep.subr.bf16.mxu0 %v9272
    %10764 = vmatpush1.bf16.msra.mxu0 %v9271
    %10765 = vmatprep.subr.bf16.mxu0 %v9280
    %10766 = vmatpush1.bf16.msra.mxu0 %v9279
    %10767 = vmatprep.subr.bf16.mxu0 %v9288
    %10768 = vmatpush1.bf16.msra.mxu0 %v9287
    %10769 = vmatprep.subr.bf16.mxu0 %v9296
    %10770 = vmatpush1.bf16.msra.mxu0 %v9295
    %10771 = vmatprep.subr.bf16.mxu0 %v9304
    %10772 = vmatpush1.bf16.msra.mxu0 %v9303
    %10773 = vmatprep.subr.bf16.mxu0 %v9312
    %10774 = vmatpush1.bf16.msra.mxu0 %v9311
    %10775 = vmatprep.subr.bf16.mxu0 %v9320
    %10776 = vmatpush1.bf16.msra.mxu0 %v9319
    %10777 = vmatprep.subr.bf16.mxu0 %v9328
    %10778 = vmatpush1.bf16.msra.mxu0 %v9327
    %10779 = vmatprep.subr.bf16.mxu0 %v9336
    %10780 = vmatpush1.bf16.msra.mxu0 %v9335
    %10781 = vmatprep.subr.bf16.mxu0 %v9344
    %10782 = vmatpush1.bf16.msra.mxu0 %v9343
    %10783 = vmatprep.subr.bf16.mxu0 %v9352
    %10784 = vmatpush1.bf16.msra.mxu0 %v9351
    %10785 = vmatprep.subr.bf16.mxu0 %v9360
    %10786 = vmatpush1.bf16.msra.mxu0 %v9359
    %10787 = vmatprep.subr.bf16.mxu0 %v9368
    %10788 = vmatpush1.bf16.msra.mxu0 %v9367
    %10789 = vmatprep.mubr.bf16.mxu0 %v7186
    %10790 = vmatmul.mubr.bf16.gmra.mrb[0].mxu0 %v7185
    %v10791 = vpop.f32.mrb[0].mxu0
    %v10792 = vadd.f32 0.0, %v10791
    %v10793 = vpop.f32.mrb[0].mxu0
    %v10794 = vadd.f32 0.0, %v10793
    %v10795 = vpop.f32.mrb[0].mxu0
    %v10796 = vpop.f32.mrb[0].mxu0
    %10797 = vdwg.mxu0
    %10798 = vmatprep.subr.bf16.mxu0 %v9376
    %10799 = vmatpush1.bf16.msra.mxu0 %v9375
    %10800 = vmatprep.subr.bf16.mxu0 %v9384
    %10801 = vmatpush1.bf16.msra.mxu0 %v9383
    %10802 = vmatprep.subr.bf16.mxu0 %v9392
    %10803 = vmatpush1.bf16.msra.mxu0 %v9391
    %10804 = vmatprep.subr.bf16.mxu0 %v9400
    %10805 = vmatpush1.bf16.msra.mxu0 %v9399
    %10806 = vmatprep.subr.bf16.mxu0 %v9408
    %10807 = vmatpush1.bf16.msra.mxu0 %v9407
    %10808 = vmatprep.subr.bf16.mxu0 %v9416
    %10809 = vmatpush1.bf16.msra.mxu0 %v9415
    %10810 = vmatprep.subr.bf16.mxu0 %v9424
    %10811 = vmatpush1.bf16.msra.mxu0 %v9423
    %10812 = vmatprep.subr.bf16.mxu0 %v9432
    %10813 = vmatpush1.bf16.msra.mxu0 %v9431
    %10814 = vmatprep.subr.bf16.mxu0 %v9440
    %10815 = vmatpush1.bf16.msra.mxu0 %v9439
    %10816 = vmatprep.subr.bf16.mxu0 %v9448
    %10817 = vmatpush1.bf16.msra.mxu0 %v9447
    %10818 = vmatprep.subr.bf16.mxu0 %v9456
    %10819 = vmatpush1.bf16.msra.mxu0 %v9455
    %10820 = vmatprep.subr.bf16.mxu0 %v9464
    %10821 = vmatpush1.bf16.msra.mxu0 %v9463
    %10822 = vmatprep.subr.bf16.mxu0 %v9472
    %10823 = vmatpush1.bf16.msra.mxu0 %v9471
    %10824 = vmatprep.subr.bf16.mxu0 %v9480
    %10825 = vmatpush1.bf16.msra.mxu0 %v9479
    %10826 = vmatprep.subr.bf16.mxu0 %v9488
    %10827 = vmatpush1.bf16.msra.mxu0 %v9487
    %10828 = vmatprep.subr.bf16.mxu0 %v9496
    %10829 = vmatpush1.bf16.msra.mxu0 %v9495
    %10830 = vmatprep.mubr.bf16.mxu0 %v7188
    %10831 = vmatmul.mubr.bf16.gmra.mrb[0].mxu0 %v7187
    %v10832 = vpop.f32.mrb[0].mxu0
    %v10833 = vadd.f32 %v10792, %v10832
    %v10834 = vpop.f32.mrb[0].mxu0
    %v10835 = vadd.f32 %v10794, %v10834
    %v10836 = vpop.f32.mrb[0].mxu0
    %v10837 = vpop.f32.mrb[0].mxu0
    %10838 = vdwg.mxu0
    %10839 = vmatprep.subr.bf16.mxu0 %v9504
    %10840 = vmatpush1.bf16.msra.mxu0 %v9503
    %10841 = vmatprep.subr.bf16.mxu0 %v9512
    %10842 = vmatpush1.bf16.msra.mxu0 %v9511
    %10843 = vmatprep.subr.bf16.mxu0 %v9520
    %10844 = vmatpush1.bf16.msra.mxu0 %v9519
    %10845 = vmatprep.subr.bf16.mxu0 %v9528
    %10846 = vmatpush1.bf16.msra.mxu0 %v9527
    %10847 = vmatprep.subr.bf16.mxu0 %v9536
    %10848 = vmatpush1.bf16.msra.mxu0 %v9535
    %10849 = vmatprep.subr.bf16.mxu0 %v9544
    %10850 = vmatpush1.bf16.msra.mxu0 %v9543
    %10851 = vmatprep.subr.bf16.mxu0 %v9552
    %10852 = vmatpush1.bf16.msra.mxu0 %v9551
    %10853 = vmatprep.subr.bf16.mxu0 %v9560
    %10854 = vmatpush1.bf16.msra.mxu0 %v9559
    %10855 = vmatprep.subr.bf16.mxu0 %v9568
    %10856 = vmatpush1.bf16.msra.mxu0 %v9567
    %10857 = vmatprep.subr.bf16.mxu0 %v9576
    %10858 = vmatpush1.bf16.msra.mxu0 %v9575
    %10859 = vmatprep.subr.bf16.mxu0 %v9584
    %10860 = vmatpush1.bf16.msra.mxu0 %v9583
    %10861 = vmatprep.subr.bf16.mxu0 %v9592
    %10862 = vmatpush1.bf16.msra.mxu0 %v9591
    %10863 = vmatprep.subr.bf16.mxu0 %v9600
    %10864 = vmatpush1.bf16.msra.mxu0 %v9599
    %10865 = vmatprep.subr.bf16.mxu0 %v9608
    %10866 = vmatpush1.bf16.msra.mxu0 %v9607
    %10867 = vmatprep.subr.bf16.mxu0 %v9616
    %10868 = vmatpush1.bf16.msra.mxu0 %v9615
    %10869 = vmatprep.subr.bf16.mxu0 %v9624
    %10870 = vmatpush1.bf16.msra.mxu0 %v9623
    %10871 = vmatprep.mubr.bf16.mxu0 %v7190
    %10872 = vmatmul.mubr.bf16.gmra.mrb[0].mxu0 %v7189
    %v10873 = vpop.f32.mrb[0].mxu0
    %v10874 = vadd.f32 %v10833, %v10873
    %v10875 = vpop.f32.mrb[0].mxu0
    %v10876 = vadd.f32 %v10835, %v10875
    %v10877 = vpop.f32.mrb[0].mxu0
    %v10878 = vpop.f32.mrb[0].mxu0
    %10879 = vdwg.mxu0
    %10880 = vmatprep.subr.bf16.mxu0 %v9632
    %10881 = vmatpush1.bf16.msra.mxu0 %v9631
    %10882 = vmatprep.subr.bf16.mxu0 %v9640
    %10883 = vmatpush1.bf16.msra.mxu0 %v9639
    %10884 = vmatprep.subr.bf16.mxu0 %v9648
    %10885 = vmatpush1.bf16.msra.mxu0 %v9647
    %10886 = vmatprep.subr.bf16.mxu0 %v9656
    %10887 = vmatpush1.bf16.msra.mxu0 %v9655
    %10888 = vmatprep.subr.bf16.mxu0 %v9664
    %10889 = vmatpush1.bf16.msra.mxu0 %v9663
    %10890 = vmatprep.subr.bf16.mxu0 %v9672
    %10891 = vmatpush1.bf16.msra.mxu0 %v9671
    %10892 = vmatprep.subr.bf16.mxu0 %v9680
    %10893 = vmatpush1.bf16.msra.mxu0 %v9679
    %10894 = vmatprep.subr.bf16.mxu0 %v9688
    %10895 = vmatpush1.bf16.msra.mxu0 %v9687
    %10896 = vmatprep.subr.bf16.mxu0 %v9696
    %10897 = vmatpush1.bf16.msra.mxu0 %v9695
    %10898 = vmatprep.subr.bf16.mxu0 %v9704
    %10899 = vmatpush1.bf16.msra.mxu0 %v9703
    %10900 = vmatprep.subr.bf16.mxu0 %v9712
    %10901 = vmatpush1.bf16.msra.mxu0 %v9711
    %10902 = vmatprep.subr.bf16.mxu0 %v9720
    %10903 = vmatpush1.bf16.msra.mxu0 %v9719
    %10904 = vmatprep.subr.bf16.mxu0 %v9728
    %10905 = vmatpush1.bf16.msra.mxu0 %v9727
    %10906 = vmatprep.subr.bf16.mxu0 %v9736
    %10907 = vmatpush1.bf16.msra.mxu0 %v9735
    %10908 = vmatprep.subr.bf16.mxu0 %v9744
    %10909 = vmatpush1.bf16.msra.mxu0 %v9743
    %10910 = vmatprep.subr.bf16.mxu0 %v9752
    %10911 = vmatpush1.bf16.msra.mxu0 %v9751
    %10912 = vmatprep.mubr.bf16.mxu0 %v7192
    %10913 = vmatmul.mubr.bf16.gmra.mrb[0].mxu0 %v7191
    %v10914 = vpop.f32.mrb[0].mxu0
    %v10915 = vadd.f32 %v10874, %v10914
    %v10916 = vpop.f32.mrb[0].mxu0
    %v10917 = vadd.f32 %v10876, %v10916
    %v10918 = vpop.f32.mrb[0].mxu0
    %v10919 = vpop.f32.mrb[0].mxu0
    %10920 = vdwg.mxu0
    %v10921 = vld [vmem:[#allocation19] sm:$0xff]
    %v10922 = vld [vmem:[#allocation20] sm:$0xff]
    %v10923 = vrot.slane %v10423, 4
    %v10924 = vadd.f32 %v10423, %v10923
    %v10925 = vrot.slane %v10924, 2
    %v10926 = vadd.f32 %v10924, %v10925
    %v10927 = vrot.slane %v10926, 1
    %v10928 = vadd.f32 %v10926, %v10927
    %v10929 = vrot.slane %v10425, 4
    %v10930 = vadd.f32 %v10425, %v10929
    %v10931 = vrot.slane %v10930, 2
    %v10932 = vadd.f32 %v10930, %v10931
    %v10933 = vrot.slane %v10932, 1
    %v10934 = vadd.f32 %v10932, %v10933
    %v10935 = vrot.slane %v10587, 4
    %v10936 = vadd.f32 %v10587, %v10935
    %v10937 = vrot.slane %v10936, 2
    %v10938 = vadd.f32 %v10936, %v10937
    %v10939 = vrot.slane %v10938, 1
    %v10940 = vadd.f32 %v10938, %v10939
    %v10941 = vrot.slane %v10589, 4
    %v10942 = vadd.f32 %v10589, %v10941
    %v10943 = vrot.slane %v10942, 2
    %v10944 = vadd.f32 %v10942, %v10943
    %v10945 = vrot.slane %v10944, 1
    %v10946 = vadd.f32 %v10944, %v10945
    %v10947 = vrot.slane %v10751, 4
    %v10948 = vadd.f32 %v10751, %v10947
    %v10949 = vrot.slane %v10948, 2
    %v10950 = vadd.f32 %v10948, %v10949
    %v10951 = vrot.slane %v10950, 1
    %v10952 = vadd.f32 %v10950, %v10951
    %v10953 = vrot.slane %v10753, 4
    %v10954 = vadd.f32 %v10753, %v10953
    %v10955 = vrot.slane %v10954, 2
    %v10956 = vadd.f32 %v10954, %v10955
    %v10957 = vrot.slane %v10956, 1
    %v10958 = vadd.f32 %v10956, %v10957
    %v10959 = vrot.slane %v10915, 4
    %v10960 = vadd.f32 %v10915, %v10959
    %v10961 = vrot.slane %v10960, 2
    %v10962 = vadd.f32 %v10960, %v10961
    %v10963 = vrot.slane %v10962, 1
    %v10964 = vadd.f32 %v10962, %v10963
    %v10965 = vrot.slane %v10917, 4
    %v10966 = vadd.f32 %v10917, %v10965
    %v10967 = vrot.slane %v10966, 2
    %v10968 = vadd.f32 %v10966, %v10967
    %v10969 = vrot.slane %v10968, 1
    %v10970 = vadd.f32 %v10968, %v10969
    %v10971 = vmul.f32 %v10928, %v2726
    %v10972 = vmul.f32 %v10934, %v2726
    %v10973 = vmul.f32 %v10940, %v2726
    %v10974 = vmul.f32 %v10946, %v2726
    %v10975 = vmul.f32 %v10952, %v2726
    %v10976 = vmul.f32 %v10958, %v2726
    %v10977 = vmul.f32 %v10964, %v2726
    %v10978 = vmul.f32 %v10970, %v2726
    %v10979 = vsub.f32 %v10423, %v10971
    %v10980 = vsub.f32 %v10425, %v10972
    %v10981 = vsub.f32 %v10587, %v10973
    %v10982 = vsub.f32 %v10589, %v10974
    %v10983 = vsub.f32 %v10751, %v10975
    %v10984 = vsub.f32 %v10753, %v10976
    %v10985 = vsub.f32 %v10915, %v10977
    %v10986 = vsub.f32 %v10917, %v10978
    %v10987 = vmul.f32 %v10979, %v10979
    %v10988 = vmul.f32 %v10980, %v10980
    %v10989 = vmul.f32 %v10981, %v10981
    %v10990 = vmul.f32 %v10982, %v10982
    %v10991 = vmul.f32 %v10983, %v10983
    %v10992 = vmul.f32 %v10984, %v10984
    %v10993 = vmul.f32 %v10985, %v10985
    %v10994 = vmul.f32 %v10986, %v10986
    %v10995 = vrot.slane %v10987, 4
    %v10996 = vadd.f32 %v10987, %v10995
    %v10997 = vrot.slane %v10996, 2
    %v10998 = vadd.f32 %v10996, %v10997
    %v10999 = vrot.slane %v10998, 1
    %v11000 = vadd.f32 %v10998, %v10999
    %v11001 = vrot.slane %v10988, 4
    %v11002 = vadd.f32 %v10988, %v11001
    %v11003 = vrot.slane %v11002, 2
    %v11004 = vadd.f32 %v11002, %v11003
    %v11005 = vrot.slane %v11004, 1
    %v11006 = vadd.f32 %v11004, %v11005
    %v11007 = vrot.slane %v10989, 4
    %v11008 = vadd.f32 %v10989, %v11007
    %v11009 = vrot.slane %v11008, 2
    %v11010 = vadd.f32 %v11008, %v11009
    %v11011 = vrot.slane %v11010, 1
    %v11012 = vadd.f32 %v11010, %v11011
    %v11013 = vrot.slane %v10990, 4
    %v11014 = vadd.f32 %v10990, %v11013
    %v11015 = vrot.slane %v11014, 2
    %v11016 = vadd.f32 %v11014, %v11015
    %v11017 = vrot.slane %v11016, 1
    %v11018 = vadd.f32 %v11016, %v11017
    %v11019 = vrot.slane %v10991, 4
    %v11020 = vadd.f32 %v10991, %v11019
    %v11021 = vrot.slane %v11020, 2
    %v11022 = vadd.f32 %v11020, %v11021
    %v11023 = vrot.slane %v11022, 1
    %v11024 = vadd.f32 %v11022, %v11023
    %v11025 = vrot.slane %v10992, 4
    %v11026 = vadd.f32 %v10992, %v11025
    %v11027 = vrot.slane %v11026, 2
    %v11028 = vadd.f32 %v11026, %v11027
    %v11029 = vrot.slane %v11028, 1
    %v11030 = vadd.f32 %v11028, %v11029
    %v11031 = vrot.slane %v10993, 4
    %v11032 = vadd.f32 %v10993, %v11031
    %v11033 = vrot.slane %v11032, 2
    %v11034 = vadd.f32 %v11032, %v11033
    %v11035 = vrot.slane %v11034, 1
    %v11036 = vadd.f32 %v11034, %v11035
    %v11037 = vrot.slane %v10994, 4
    %v11038 = vadd.f32 %v10994, %v11037
    %v11039 = vrot.slane %v11038, 2
    %v11040 = vadd.f32 %v11038, %v11039
    %v11041 = vrot.slane %v11040, 1
    %v11042 = vadd.f32 %v11040, %v11041
    %v11043 = vmul.f32 %v11000, %v2726
    %v11044 = vmul.f32 %v11006, %v2726
    %v11045 = vmul.f32 %v11012, %v2726
    %v11046 = vmul.f32 %v11018, %v2726
    %v11047 = vmul.f32 %v11024, %v2726
    %v11048 = vmul.f32 %v11030, %v2726
    %v11049 = vmul.f32 %v11036, %v2726
    %v11050 = vmul.f32 %v11042, %v2726
    %v11051 = vadd.f32 %v11043, 1e-05
    %v11052 = vadd.f32 %v11044, 1e-05
    %v11053 = vadd.f32 %v11045, 1e-05
    %v11054 = vadd.f32 %v11046, 1e-05
    %v11055 = vadd.f32 %v11047, 1e-05
    %v11056 = vadd.f32 %v11048, 1e-05
    %v11057 = vadd.f32 %v11049, 1e-05
    %v11058 = vadd.f32 %v11050, 1e-05
    %v11059 = vrsqrt.pop %v11051
    %v11060 = vrsqrt.pop %v11052
    %v11061 = vrsqrt.pop %v11053
    %v11062 = vrsqrt.pop %v11054
    %v11063 = vrsqrt.pop %v11055
    %v11064 = vrsqrt.pop %v11056
    %v11065 = vrsqrt.pop %v11057
    %v11066 = vrsqrt.pop %v11058
    %v11075 = vcombine.low %v11059, %v11060
    %v11076 = vcombine.low %v11061, %v11062
    %v11077 = vcombine.low %v11063, %v11064
    %v11078 = vcombine.low %v11065, %v11066
    %v11080 = vunpack.c.l.s4 1966171168
    %v11081 = vunpack.c.0.s8 %v11080
    %v11082 = vlaneseq
    %v11083 = vshrl.u32 %v11082, 7
    %v11084 = vsub.s32 %v11081, %v11083
    %v11085 = vrot.slane %v11075, %v11084
    %v11087 = vunpack.c.l.s4 1966171168
    %v11088 = vunpack.c.0.s8 %v11087
    %v11089 = vlaneseq
    %v11090 = vshrl.u32 %v11089, 7
    %v11091 = vsub.s32 %v11088, %v11090
    %v11092 = vrot.slane %v11076, %v11091
    %v11094 = vunpack.c.l.s4 1966171168
    %v11095 = vunpack.c.0.s8 %v11094
    %v11096 = vlaneseq
    %v11097 = vshrl.u32 %v11096, 7
    %v11098 = vsub.s32 %v11095, %v11097
    %v11099 = vrot.slane %v11077, %v11098
    %v11101 = vunpack.c.l.s4 1966171168
    %v11102 = vunpack.c.0.s8 %v11101
    %v11103 = vlaneseq
    %v11104 = vshrl.u32 %v11103, 7
    %v11105 = vsub.s32 %v11102, %v11104
    %v11106 = vrot.slane %v11078, %v11105
    %v11107 = vcombine.low %v11085, %v11092
    %v11108 = vcombine.low %v11099, %v11106
    %v11110 = vunpack.c.l.s4 1966171168
    %v11111 = vunpack.c.0.s8 %v11110
    %v11112 = vlaneseq
    %v11113 = vshrl.u32 %v11112, 7
    %v11114 = vsub.s32 %v11111, %v11113
    %v11115 = vrot.slane %v11107, %v11114
    %v11117 = vunpack.c.l.s4 1966171168
    %v11118 = vunpack.c.0.s8 %v11117
    %v11119 = vlaneseq
    %v11120 = vshrl.u32 %v11119, 7
    %v11121 = vsub.s32 %v11118, %v11120
    %v11122 = vrot.slane %v11108, %v11121
    %v11123 = vcombine.low %v11115, %v11122
    %v11125 = vmul.f32 %v10921, %v11123
    %v11127 = vlaneseq
    %v11128 = vshrl.u32 %v11127, 7
    %v11129 = vsub.s32 0, %v11128
    %v11130 = vrot.slane %v11125, %v11129
    %v11131 = vlaneseq
    %v11132 = vshrl.u32 %v11131, 7
    %v11133 = vsub.s32 1, %v11132
    %v11134 = vrot.slane %v11125, %v11133
    %v11135 = vlaneseq
    %v11136 = vshrl.u32 %v11135, 7
    %v11137 = vsub.s32 2, %v11136
    %v11138 = vrot.slane %v11125, %v11137
    %v11139 = vlaneseq
    %v11140 = vshrl.u32 %v11139, 7
    %v11141 = vsub.s32 3, %v11140
    %v11142 = vrot.slane %v11125, %v11141
    %v11143 = vlaneseq
    %v11144 = vshrl.u32 %v11143, 7
    %v11145 = vsub.s32 4, %v11144
    %v11146 = vrot.slane %v11125, %v11145
    %v11147 = vlaneseq
    %v11148 = vshrl.u32 %v11147, 7
    %v11149 = vsub.s32 5, %v11148
    %v11150 = vrot.slane %v11125, %v11149
    %v11151 = vlaneseq
    %v11152 = vshrl.u32 %v11151, 7
    %v11153 = vsub.s32 6, %v11152
    %v11154 = vrot.slane %v11125, %v11153
    %v11155 = vlaneseq
    %v11156 = vshrl.u32 %v11155, 7
    %v11157 = vsub.s32 7, %v11156
    %v11158 = vrot.slane %v11125, %v11157
    %v11167 = vmul.f32 %v10971, %v11130
    %v11168 = vmul.f32 %v10972, %v11134
    %v11169 = vmul.f32 %v10973, %v11138
    %v11170 = vmul.f32 %v10974, %v11142
    %v11171 = vmul.f32 %v10975, %v11146
    %v11172 = vmul.f32 %v10976, %v11150
    %v11173 = vmul.f32 %v10977, %v11154
    %v11174 = vmul.f32 %v10978, %v11158
    %v11183 = vcombine.low %v11167, %v11168
    %v11184 = vcombine.low %v11169, %v11170
    %v11185 = vcombine.low %v11171, %v11172
    %v11186 = vcombine.low %v11173, %v11174
    %v11188 = vunpack.c.l.s4 1966171168
    %v11189 = vunpack.c.0.s8 %v11188
    %v11190 = vlaneseq
    %v11191 = vshrl.u32 %v11190, 7
    %v11192 = vsub.s32 %v11189, %v11191
    %v11193 = vrot.slane %v11183, %v11192
    %v11195 = vunpack.c.l.s4 1966171168
    %v11196 = vunpack.c.0.s8 %v11195
    %v11197 = vlaneseq
    %v11198 = vshrl.u32 %v11197, 7
    %v11199 = vsub.s32 %v11196, %v11198
    %v11200 = vrot.slane %v11184, %v11199
    %v11202 = vunpack.c.l.s4 1966171168
    %v11203 = vunpack.c.0.s8 %v11202
    %v11204 = vlaneseq
    %v11205 = vshrl.u32 %v11204, 7
    %v11206 = vsub.s32 %v11203, %v11205
    %v11207 = vrot.slane %v11185, %v11206
    %v11209 = vunpack.c.l.s4 1966171168
    %v11210 = vunpack.c.0.s8 %v11209
    %v11211 = vlaneseq
    %v11212 = vshrl.u32 %v11211, 7
    %v11213 = vsub.s32 %v11210, %v11212
    %v11214 = vrot.slane %v11186, %v11213
    %v11215 = vcombine.low %v11193, %v11200
    %v11216 = vcombine.low %v11207, %v11214
    %v11218 = vunpack.c.l.s4 1966171168
    %v11219 = vunpack.c.0.s8 %v11218
    %v11220 = vlaneseq
    %v11221 = vshrl.u32 %v11220, 7
    %v11222 = vsub.s32 %v11219, %v11221
    %v11223 = vrot.slane %v11215, %v11222
    %v11225 = vunpack.c.l.s4 1966171168
    %v11226 = vunpack.c.0.s8 %v11225
    %v11227 = vlaneseq
    %v11228 = vshrl.u32 %v11227, 7
    %v11229 = vsub.s32 %v11226, %v11228
    %v11230 = vrot.slane %v11216, %v11229
    %v11231 = vcombine.low %v11223, %v11230
    %v11233 = vsub.f32 %v10922, %v11231
    %v11234 = vmul.f32 %v10423, %v11130
    %v11235 = vmul.f32 %v10425, %v11134
    %v11236 = vmul.f32 %v10587, %v11138
    %v11237 = vmul.f32 %v10589, %v11142
    %v11238 = vmul.f32 %v10751, %v11146
    %v11239 = vmul.f32 %v10753, %v11150
    %v11240 = vmul.f32 %v10915, %v11154
    %v11241 = vmul.f32 %v10917, %v11158
    %v11243 = vlaneseq
    %v11244 = vshrl.u32 %v11243, 7
    %v11245 = vsub.s32 0, %v11244
    %v11246 = vrot.slane %v11233, %v11245
    %v11247 = vlaneseq
    %v11248 = vshrl.u32 %v11247, 7
    %v11249 = vsub.s32 1, %v11248
    %v11250 = vrot.slane %v11233, %v11249
    %v11251 = vlaneseq
    %v11252 = vshrl.u32 %v11251, 7
    %v11253 = vsub.s32 2, %v11252
    %v11254 = vrot.slane %v11233, %v11253
    %v11255 = vlaneseq
    %v11256 = vshrl.u32 %v11255, 7
    %v11257 = vsub.s32 3, %v11256
    %v11258 = vrot.slane %v11233, %v11257
    %v11259 = vlaneseq
    %v11260 = vshrl.u32 %v11259, 7
    %v11261 = vsub.s32 4, %v11260
    %v11262 = vrot.slane %v11233, %v11261
    %v11263 = vlaneseq
    %v11264 = vshrl.u32 %v11263, 7
    %v11265 = vsub.s32 5, %v11264
    %v11266 = vrot.slane %v11233, %v11265
    %v11267 = vlaneseq
    %v11268 = vshrl.u32 %v11267, 7
    %v11269 = vsub.s32 6, %v11268
    %v11270 = vrot.slane %v11233, %v11269
    %v11271 = vlaneseq
    %v11272 = vshrl.u32 %v11271, 7
    %v11273 = vsub.s32 7, %v11272
    %v11274 = vrot.slane %v11233, %v11273
    %v11283 = vadd.f32 %v11234, %v11246
    %v11284 = vadd.f32 %v11235, %v11250
    %v11285 = vadd.f32 %v11236, %v11254
    %v11286 = vadd.f32 %v11237, %v11258
    %v11287 = vadd.f32 %v11238, %v11262
    %v11288 = vadd.f32 %v11239, %v11266
    %v11289 = vadd.f32 %v11240, %v11270
    %v11290 = vadd.f32 %v11241, %v11274
    %v11291 = vmax.f32 %v11283, -1.0
    %v11292 = vmax.f32 %v11284, -1.0
    %v11293 = vmax.f32 %v11285, -1.0
    %v11294 = vmax.f32 %v11286, -1.0
    %v11295 = vmax.f32 %v11287, -1.0
    %v11296 = vmax.f32 %v11288, -1.0
    %v11297 = vmax.f32 %v11289, -1.0
    %v11298 = vmax.f32 %v11290, -1.0
    %v11299 = vmin.f32 %v11291, 1.0
    %v11300 = vmin.f32 %v11292, 1.0
    %v11301 = vmin.f32 %v11293, 1.0
    %v11302 = vmin.f32 %v11294, 1.0
    %v11303 = vmin.f32 %v11295, 1.0
    %v11304 = vmin.f32 %v11296, 1.0
    %v11305 = vmin.f32 %v11297, 1.0
    %v11306 = vmin.f32 %v11298, 1.0
    %v11307 = vld [vmem:[#allocation10] sm:$0xff]
    %v11308 = vld [vmem:[#allocation10 + $0x8] sm:$0xff]
    %v11309 = vld [vmem:[#allocation10 + $0x10] sm:$0xff]
    %v11310 = vld [vmem:[#allocation10 + $0x18] sm:$0xff]
    %v11311 = vld [vmem:[#allocation10 + $0x20] sm:$0xff]
    %v11312 = vld [vmem:[#allocation10 + $0x28] sm:$0xff]
    %v11313 = vld [vmem:[#allocation10 + $0x30] sm:$0xff]
    %v11314 = vld [vmem:[#allocation10 + $0x38] sm:$0xff]
    %v11315 = vld [vmem:[#allocation10 + $0x40] sm:$0xff]
    %v11316 = vld [vmem:[#allocation10 + $0x48] sm:$0xff]
    %v11317 = vld [vmem:[#allocation10 + $0x50] sm:$0xff]
    %v11318 = vld [vmem:[#allocation10 + $0x58] sm:$0xff]
    %v11319 = vld [vmem:[#allocation10 + $0x60] sm:$0xff]
    %v11320 = vld [vmem:[#allocation10 + $0x68] sm:$0xff]
    %v11321 = vld [vmem:[#allocation10 + $0x70] sm:$0xff]
    %v11322 = vld [vmem:[#allocation10 + $0x78] sm:$0xff]
    %v11323 = vld [vmem:[#allocation10 + $0x80] sm:$0xff]
    %v11324 = vld [vmem:[#allocation10 + $0x88] sm:$0xff]
    %v11325 = vld [vmem:[#allocation10 + $0x90] sm:$0xff]
    %v11326 = vld [vmem:[#allocation10 + $0x98] sm:$0xff]
    %v11327 = vld [vmem:[#allocation10 + $0xa0] sm:$0xff]
    %v11328 = vld [vmem:[#allocation10 + $0xa8] sm:$0xff]
    %v11329 = vld [vmem:[#allocation10 + $0xb0] sm:$0xff]
    %v11330 = vld [vmem:[#allocation10 + $0xb8] sm:$0xff]
    %v11331 = vld [vmem:[#allocation10 + $0xc0] sm:$0xff]
    %v11332 = vld [vmem:[#allocation10 + $0xc8] sm:$0xff]
    %v11333 = vld [vmem:[#allocation10 + $0xd0] sm:$0xff]
    %v11334 = vld [vmem:[#allocation10 + $0xd8] sm:$0xff]
    %v11335 = vld [vmem:[#allocation10 + $0xe0] sm:$0xff]
    %v11336 = vld [vmem:[#allocation10 + $0xe8] sm:$0xff]
    %v11337 = vld [vmem:[#allocation10 + $0xf0] sm:$0xff]
    %v11338 = vld [vmem:[#allocation10 + $0xf8] sm:$0xff]
    %v11339 = vld [vmem:[#allocation10 + $0x100] sm:$0xff]
    %v11340 = vld [vmem:[#allocation10 + $0x108] sm:$0xff]
    %v11341 = vld [vmem:[#allocation10 + $0x110] sm:$0xff]
    %v11342 = vld [vmem:[#allocation10 + $0x118] sm:$0xff]
    %v11343 = vld [vmem:[#allocation10 + $0x120] sm:$0xff]
    %v11344 = vld [vmem:[#allocation10 + $0x128] sm:$0xff]
    %v11345 = vld [vmem:[#allocation10 + $0x130] sm:$0xff]
    %v11346 = vld [vmem:[#allocation10 + $0x138] sm:$0xff]
    %v11347 = vld [vmem:[#allocation10 + $0x140] sm:$0xff]
    %v11348 = vld [vmem:[#allocation10 + $0x148] sm:$0xff]
    %v11349 = vld [vmem:[#allocation10 + $0x150] sm:$0xff]
    %v11350 = vld [vmem:[#allocation10 + $0x158] sm:$0xff]
    %v11351 = vld [vmem:[#allocation10 + $0x160] sm:$0xff]
    %v11352 = vld [vmem:[#allocation10 + $0x168] sm:$0xff]
    %v11353 = vld [vmem:[#allocation10 + $0x170] sm:$0xff]
    %v11354 = vld [vmem:[#allocation10 + $0x178] sm:$0xff]
    %v11355 = vld [vmem:[#allocation10 + $0x180] sm:$0xff]
    %v11356 = vld [vmem:[#allocation10 + $0x188] sm:$0xff]
    %v11357 = vld [vmem:[#allocation10 + $0x190] sm:$0xff]
    %v11358 = vld [vmem:[#allocation10 + $0x198] sm:$0xff]
    %v11359 = vld [vmem:[#allocation10 + $0x1a0] sm:$0xff]
    %v11360 = vld [vmem:[#allocation10 + $0x1a8] sm:$0xff]
    %v11361 = vld [vmem:[#allocation10 + $0x1b0] sm:$0xff]
    %v11362 = vld [vmem:[#allocation10 + $0x1b8] sm:$0xff]
    %v11363 = vld [vmem:[#allocation10 + $0x1c0] sm:$0xff]
    %v11364 = vld [vmem:[#allocation10 + $0x1c8] sm:$0xff]
    %v11365 = vld [vmem:[#allocation10 + $0x1d0] sm:$0xff]
    %v11366 = vld [vmem:[#allocation10 + $0x1d8] sm:$0xff]
    %v11367 = vld [vmem:[#allocation10 + $0x1e0] sm:$0xff]
    %v11368 = vld [vmem:[#allocation10 + $0x1e8] sm:$0xff]
    %v11369 = vld [vmem:[#allocation10 + $0x1f0] sm:$0xff]
    %v11370 = vld [vmem:[#allocation10 + $0x1f8] sm:$0xff]
    %v11371 = vld [vmem:[#allocation10 + $0x200] sm:$0xff]
    %v11372 = vld [vmem:[#allocation10 + $0x208] sm:$0xff]
    %v11373 = vld [vmem:[#allocation10 + $0x210] sm:$0xff]
    %v11374 = vld [vmem:[#allocation10 + $0x218] sm:$0xff]
    %v11375 = vld [vmem:[#allocation10 + $0x220] sm:$0xff]
    %v11376 = vld [vmem:[#allocation10 + $0x228] sm:$0xff]
    %v11377 = vld [vmem:[#allocation10 + $0x230] sm:$0xff]
    %v11378 = vld [vmem:[#allocation10 + $0x238] sm:$0xff]
    %v11379 = vld [vmem:[#allocation10 + $0x240] sm:$0xff]
    %v11380 = vld [vmem:[#allocation10 + $0x248] sm:$0xff]
    %v11381 = vld [vmem:[#allocation10 + $0x250] sm:$0xff]
    %v11382 = vld [vmem:[#allocation10 + $0x258] sm:$0xff]
    %v11383 = vld [vmem:[#allocation10 + $0x260] sm:$0xff]
    %v11384 = vld [vmem:[#allocation10 + $0x268] sm:$0xff]
    %v11385 = vld [vmem:[#allocation10 + $0x270] sm:$0xff]
    %v11386 = vld [vmem:[#allocation10 + $0x278] sm:$0xff]
    %v11387 = vld [vmem:[#allocation10 + $0x280] sm:$0xff]
    %v11388 = vld [vmem:[#allocation10 + $0x288] sm:$0xff]
    %v11389 = vld [vmem:[#allocation10 + $0x290] sm:$0xff]
    %v11390 = vld [vmem:[#allocation10 + $0x298] sm:$0xff]
    %v11391 = vld [vmem:[#allocation10 + $0x2a0] sm:$0xff]
    %v11392 = vld [vmem:[#allocation10 + $0x2a8] sm:$0xff]
    %v11393 = vld [vmem:[#allocation10 + $0x2b0] sm:$0xff]
    %v11394 = vld [vmem:[#allocation10 + $0x2b8] sm:$0xff]
    %v11395 = vld [vmem:[#allocation10 + $0x2c0] sm:$0xff]
    %v11396 = vld [vmem:[#allocation10 + $0x2c8] sm:$0xff]
    %v11397 = vld [vmem:[#allocation10 + $0x2d0] sm:$0xff]
    %v11398 = vld [vmem:[#allocation10 + $0x2d8] sm:$0xff]
    %v11399 = vld [vmem:[#allocation10 + $0x2e0] sm:$0xff]
    %v11400 = vld [vmem:[#allocation10 + $0x2e8] sm:$0xff]
    %v11401 = vld [vmem:[#allocation10 + $0x2f0] sm:$0xff]
    %v11402 = vld [vmem:[#allocation10 + $0x2f8] sm:$0xff]
    %v11403 = vld [vmem:[#allocation10 + $0x300] sm:$0xff]
    %v11404 = vld [vmem:[#allocation10 + $0x308] sm:$0xff]
    %v11405 = vld [vmem:[#allocation10 + $0x310] sm:$0xff]
    %v11406 = vld [vmem:[#allocation10 + $0x318] sm:$0xff]
    %v11407 = vld [vmem:[#allocation10 + $0x320] sm:$0xff]
    %v11408 = vld [vmem:[#allocation10 + $0x328] sm:$0xff]
    %v11409 = vld [vmem:[#allocation10 + $0x330] sm:$0xff]
    %v11410 = vld [vmem:[#allocation10 + $0x338] sm:$0xff]
    %v11411 = vld [vmem:[#allocation10 + $0x340] sm:$0xff]
    %v11412 = vld [vmem:[#allocation10 + $0x348] sm:$0xff]
    %v11413 = vld [vmem:[#allocation10 + $0x350] sm:$0xff]
    %v11414 = vld [vmem:[#allocation10 + $0x358] sm:$0xff]
    %v11415 = vld [vmem:[#allocation10 + $0x360] sm:$0xff]
    %v11416 = vld [vmem:[#allocation10 + $0x368] sm:$0xff]
    %v11417 = vld [vmem:[#allocation10 + $0x370] sm:$0xff]
    %v11418 = vld [vmem:[#allocation10 + $0x378] sm:$0xff]
    %v11419 = vld [vmem:[#allocation10 + $0x380] sm:$0xff]
    %v11420 = vld [vmem:[#allocation10 + $0x388] sm:$0xff]
    %v11421 = vld [vmem:[#allocation10 + $0x390] sm:$0xff]
    %v11422 = vld [vmem:[#allocation10 + $0x398] sm:$0xff]
    %v11423 = vld [vmem:[#allocation10 + $0x3a0] sm:$0xff]
    %v11424 = vld [vmem:[#allocation10 + $0x3a8] sm:$0xff]
    %v11425 = vld [vmem:[#allocation10 + $0x3b0] sm:$0xff]
    %v11426 = vld [vmem:[#allocation10 + $0x3b8] sm:$0xff]
    %v11427 = vld [vmem:[#allocation10 + $0x3c0] sm:$0xff]
    %v11428 = vld [vmem:[#allocation10 + $0x3c8] sm:$0xff]
    %v11429 = vld [vmem:[#allocation10 + $0x3d0] sm:$0xff]
    %v11430 = vld [vmem:[#allocation10 + $0x3d8] sm:$0xff]
    %v11431 = vld [vmem:[#allocation10 + $0x3e0] sm:$0xff]
    %v11432 = vld [vmem:[#allocation10 + $0x3e8] sm:$0xff]
    %v11433 = vld [vmem:[#allocation10 + $0x3f0] sm:$0xff]
    %v11434 = vld [vmem:[#allocation10 + $0x3f8] sm:$0xff]
    %v11435 = vld [vmem:[#allocation11] sm:$0x1]
    %v11437 = vlaneseq
    %v11438 = vshrl.u32 %v11437, 7
    %v11439 = vsub.s32 0, %v11438
    %v11440 = vrot.slane %v11435, %v11439
    %11442 = vmatprep.subr.mxu0 0.0
    %11443 = vmatpush1.msra.mxu0 %v11307
    %11444 = vmatprep.subr.mxu0 0.0
    %11445 = vmatpush1.msra.mxu0 %v11308
    %11446 = vmatprep.subr.mxu0 0.0
    %11447 = vmatpush1.msra.mxu0 %v11309
    %11448 = vmatprep.subr.mxu0 0.0
    %11449 = vmatpush1.msra.mxu0 %v11310
    %11450 = vmatprep.subr.mxu0 0.0
    %11451 = vmatpush1.msra.mxu0 %v11311
    %11452 = vmatprep.subr.mxu0 0.0
    %11453 = vmatpush1.msra.mxu0 %v11312
    %11454 = vmatprep.subr.mxu0 0.0
    %11455 = vmatpush1.msra.mxu0 %v11313
    %11456 = vmatprep.subr.mxu0 0.0
    %11457 = vmatpush1.msra.mxu0 %v11314
    %11458 = vmatprep.subr.mxu0 0.0
    %11459 = vmatpush1.msra.mxu0 %v11315
    %11460 = vmatprep.subr.mxu0 0.0
    %11461 = vmatpush1.msra.mxu0 %v11316
    %11462 = vmatprep.subr.mxu0 0.0
    %11463 = vmatpush1.msra.mxu0 %v11317
    %11464 = vmatprep.subr.mxu0 0.0
    %11465 = vmatpush1.msra.mxu0 %v11318
    %11466 = vmatprep.subr.mxu0 0.0
    %11467 = vmatpush1.msra.mxu0 %v11319
    %11468 = vmatprep.subr.mxu0 0.0
    %11469 = vmatpush1.msra.mxu0 %v11320
    %11470 = vmatprep.subr.mxu0 0.0
    %11471 = vmatpush1.msra.mxu0 %v11321
    %11472 = vmatprep.subr.mxu0 0.0
    %11473 = vmatpush1.msra.mxu0 %v11322
    %11474 = vmatprep.subr.mxu0 0.0
    %11475 = vmatpush1.msra.mxu0 %v11323
    %11476 = vmatprep.subr.mxu0 0.0
    %11477 = vmatpush1.msra.mxu0 %v11324
    %11478 = vmatprep.subr.mxu0 0.0
    %11479 = vmatpush1.msra.mxu0 %v11325
    %11480 = vmatprep.subr.mxu0 0.0
    %11481 = vmatpush1.msra.mxu0 %v11326
    %11482 = vmatprep.subr.mxu0 0.0
    %11483 = vmatpush1.msra.mxu0 %v11327
    %11484 = vmatprep.subr.mxu0 0.0
    %11485 = vmatpush1.msra.mxu0 %v11328
    %11486 = vmatprep.subr.mxu0 0.0
    %11487 = vmatpush1.msra.mxu0 %v11329
    %11488 = vmatprep.subr.mxu0 0.0
    %11489 = vmatpush1.msra.mxu0 %v11330
    %11490 = vmatprep.subr.mxu0 0.0
    %11491 = vmatpush1.msra.mxu0 %v11331
    %11492 = vmatprep.subr.mxu0 0.0
    %11493 = vmatpush1.msra.mxu0 %v11332
    %11494 = vmatprep.subr.mxu0 0.0
    %11495 = vmatpush1.msra.mxu0 %v11333
    %11496 = vmatprep.subr.mxu0 0.0
    %11497 = vmatpush1.msra.mxu0 %v11334
    %11498 = vmatprep.subr.mxu0 0.0
    %11499 = vmatpush1.msra.mxu0 %v11335
    %11500 = vmatprep.subr.mxu0 0.0
    %11501 = vmatpush1.msra.mxu0 %v11336
    %11502 = vmatprep.subr.mxu0 0.0
    %11503 = vmatpush1.msra.mxu0 %v11337
    %11504 = vmatprep.subr.mxu0 0.0
    %11505 = vmatpush1.msra.mxu0 %v11338
    %11506 = vmatprep.mubr.f32.mxu0 %v11300
    %11507 = vmatmul.mubr.f32.gmra.mrb[0].mxu0 %v11299
    %v11508 = vpop.f32.mrb[0].mxu0
    %v11509 = vadd.f32 %v11440, %v11508
    %v11510 = vpop.f32.mrb[0].mxu0
    %11511 = vdwg.mxu0
    %11512 = vmatprep.subr.mxu0 0.0
    %11513 = vmatpush1.msra.mxu0 %v11339
    %11514 = vmatprep.subr.mxu0 0.0
    %11515 = vmatpush1.msra.mxu0 %v11340
    %11516 = vmatprep.subr.mxu0 0.0
    %11517 = vmatpush1.msra.mxu0 %v11341
    %11518 = vmatprep.subr.mxu0 0.0
    %11519 = vmatpush1.msra.mxu0 %v11342
    %11520 = vmatprep.subr.mxu0 0.0
    %11521 = vmatpush1.msra.mxu0 %v11343
    %11522 = vmatprep.subr.mxu0 0.0
    %11523 = vmatpush1.msra.mxu0 %v11344
    %11524 = vmatprep.subr.mxu0 0.0
    %11525 = vmatpush1.msra.mxu0 %v11345
    %11526 = vmatprep.subr.mxu0 0.0
    %11527 = vmatpush1.msra.mxu0 %v11346
    %11528 = vmatprep.subr.mxu0 0.0
    %11529 = vmatpush1.msra.mxu0 %v11347
    %11530 = vmatprep.subr.mxu0 0.0
    %11531 = vmatpush1.msra.mxu0 %v11348
    %11532 = vmatprep.subr.mxu0 0.0
    %11533 = vmatpush1.msra.mxu0 %v11349
    %11534 = vmatprep.subr.mxu0 0.0
    %11535 = vmatpush1.msra.mxu0 %v11350
    %11536 = vmatprep.subr.mxu0 0.0
    %11537 = vmatpush1.msra.mxu0 %v11351
    %11538 = vmatprep.subr.mxu0 0.0
    %11539 = vmatpush1.msra.mxu0 %v11352
    %11540 = vmatprep.subr.mxu0 0.0
    %11541 = vmatpush1.msra.mxu0 %v11353
    %11542 = vmatprep.subr.mxu0 0.0
    %11543 = vmatpush1.msra.mxu0 %v11354
    %11544 = vmatprep.subr.mxu0 0.0
    %11545 = vmatpush1.msra.mxu0 %v11355
    %11546 = vmatprep.subr.mxu0 0.0
    %11547 = vmatpush1.msra.mxu0 %v11356
    %11548 = vmatprep.subr.mxu0 0.0
    %11549 = vmatpush1.msra.mxu0 %v11357
    %11550 = vmatprep.subr.mxu0 0.0
    %11551 = vmatpush1.msra.mxu0 %v11358
    %11552 = vmatprep.subr.mxu0 0.0
    %11553 = vmatpush1.msra.mxu0 %v11359
    %11554 = vmatprep.subr.mxu0 0.0
    %11555 = vmatpush1.msra.mxu0 %v11360
    %11556 = vmatprep.subr.mxu0 0.0
    %11557 = vmatpush1.msra.mxu0 %v11361
    %11558 = vmatprep.subr.mxu0 0.0
    %11559 = vmatpush1.msra.mxu0 %v11362
    %11560 = vmatprep.subr.mxu0 0.0
    %11561 = vmatpush1.msra.mxu0 %v11363
    %11562 = vmatprep.subr.mxu0 0.0
    %11563 = vmatpush1.msra.mxu0 %v11364
    %11564 = vmatprep.subr.mxu0 0.0
    %11565 = vmatpush1.msra.mxu0 %v11365
    %11566 = vmatprep.subr.mxu0 0.0
    %11567 = vmatpush1.msra.mxu0 %v11366
    %11568 = vmatprep.subr.mxu0 0.0
    %11569 = vmatpush1.msra.mxu0 %v11367
    %11570 = vmatprep.subr.mxu0 0.0
    %11571 = vmatpush1.msra.mxu0 %v11368
    %11572 = vmatprep.subr.mxu0 0.0
    %11573 = vmatpush1.msra.mxu0 %v11369
    %11574 = vmatprep.subr.mxu0 0.0
    %11575 = vmatpush1.msra.mxu0 %v11370
    %11576 = vmatprep.mubr.f32.mxu0 %v11302
    %11577 = vmatmul.mubr.f32.gmra.mrb[0].mxu0 %v11301
    %v11578 = vpop.f32.mrb[0].mxu0
    %v11579 = vadd.f32 %v11509, %v11578
    %v11580 = vpop.f32.mrb[0].mxu0
    %11581 = vdwg.mxu0
    %11582 = vmatprep.subr.mxu0 0.0
    %11583 = vmatpush1.msra.mxu0 %v11371
    %11584 = vmatprep.subr.mxu0 0.0
    %11585 = vmatpush1.msra.mxu0 %v11372
    %11586 = vmatprep.subr.mxu0 0.0
    %11587 = vmatpush1.msra.mxu0 %v11373
    %11588 = vmatprep.subr.mxu0 0.0
    %11589 = vmatpush1.msra.mxu0 %v11374
    %11590 = vmatprep.subr.mxu0 0.0
    %11591 = vmatpush1.msra.mxu0 %v11375
    %11592 = vmatprep.subr.mxu0 0.0
    %11593 = vmatpush1.msra.mxu0 %v11376
    %11594 = vmatprep.subr.mxu0 0.0
    %11595 = vmatpush1.msra.mxu0 %v11377
    %11596 = vmatprep.subr.mxu0 0.0
    %11597 = vmatpush1.msra.mxu0 %v11378
    %11598 = vmatprep.subr.mxu0 0.0
    %11599 = vmatpush1.msra.mxu0 %v11379
    %11600 = vmatprep.subr.mxu0 0.0
    %11601 = vmatpush1.msra.mxu0 %v11380
    %11602 = vmatprep.subr.mxu0 0.0
    %11603 = vmatpush1.msra.mxu0 %v11381
    %11604 = vmatprep.subr.mxu0 0.0
    %11605 = vmatpush1.msra.mxu0 %v11382
    %11606 = vmatprep.subr.mxu0 0.0
    %11607 = vmatpush1.msra.mxu0 %v11383
    %11608 = vmatprep.subr.mxu0 0.0
    %11609 = vmatpush1.msra.mxu0 %v11384
    %11610 = vmatprep.subr.mxu0 0.0
    %11611 = vmatpush1.msra.mxu0 %v11385
    %11612 = vmatprep.subr.mxu0 0.0
    %11613 = vmatpush1.msra.mxu0 %v11386
    %11614 = vmatprep.subr.mxu0 0.0
    %11615 = vmatpush1.msra.mxu0 %v11387
    %11616 = vmatprep.subr.mxu0 0.0
    %11617 = vmatpush1.msra.mxu0 %v11388
    %11618 = vmatprep.subr.mxu0 0.0
    %11619 = vmatpush1.msra.mxu0 %v11389
    %11620 = vmatprep.subr.mxu0 0.0
    %11621 = vmatpush1.msra.mxu0 %v11390
    %11622 = vmatprep.subr.mxu0 0.0
    %11623 = vmatpush1.msra.mxu0 %v11391
    %11624 = vmatprep.subr.mxu0 0.0
    %11625 = vmatpush1.msra.mxu0 %v11392
    %11626 = vmatprep.subr.mxu0 0.0
    %11627 = vmatpush1.msra.mxu0 %v11393
    %11628 = vmatprep.subr.mxu0 0.0
    %11629 = vmatpush1.msra.mxu0 %v11394
    %11630 = vmatprep.subr.mxu0 0.0
    %11631 = vmatpush1.msra.mxu0 %v11395
    %11632 = vmatprep.subr.mxu0 0.0
    %11633 = vmatpush1.msra.mxu0 %v11396
    %11634 = vmatprep.subr.mxu0 0.0
    %11635 = vmatpush1.msra.mxu0 %v11397
    %11636 = vmatprep.subr.mxu0 0.0
    %11637 = vmatpush1.msra.mxu0 %v11398
    %11638 = vmatprep.subr.mxu0 0.0
    %11639 = vmatpush1.msra.mxu0 %v11399
    %11640 = vmatprep.subr.mxu0 0.0
    %11641 = vmatpush1.msra.mxu0 %v11400
    %11642 = vmatprep.subr.mxu0 0.0
    %11643 = vmatpush1.msra.mxu0 %v11401
    %11644 = vmatprep.subr.mxu0 0.0
    %11645 = vmatpush1.msra.mxu0 %v11402
    %11646 = vmatprep.mubr.f32.mxu0 %v11304
    %11647 = vmatmul.mubr.f32.gmra.mrb[0].mxu0 %v11303
    %v11648 = vpop.f32.mrb[0].mxu0
    %v11649 = vadd.f32 %v11579, %v11648
    %v11650 = vpop.f32.mrb[0].mxu0
    %11651 = vdwg.mxu0
    %11652 = vmatprep.subr.mxu0 0.0
    %11653 = vmatpush1.msra.mxu0 %v11403
    %11654 = vmatprep.subr.mxu0 0.0
    %11655 = vmatpush1.msra.mxu0 %v11404
    %11656 = vmatprep.subr.mxu0 0.0
    %11657 = vmatpush1.msra.mxu0 %v11405
    %11658 = vmatprep.subr.mxu0 0.0
    %11659 = vmatpush1.msra.mxu0 %v11406
    %11660 = vmatprep.subr.mxu0 0.0
    %11661 = vmatpush1.msra.mxu0 %v11407
    %11662 = vmatprep.subr.mxu0 0.0
    %11663 = vmatpush1.msra.mxu0 %v11408
    %11664 = vmatprep.subr.mxu0 0.0
    %11665 = vmatpush1.msra.mxu0 %v11409
    %11666 = vmatprep.subr.mxu0 0.0
    %11667 = vmatpush1.msra.mxu0 %v11410
    %11668 = vmatprep.subr.mxu0 0.0
    %11669 = vmatpush1.msra.mxu0 %v11411
    %11670 = vmatprep.subr.mxu0 0.0
    %11671 = vmatpush1.msra.mxu0 %v11412
    %11672 = vmatprep.subr.mxu0 0.0
    %11673 = vmatpush1.msra.mxu0 %v11413
    %11674 = vmatprep.subr.mxu0 0.0
    %11675 = vmatpush1.msra.mxu0 %v11414
    %11676 = vmatprep.subr.mxu0 0.0
    %11677 = vmatpush1.msra.mxu0 %v11415
    %11678 = vmatprep.subr.mxu0 0.0
    %11679 = vmatpush1.msra.mxu0 %v11416
    %11680 = vmatprep.subr.mxu0 0.0
    %11681 = vmatpush1.msra.mxu0 %v11417
    %11682 = vmatprep.subr.mxu0 0.0
    %11683 = vmatpush1.msra.mxu0 %v11418
    %11684 = vmatprep.subr.mxu0 0.0
    %11685 = vmatpush1.msra.mxu0 %v11419
    %11686 = vmatprep.subr.mxu0 0.0
    %11687 = vmatpush1.msra.mxu0 %v11420
    %11688 = vmatprep.subr.mxu0 0.0
    %11689 = vmatpush1.msra.mxu0 %v11421
    %11690 = vmatprep.subr.mxu0 0.0
    %11691 = vmatpush1.msra.mxu0 %v11422
    %11692 = vmatprep.subr.mxu0 0.0
    %11693 = vmatpush1.msra.mxu0 %v11423
    %11694 = vmatprep.subr.mxu0 0.0
    %11695 = vmatpush1.msra.mxu0 %v11424
    %11696 = vmatprep.subr.mxu0 0.0
    %11697 = vmatpush1.msra.mxu0 %v11425
    %11698 = vmatprep.subr.mxu0 0.0
    %11699 = vmatpush1.msra.mxu0 %v11426
    %11700 = vmatprep.subr.mxu0 0.0
    %11701 = vmatpush1.msra.mxu0 %v11427
    %11702 = vmatprep.subr.mxu0 0.0
    %11703 = vmatpush1.msra.mxu0 %v11428
    %11704 = vmatprep.subr.mxu0 0.0
    %11705 = vmatpush1.msra.mxu0 %v11429
    %11706 = vmatprep.subr.mxu0 0.0
    %11707 = vmatpush1.msra.mxu0 %v11430
    %11708 = vmatprep.subr.mxu0 0.0
    %11709 = vmatpush1.msra.mxu0 %v11431
    %11710 = vmatprep.subr.mxu0 0.0
    %11711 = vmatpush1.msra.mxu0 %v11432
    %11712 = vmatprep.subr.mxu0 0.0
    %11713 = vmatpush1.msra.mxu0 %v11433
    %11714 = vmatprep.subr.mxu0 0.0
    %11715 = vmatpush1.msra.mxu0 %v11434
    %11716 = vmatprep.mubr.f32.mxu0 %v11306
    %11717 = vmatmul.mubr.f32.gmra.mrb[0].mxu0 %v11305
    %v11718 = vpop.f32.mrb[0].mxu0
    %v11719 = vadd.f32 %v11649, %v11718
    %v11720 = vpop.f32.mrb[0].mxu0
    %11721 = vdwg.mxu0
    %11722 = vst [vmem:[#allocation22] sm:$0xff] %v11719
    // Predicated region
    $region98: #{tpu_custom_call.1} parent=1 // pred_check
      _
    $region99: #{tpu_custom_call.1} parent=1 // pred_check_branch
      %11724 = sbr.rel (0) target = $region101
    $region100: #{tpu_custom_call.1} parent=1 // pred_region
      %s11726 = ssub.s32 128, 128
      %11727 = vsyncadd [#allocation4], %s11726
      %s11729 = sshll.u32 [#allocation22], 4
      %s11730 = int_to_ptr.vmem [resolvable:$true] %s11729
      %11732 = dma.vmem_to_hbm [thread:$0]  %s11730, 128, %s12, [#allocation4]
    $region101: #{tpu_custom_call.1} parent=1 // pred_fallthru
      _
    // Predicated region
    $region102: #{tpu_custom_call.1} parent=1 // pred_check
      _
    $region103: #{tpu_custom_call.1} parent=1 // pred_check_branch
      %11734 = sbr.rel (0) target = $region105
    $region104: #{tpu_custom_call.1} parent=1 // pred_region
      %11735 = dma.done [#allocation4], 128
    $region105: #{tpu_custom_call.1} parent=1 // pred_fallthru
      _
    %11736 = vsyncpa [#allocation3], 1
    %11737 = vsyncpa [#allocation6], 1
    %11738 = vsyncpa [#allocation9], 1
    %11739 = vsyncpa [#allocation12], 1
    %11740 = vsyncpa [#allocation15], 1
    %11741 = vsyncpa [#allocation18], 1
    %11742 = vsyncpa [#allocation21], 1
    %11743 = vsyncpa [#allocation4], 1

</llo_original>
